<compile_context>
chip_gen: v6e
topology: v6e:2x2x1
jax: 0.10.0
libtpu: 0.0.40
codegen_flags: <defaults>
</compile_context>

<pallas_src>
import functools

import numpy as np
import jax
import jax.numpy as jnp
from jax.experimental import pallas as pl
from jax.experimental.pallas import tpu as pltpu

LOG_2PI = float(np.log(2.0 * np.pi))
LAYER_SIZES = [(784, 400), (400, 400), (400, 10)]

# --- kernel tiling constants -------------------------------------------------
CK1, N1 = 112, 400                          # layer-1 K-chunk rows, layer-1 n_out
K1C = LAYER_SIZES[0][0] // CK1              # 7 chunks  (= grid size)
CK2, N2 = 80, 400                           # layer-2 K-chunk rows, layer-2 n_out
K2C = LAYER_SIZES[1][0] // CK2              # 5 chunks
K3, N3 = LAYER_SIZES[2]                     # 400, 10

# total number of *true* sampled parameters (weights + biases), for the constant
# terms of the log-likelihoods (padding never contributes).
N_TOTAL = sum(ni * no + no for ni, no in LAYER_SIZES)

# rho whose softplus is exactly 1 (log(e-1)); used to pad the packed bias table
# so padded entries contribute exactly 0 to lp and lq.
RHO_NEUTRAL = float(np.log(np.e - 1.0))
TINY_SIGMA = 1e-30                          # clamp inside log() only


def _softplus(x):
    # numerically stable log(1 + exp(x))  (== F.softplus with default beta)
    return jnp.maximum(x, 0.0) + jnp.log1p(jnp.exp(-jnp.abs(x)))


def _log_sigma(sig):
    # stable log(sigma): softplus underflow cannot produce -inf/NaN in lq
    return jnp.log(jnp.maximum(sig, TINY_SIGMA))


# ----------------------------------------------------------------------------
# Fused, K-pipelined whole-network kernel
#   grid step g (< K1C): layer-1 K-chunk g  (streamed W1 chunk: sample, partial
#                        matmul, elementwise lp/lq accumulation)
#   grid step g (< K2C): also sample layer-2 K-chunk g into VMEM scratch
#   last grid step:      biases, layer-2/3 matmuls, log_softmax, lp/lq finalize
# ----------------------------------------------------------------------------
def fused_bayes_net_kernel(x3_ref, w1mu_ref, w1rho_ref, w1eps_ref,
                           w2mu_ref, w2rho_ref, w2eps_ref,
                           w3_ref, bias_ref,
                           out_ref, lplq_ref,
                           acc1_ref, w2s_ref, accsq_ref, accq_ref,
                           *, sigma_prior):
    g = pl.program_id(0)

    sp = float(sigma_prior)
    neg_half_log2pi = -0.5 * LOG_2PI
    prior_const = neg_half_log2pi - float(np.log(sp))   # per-element prior const
    inv_two_sp2 = 0.5 / (sp * sp)

    # ---------------- init (first grid step) ----------------
    @pl.when(g == 0)
    def _init():
        acc1_ref[...] = jnp.zeros_like(acc1_ref)
        accsq_ref[...] = jnp.zeros_like(accsq_ref)
        accq_ref[...] = jnp.zeros_like(accq_ref)

    # ---------------- layer-1 K-chunk (every grid step) ----------------
    eps1 = w1eps_ref[...]
    sig1 = _softplus(w1rho_ref[...])
    w1c = w1mu_ref[...] + sig1 * eps1                    # (CK1, N1) sampled chunk
    xc = x3_ref[g]                                       # (B, CK1) matching chunk
    acc1_ref[...] += jnp.dot(xc, w1c, preferred_element_type=jnp.float32)
    # elementwise-only accumulation; single cross-lane reduce in the epilogue
    accsq_ref[...] += w1c * w1c
    accq_ref[...] += _log_sigma(sig1) + 0.5 * (eps1 * eps1)

    # ---------------- layer-2 sampling chunk (steps 0..K2C-1) ----------------
    # W2 sampling does not depend on the layer-1 output, so it is spread over the
    # early grid steps (overlapping the streamed DMA) and stored persistently.
    @pl.when(g < K2C)
    def _sample_w2_chunk():
        eps2 = w2eps_ref[...]
        sig2 = _softplus(w2rho_ref[...])
        w2c = w2mu_ref[...] + sig2 * eps2                # (CK2, N2)
        row0 = pl.multiple_of(g * CK2, 8)
        w2s_ref[pl.ds(row0, CK2), :] = w2c
        accsq_ref[0:CK2, :] = accsq_ref[0:CK2, :] + w2c * w2c
        accq_ref[0:CK2, :] = (accq_ref[0:CK2, :]
                              + _log_sigma(sig2) + 0.5 * (eps2 * eps2))

    # ---------------- epilogue (last grid step) ----------------
    @pl.when(g == K1C - 1)
    def _epilogue():
        # bias samples from the packed (9, N1) table; layer-3 rows are padded
        # with neutral values contributing exactly 0 to lp / lq.
        ssq_small = jnp.float32(0.0)
        q_small = jnp.float32(0.0)
        b = []
        for li in range(3):
            r = 3 * li
            bmu = bias_ref[r:r + 1, :]
            brho = bias_ref[r + 1:r + 2, :]
            beps = bias_ref[r + 2:r + 3, :]
            sigb = _softplus(brho)
            bsample = bmu + sigb * beps                  # (1, N1)
            b.append(bsample)
            ssq_small += jnp.sum(bsample * bsample)
            q_small += jnp.sum(_log_sigma(sigb) + 0.5 * (beps * beps))

        # layer-3 weight sample from the packed (3, K3, N3) input
        w3mu, w3rho, w3eps = w3_ref[0], w3_ref[1], w3_ref[2]
        sig3 = _softplus(w3rho)
        w3 = w3mu + sig3 * w3eps                         # (K3, N3)
        ssq_small += jnp.sum(w3 * w3)
        q_small += jnp.sum(_log_sigma(sig3) + 0.5 * (w3eps * w3eps))

        # finish forward: bias+ReLU layer 1, layer-2 matmul on pre-sampled W2,
        # tiny layer 3, fused log_softmax (no extra launches / HBM round trips).
        # TODO(synk): on v7x the EUP-bound lq path could use the bf16 EUP rate;
        # kept f32 here to preserve the 1e-4 tolerance.
        h1 = jnp.maximum(acc1_ref[...] + b[0], 0.0)
        h2 = jnp.maximum(
            jnp.dot(h1, w2s_ref[...], preferred_element_type=jnp.float32) + b[1],
            0.0)
        h3 = jnp.dot(h2, w3, preferred_element_type=jnp.float32) + b[2][:, 0:N3]

        m = jnp.max(h3, axis=1, keepdims=True)
        lse = m + jnp.log(jnp.sum(jnp.exp(h3 - m), axis=1, keepdims=True))
        out_ref[...] = h3 - lse

        # single cross-lane reduction of the elementwise accumulators
        s_sq = jnp.sum(accsq_ref[...]) + ssq_small
        s_q = jnp.sum(accq_ref[...]) + q_small
        #   lp = sum[-0.5 log(2 pi) - log sp - W^2 / (2 sp^2)]
        #   lq = sum[-0.5 log(2 pi) - log sig - 0.5 eps^2]     (W - mu = sig*eps)
        lplq_ref[0] = (jnp.float32(N_TOTAL * prior_const)
                       - s_sq * jnp.float32(inv_two_sp2))
        lplq_ref[1] = jnp.float32(N_TOTAL * neg_half_log2pi) - s_q


# ----------------------------------------------------------------------------
# Wrapper
# ----------------------------------------------------------------------------
def _pad_cols(v, width, fill):
    v = v.astype(jnp.float32)
    pad_w = width - v.shape[1]
    if pad_w == 0:
        return v
    pad = jnp.full((v.shape[0], pad_w), fill, jnp.float32)
    return jnp.concatenate([v, pad], axis=1)


def bayes_net_forward(x, params, eps, sigma_prior=1.0):
    """Returns (log_softmax logits, log_prior_likelihood, log_posterior_likelihood)."""
    # TODO(synk): scale-mixture prior (ratio_prior is not None) not implemented;
    # only the scalar Gaussian prior path of BayesianParameter.sample is covered.
    # TODO(synk): v7x dual-TensorCore split not implemented: a 2-core split of
    # this sequential 3-layer chain needs a cross-core reduction of the partial
    # hidden activations (CMEM/VMEM_SHARED + barrier); kept single-TC.
    # TODO(synk): eps is passed in (bit-matches the JAX reference); in-kernel
    # pltpu.prng_random_bits generation would cut ~1/3 of the streamed bytes.
    # TODO(synk): for production batch sizes add a 'parallel' batch grid axis;
    # at B=2 the MXU is nowhere near the bottleneck.
    B = x.shape[0]
    h = x.reshape(B, -1).astype(jnp.float32)             # x.view(B, -1)
    assert h.shape[1] == LAYER_SIZES[0][0]

    # layer-1 input regrouped by K-chunk so the kernel indexes chunk g on the
    # leading axis instead of dynamically slicing the lane dimension.
    x3 = jnp.transpose(h.reshape(B, K1C, CK1), (1, 0, 2))          # (K1C, B, CK1)

    p1, p2, p3 = params
    e1, e2, e3 = eps

    # pack the 3 tiny layer-3 weight tensors into one input  (1 DMA, not 3)
    w3_pack = jnp.stack([p3["w_mu"].astype(jnp.float32),
                         p3["w_rho"].astype(jnp.float32),
                         e3["w_eps"].astype(jnp.float32)], axis=0)  # (3, K3, N3)

    # pack the 9 bias tensors into one (9, N1) input  (1 DMA, not 9)
    rows = []
    for p, e in zip(params, eps):
        rows.append(_pad_cols(p["b_mu"], N1, 0.0))
        rows.append(_pad_cols(p["b_rho"], N1, RHO_NEUTRAL))
        rows.append(_pad_cols(e["b_eps"], N1, 0.0))
    bias_pack = jnp.concatenate(rows, axis=0)                       # (9, N1)

    kernel = functools.partial(fused_bayes_net_kernel,
                               sigma_prior=float(sigma_prior))

    w1_chunk = lambda g: (g, 0)
    w2_chunk = lambda g: (jnp.minimum(g, K2C - 1), 0)
    resident2 = lambda g: (0, 0)
    resident3 = lambda g: (0, 0, 0)

    logits, lplq = pl.pallas_call(
        kernel,
        grid=(K1C,),
        in_specs=[
            pl.BlockSpec((K1C, B, CK1), resident3),      # x, chunk-major (resident)
            pl.BlockSpec((CK1, N1), w1_chunk),           # w1_mu   (streamed)
            pl.BlockSpec((CK1, N1), w1_chunk),           # w1_rho  (streamed)
            pl.BlockSpec((CK1, N1), w1_chunk),           # w1_eps  (streamed)
            pl.BlockSpec((CK2, N2), w2_chunk),           # w2_mu   (streamed)
            pl.BlockSpec((CK2, N2), w2_chunk),           # w2_rho  (streamed)
            pl.BlockSpec((CK2, N2), w2_chunk),           # w2_eps  (streamed)
            pl.BlockSpec((3, K3, N3), resident3),        # packed layer-3 weights
            pl.BlockSpec((9, N1), resident2),            # packed biases
        ],
        out_specs=(
            pl.BlockSpec((B, N3), resident2),
            pl.BlockSpec((2,), lambda g: (0,),
                         memory_space=pltpu.MemorySpace.SMEM),
        ),
        out_shape=(jax.ShapeDtypeStruct((B, N3), jnp.float32),
                   jax.ShapeDtypeStruct((2,), jnp.float32)),
        scratch_shapes=[
            pltpu.VMEM((B, N1), jnp.float32),                    # layer-1 matmul acc
            pltpu.VMEM((LAYER_SIZES[1][0], N2), jnp.float32),    # sampled W2 (400,400)
            pltpu.VMEM((CK1, N1), jnp.float32),                  # acc: sum W^2
            pltpu.VMEM((CK1, N1), jnp.float32),                  # acc: log(sig)+.5eps^2
        ],
        compiler_params=pltpu.CompilerParams(
            dimension_semantics=("arbitrary",),          # sequential K pipeline
            # ~4 MB live (double-buffered chunks + 640 KB W2 scratch + 2x179 KB
            # accumulators); 32 MiB scoped fits v5e/v6e (128 MiB) and v7x (64 MiB).
            vmem_limit_bytes=32 * 1024 * 1024),
    )(x3, p1["w_mu"], p1["w_rho"], e1["w_eps"],
      p2["w_mu"], p2["w_rho"], e2["w_eps"],
      w3_pack, bias_pack)
    return logits, lplq[0], lplq[1]


# ----------------------------------------------------------------------------
# Parameter / noise init (matches BayesianParameter.__init__ and .sample)
# ----------------------------------------------------------------------------
def init_params(key, initial_rho=-3.0):
    params = []
    for (n_in, n_out) in LAYER_SIZES:
        key, k_w, k_b = jax.random.split(key, 3)
        params.append(dict(
            w_mu=0.1 * jax.random.normal(k_w, (n_in, n_out), jnp.float32),
            w_rho=jnp.full((n_in, n_out), initial_rho, jnp.float32),
            b_mu=0.1 * jax.random.normal(k_b, (1, n_out), jnp.float32),
            b_rho=jnp.full((1, n_out), initial_rho, jnp.float32),
        ))
    return params


def sample_eps(key):
    eps = []
    for (n_in, n_out) in LAYER_SIZES:
        key, k_w, k_b = jax.random.split(key, 3)
        eps.append(dict(
            w_eps=jax.random.normal(k_w, (n_in, n_out), jnp.float32),
            b_eps=jax.random.normal(k_b, (1, n_out), jnp.float32),
        ))
    return eps


# ----------------------------------------------------------------------------
# Pure-JAX reference (mirrors the PyTorch math literally) for verification
# ----------------------------------------------------------------------------
def _ref_forward(x, params, eps, sigma_prior=1.0):
    def log_gauss(v, mu, sigma):
        return -0.5 * LOG_2PI - jnp.log(sigma) - (v - mu) ** 2 / (2.0 * sigma ** 2)

    h = x.reshape(x.shape[0], -1)
    lp = jnp.float32(0.0)
    lq = jnp.float32(0.0)
    for i, (p, e) in enumerate(zip(params, eps)):
        sig_w = jax.nn.softplus(p["w_rho"])
        sig_b = jax.nn.softplus(p["b_rho"])
        W = p["w_mu"] + sig_w * e["w_eps"]
        b = p["b_mu"] + sig_b * e["b_eps"]
        h = h @ W + b
        if i < len(params) - 1:
            h = jax.nn.relu(h)
        lp = lp + jnp.sum(log_gauss(W, 0.0, sigma_prior)) \
                + jnp.sum(log_gauss(b, 0.0, sigma_prior))
        lq = lq + jnp.sum(log_gauss(W, p["w_mu"], sig_w)) \
                + jnp.sum(log_gauss(b, p["b_mu"], sig_b))
    return jax.nn.log_softmax(h, axis=1), lp, lq


if __name__ == "__main__":
    sigma_prior = 1.0
    ratio_prior = None
    initial_rho = -3.0

    key = jax.random.PRNGKey(0)
    k_param, k_eps, k_x = jax.random.split(key, 3)

    params = init_params(k_param, initial_rho=initial_rho)
    eps = sample_eps(k_eps)

    # batch=2 MNIST-shaped input (flattened to 784 inside forward)
    x = jax.random.normal(k_x, (2, 1, 28, 28), jnp.float32)

    fwd = jax.jit(functools.partial(bayes_net_forward, sigma_prior=sigma_prior))
    logits, log_prior_ll, log_post_ll = fwd(x, params, eps)
    jax.block_until_ready((logits, log_prior_ll, log_post_ll))

    # correctness vs. pure-JAX reference of the original PyTorch math
    ref_logits, ref_lp, ref_lq = _ref_forward(x, params, eps, sigma_prior)
    assert logits.shape == (2, 10)
    assert np.allclose(np.asarray(logits), np.asarray(ref_logits), atol=1e-4)
    assert np.allclose(float(log_prior_ll), float(ref_lp), rtol=1e-4)
    assert np.allclose(float(log_post_ll), float(ref_lq), rtol=1e-4)
    # rows of log_softmax must exp-sum to 1
    assert np.allclose(np.exp(np.asarray(logits)).sum(axis=1), 1.0, atol=1e-4)
    assert np.isfinite(float(log_prior_ll)) and np.isfinite(float(log_post_ll))

    print("KERNEL_OK")
</pallas_src>

<mosaic_0001>
module attributes {stable_mosaic.version = 11 : i64} {
  func.func @fused_bayes_net_kernel(%arg0: i32, %arg1: memref<7x2x112xf32, #tpu.memory_space<vmem>>, %arg2: memref<112x400xf32, #tpu.memory_space<vmem>>, %arg3: memref<112x400xf32, #tpu.memory_space<vmem>>, %arg4: memref<112x400xf32, #tpu.memory_space<vmem>>, %arg5: memref<80x400xf32, #tpu.memory_space<vmem>>, %arg6: memref<80x400xf32, #tpu.memory_space<vmem>>, %arg7: memref<80x400xf32, #tpu.memory_space<vmem>>, %arg8: memref<3x400x10xf32, #tpu.memory_space<vmem>>, %arg9: memref<9x400xf32, #tpu.memory_space<vmem>>, %arg10: memref<2x10xf32, #tpu.memory_space<vmem>>, %arg11: memref<2xf32, #tpu.memory_space<smem>>, %arg12: memref<2x400xf32, #tpu.memory_space<vmem>>, %arg13: memref<400x400xf32, #tpu.memory_space<vmem>>, %arg14: memref<112x400xf32, #tpu.memory_space<vmem>>, %arg15: memref<112x400xf32, #tpu.memory_space<vmem>>) attributes {dimension_semantics = [#tpu.dimension_semantics<arbitrary>], iteration_bounds = array<i64: 7>, scalar_prefetch = 0 : i64, scratch_operands = 4 : i64, tpu.core_type = #tpu.core_type<tc>, window_params = [{pipeline_mode = #tpu.pipeline_mode<synchronous>, transform_indices = @transform_0, window_bounds = array<i64: 7, 2, 112>}, {transform_indices = @transform_1, window_bounds = array<i64: 112, 400>}, {transform_indices = @transform_2, window_bounds = array<i64: 112, 400>}, {transform_indices = @transform_3, window_bounds = array<i64: 112, 400>}, {transform_indices = @transform_4, window_bounds = array<i64: 80, 400>}, {transform_indices = @transform_5, window_bounds = array<i64: 80, 400>}, {transform_indices = @transform_6, window_bounds = array<i64: 80, 400>}, {pipeline_mode = #tpu.pipeline_mode<synchronous>, transform_indices = @transform_7, window_bounds = array<i64: 3, 400, 10>}, {pipeline_mode = #tpu.pipeline_mode<synchronous>, transform_indices = @transform_8, window_bounds = array<i64: 9, 400>}, {pipeline_mode = #tpu.pipeline_mode<synchronous>, transform_indices = @transform_9, window_bounds = array<i64: 2, 10>}, {transform_indices = @transform_10, window_bounds = array<i64: 2>}]} {
    %c0_i32 = arith.constant 0 : i32
    %0 = arith.cmpi eq, %arg0, %c0_i32 : i32
    %1 = arith.extui %0 : i1 to i32
    %c0_i32_0 = arith.constant 0 : i32
    %2 = arith.cmpi ne, %1, %c0_i32_0 : i32
    scf.if %2 {
      %cst_26 = arith.constant 0.000000e+00 : f32
      %43 = vector.broadcast %cst_26 : f32 to vector<2x400xf32>
      %c0_27 = arith.constant 0 : index
      %c0_28 = arith.constant 0 : index
      %44 = vector.load %arg12[%c0_27, %c0_28] : memref<2x400xf32, #tpu.memory_space<vmem>>, vector<2x400xf32>
      tpu.vector_store %arg12[%c0_27, %c0_28], %43 {strides = array<i32>} : memref<2x400xf32, #tpu.memory_space<vmem>>, vector<2x400xf32>,
      %cst_29 = arith.constant 0.000000e+00 : f32
      %45 = vector.broadcast %cst_29 : f32 to vector<112x400xf32>
      %c0_30 = arith.constant 0 : index
      %c0_31 = arith.constant 0 : index
      %46 = vector.load %arg14[%c0_30, %c0_31] : memref<112x400xf32, #tpu.memory_space<vmem>>, vector<112x400xf32>
      tpu.vector_store %arg14[%c0_30, %c0_31], %45 {strides = array<i32>} : memref<112x400xf32, #tpu.memory_space<vmem>>, vector<112x400xf32>,
      %cst_32 = arith.constant 0.000000e+00 : f32
      %47 = vector.broadcast %cst_32 : f32 to vector<112x400xf32>
      %c0_33 = arith.constant 0 : index
      %c0_34 = arith.constant 0 : index
      %48 = vector.load %arg15[%c0_33, %c0_34] : memref<112x400xf32, #tpu.memory_space<vmem>>, vector<112x400xf32>
      tpu.vector_store %arg15[%c0_33, %c0_34], %47 {strides = array<i32>} : memref<112x400xf32, #tpu.memory_space<vmem>>, vector<112x400xf32>,
    } else {
    }
    %c0 = arith.constant 0 : index
    %c0_1 = arith.constant 0 : index
    %3 = vector.load %arg4[%c0, %c0_1] : memref<112x400xf32, #tpu.memory_space<vmem>>, vector<112x400xf32>
    %c0_2 = arith.constant 0 : index
    %c0_3 = arith.constant 0 : index
    %4 = vector.load %arg3[%c0_2, %c0_3] : memref<112x400xf32, #tpu.memory_space<vmem>>, vector<112x400xf32>
    %cst = arith.constant 0.000000e+00 : f32
    %5 = vector.broadcast %cst : f32 to vector<112x400xf32>
    %6 = arith.maximumf %4, %5 : vector<112x400xf32>
    %7 = math.absf %4 : vector<112x400xf32>
    %cst_4 = arith.constant 0.000000e+00 : f32
    %8 = vector.broadcast %cst_4 : f32 to vector<112x400xf32>
    %9 = arith.subf %8, %7 : vector<112x400xf32>
    %10 = math.exp %9 : vector<112x400xf32>
    %11 = math.log1p %10 : vector<112x400xf32>
    %12 = arith.addf %6, %11 : vector<112x400xf32>
    %c0_5 = arith.constant 0 : index
    %c0_6 = arith.constant 0 : index
    %13 = vector.load %arg2[%c0_5, %c0_6] : memref<112x400xf32, #tpu.memory_space<vmem>>, vector<112x400xf32>
    %14 = arith.mulf %12, %3 : vector<112x400xf32>
    %15 = arith.addf %13, %14 : vector<112x400xf32>
    %16 = arith.index_cast %arg0 : i32 to index
    %c0_7 = arith.constant 0 : index
    %c0_8 = arith.constant 0 : index
    %17 = vector.load %arg1[%16, %c0_7, %c0_8] : memref<7x2x112xf32, #tpu.memory_space<vmem>>, vector<1x2x112xf32>
    %18 = vector.shape_cast %17 : vector<1x2x112xf32> to vector<2x112xf32>
    %c0_9 = arith.constant 0 : index
    %c0_10 = arith.constant 0 : index
    %19 = vector.load %arg12[%c0_9, %c0_10] : memref<2x400xf32, #tpu.memory_space<vmem>>, vector<2x400xf32>
    %cst_11 = arith.constant dense<0.000000e+00> : vector<2x400xf32>
    %20 = tpu.matmul %18, %15, %cst_11 {dimension_numbers = #tpu.dot_dimension_numbers<[1], [0], [0], [1], [0, 0, 1, 1], [], []>} : vector<2x112xf32>, vector<112x400xf32>, vector<2x400xf32> -> vector<2x400xf32>
    %21 = arith.addf %19, %20 : vector<2x400xf32>
    %c0_12 = arith.constant 0 : index
    %c0_13 = arith.constant 0 : index
    %22 = vector.load %arg12[%c0_12, %c0_13] : memref<2x400xf32, #tpu.memory_space<vmem>>, vector<2x400xf32>
    tpu.vector_store %arg12[%c0_12, %c0_13], %21 {strides = array<i32>} : memref<2x400xf32, #tpu.memory_space<vmem>>, vector<2x400xf32>,
    %c0_14 = arith.constant 0 : index
    %c0_15 = arith.constant 0 : index
    %23 = vector.load %arg14[%c0_14, %c0_15] : memref<112x400xf32, #tpu.memory_space<vmem>>, vector<112x400xf32>
    %24 = arith.mulf %15, %15 : vector<112x400xf32>
    %25 = arith.addf %23, %24 : vector<112x400xf32>
    %c0_16 = arith.constant 0 : index
    %c0_17 = arith.constant 0 : index
    %26 = vector.load %arg14[%c0_16, %c0_17] : memref<112x400xf32, #tpu.memory_space<vmem>>, vector<112x400xf32>
    tpu.vector_store %arg14[%c0_16, %c0_17], %25 {strides = array<i32>} : memref<112x400xf32, #tpu.memory_space<vmem>>, vector<112x400xf32>,
    %c0_18 = arith.constant 0 : index
    %c0_19 = arith.constant 0 : index
    %27 = vector.load %arg15[%c0_18, %c0_19] : memref<112x400xf32, #tpu.memory_space<vmem>>, vector<112x400xf32>
    %cst_20 = arith.constant 1.000000e-30 : f32
    %28 = vector.broadcast %cst_20 : f32 to vector<112x400xf32>
    %29 = arith.maximumf %12, %28 : vector<112x400xf32>
    %30 = math.log %29 : vector<112x400xf32>
    %31 = arith.mulf %3, %3 : vector<112x400xf32>
    %cst_21 = arith.constant 5.000000e-01 : f32
    %32 = vector.broadcast %cst_21 : f32 to vector<112x400xf32>
    %33 = arith.mulf %32, %31 : vector<112x400xf32>
    %34 = arith.addf %30, %33 : vector<112x400xf32>
    %35 = arith.addf %27, %34 : vector<112x400xf32>
    %c0_22 = arith.constant 0 : index
    %c0_23 = arith.constant 0 : index
    %36 = vector.load %arg15[%c0_22, %c0_23] : memref<112x400xf32, #tpu.memory_space<vmem>>, vector<112x400xf32>
    tpu.vector_store %arg15[%c0_22, %c0_23], %35 {strides = array<i32>} : memref<112x400xf32, #tpu.memory_space<vmem>>, vector<112x400xf32>,
    %c5_i32 = arith.constant 5 : i32
    %37 = arith.cmpi slt, %arg0, %c5_i32 : i32
    %38 = arith.extui %37 : i1 to i32
    %c0_i32_24 = arith.constant 0 : i32
    %39 = arith.cmpi ne, %38, %c0_i32_24 : i32
    scf.if %39 {
      %c0_26 = arith.constant 0 : index
      %c0_27 = arith.constant 0 : index
      %43 = vector.load %arg7[%c0_26, %c0_27] : memref<80x400xf32, #tpu.memory_space<vmem>>, vector<80x400xf32>
      %c0_28 = arith.constant 0 : index
      %c0_29 = arith.constant 0 : index
      %44 = vector.load %arg6[%c0_28, %c0_29] : memref<80x400xf32, #tpu.memory_space<vmem>>, vector<80x400xf32>
      %cst_30 = arith.constant 0.000000e+00 : f32
      %45 = vector.broadcast %cst_30 : f32 to vector<80x400xf32>
      %46 = arith.maximumf %44, %45 : vector<80x400xf32>
      %47 = math.absf %44 : vector<80x400xf32>
      %cst_31 = arith.constant 0.000000e+00 : f32
      %48 = vector.broadcast %cst_31 : f32 to vector<80x400xf32>
      %49 = arith.subf %48, %47 : vector<80x400xf32>
      %50 = math.exp %49 : vector<80x400xf32>
      %51 = math.log1p %50 : vector<80x400xf32>
      %52 = arith.addf %46, %51 : vector<80x400xf32>
      %c0_32 = arith.constant 0 : index
      %c0_33 = arith.constant 0 : index
      %53 = vector.load %arg5[%c0_32, %c0_33] : memref<80x400xf32, #tpu.memory_space<vmem>>, vector<80x400xf32>
      %54 = arith.mulf %52, %43 : vector<80x400xf32>
      %55 = arith.addf %53, %54 : vector<80x400xf32>
      %c80_i32 = arith.constant 80 : i32
      %56 = arith.muli %arg0, %c80_i32 : i32
      %57 = tpu.assume_multiple %56, 8 : i32
      %58 = arith.index_cast %57 : i32 to index
      %c0_34 = arith.constant 0 : index
      %59 = vector.load %arg13[%58, %c0_34] : memref<400x400xf32, #tpu.memory_space<vmem>>, vector<80x400xf32>
      tpu.vector_store %arg13[%58, %c0_34], %55 {strides = array<i32>} : memref<400x400xf32, #tpu.memory_space<vmem>>, vector<80x400xf32>,
      %c0_35 = arith.constant 0 : index
      %c0_36 = arith.constant 0 : index
      %60 = vector.load %arg14[%c0_35, %c0_36] : memref<112x400xf32, #tpu.memory_space<vmem>>, vector<80x400xf32>
      %61 = arith.mulf %55, %55 : vector<80x400xf32>
      %62 = arith.addf %60, %61 : vector<80x400xf32>
      %c0_37 = arith.constant 0 : index
      %c0_38 = arith.constant 0 : index
      %63 = vector.load %arg14[%c0_37, %c0_38] : memref<112x400xf32, #tpu.memory_space<vmem>>, vector<80x400xf32>
      tpu.vector_store %arg14[%c0_37, %c0_38], %62 {strides = array<i32>} : memref<112x400xf32, #tpu.memory_space<vmem>>, vector<80x400xf32>,
      %c0_39 = arith.constant 0 : index
      %c0_40 = arith.constant 0 : index
      %64 = vector.load %arg15[%c0_39, %c0_40] : memref<112x400xf32, #tpu.memory_space<vmem>>, vector<80x400xf32>
      %cst_41 = arith.constant 1.000000e-30 : f32
      %65 = vector.broadcast %cst_41 : f32 to vector<80x400xf32>
      %66 = arith.maximumf %52, %65 : vector<80x400xf32>
      %67 = math.log %66 : vector<80x400xf32>
      %68 = arith.addf %64, %67 : vector<80x400xf32>
      %69 = arith.mulf %43, %43 : vector<80x400xf32>
      %cst_42 = arith.constant 5.000000e-01 : f32
      %70 = vector.broadcast %cst_42 : f32 to vector<80x400xf32>
      %71 = arith.mulf %70, %69 : vector<80x400xf32>
      %72 = arith.addf %68, %71 : vector<80x400xf32>
      %c0_43 = arith.constant 0 : index
      %c0_44 = arith.constant 0 : index
      %73 = vector.load %arg15[%c0_43, %c0_44] : memref<112x400xf32, #tpu.memory_space<vmem>>, vector<80x400xf32>
      tpu.vector_store %arg15[%c0_43, %c0_44], %72 {strides = array<i32>} : memref<112x400xf32, #tpu.memory_space<vmem>>, vector<80x400xf32>,
    } else {
    }
    %c6_i32 = arith.constant 6 : i32
    %40 = arith.cmpi eq, %arg0, %c6_i32 : i32
    %41 = arith.extui %40 : i1 to i32
    %c0_i32_25 = arith.constant 0 : i32
    %42 = arith.cmpi ne, %41, %c0_i32_25 : i32
    scf.if %42 {
      %c0_26 = arith.constant 0 : index
      %c0_27 = arith.constant 0 : index
      %43 = vector.load %arg9[%c0_26, %c0_27] : memref<9x400xf32, #tpu.memory_space<vmem>>, vector<1x400xf32>
      %c1 = arith.constant 1 : index
      %c0_28 = arith.constant 0 : index
      %44 = vector.load %arg9[%c1, %c0_28] : memref<9x400xf32, #tpu.memory_space<vmem>>, vector<1x400xf32>
      %c2 = arith.constant 2 : index
      %c0_29 = arith.constant 0 : index
      %45 = vector.load %arg9[%c2, %c0_29] : memref<9x400xf32, #tpu.memory_space<vmem>>, vector<1x400xf32>
      %cst_30 = arith.constant 0.000000e+00 : f32
      %46 = vector.broadcast %cst_30 : f32 to vector<1x400xf32>
      %47 = arith.maximumf %44, %46 : vector<1x400xf32>
      %48 = math.absf %44 : vector<1x400xf32>
      %cst_31 = arith.constant 0.000000e+00 : f32
      %49 = vector.broadcast %cst_31 : f32 to vector<1x400xf32>
      %50 = arith.subf %49, %48 : vector<1x400xf32>
      %51 = math.exp %50 : vector<1x400xf32>
      %52 = math.log1p %51 : vector<1x400xf32>
      %53 = arith.addf %47, %52 : vector<1x400xf32>
      %54 = arith.mulf %53, %45 : vector<1x400xf32>
      %55 = arith.addf %43, %54 : vector<1x400xf32>
      %56 = arith.mulf %55, %55 : vector<1x400xf32>
      %57 = vector.shape_cast %56 : vector<1x400xf32> to vector<1x1x400xf32>
      %cst_32 = arith.constant dense<0.000000e+00> : vector<1xf32>
      %58 = vector.multi_reduction <add>, %57, %cst_32 [1, 2] : vector<1x1x400xf32> to vector<1xf32>
      %59 = vector.shape_cast %58 : vector<1xf32> to vector<1x1x1xf32>
      %60 = vector.extract %59[0, 0, 0] : f32 from vector<1x1x1xf32>
      %cst_33 = arith.constant 0.000000e+00 : f32
      %61 = arith.addf %cst_33, %60 : f32
      %cst_34 = arith.constant 1.000000e-30 : f32
      %62 = vector.broadcast %cst_34 : f32 to vector<1x400xf32>
      %63 = arith.maximumf %53, %62 : vector<1x400xf32>
      %64 = math.log %63 : vector<1x400xf32>
      %65 = arith.mulf %45, %45 : vector<1x400xf32>
      %cst_35 = arith.constant 5.000000e-01 : f32
      %66 = vector.broadcast %cst_35 : f32 to vector<1x400xf32>
      %67 = arith.mulf %66, %65 : vector<1x400xf32>
      %68 = arith.addf %64, %67 : vector<1x400xf32>
      %69 = vector.shape_cast %68 : vector<1x400xf32> to vector<1x1x400xf32>
      %cst_36 = arith.constant dense<0.000000e+00> : vector<1xf32>
      %70 = vector.multi_reduction <add>, %69, %cst_36 [1, 2] : vector<1x1x400xf32> to vector<1xf32>
      %71 = vector.shape_cast %70 : vector<1xf32> to vector<1x1x1xf32>
      %72 = vector.extract %71[0, 0, 0] : f32 from vector<1x1x1xf32>
      %cst_37 = arith.constant 0.000000e+00 : f32
      %73 = arith.addf %cst_37, %72 : f32
      %c3 = arith.constant 3 : index
      %c0_38 = arith.constant 0 : index
      %74 = vector.load %arg9[%c3, %c0_38] : memref<9x400xf32, #tpu.memory_space<vmem>>, vector<1x400xf32>
      %c4 = arith.constant 4 : index
      %c0_39 = arith.constant 0 : index
      %75 = vector.load %arg9[%c4, %c0_39] : memref<9x400xf32, #tpu.memory_space<vmem>>, vector<1x400xf32>
      %c5 = arith.constant 5 : index
      %c0_40 = arith.constant 0 : index
      %76 = vector.load %arg9[%c5, %c0_40] : memref<9x400xf32, #tpu.memory_space<vmem>>, vector<1x400xf32>
      %cst_41 = arith.constant 0.000000e+00 : f32
      %77 = vector.broadcast %cst_41 : f32 to vector<1x400xf32>
      %78 = arith.maximumf %75, %77 : vector<1x400xf32>
      %79 = math.absf %75 : vector<1x400xf32>
      %cst_42 = arith.constant 0.000000e+00 : f32
      %80 = vector.broadcast %cst_42 : f32 to vector<1x400xf32>
      %81 = arith.subf %80, %79 : vector<1x400xf32>
      %82 = math.exp %81 : vector<1x400xf32>
      %83 = math.log1p %82 : vector<1x400xf32>
      %84 = arith.addf %78, %83 : vector<1x400xf32>
      %85 = arith.mulf %84, %76 : vector<1x400xf32>
      %86 = arith.addf %74, %85 : vector<1x400xf32>
      %87 = arith.mulf %86, %86 : vector<1x400xf32>
      %88 = vector.shape_cast %87 : vector<1x400xf32> to vector<1x1x400xf32>
      %cst_43 = arith.constant dense<0.000000e+00> : vector<1xf32>
      %89 = vector.multi_reduction <add>, %88, %cst_43 [1, 2] : vector<1x1x400xf32> to vector<1xf32>
      %90 = vector.shape_cast %89 : vector<1xf32> to vector<1x1x1xf32>
      %91 = vector.extract %90[0, 0, 0] : f32 from vector<1x1x1xf32>
      %92 = arith.addf %61, %91 : f32
      %cst_44 = arith.constant 1.000000e-30 : f32
      %93 = vector.broadcast %cst_44 : f32 to vector<1x400xf32>
      %94 = arith.maximumf %84, %93 : vector<1x400xf32>
      %95 = math.log %94 : vector<1x400xf32>
      %96 = arith.mulf %76, %76 : vector<1x400xf32>
      %cst_45 = arith.constant 5.000000e-01 : f32
      %97 = vector.broadcast %cst_45 : f32 to vector<1x400xf32>
      %98 = arith.mulf %97, %96 : vector<1x400xf32>
      %99 = arith.addf %95, %98 : vector<1x400xf32>
      %100 = vector.shape_cast %99 : vector<1x400xf32> to vector<1x1x400xf32>
      %cst_46 = arith.constant dense<0.000000e+00> : vector<1xf32>
      %101 = vector.multi_reduction <add>, %100, %cst_46 [1, 2] : vector<1x1x400xf32> to vector<1xf32>
      %102 = vector.shape_cast %101 : vector<1xf32> to vector<1x1x1xf32>
      %103 = vector.extract %102[0, 0, 0] : f32 from vector<1x1x1xf32>
      %104 = arith.addf %73, %103 : f32
      %c6 = arith.constant 6 : index
      %c0_47 = arith.constant 0 : index
      %105 = vector.load %arg9[%c6, %c0_47] : memref<9x400xf32, #tpu.memory_space<vmem>>, vector<1x400xf32>
      %c7 = arith.constant 7 : index
      %c0_48 = arith.constant 0 : index
      %106 = vector.load %arg9[%c7, %c0_48] : memref<9x400xf32, #tpu.memory_space<vmem>>, vector<1x400xf32>
      %c8 = arith.constant 8 : index
      %c0_49 = arith.constant 0 : index
      %107 = vector.load %arg9[%c8, %c0_49] : memref<9x400xf32, #tpu.memory_space<vmem>>, vector<1x400xf32>
      %cst_50 = arith.constant 0.000000e+00 : f32
      %108 = vector.broadcast %cst_50 : f32 to vector<1x400xf32>
      %109 = arith.maximumf %106, %108 : vector<1x400xf32>
      %110 = math.absf %106 : vector<1x400xf32>
      %cst_51 = arith.constant 0.000000e+00 : f32
      %111 = vector.broadcast %cst_51 : f32 to vector<1x400xf32>
      %112 = arith.subf %111, %110 : vector<1x400xf32>
      %113 = math.exp %112 : vector<1x400xf32>
      %114 = math.log1p %113 : vector<1x400xf32>
      %115 = arith.addf %109, %114 : vector<1x400xf32>
      %116 = arith.mulf %115, %107 : vector<1x400xf32>
      %117 = arith.addf %105, %116 : vector<1x400xf32>
      %118 = arith.mulf %117, %117 : vector<1x400xf32>
      %119 = vector.shape_cast %118 : vector<1x400xf32> to vector<1x1x400xf32>
      %cst_52 = arith.constant dense<0.000000e+00> : vector<1xf32>
      %120 = vector.multi_reduction <add>, %119, %cst_52 [1, 2] : vector<1x1x400xf32> to vector<1xf32>
      %121 = vector.shape_cast %120 : vector<1xf32> to vector<1x1x1xf32>
      %122 = vector.extract %121[0, 0, 0] : f32 from vector<1x1x1xf32>
      %123 = arith.addf %92, %122 : f32
      %cst_53 = arith.constant 1.000000e-30 : f32
      %124 = vector.broadcast %cst_53 : f32 to vector<1x400xf32>
      %125 = arith.maximumf %115, %124 : vector<1x400xf32>
      %126 = math.log %125 : vector<1x400xf32>
      %127 = arith.mulf %107, %107 : vector<1x400xf32>
      %cst_54 = arith.constant 5.000000e-01 : f32
      %128 = vector.broadcast %cst_54 : f32 to vector<1x400xf32>
      %129 = arith.mulf %128, %127 : vector<1x400xf32>
      %130 = arith.addf %126, %129 : vector<1x400xf32>
      %131 = vector.shape_cast %130 : vector<1x400xf32> to vector<1x1x400xf32>
      %cst_55 = arith.constant dense<0.000000e+00> : vector<1xf32>
      %132 = vector.multi_reduction <add>, %131, %cst_55 [1, 2] : vector<1x1x400xf32> to vector<1xf32>
      %133 = vector.shape_cast %132 : vector<1xf32> to vector<1x1x1xf32>
      %134 = vector.extract %133[0, 0, 0] : f32 from vector<1x1x1xf32>
      %135 = arith.addf %104, %134 : f32
      %c0_56 = arith.constant 0 : index
      %c0_57 = arith.constant 0 : index
      %c0_58 = arith.constant 0 : index
      %136 = vector.load %arg8[%c0_56, %c0_57, %c0_58] : memref<3x400x10xf32, #tpu.memory_space<vmem>>, vector<1x400x10xf32>
      %137 = vector.shape_cast %136 : vector<1x400x10xf32> to vector<400x10xf32>
      %c1_59 = arith.constant 1 : index
      %c0_60 = arith.constant 0 : index
      %c0_61 = arith.constant 0 : index
      %138 = vector.load %arg8[%c1_59, %c0_60, %c0_61] : memref<3x400x10xf32, #tpu.memory_space<vmem>>, vector<1x400x10xf32>
      %139 = vector.shape_cast %138 : vector<1x400x10xf32> to vector<400x10xf32>
      %c2_62 = arith.constant 2 : index
      %c0_63 = arith.constant 0 : index
      %c0_64 = arith.constant 0 : index
      %140 = vector.load %arg8[%c2_62, %c0_63, %c0_64] : memref<3x400x10xf32, #tpu.memory_space<vmem>>, vector<1x400x10xf32>
      %141 = vector.shape_cast %140 : vector<1x400x10xf32> to vector<400x10xf32>
      %cst_65 = arith.constant 0.000000e+00 : f32
      %142 = vector.broadcast %cst_65 : f32 to vector<400x10xf32>
      %143 = arith.maximumf %139, %142 : vector<400x10xf32>
      %144 = math.absf %139 : vector<400x10xf32>
      %cst_66 = arith.constant 0.000000e+00 : f32
      %145 = vector.broadcast %cst_66 : f32 to vector<400x10xf32>
      %146 = arith.subf %145, %144 : vector<400x10xf32>
      %147 = math.exp %146 : vector<400x10xf32>
      %148 = math.log1p %147 : vector<400x10xf32>
      %149 = arith.addf %143, %148 : vector<400x10xf32>
      %150 = arith.mulf %149, %141 : vector<400x10xf32>
      %151 = arith.addf %137, %150 : vector<400x10xf32>
      %152 = arith.mulf %151, %151 : vector<400x10xf32>
      %153 = vector.shape_cast %152 : vector<400x10xf32> to vector<1x400x10xf32>
      %cst_67 = arith.constant dense<0.000000e+00> : vector<1xf32>
      %154 = vector.multi_reduction <add>, %153, %cst_67 [1, 2] : vector<1x400x10xf32> to vector<1xf32>
      %155 = vector.shape_cast %154 : vector<1xf32> to vector<1x1x1xf32>
      %156 = vector.extract %155[0, 0, 0] : f32 from vector<1x1x1xf32>
      %157 = arith.addf %123, %156 : f32
      %cst_68 = arith.constant 1.000000e-30 : f32
      %158 = vector.broadcast %cst_68 : f32 to vector<400x10xf32>
      %159 = arith.maximumf %149, %158 : vector<400x10xf32>
      %160 = math.log %159 : vector<400x10xf32>
      %161 = arith.mulf %141, %141 : vector<400x10xf32>
      %cst_69 = arith.constant 5.000000e-01 : f32
      %162 = vector.broadcast %cst_69 : f32 to vector<400x10xf32>
      %163 = arith.mulf %162, %161 : vector<400x10xf32>
      %164 = arith.addf %160, %163 : vector<400x10xf32>
      %165 = vector.shape_cast %164 : vector<400x10xf32> to vector<1x400x10xf32>
      %cst_70 = arith.constant dense<0.000000e+00> : vector<1xf32>
      %166 = vector.multi_reduction <add>, %165, %cst_70 [1, 2] : vector<1x400x10xf32> to vector<1xf32>
      %167 = vector.shape_cast %166 : vector<1xf32> to vector<1x1x1xf32>
      %168 = vector.extract %167[0, 0, 0] : f32 from vector<1x1x1xf32>
      %169 = arith.addf %135, %168 : f32
      %c0_71 = arith.constant 0 : index
      %c0_72 = arith.constant 0 : index
      %170 = vector.load %arg12[%c0_71, %c0_72] : memref<2x400xf32, #tpu.memory_space<vmem>>, vector<2x400xf32>
      %171 = vector.broadcast %55 : vector<1x400xf32> to vector<2x400xf32>
      %172 = arith.addf %170, %171 : vector<2x400xf32>
      %cst_73 = arith.constant 0.000000e+00 : f32
      %173 = vector.broadcast %cst_73 : f32 to vector<2x400xf32>
      %174 = arith.maximumf %172, %173 : vector<2x400xf32>
      %c0_74 = arith.constant 0 : index
      %c0_75 = arith.constant 0 : index
      %175 = vector.load %arg13[%c0_74, %c0_75] : memref<400x400xf32, #tpu.memory_space<vmem>>, vector<400x400xf32>
      %cst_76 = arith.constant dense<0.000000e+00> : vector<2x400xf32>
      %176 = tpu.matmul %174, %175, %cst_76 {dimension_numbers = #tpu.dot_dimension_numbers<[1], [0], [0], [1], [0, 0, 1, 1], [], []>} : vector<2x400xf32>, vector<400x400xf32>, vector<2x400xf32> -> vector<2x400xf32>
      %177 = vector.broadcast %86 : vector<1x400xf32> to vector<2x400xf32>
      %178 = arith.addf %176, %177 : vector<2x400xf32>
      %cst_77 = arith.constant 0.000000e+00 : f32
      %179 = vector.broadcast %cst_77 : f32 to vector<2x400xf32>
      %180 = arith.maximumf %178, %179 : vector<2x400xf32>
      %cst_78 = arith.constant dense<0.000000e+00> : vector<2x10xf32>
      %181 = tpu.matmul %180, %151, %cst_78 {dimension_numbers = #tpu.dot_dimension_numbers<[1], [0], [0], [1], [0, 0, 1, 1], [], []>} : vector<2x400xf32>, vector<400x10xf32>, vector<2x10xf32> -> vector<2x10xf32>
      %182 = vector.extract_strided_slice %117 {offsets = [0, 0], sizes = [1, 10], strides = [1, 1]} : vector<1x400xf32> to vector<1x10xf32>
      %183 = vector.broadcast %182 : vector<1x10xf32> to vector<2x10xf32>
      %184 = arith.addf %181, %183 : vector<2x10xf32>
      %cst_79 = arith.constant dense<0xFF800000> : vector<2xf32>
      %185 = vector.multi_reduction <maximumf>, %184, %cst_79 [1] : vector<2x10xf32> to vector<2xf32>
      %186 = vector.shape_cast %185 : vector<2xf32> to vector<2x1xf32>
      %187 = vector.broadcast %186 : vector<2x1xf32> to vector<2x10xf32>
      %188 = arith.subf %184, %187 : vector<2x10xf32>
      %189 = math.exp %188 : vector<2x10xf32>
      %cst_80 = arith.constant dense<0.000000e+00> : vector<2xf32>
      %190 = vector.multi_reduction <add>, %189, %cst_80 [1] : vector<2x10xf32> to vector<2xf32>
      %191 = vector.shape_cast %190 : vector<2xf32> to vector<2x1xf32>
      %192 = math.log %191 : vector<2x1xf32>
      %193 = arith.addf %186, %192 : vector<2x1xf32>
      %194 = vector.broadcast %193 : vector<2x1xf32> to vector<2x10xf32>
      %195 = arith.subf %184, %194 : vector<2x10xf32>
      %c0_81 = arith.constant 0 : index
      %c0_82 = arith.constant 0 : index
      %196 = vector.load %arg10[%c0_81, %c0_82] : memref<2x10xf32, #tpu.memory_space<vmem>>, vector<2x10xf32>
      tpu.vector_store %arg10[%c0_81, %c0_82], %195 {strides = array<i32>} : memref<2x10xf32, #tpu.memory_space<vmem>>, vector<2x10xf32>,
      %c0_83 = arith.constant 0 : index
      %c0_84 = arith.constant 0 : index
      %197 = vector.load %arg14[%c0_83, %c0_84] : memref<112x400xf32, #tpu.memory_space<vmem>>, vector<112x400xf32>
      %198 = vector.shape_cast %197 : vector<112x400xf32> to vector<1x112x400xf32>
      %cst_85 = arith.constant dense<0.000000e+00> : vector<1xf32>
      %199 = vector.multi_reduction <add>, %198, %cst_85 [1, 2] : vector<1x112x400xf32> to vector<1xf32>
      %200 = vector.shape_cast %199 : vector<1xf32> to vector<1x1x1xf32>
      %201 = vector.extract %200[0, 0, 0] : f32 from vector<1x1x1xf32>
      %202 = arith.addf %201, %157 : f32
      %c0_86 = arith.constant 0 : index
      %c0_87 = arith.constant 0 : index
      %203 = vector.load %arg15[%c0_86, %c0_87] : memref<112x400xf32, #tpu.memory_space<vmem>>, vector<112x400xf32>
      %204 = vector.shape_cast %203 : vector<112x400xf32> to vector<1x112x400xf32>
      %cst_88 = arith.constant dense<0.000000e+00> : vector<1xf32>
      %205 = vector.multi_reduction <add>, %204, %cst_88 [1, 2] : vector<1x112x400xf32> to vector<1xf32>
      %206 = vector.shape_cast %205 : vector<1xf32> to vector<1x1x1xf32>
      %207 = vector.extract %206[0, 0, 0] : f32 from vector<1x1x1xf32>
      %208 = arith.addf %207, %169 : f32
      %cst_89 = arith.constant 5.000000e-01 : f32
      %209 = arith.mulf %202, %cst_89 : f32
      %cst_90 = arith.constant -439629.375 : f32
      %210 = arith.subf %cst_90, %209 : f32
      %c0_91 = arith.constant 0 : index
      %211 = memref.load %arg11[%c0_91] : memref<2xf32, #tpu.memory_space<smem>>
      memref.store %210, %arg11[%c0_91] : memref<2xf32, #tpu.memory_space<smem>>
      %cst_92 = arith.constant -439629.375 : f32
      %212 = arith.subf %cst_92, %208 : f32
      %c1_93 = arith.constant 1 : index
      %213 = memref.load %arg11[%c1_93] : memref<2xf32, #tpu.memory_space<smem>>
      memref.store %212, %arg11[%c1_93] : memref<2xf32, #tpu.memory_space<smem>>
    } else {
    }
    return
  }
  func.func @transform_0(%arg0: i32) -> (i32, i32, i32) {
    %c0_i32 = arith.constant 0 : i32
    %c0_i32_0 = arith.constant 0 : i32
    %c0_i32_1 = arith.constant 0 : i32
    %c0_i32_2 = arith.constant 0 : i32
    return %c0_i32, %c0_i32_0, %c0_i32_1 : i32, i32, i32
  }
  func.func @transform_1(%arg0: i32) -> (i32, i32) {
    %c0_i32 = arith.constant 0 : i32
    %c0_i32_0 = arith.constant 0 : i32
    return %arg0, %c0_i32 : i32, i32
  }
  func.func @transform_2(%arg0: i32) -> (i32, i32) {
    %c0_i32 = arith.constant 0 : i32
    %c0_i32_0 = arith.constant 0 : i32
    return %arg0, %c0_i32 : i32, i32
  }
  func.func @transform_3(%arg0: i32) -> (i32, i32) {
    %c0_i32 = arith.constant 0 : i32
    %c0_i32_0 = arith.constant 0 : i32
    return %arg0, %c0_i32 : i32, i32
  }
  func.func @transform_4(%arg0: i32) -> (i32, i32) {
    %c4_i32 = arith.constant 4 : i32
    %0 = arith.minsi %arg0, %c4_i32 : i32
    %c0_i32 = arith.constant 0 : i32
    %c0_i32_0 = arith.constant 0 : i32
    return %0, %c0_i32 : i32, i32
  }
  func.func @transform_5(%arg0: i32) -> (i32, i32) {
    %c4_i32 = arith.constant 4 : i32
    %0 = arith.minsi %arg0, %c4_i32 : i32
    %c0_i32 = arith.constant 0 : i32
    %c0_i32_0 = arith.constant 0 : i32
    return %0, %c0_i32 : i32, i32
  }
  func.func @transform_6(%arg0: i32) -> (i32, i32) {
    %c4_i32 = arith.constant 4 : i32
    %0 = arith.minsi %arg0, %c4_i32 : i32
    %c0_i32 = arith.constant 0 : i32
    %c0_i32_0 = arith.constant 0 : i32
    return %0, %c0_i32 : i32, i32
  }
  func.func @transform_7(%arg0: i32) -> (i32, i32, i32) {
    %c0_i32 = arith.constant 0 : i32
    %c0_i32_0 = arith.constant 0 : i32
    %c0_i32_1 = arith.constant 0 : i32
    %c0_i32_2 = arith.constant 0 : i32
    return %c0_i32, %c0_i32_0, %c0_i32_1 : i32, i32, i32
  }
  func.func @transform_8(%arg0: i32) -> (i32, i32) {
    %c0_i32 = arith.constant 0 : i32
    %c0_i32_0 = arith.constant 0 : i32
    %c0_i32_1 = arith.constant 0 : i32
    return %c0_i32, %c0_i32_0 : i32, i32
  }
  func.func @transform_9(%arg0: i32) -> (i32, i32) {
    %c0_i32 = arith.constant 0 : i32
    %c0_i32_0 = arith.constant 0 : i32
    %c0_i32_1 = arith.constant 0 : i32
    return %c0_i32, %c0_i32_0 : i32, i32
  }
  func.func @transform_10(%arg0: i32) -> i32 {
    %c0_i32 = arith.constant 0 : i32
    %c0_i32_0 = arith.constant 0 : i32
    return %c0_i32 : i32
  }
}

</mosaic_0001>

<llo_original>
// kernel: bayes_net_forward.1
$region0: #{bayes_net_forward.1}
  #allocation0 [shape = 'u32[]', space=smem, size = 0x4, offset = 0x4, fixed_abs, tag = 'smem constant byte address 0x4 - core index']
  #allocation1 [shape = 'u32[144,128]{1,0:T(1,128)}', space=vmem, size = 0x12000, scoped, tag = 'internal scratch']
  #allocation2 [shape = 'f32[2,400]{1,0:T(2,128)}', space=vmem, size = 0x1000, scoped, tag = 'scratch operand']
  #allocation3 [shape = 'f32[400,400]{1,0:T(8,128)}', space=vmem, size = 0xc8000, scoped, tag = 'scratch operand']
  #allocation4 [shape = 'f32[112,400]{1,0:T(8,128)}', space=vmem, size = 0x38000, scoped, tag = 'scratch operand']
  #allocation5 [shape = 'f32[112,400]{1,0:T(8,128)}', space=vmem, size = 0x38000, scoped, tag = 'scratch operand']
  %s0 = inlined_call_operand.vmem [shape: f32[7,2,112], index: 0, kind: input, shape index: {}]
  %s1 = inlined_call_operand.vmem [shape: f32[784,400], index: 1, kind: input, shape index: {}]
  %s2 = inlined_call_operand.vmem [shape: f32[784,400], index: 2, kind: input, shape index: {}]
  %s3 = inlined_call_operand.vmem [shape: f32[784,400], index: 3, kind: input, shape index: {}]
  %s4 = inlined_call_operand.vmem [shape: f32[400,400], index: 4, kind: input, shape index: {}]
  %s5 = inlined_call_operand.vmem [shape: f32[400,400], index: 5, kind: input, shape index: {}]
  %s6 = inlined_call_operand.vmem [shape: f32[400,400], index: 6, kind: input, shape index: {}]
  %s7 = inlined_call_operand.vmem [shape: f32[3,400,10], index: 7, kind: input, shape index: {}]
  %s8 = inlined_call_operand.vmem [shape: f32[9,400], index: 8, kind: input, shape index: {}]
  %s9 = inlined_call_operand.hbm [shape: f32[2,10], index: 9, kind: output, shape index: {0}]
  %s10 = inlined_call_operand.vmem [shape: f32[2], index: 10, kind: output, shape index: {1}]
  %11 = xla_tuple %s9, %s10
  %s12 = sld [smem:[#allocation0]]
  $region89: #{bayes_net_forward.1} parent=0
    _
  %s14 = ssub.s32 1, %s12
  %s15 = scalar_select 0, %s14, %s12
  $region1: #{bayes_net_forward.1} parent=0
    #allocation6 [shape = 'u8[1024]{0}', space=vmem, size = 0x400, scoped, tag = 'output window, operand 0, single buffered']
    #allocation7 [shape = 's32[2]{0}', space=sflag, size = 0x8, scoped, tag = 'scoped memory for bayes_net_forward.1']
    #allocation8 [shape = 's32[2]{0}', space=sflag, size = 0x8, scoped, tag = 'scoped memory for bayes_net_forward.1']
    #allocation9 [shape = 'u8[512]{0}', space=smem, size = 0x200, scoped, tag = 'output window, operand 1, single buffered']
    %16 = vsyncpa [#allocation7], 0
    %17 = vsyncpa [#allocation8], 0
    loop: start=0, step=1, limit=9
    $region2: #{bayes_net_forward.1} parent=1 // loop_pre_header
      _
    $region3: #{bayes_net_forward.1} parent=1 // loop_header
      %s19 = sphi 0, %s23
      %p20 = scmp.ge.s32.totalorder %s19, 9
      %s27 = sphi 0, %s27
      %s29 = sphi 0, %s27
      %s30 = sphi 0, %s29
      %s44 = sphi 0, %s30
      %s50 = sphi 0, %s52
      %s53 = sphi 0, %s50
      %s54 = sphi 0, %s53
      %s70 = sphi 0, %s54
      %s76 = sphi 0, %s78
      %s79 = sphi 0, %s76
      %s80 = sphi 0, %s79
      %s96 = sphi 0, %s80
      %s102 = sphi 0, %s104
      %s105 = sphi 0, %s102
      %s106 = sphi 0, %s105
      %s122 = sphi 0, %s106
      %s132 = sphi 0, %s134
      %s135 = sphi 0, %s132
      %s136 = sphi 0, %s135
      %s152 = sphi 0, %s136
      %s162 = sphi 0, %s164
      %s165 = sphi 0, %s162
      %s166 = sphi 0, %s165
      %s182 = sphi 0, %s166
      %s192 = sphi 0, %s194
      %s195 = sphi 0, %s192
      %s196 = sphi 0, %s195
      %s212 = sphi 0, %s196
      %s216 = sphi 0, %s216
      %s218 = sphi 0, %s216
      %s219 = sphi 0, %s218
      %s233 = sphi 0, %s219
      %s237 = sphi 0, %s237
      %s239 = sphi 0, %s237
      %s240 = sphi 0, %s239
      %s254 = sphi 0, %s240
      %s258 = sphi 0, %s258
      %s260 = sphi 0, %s258
      %s261 = sphi 0, %s260
      %s275 = sphi 0, %s261
      %s279 = sphi 0, %s279
      %s281 = sphi 0, %s279
      %s282 = sphi 0, %s281
      %s296 = sphi 0, %s282
    $region4: #{bayes_net_forward.1} parent=1 // loop_header_branch
      %22 = sbr.rel (%p20) target = $region8
    $region5: #{bayes_net_forward.1} parent=1 // loop_body
      %s24 = ssub.s32 %s19, 1
      %s25 = ssub.s32 %s19, 2
      %s26 = sadd.s32 %s19, 1
      %s28 = sadd.s32 %s27, 1
      %p31 = scmp.eq.s32.totalorder %s19, 6
      %p32 = scmp.ne.s32.totalorder %s27, %s29
      %p33 = scmp.eq.s32.totalorder %s19, 0
      %p34 = por %p32, %p33
      %p35 = scmp.ne.s32.totalorder %s27, %s29
      %p36 = scmp.eq.s32.totalorder %s24, 6
      %p37 = por %p35, %p36
      %p38 = scmp.ne.s32.totalorder %s29, %s30
      %p39 = scmp.eq.s32.totalorder %s24, 0
      %p40 = por %p38, %p39
      %p41 = scmp.ne.s32.totalorder %s29, %s30
      %p42 = scmp.eq.s32.totalorder %s25, 6
      %p43 = por %p41, %p42
      %p45 = scmp.ne.s32.totalorder %s30, %s44
      %p46 = scmp.eq.s32.totalorder %s25, 0
      %p47 = por %p45, %p46
      %s48 = ssub.s32 %s19, %s26
      %p49 = scmp.eq.s32.totalorder %s48, 0
      %s51 = sadd.s32 %s50, 1
      %s52 = scalar_select %p49, %s50, %s51
      %p55 = pneg %p49
      %p56 = scmp.eq.s32.totalorder %s19, 6
      %p57 = por %p55, %p56
      %p58 = scmp.ne.s32.totalorder %s50, %s53
      %p59 = scmp.eq.s32.totalorder %s19, 0
      %p60 = por %p58, %p59
      %p61 = scmp.ne.s32.totalorder %s50, %s53
      %p62 = scmp.eq.s32.totalorder %s24, 6
      %p63 = por %p61, %p62
      %p64 = scmp.ne.s32.totalorder %s53, %s54
      %p65 = scmp.eq.s32.totalorder %s24, 0
      %p66 = por %p64, %p65
      %p67 = scmp.ne.s32.totalorder %s53, %s54
      %p68 = scmp.eq.s32.totalorder %s25, 6
      %p69 = por %p67, %p68
      %p71 = scmp.ne.s32.totalorder %s54, %s70
      %p72 = scmp.eq.s32.totalorder %s25, 0
      %p73 = por %p71, %p72
      %s74 = ssub.s32 %s19, %s26
      %p75 = scmp.eq.s32.totalorder %s74, 0
      %s77 = sadd.s32 %s76, 1
      %s78 = scalar_select %p75, %s76, %s77
      %p81 = pneg %p75
      %p82 = scmp.eq.s32.totalorder %s19, 6
      %p83 = por %p81, %p82
      %p84 = scmp.ne.s32.totalorder %s76, %s79
      %p85 = scmp.eq.s32.totalorder %s19, 0
      %p86 = por %p84, %p85
      %p87 = scmp.ne.s32.totalorder %s76, %s79
      %p88 = scmp.eq.s32.totalorder %s24, 6
      %p89 = por %p87, %p88
      %p90 = scmp.ne.s32.totalorder %s79, %s80
      %p91 = scmp.eq.s32.totalorder %s24, 0
      %p92 = por %p90, %p91
      %p93 = scmp.ne.s32.totalorder %s79, %s80
      %p94 = scmp.eq.s32.totalorder %s25, 6
      %p95 = por %p93, %p94
      %p97 = scmp.ne.s32.totalorder %s80, %s96
      %p98 = scmp.eq.s32.totalorder %s25, 0
      %p99 = por %p97, %p98
      %s100 = ssub.s32 %s19, %s26
      %p101 = scmp.eq.s32.totalorder %s100, 0
      %s103 = sadd.s32 %s102, 1
      %s104 = scalar_select %p101, %s102, %s103
      %p107 = pneg %p101
      %p108 = scmp.eq.s32.totalorder %s19, 6
      %p109 = por %p107, %p108
      %p110 = scmp.ne.s32.totalorder %s102, %s105
      %p111 = scmp.eq.s32.totalorder %s19, 0
      %p112 = por %p110, %p111
      %p113 = scmp.ne.s32.totalorder %s102, %s105
      %p114 = scmp.eq.s32.totalorder %s24, 6
      %p115 = por %p113, %p114
      %p116 = scmp.ne.s32.totalorder %s105, %s106
      %p117 = scmp.eq.s32.totalorder %s24, 0
      %p118 = por %p116, %p117
      %p119 = scmp.ne.s32.totalorder %s105, %s106
      %p120 = scmp.eq.s32.totalorder %s25, 6
      %p121 = por %p119, %p120
      %p123 = scmp.ne.s32.totalorder %s106, %s122
      %p124 = scmp.eq.s32.totalorder %s25, 0
      %p125 = por %p123, %p124
      %p126 = scmp.lt.s32.totalorder %s19, 4
      %s127 = scalar_select %p126, %s19, 4
      %p128 = scmp.lt.s32.totalorder %s26, 4
      %s129 = scalar_select %p128, %s26, 4
      %s130 = ssub.s32 %s127, %s129
      %p131 = scmp.eq.s32.totalorder %s130, 0
      %s133 = sadd.s32 %s132, 1
      %s134 = scalar_select %p131, %s132, %s133
      %p137 = pneg %p131
      %p138 = scmp.eq.s32.totalorder %s19, 6
      %p139 = por %p137, %p138
      %p140 = scmp.ne.s32.totalorder %s132, %s135
      %p141 = scmp.eq.s32.totalorder %s19, 0
      %p142 = por %p140, %p141
      %p143 = scmp.ne.s32.totalorder %s132, %s135
      %p144 = scmp.eq.s32.totalorder %s24, 6
      %p145 = por %p143, %p144
      %p146 = scmp.ne.s32.totalorder %s135, %s136
      %p147 = scmp.eq.s32.totalorder %s24, 0
      %p148 = por %p146, %p147
      %p149 = scmp.ne.s32.totalorder %s135, %s136
      %p150 = scmp.eq.s32.totalorder %s25, 6
      %p151 = por %p149, %p150
      %p153 = scmp.ne.s32.totalorder %s136, %s152
      %p154 = scmp.eq.s32.totalorder %s25, 0
      %p155 = por %p153, %p154
      %p156 = scmp.lt.s32.totalorder %s19, 4
      %s157 = scalar_select %p156, %s19, 4
      %p158 = scmp.lt.s32.totalorder %s26, 4
      %s159 = scalar_select %p158, %s26, 4
      %s160 = ssub.s32 %s157, %s159
      %p161 = scmp.eq.s32.totalorder %s160, 0
      %s163 = sadd.s32 %s162, 1
      %s164 = scalar_select %p161, %s162, %s163
      %p167 = pneg %p161
      %p168 = scmp.eq.s32.totalorder %s19, 6
      %p169 = por %p167, %p168
      %p170 = scmp.ne.s32.totalorder %s162, %s165
      %p171 = scmp.eq.s32.totalorder %s19, 0
      %p172 = por %p170, %p171
      %p173 = scmp.ne.s32.totalorder %s162, %s165
      %p174 = scmp.eq.s32.totalorder %s24, 6
      %p175 = por %p173, %p174
      %p176 = scmp.ne.s32.totalorder %s165, %s166
      %p177 = scmp.eq.s32.totalorder %s24, 0
      %p178 = por %p176, %p177
      %p179 = scmp.ne.s32.totalorder %s165, %s166
      %p180 = scmp.eq.s32.totalorder %s25, 6
      %p181 = por %p179, %p180
      %p183 = scmp.ne.s32.totalorder %s166, %s182
      %p184 = scmp.eq.s32.totalorder %s25, 0
      %p185 = por %p183, %p184
      %p186 = scmp.lt.s32.totalorder %s19, 4
      %s187 = scalar_select %p186, %s19, 4
      %p188 = scmp.lt.s32.totalorder %s26, 4
      %s189 = scalar_select %p188, %s26, 4
      %s190 = ssub.s32 %s187, %s189
      %p191 = scmp.eq.s32.totalorder %s190, 0
      %s193 = sadd.s32 %s192, 1
      %s194 = scalar_select %p191, %s192, %s193
      %p197 = pneg %p191
      %p198 = scmp.eq.s32.totalorder %s19, 6
      %p199 = por %p197, %p198
      %p200 = scmp.ne.s32.totalorder %s192, %s195
      %p201 = scmp.eq.s32.totalorder %s19, 0
      %p202 = por %p200, %p201
      %p203 = scmp.ne.s32.totalorder %s192, %s195
      %p204 = scmp.eq.s32.totalorder %s24, 6
      %p205 = por %p203, %p204
      %p206 = scmp.ne.s32.totalorder %s195, %s196
      %p207 = scmp.eq.s32.totalorder %s24, 0
      %p208 = por %p206, %p207
      %p209 = scmp.ne.s32.totalorder %s195, %s196
      %p210 = scmp.eq.s32.totalorder %s25, 6
      %p211 = por %p209, %p210
      %p213 = scmp.ne.s32.totalorder %s196, %s212
      %p214 = scmp.eq.s32.totalorder %s25, 0
      %p215 = por %p213, %p214
      %s217 = sadd.s32 %s216, 1
      %p220 = scmp.eq.s32.totalorder %s19, 6
      %p221 = scmp.ne.s32.totalorder %s216, %s218
      %p222 = scmp.eq.s32.totalorder %s19, 0
      %p223 = por %p221, %p222
      %p224 = scmp.ne.s32.totalorder %s216, %s218
      %p225 = scmp.eq.s32.totalorder %s24, 6
      %p226 = por %p224, %p225
      %p227 = scmp.ne.s32.totalorder %s218, %s219
      %p228 = scmp.eq.s32.totalorder %s24, 0
      %p229 = por %p227, %p228
      %p230 = scmp.ne.s32.totalorder %s218, %s219
      %p231 = scmp.eq.s32.totalorder %s25, 6
      %p232 = por %p230, %p231
      %p234 = scmp.ne.s32.totalorder %s219, %s233
      %p235 = scmp.eq.s32.totalorder %s25, 0
      %p236 = por %p234, %p235
      %s238 = sadd.s32 %s237, 1
      %p241 = scmp.eq.s32.totalorder %s19, 6
      %p242 = scmp.ne.s32.totalorder %s237, %s239
      %p243 = scmp.eq.s32.totalorder %s19, 0
      %p244 = por %p242, %p243
      %p245 = scmp.ne.s32.totalorder %s237, %s239
      %p246 = scmp.eq.s32.totalorder %s24, 6
      %p247 = por %p245, %p246
      %p248 = scmp.ne.s32.totalorder %s239, %s240
      %p249 = scmp.eq.s32.totalorder %s24, 0
      %p250 = por %p248, %p249
      %p251 = scmp.ne.s32.totalorder %s239, %s240
      %p252 = scmp.eq.s32.totalorder %s25, 6
      %p253 = por %p251, %p252
      %p255 = scmp.ne.s32.totalorder %s240, %s254
      %p256 = scmp.eq.s32.totalorder %s25, 0
      %p257 = por %p255, %p256
      %s259 = sadd.s32 %s258, 1
      %p262 = scmp.eq.s32.totalorder %s19, 6
      %p263 = scmp.ne.s32.totalorder %s258, %s260
      %p264 = scmp.eq.s32.totalorder %s19, 0
      %p265 = por %p263, %p264
      %p266 = scmp.ne.s32.totalorder %s258, %s260
      %p267 = scmp.eq.s32.totalorder %s24, 6
      %p268 = por %p266, %p267
      %p269 = scmp.ne.s32.totalorder %s260, %s261
      %p270 = scmp.eq.s32.totalorder %s24, 0
      %p271 = por %p269, %p270
      %p272 = scmp.ne.s32.totalorder %s260, %s261
      %p273 = scmp.eq.s32.totalorder %s25, 6
      %p274 = por %p272, %p273
      %p276 = scmp.ne.s32.totalorder %s261, %s275
      %p277 = scmp.eq.s32.totalorder %s25, 0
      %p278 = por %p276, %p277
      %s280 = sadd.s32 %s279, 1
      %p283 = scmp.eq.s32.totalorder %s19, 6
      %p284 = scmp.ne.s32.totalorder %s279, %s281
      %p285 = scmp.eq.s32.totalorder %s19, 0
      %p286 = por %p284, %p285
      %p287 = scmp.ne.s32.totalorder %s279, %s281
      %p288 = scmp.eq.s32.totalorder %s24, 6
      %p289 = por %p287, %p288
      %p290 = scmp.ne.s32.totalorder %s281, %s282
      %p291 = scmp.eq.s32.totalorder %s24, 0
      %p292 = por %p290, %p291
      %p293 = scmp.ne.s32.totalorder %s281, %s282
      %p294 = scmp.eq.s32.totalorder %s25, 6
      %p295 = por %p293, %p294
      %p297 = scmp.ne.s32.totalorder %s282, %s296
      %p298 = scmp.eq.s32.totalorder %s25, 0
      %p299 = por %p297, %p298
      %p300 = scmp.le.s32.totalorder 1, %s19
      %p301 = scmp.lt.s32.totalorder %s19, 8
      %p302 = pnand %p300, %p301
      %p303 = pneg %p302
      // Predicated region
      $region9: #{bayes_net_forward.1} parent=5 // pred_check
        _
      $region10: #{bayes_net_forward.1} parent=5 // pred_check_branch
        %305 = sbr.rel (%p302) target = $region12
      $region11: #{bayes_net_forward.1} parent=5 // pred_region
        %s306 = ssub.s32 %s19, 1
        // Predicated region
        $region13: #{bayes_net_forward.1} parent=11 // pred_check
          %p307 = pneg %p40
        $region14: #{bayes_net_forward.1} parent=11 // pred_check_branch
          %309 = sbr.rel (%p307) target = $region16
        $region15: #{bayes_net_forward.1} parent=11 // pred_region
          _
        $region16: #{bayes_net_forward.1} parent=11 // pred_fallthru
          _
        // Predicated region
        $region17: #{bayes_net_forward.1} parent=11 // pred_check
          %p310 = pneg %p229
        $region18: #{bayes_net_forward.1} parent=11 // pred_check_branch
          %312 = sbr.rel (%p310) target = $region20
        $region19: #{bayes_net_forward.1} parent=11 // pred_region
          _
        $region20: #{bayes_net_forward.1} parent=11 // pred_fallthru
          _
        // Predicated region
        $region21: #{bayes_net_forward.1} parent=11 // pred_check
          %p313 = pneg %p250
        $region22: #{bayes_net_forward.1} parent=11 // pred_check_branch
          %315 = sbr.rel (%p313) target = $region24
        $region23: #{bayes_net_forward.1} parent=11 // pred_region
          _
        $region24: #{bayes_net_forward.1} parent=11 // pred_fallthru
          _
      $region12: #{bayes_net_forward.1} parent=5 // pred_fallthru
        _
      %p316 = scmp.lt.s32.totalorder %s19, 7
      // Predicated region
      $region25: #{bayes_net_forward.1} parent=5 // pred_check
        %p317 = pneg %p316
      $region26: #{bayes_net_forward.1} parent=5 // pred_check_branch
        %319 = sbr.rel (%p317) target = $region28
      $region27: #{bayes_net_forward.1} parent=5 // pred_region
        // Predicated region
        $region29: #{bayes_net_forward.1} parent=27 // pred_check
          %p320 = pneg %p60
        $region30: #{bayes_net_forward.1} parent=27 // pred_check_branch
          %322 = sbr.rel (%p320) target = $region32
        $region31: #{bayes_net_forward.1} parent=27 // pred_region
          %s323 = smul.u32 14, %s19
          %p324 = scmp.lt.s32.totalorder %s323, 97
          %s325 = scalar_select %p324, %s323, 97
          %s326 = smul.addr %s325, 4
          %s327 = smul.addr %s326, 8
          %s328 = scalar_lea.vmem %s1, %s327
          %s329 = smul.u32 14, %s19
        $region32: #{bayes_net_forward.1} parent=27 // pred_fallthru
          _
        // Predicated region
        $region33: #{bayes_net_forward.1} parent=27 // pred_check
          %p330 = pneg %p86
        $region34: #{bayes_net_forward.1} parent=27 // pred_check_branch
          %332 = sbr.rel (%p330) target = $region36
        $region35: #{bayes_net_forward.1} parent=27 // pred_region
          %s333 = smul.u32 14, %s19
          %p334 = scmp.lt.s32.totalorder %s333, 97
          %s335 = scalar_select %p334, %s333, 97
          %s336 = smul.addr %s335, 4
          %s337 = smul.addr %s336, 8
          %s338 = scalar_lea.vmem %s2, %s337
          %s339 = smul.u32 14, %s19
        $region36: #{bayes_net_forward.1} parent=27 // pred_fallthru
          _
        // Predicated region
        $region37: #{bayes_net_forward.1} parent=27 // pred_check
          %p340 = pneg %p112
        $region38: #{bayes_net_forward.1} parent=27 // pred_check_branch
          %342 = sbr.rel (%p340) target = $region40
        $region39: #{bayes_net_forward.1} parent=27 // pred_region
          %s343 = smul.u32 14, %s19
          %p344 = scmp.lt.s32.totalorder %s343, 97
          %s345 = scalar_select %p344, %s343, 97
          %s346 = smul.addr %s345, 4
          %s347 = smul.addr %s346, 8
          %s348 = scalar_lea.vmem %s3, %s347
          %s349 = smul.u32 14, %s19
        $region40: #{bayes_net_forward.1} parent=27 // pred_fallthru
          _
        // Predicated region
        $region41: #{bayes_net_forward.1} parent=27 // pred_check
          %p350 = pneg %p142
        $region42: #{bayes_net_forward.1} parent=27 // pred_check_branch
          %352 = sbr.rel (%p350) target = $region44
        $region43: #{bayes_net_forward.1} parent=27 // pred_region
          %p353 = scmp.lt.s32.totalorder %s19, 4
          %s354 = scalar_select %p353, %s19, 4
          %s355 = smul.u32 10, %s354
          %p356 = scmp.lt.s32.totalorder %s355, 49
          %s357 = scalar_select %p356, %s355, 49
          %s358 = smul.addr %s357, 4
          %s359 = smul.addr %s358, 8
          %s360 = scalar_lea.vmem %s4, %s359
          %p361 = scmp.lt.s32.totalorder %s19, 4
          %s362 = scalar_select %p361, %s19, 4
          %s363 = smul.u32 10, %s362
        $region44: #{bayes_net_forward.1} parent=27 // pred_fallthru
          _
        // Predicated region
        $region45: #{bayes_net_forward.1} parent=27 // pred_check
          %p364 = pneg %p172
        $region46: #{bayes_net_forward.1} parent=27 // pred_check_branch
          %366 = sbr.rel (%p364) target = $region48
        $region47: #{bayes_net_forward.1} parent=27 // pred_region
          %p367 = scmp.lt.s32.totalorder %s19, 4
          %s368 = scalar_select %p367, %s19, 4
          %s369 = smul.u32 10, %s368
          %p370 = scmp.lt.s32.totalorder %s369, 49
          %s371 = scalar_select %p370, %s369, 49
          %s372 = smul.addr %s371, 4
          %s373 = smul.addr %s372, 8
          %s374 = scalar_lea.vmem %s5, %s373
          %p375 = scmp.lt.s32.totalorder %s19, 4
          %s376 = scalar_select %p375, %s19, 4
          %s377 = smul.u32 10, %s376
        $region48: #{bayes_net_forward.1} parent=27 // pred_fallthru
          _
        // Predicated region
        $region49: #{bayes_net_forward.1} parent=27 // pred_check
          %p378 = pneg %p202
        $region50: #{bayes_net_forward.1} parent=27 // pred_check_branch
          %380 = sbr.rel (%p378) target = $region52
        $region51: #{bayes_net_forward.1} parent=27 // pred_region
          %p381 = scmp.lt.s32.totalorder %s19, 4
          %s382 = scalar_select %p381, %s19, 4
          %s383 = smul.u32 10, %s382
          %p384 = scmp.lt.s32.totalorder %s383, 49
          %s385 = scalar_select %p384, %s383, 49
          %s386 = smul.addr %s385, 4
          %s387 = smul.addr %s386, 8
          %s388 = scalar_lea.vmem %s6, %s387
          %p389 = scmp.lt.s32.totalorder %s19, 4
          %s390 = scalar_select %p389, %s19, 4
          %s391 = smul.u32 10, %s390
        $region52: #{bayes_net_forward.1} parent=27 // pred_fallthru
          _
      $region28: #{bayes_net_forward.1} parent=5 // pred_fallthru
        _
      %p392 = scmp.le.s32.totalorder 1, %s19
      %p393 = scmp.lt.s32.totalorder %s19, 8
      %p394 = pnand %p392, %p393
      %p395 = pneg %p394
      // Predicated region
      $region53: #{bayes_net_forward.1} parent=5 // pred_check
        _
      $region54: #{bayes_net_forward.1} parent=5 // pred_check_branch
        %397 = sbr.rel (%p394) target = $region56
      $region55: #{bayes_net_forward.1} parent=5 // pred_region
        %s398 = ssub.s32 %s19, 1
        %p399 = pneg %p40
        %p400 = pneg %p37
        %s401 = smul.u32 14, %s24
        %p402 = scmp.lt.s32.totalorder %s401, 97
        %s403 = scalar_select %p402, %s401, 97
        %s404 = smul.addr %s403, 4
        %s405 = smul.addr %s404, 8
        %s406 = scalar_lea.vmem %s1, %s405
        %p407 = pneg %p66
        %p408 = pneg %p63
        %s409 = smul.u32 14, %s24
        %p410 = scmp.lt.s32.totalorder %s409, 97
        %s411 = scalar_select %p410, %s409, 97
        %s412 = smul.addr %s411, 4
        %s413 = smul.addr %s412, 8
        %s414 = scalar_lea.vmem %s2, %s413
        %p415 = pneg %p92
        %p416 = pneg %p89
        %s417 = smul.u32 14, %s24
        %p418 = scmp.lt.s32.totalorder %s417, 97
        %s419 = scalar_select %p418, %s417, 97
        %s420 = smul.addr %s419, 4
        %s421 = smul.addr %s420, 8
        %s422 = scalar_lea.vmem %s3, %s421
        %p423 = pneg %p118
        %p424 = pneg %p115
        %p425 = scmp.lt.s32.totalorder %s24, 4
        %s426 = scalar_select %p425, %s24, 4
        %s427 = smul.u32 10, %s426
        %p428 = scmp.lt.s32.totalorder %s427, 49
        %s429 = scalar_select %p428, %s427, 49
        %s430 = smul.addr %s429, 4
        %s431 = smul.addr %s430, 8
        %s432 = scalar_lea.vmem %s4, %s431
        %p433 = pneg %p148
        %p434 = pneg %p145
        %p435 = scmp.lt.s32.totalorder %s24, 4
        %s436 = scalar_select %p435, %s24, 4
        %s437 = smul.u32 10, %s436
        %p438 = scmp.lt.s32.totalorder %s437, 49
        %s439 = scalar_select %p438, %s437, 49
        %s440 = smul.addr %s439, 4
        %s441 = smul.addr %s440, 8
        %s442 = scalar_lea.vmem %s5, %s441
        %p443 = pneg %p178
        %p444 = pneg %p175
        %p445 = scmp.lt.s32.totalorder %s24, 4
        %s446 = scalar_select %p445, %s24, 4
        %s447 = smul.u32 10, %s446
        %p448 = scmp.lt.s32.totalorder %s447, 49
        %s449 = scalar_select %p448, %s447, 49
        %s450 = smul.addr %s449, 4
        %s451 = smul.addr %s450, 8
        %s452 = scalar_lea.vmem %s6, %s451
        %p453 = pneg %p208
        %p454 = pneg %p205
        %p455 = pneg %p229
        %p456 = pneg %p226
        %p457 = pneg %p250
        %p458 = pneg %p247
        %p459 = pneg %p271
        %p460 = pneg %p268
        %p461 = pneg %p292
        %p462 = pneg %p289
        %s463 = smul.u32 14, %s24
        %p464 = scmp.lt.s32.totalorder %s463, 97
        %s465 = scalar_select %p464, %s463, 97
        %s466 = smul.addr %s465, 4
        %s467 = smul.addr %s466, 8
        %s468 = scalar_lea.vmem %s1, %s467
        %s469 = smul.u32 14, %s24
        %s470 = smul.u32 14, %s24
        %p471 = scmp.lt.s32.totalorder %s470, 97
        %s472 = scalar_select %p471, %s470, 97
        %s473 = smul.addr %s472, 4
        %s474 = smul.addr %s473, 8
        %s475 = scalar_lea.vmem %s2, %s474
        %s476 = smul.u32 14, %s24
        %s477 = smul.u32 14, %s24
        %p478 = scmp.lt.s32.totalorder %s477, 97
        %s479 = scalar_select %p478, %s477, 97
        %s480 = smul.addr %s479, 4
        %s481 = smul.addr %s480, 8
        %s482 = scalar_lea.vmem %s3, %s481
        %s483 = smul.u32 14, %s24
        %p484 = scmp.lt.s32.totalorder %s24, 4
        %s485 = scalar_select %p484, %s24, 4
        %s486 = smul.u32 10, %s485
        %p487 = scmp.lt.s32.totalorder %s486, 49
        %s488 = scalar_select %p487, %s486, 49
        %s489 = smul.addr %s488, 4
        %s490 = smul.addr %s489, 8
        %s491 = scalar_lea.vmem %s4, %s490
        %p492 = scmp.lt.s32.totalorder %s24, 4
        %s493 = scalar_select %p492, %s24, 4
        %s494 = smul.u32 10, %s493
        %p495 = scmp.lt.s32.totalorder %s24, 4
        %s496 = scalar_select %p495, %s24, 4
        %s497 = smul.u32 10, %s496
        %p498 = scmp.lt.s32.totalorder %s497, 49
        %s499 = scalar_select %p498, %s497, 49
        %s500 = smul.addr %s499, 4
        %s501 = smul.addr %s500, 8
        %s502 = scalar_lea.vmem %s5, %s501
        %p503 = scmp.lt.s32.totalorder %s24, 4
        %s504 = scalar_select %p503, %s24, 4
        %s505 = smul.u32 10, %s504
        %p506 = scmp.lt.s32.totalorder %s24, 4
        %s507 = scalar_select %p506, %s24, 4
        %s508 = smul.u32 10, %s507
        %p509 = scmp.lt.s32.totalorder %s508, 49
        %s510 = scalar_select %p509, %s508, 49
        %s511 = smul.addr %s510, 4
        %s512 = smul.addr %s511, 8
        %s513 = scalar_lea.vmem %s6, %s512
        %p514 = scmp.lt.s32.totalorder %s24, 4
        %s515 = scalar_select %p514, %s24, 4
        %s516 = smul.u32 10, %s515
        %p517 = scmp.eq.s32.totalorder %s24, 0
        // Predicated region
        $region57: #{bayes_net_forward.1} parent=55 // pred_check
          %p518 = pneg %p517
        $region58: #{bayes_net_forward.1} parent=55 // pred_check_branch
          %520 = sbr.rel (%p518) target = $region60
        $region59: #{bayes_net_forward.1} parent=55 // pred_region
          %vm521 = vcmask 1041408
          %vm522 = vcmask 1043458
          %vm523 = vmor %vm522, %vm521
          %vm524 = vcmask 1045508
          %vm525 = vmor %vm524, %vm523
          %vm526 = vcmask 130054
          %vm527 = vmor %vm526, %vm525
          %528 = vst.msk [vmem:[#allocation2] sm:$0xff] %vm527, 0.0
          %529 = vst [vmem:[#allocation4] sm:$0xff] 0.0
          %530 = vst [vmem:[#allocation4 + $0x8] sm:$0xff] 0.0
          %531 = vst [vmem:[#allocation4 + $0x10] sm:$0xff] 0.0
          %vm532 = vcmask 130048
          %533 = vst.msk [vmem:[#allocation4 + $0x18] sm:$0xff] %vm532, 0.0
          %534 = vst [vmem:[#allocation4 + $0x20] sm:$0xff] 0.0
          %535 = vst [vmem:[#allocation4 + $0x28] sm:$0xff] 0.0
          %536 = vst [vmem:[#allocation4 + $0x30] sm:$0xff] 0.0
          %537 = vst.msk [vmem:[#allocation4 + $0x38] sm:$0xff] %vm532, 0.0
          %538 = vst [vmem:[#allocation4 + $0x40] sm:$0xff] 0.0
          %539 = vst [vmem:[#allocation4 + $0x48] sm:$0xff] 0.0
          %540 = vst [vmem:[#allocation4 + $0x50] sm:$0xff] 0.0
          %541 = vst.msk [vmem:[#allocation4 + $0x58] sm:$0xff] %vm532, 0.0
          %542 = vst [vmem:[#allocation4 + $0x60] sm:$0xff] 0.0
          %543 = vst [vmem:[#allocation4 + $0x68] sm:$0xff] 0.0
          %544 = vst [vmem:[#allocation4 + $0x70] sm:$0xff] 0.0
          %545 = vst.msk [vmem:[#allocation4 + $0x78] sm:$0xff] %vm532, 0.0
          %546 = vst [vmem:[#allocation4 + $0x80] sm:$0xff] 0.0
          %547 = vst [vmem:[#allocation4 + $0x88] sm:$0xff] 0.0
          %548 = vst [vmem:[#allocation4 + $0x90] sm:$0xff] 0.0
          %549 = vst.msk [vmem:[#allocation4 + $0x98] sm:$0xff] %vm532, 0.0
          %550 = vst [vmem:[#allocation4 + $0xa0] sm:$0xff] 0.0
          %551 = vst [vmem:[#allocation4 + $0xa8] sm:$0xff] 0.0
          %552 = vst [vmem:[#allocation4 + $0xb0] sm:$0xff] 0.0
          %553 = vst.msk [vmem:[#allocation4 + $0xb8] sm:$0xff] %vm532, 0.0
          %554 = vst [vmem:[#allocation4 + $0xc0] sm:$0xff] 0.0
          %555 = vst [vmem:[#allocation4 + $0xc8] sm:$0xff] 0.0
          %556 = vst [vmem:[#allocation4 + $0xd0] sm:$0xff] 0.0
          %557 = vst.msk [vmem:[#allocation4 + $0xd8] sm:$0xff] %vm532, 0.0
          %558 = vst [vmem:[#allocation4 + $0xe0] sm:$0xff] 0.0
          %559 = vst [vmem:[#allocation4 + $0xe8] sm:$0xff] 0.0
          %560 = vst [vmem:[#allocation4 + $0xf0] sm:$0xff] 0.0
          %561 = vst.msk [vmem:[#allocation4 + $0xf8] sm:$0xff] %vm532, 0.0
          %562 = vst [vmem:[#allocation4 + $0x100] sm:$0xff] 0.0
          %563 = vst [vmem:[#allocation4 + $0x108] sm:$0xff] 0.0
          %564 = vst [vmem:[#allocation4 + $0x110] sm:$0xff] 0.0
          %565 = vst.msk [vmem:[#allocation4 + $0x118] sm:$0xff] %vm532, 0.0
          %566 = vst [vmem:[#allocation4 + $0x120] sm:$0xff] 0.0
          %567 = vst [vmem:[#allocation4 + $0x128] sm:$0xff] 0.0
          %568 = vst [vmem:[#allocation4 + $0x130] sm:$0xff] 0.0
          %569 = vst.msk [vmem:[#allocation4 + $0x138] sm:$0xff] %vm532, 0.0
          %570 = vst [vmem:[#allocation4 + $0x140] sm:$0xff] 0.0
          %571 = vst [vmem:[#allocation4 + $0x148] sm:$0xff] 0.0
          %572 = vst [vmem:[#allocation4 + $0x150] sm:$0xff] 0.0
          %573 = vst.msk [vmem:[#allocation4 + $0x158] sm:$0xff] %vm532, 0.0
          %574 = vst [vmem:[#allocation4 + $0x160] sm:$0xff] 0.0
          %575 = vst [vmem:[#allocation4 + $0x168] sm:$0xff] 0.0
          %576 = vst [vmem:[#allocation4 + $0x170] sm:$0xff] 0.0
          %577 = vst.msk [vmem:[#allocation4 + $0x178] sm:$0xff] %vm532, 0.0
          %578 = vst [vmem:[#allocation4 + $0x180] sm:$0xff] 0.0
          %579 = vst [vmem:[#allocation4 + $0x188] sm:$0xff] 0.0
          %580 = vst [vmem:[#allocation4 + $0x190] sm:$0xff] 0.0
          %581 = vst.msk [vmem:[#allocation4 + $0x198] sm:$0xff] %vm532, 0.0
          %582 = vst [vmem:[#allocation4 + $0x1a0] sm:$0xff] 0.0
          %583 = vst [vmem:[#allocation4 + $0x1a8] sm:$0xff] 0.0
          %584 = vst [vmem:[#allocation4 + $0x1b0] sm:$0xff] 0.0
          %585 = vst.msk [vmem:[#allocation4 + $0x1b8] sm:$0xff] %vm532, 0.0
          %586 = vst [vmem:[#allocation5] sm:$0xff] 0.0
          %587 = vst [vmem:[#allocation5 + $0x8] sm:$0xff] 0.0
          %588 = vst [vmem:[#allocation5 + $0x10] sm:$0xff] 0.0
          %589 = vst.msk [vmem:[#allocation5 + $0x18] sm:$0xff] %vm532, 0.0
          %590 = vst [vmem:[#allocation5 + $0x20] sm:$0xff] 0.0
          %591 = vst [vmem:[#allocation5 + $0x28] sm:$0xff] 0.0
          %592 = vst [vmem:[#allocation5 + $0x30] sm:$0xff] 0.0
          %593 = vst.msk [vmem:[#allocation5 + $0x38] sm:$0xff] %vm532, 0.0
          %594 = vst [vmem:[#allocation5 + $0x40] sm:$0xff] 0.0
          %595 = vst [vmem:[#allocation5 + $0x48] sm:$0xff] 0.0
          %596 = vst [vmem:[#allocation5 + $0x50] sm:$0xff] 0.0
          %597 = vst.msk [vmem:[#allocation5 + $0x58] sm:$0xff] %vm532, 0.0
          %598 = vst [vmem:[#allocation5 + $0x60] sm:$0xff] 0.0
          %599 = vst [vmem:[#allocation5 + $0x68] sm:$0xff] 0.0
          %600 = vst [vmem:[#allocation5 + $0x70] sm:$0xff] 0.0
          %601 = vst.msk [vmem:[#allocation5 + $0x78] sm:$0xff] %vm532, 0.0
          %602 = vst [vmem:[#allocation5 + $0x80] sm:$0xff] 0.0
          %603 = vst [vmem:[#allocation5 + $0x88] sm:$0xff] 0.0
          %604 = vst [vmem:[#allocation5 + $0x90] sm:$0xff] 0.0
          %605 = vst.msk [vmem:[#allocation5 + $0x98] sm:$0xff] %vm532, 0.0
          %606 = vst [vmem:[#allocation5 + $0xa0] sm:$0xff] 0.0
          %607 = vst [vmem:[#allocation5 + $0xa8] sm:$0xff] 0.0
          %608 = vst [vmem:[#allocation5 + $0xb0] sm:$0xff] 0.0
          %609 = vst.msk [vmem:[#allocation5 + $0xb8] sm:$0xff] %vm532, 0.0
          %610 = vst [vmem:[#allocation5 + $0xc0] sm:$0xff] 0.0
          %611 = vst [vmem:[#allocation5 + $0xc8] sm:$0xff] 0.0
          %612 = vst [vmem:[#allocation5 + $0xd0] sm:$0xff] 0.0
          %613 = vst.msk [vmem:[#allocation5 + $0xd8] sm:$0xff] %vm532, 0.0
          %614 = vst [vmem:[#allocation5 + $0xe0] sm:$0xff] 0.0
          %615 = vst [vmem:[#allocation5 + $0xe8] sm:$0xff] 0.0
          %616 = vst [vmem:[#allocation5 + $0xf0] sm:$0xff] 0.0
          %617 = vst.msk [vmem:[#allocation5 + $0xf8] sm:$0xff] %vm532, 0.0
          %618 = vst [vmem:[#allocation5 + $0x100] sm:$0xff] 0.0
          %619 = vst [vmem:[#allocation5 + $0x108] sm:$0xff] 0.0
          %620 = vst [vmem:[#allocation5 + $0x110] sm:$0xff] 0.0
          %621 = vst.msk [vmem:[#allocation5 + $0x118] sm:$0xff] %vm532, 0.0
          %622 = vst [vmem:[#allocation5 + $0x120] sm:$0xff] 0.0
          %623 = vst [vmem:[#allocation5 + $0x128] sm:$0xff] 0.0
          %624 = vst [vmem:[#allocation5 + $0x130] sm:$0xff] 0.0
          %625 = vst.msk [vmem:[#allocation5 + $0x138] sm:$0xff] %vm532, 0.0
          %626 = vst [vmem:[#allocation5 + $0x140] sm:$0xff] 0.0
          %627 = vst [vmem:[#allocation5 + $0x148] sm:$0xff] 0.0
          %628 = vst [vmem:[#allocation5 + $0x150] sm:$0xff] 0.0
          %629 = vst.msk [vmem:[#allocation5 + $0x158] sm:$0xff] %vm532, 0.0
          %630 = vst [vmem:[#allocation5 + $0x160] sm:$0xff] 0.0
          %631 = vst [vmem:[#allocation5 + $0x168] sm:$0xff] 0.0
          %632 = vst [vmem:[#allocation5 + $0x170] sm:$0xff] 0.0
          %633 = vst.msk [vmem:[#allocation5 + $0x178] sm:$0xff] %vm532, 0.0
          %634 = vst [vmem:[#allocation5 + $0x180] sm:$0xff] 0.0
          %635 = vst [vmem:[#allocation5 + $0x188] sm:$0xff] 0.0
          %636 = vst [vmem:[#allocation5 + $0x190] sm:$0xff] 0.0
          %637 = vst.msk [vmem:[#allocation5 + $0x198] sm:$0xff] %vm532, 0.0
          %638 = vst [vmem:[#allocation5 + $0x1a0] sm:$0xff] 0.0
          %639 = vst [vmem:[#allocation5 + $0x1a8] sm:$0xff] 0.0
          %640 = vst [vmem:[#allocation5 + $0x1b0] sm:$0xff] 0.0
          %641 = vst.msk [vmem:[#allocation5 + $0x1b8] sm:$0xff] %vm532, 0.0
        $region60: #{bayes_net_forward.1} parent=55 // pred_fallthru
          _
        %v642 = vld [vmem:[%s482] sm:$0xff]
        %v643 = vld [vmem:[%s482 + $0x8] sm:$0xff]
        %v644 = vld [vmem:[%s482 + $0x10] sm:$0xff]
        %v645 = vld [vmem:[%s482 + $0x18] sm:$0xff]
        %v646 = vld [vmem:[%s482 + $0x20] sm:$0xff]
        %v647 = vld [vmem:[%s482 + $0x28] sm:$0xff]
        %v648 = vld [vmem:[%s482 + $0x30] sm:$0xff]
        %v649 = vld [vmem:[%s482 + $0x38] sm:$0xff]
        %v650 = vld [vmem:[%s482 + $0x40] sm:$0xff]
        %v651 = vld [vmem:[%s482 + $0x48] sm:$0xff]
        %v652 = vld [vmem:[%s482 + $0x50] sm:$0xff]
        %v653 = vld [vmem:[%s482 + $0x58] sm:$0xff]
        %v654 = vld [vmem:[%s482 + $0x60] sm:$0xff]
        %v655 = vld [vmem:[%s482 + $0x68] sm:$0xff]
        %v656 = vld [vmem:[%s482 + $0x70] sm:$0xff]
        %v657 = vld [vmem:[%s482 + $0x78] sm:$0xff]
        %v658 = vld [vmem:[%s482 + $0x80] sm:$0xff]
        %v659 = vld [vmem:[%s482 + $0x88] sm:$0xff]
        %v660 = vld [vmem:[%s482 + $0x90] sm:$0xff]
        %v661 = vld [vmem:[%s482 + $0x98] sm:$0xff]
        %v662 = vld [vmem:[%s482 + $0xa0] sm:$0xff]
        %v663 = vld [vmem:[%s482 + $0xa8] sm:$0xff]
        %v664 = vld [vmem:[%s482 + $0xb0] sm:$0xff]
        %v665 = vld [vmem:[%s482 + $0xb8] sm:$0xff]
        %v666 = vld [vmem:[%s482 + $0xc0] sm:$0xff]
        %v667 = vld [vmem:[%s482 + $0xc8] sm:$0xff]
        %v668 = vld [vmem:[%s482 + $0xd0] sm:$0xff]
        %v669 = vld [vmem:[%s482 + $0xd8] sm:$0xff]
        %v670 = vld [vmem:[%s482 + $0xe0] sm:$0xff]
        %v671 = vld [vmem:[%s482 + $0xe8] sm:$0xff]
        %v672 = vld [vmem:[%s482 + $0xf0] sm:$0xff]
        %v673 = vld [vmem:[%s482 + $0xf8] sm:$0xff]
        %v674 = vld [vmem:[%s482 + $0x100] sm:$0xff]
        %v675 = vld [vmem:[%s482 + $0x108] sm:$0xff]
        %v676 = vld [vmem:[%s482 + $0x110] sm:$0xff]
        %v677 = vld [vmem:[%s482 + $0x118] sm:$0xff]
        %v678 = vld [vmem:[%s482 + $0x120] sm:$0xff]
        %v679 = vld [vmem:[%s482 + $0x128] sm:$0xff]
        %v680 = vld [vmem:[%s482 + $0x130] sm:$0xff]
        %v681 = vld [vmem:[%s482 + $0x138] sm:$0xff]
        %v682 = vld [vmem:[%s482 + $0x140] sm:$0xff]
        %v683 = vld [vmem:[%s482 + $0x148] sm:$0xff]
        %v684 = vld [vmem:[%s482 + $0x150] sm:$0xff]
        %v685 = vld [vmem:[%s482 + $0x158] sm:$0xff]
        %v686 = vld [vmem:[%s482 + $0x160] sm:$0xff]
        %v687 = vld [vmem:[%s482 + $0x168] sm:$0xff]
        %v688 = vld [vmem:[%s482 + $0x170] sm:$0xff]
        %v689 = vld [vmem:[%s482 + $0x178] sm:$0xff]
        %v690 = vld [vmem:[%s482 + $0x180] sm:$0xff]
        %v691 = vld [vmem:[%s482 + $0x188] sm:$0xff]
        %v692 = vld [vmem:[%s482 + $0x190] sm:$0xff]
        %v693 = vld [vmem:[%s482 + $0x198] sm:$0xff]
        %v694 = vld [vmem:[%s482 + $0x1a0] sm:$0xff]
        %v695 = vld [vmem:[%s482 + $0x1a8] sm:$0xff]
        %v696 = vld [vmem:[%s482 + $0x1b0] sm:$0xff]
        %v697 = vld [vmem:[%s482 + $0x1b8] sm:$0xff]
        %v698 = vld [vmem:[%s475] sm:$0xff]
        %v699 = vld [vmem:[%s475 + $0x8] sm:$0xff]
        %v700 = vld [vmem:[%s475 + $0x10] sm:$0xff]
        %v701 = vld [vmem:[%s475 + $0x18] sm:$0xff]
        %v702 = vld [vmem:[%s475 + $0x20] sm:$0xff]
        %v703 = vld [vmem:[%s475 + $0x28] sm:$0xff]
        %v704 = vld [vmem:[%s475 + $0x30] sm:$0xff]
        %v705 = vld [vmem:[%s475 + $0x38] sm:$0xff]
        %v706 = vld [vmem:[%s475 + $0x40] sm:$0xff]
        %v707 = vld [vmem:[%s475 + $0x48] sm:$0xff]
        %v708 = vld [vmem:[%s475 + $0x50] sm:$0xff]
        %v709 = vld [vmem:[%s475 + $0x58] sm:$0xff]
        %v710 = vld [vmem:[%s475 + $0x60] sm:$0xff]
        %v711 = vld [vmem:[%s475 + $0x68] sm:$0xff]
        %v712 = vld [vmem:[%s475 + $0x70] sm:$0xff]
        %v713 = vld [vmem:[%s475 + $0x78] sm:$0xff]
        %v714 = vld [vmem:[%s475 + $0x80] sm:$0xff]
        %v715 = vld [vmem:[%s475 + $0x88] sm:$0xff]
        %v716 = vld [vmem:[%s475 + $0x90] sm:$0xff]
        %v717 = vld [vmem:[%s475 + $0x98] sm:$0xff]
        %v718 = vld [vmem:[%s475 + $0xa0] sm:$0xff]
        %v719 = vld [vmem:[%s475 + $0xa8] sm:$0xff]
        %v720 = vld [vmem:[%s475 + $0xb0] sm:$0xff]
        %v721 = vld [vmem:[%s475 + $0xb8] sm:$0xff]
        %v722 = vld [vmem:[%s475 + $0xc0] sm:$0xff]
        %v723 = vld [vmem:[%s475 + $0xc8] sm:$0xff]
        %v724 = vld [vmem:[%s475 + $0xd0] sm:$0xff]
        %v725 = vld [vmem:[%s475 + $0xd8] sm:$0xff]
        %v726 = vld [vmem:[%s475 + $0xe0] sm:$0xff]
        %v727 = vld [vmem:[%s475 + $0xe8] sm:$0xff]
        %v728 = vld [vmem:[%s475 + $0xf0] sm:$0xff]
        %v729 = vld [vmem:[%s475 + $0xf8] sm:$0xff]
        %v730 = vld [vmem:[%s475 + $0x100] sm:$0xff]
        %v731 = vld [vmem:[%s475 + $0x108] sm:$0xff]
        %v732 = vld [vmem:[%s475 + $0x110] sm:$0xff]
        %v733 = vld [vmem:[%s475 + $0x118] sm:$0xff]
        %v734 = vld [vmem:[%s475 + $0x120] sm:$0xff]
        %v735 = vld [vmem:[%s475 + $0x128] sm:$0xff]
        %v736 = vld [vmem:[%s475 + $0x130] sm:$0xff]
        %v737 = vld [vmem:[%s475 + $0x138] sm:$0xff]
        %v738 = vld [vmem:[%s475 + $0x140] sm:$0xff]
        %v739 = vld [vmem:[%s475 + $0x148] sm:$0xff]
        %v740 = vld [vmem:[%s475 + $0x150] sm:$0xff]
        %v741 = vld [vmem:[%s475 + $0x158] sm:$0xff]
        %v742 = vld [vmem:[%s475 + $0x160] sm:$0xff]
        %v743 = vld [vmem:[%s475 + $0x168] sm:$0xff]
        %v744 = vld [vmem:[%s475 + $0x170] sm:$0xff]
        %v745 = vld [vmem:[%s475 + $0x178] sm:$0xff]
        %v746 = vld [vmem:[%s475 + $0x180] sm:$0xff]
        %v747 = vld [vmem:[%s475 + $0x188] sm:$0xff]
        %v748 = vld [vmem:[%s475 + $0x190] sm:$0xff]
        %v749 = vld [vmem:[%s475 + $0x198] sm:$0xff]
        %v750 = vld [vmem:[%s475 + $0x1a0] sm:$0xff]
        %v751 = vld [vmem:[%s475 + $0x1a8] sm:$0xff]
        %v752 = vld [vmem:[%s475 + $0x1b0] sm:$0xff]
        %v753 = vld [vmem:[%s475 + $0x1b8] sm:$0xff]
        %v754 = vmax.f32 %v698, 0.0
        %v755 = vmax.f32 %v699, 0.0
        %v756 = vmax.f32 %v700, 0.0
        %v757 = vmax.f32 %v701, 0.0
        %v758 = vmax.f32 %v702, 0.0
        %v759 = vmax.f32 %v703, 0.0
        %v760 = vmax.f32 %v704, 0.0
        %v761 = vmax.f32 %v705, 0.0
        %v762 = vmax.f32 %v706, 0.0
        %v763 = vmax.f32 %v707, 0.0
        %v764 = vmax.f32 %v708, 0.0
        %v765 = vmax.f32 %v709, 0.0
        %v766 = vmax.f32 %v710, 0.0
        %v767 = vmax.f32 %v711, 0.0
        %v768 = vmax.f32 %v712, 0.0
        %v769 = vmax.f32 %v713, 0.0
        %v770 = vmax.f32 %v714, 0.0
        %v771 = vmax.f32 %v715, 0.0
        %v772 = vmax.f32 %v716, 0.0
        %v773 = vmax.f32 %v717, 0.0
        %v774 = vmax.f32 %v718, 0.0
        %v775 = vmax.f32 %v719, 0.0
        %v776 = vmax.f32 %v720, 0.0
        %v777 = vmax.f32 %v721, 0.0
        %v778 = vmax.f32 %v722, 0.0
        %v779 = vmax.f32 %v723, 0.0
        %v780 = vmax.f32 %v724, 0.0
        %v781 = vmax.f32 %v725, 0.0
        %v782 = vmax.f32 %v726, 0.0
        %v783 = vmax.f32 %v727, 0.0
        %v784 = vmax.f32 %v728, 0.0
        %v785 = vmax.f32 %v729, 0.0
        %v786 = vmax.f32 %v730, 0.0
        %v787 = vmax.f32 %v731, 0.0
        %v788 = vmax.f32 %v732, 0.0
        %v789 = vmax.f32 %v733, 0.0
        %v790 = vmax.f32 %v734, 0.0
        %v791 = vmax.f32 %v735, 0.0
        %v792 = vmax.f32 %v736, 0.0
        %v793 = vmax.f32 %v737, 0.0
        %v794 = vmax.f32 %v738, 0.0
        %v795 = vmax.f32 %v739, 0.0
        %v796 = vmax.f32 %v740, 0.0
        %v797 = vmax.f32 %v741, 0.0
        %v798 = vmax.f32 %v742, 0.0
        %v799 = vmax.f32 %v743, 0.0
        %v800 = vmax.f32 %v744, 0.0
        %v801 = vmax.f32 %v745, 0.0
        %v802 = vmax.f32 %v746, 0.0
        %v803 = vmax.f32 %v747, 0.0
        %v804 = vmax.f32 %v748, 0.0
        %v805 = vmax.f32 %v749, 0.0
        %v806 = vmax.f32 %v750, 0.0
        %v807 = vmax.f32 %v751, 0.0
        %v808 = vmax.f32 %v752, 0.0
        %v809 = vmax.f32 %v753, 0.0
        %v810 = vand.u32 2147483647, %v698
        %v811 = vand.u32 2147483647, %v699
        %v812 = vand.u32 2147483647, %v700
        %v813 = vand.u32 2147483647, %v701
        %v814 = vand.u32 2147483647, %v702
        %v815 = vand.u32 2147483647, %v703
        %v816 = vand.u32 2147483647, %v704
        %v817 = vand.u32 2147483647, %v705
        %v818 = vand.u32 2147483647, %v706
        %v819 = vand.u32 2147483647, %v707
        %v820 = vand.u32 2147483647, %v708
        %v821 = vand.u32 2147483647, %v709
        %v822 = vand.u32 2147483647, %v710
        %v823 = vand.u32 2147483647, %v711
        %v824 = vand.u32 2147483647, %v712
        %v825 = vand.u32 2147483647, %v713
        %v826 = vand.u32 2147483647, %v714
        %v827 = vand.u32 2147483647, %v715
        %v828 = vand.u32 2147483647, %v716
        %v829 = vand.u32 2147483647, %v717
        %v830 = vand.u32 2147483647, %v718
        %v831 = vand.u32 2147483647, %v719
        %v832 = vand.u32 2147483647, %v720
        %v833 = vand.u32 2147483647, %v721
        %v834 = vand.u32 2147483647, %v722
        %v835 = vand.u32 2147483647, %v723
        %v836 = vand.u32 2147483647, %v724
        %v837 = vand.u32 2147483647, %v725
        %v838 = vand.u32 2147483647, %v726
        %v839 = vand.u32 2147483647, %v727
        %v840 = vand.u32 2147483647, %v728
        %v841 = vand.u32 2147483647, %v729
        %v842 = vand.u32 2147483647, %v730
        %v843 = vand.u32 2147483647, %v731
        %v844 = vand.u32 2147483647, %v732
        %v845 = vand.u32 2147483647, %v733
        %v846 = vand.u32 2147483647, %v734
        %v847 = vand.u32 2147483647, %v735
        %v848 = vand.u32 2147483647, %v736
        %v849 = vand.u32 2147483647, %v737
        %v850 = vand.u32 2147483647, %v738
        %v851 = vand.u32 2147483647, %v739
        %v852 = vand.u32 2147483647, %v740
        %v853 = vand.u32 2147483647, %v741
        %v854 = vand.u32 2147483647, %v742
        %v855 = vand.u32 2147483647, %v743
        %v856 = vand.u32 2147483647, %v744
        %v857 = vand.u32 2147483647, %v745
        %v858 = vand.u32 2147483647, %v746
        %v859 = vand.u32 2147483647, %v747
        %v860 = vand.u32 2147483647, %v748
        %v861 = vand.u32 2147483647, %v749
        %v862 = vand.u32 2147483647, %v750
        %v863 = vand.u32 2147483647, %v751
        %v864 = vand.u32 2147483647, %v752
        %v865 = vand.u32 2147483647, %v753
        %v866 = vsub.f32 0.0, %v810
        %v867 = vsub.f32 0.0, %v811
        %v868 = vsub.f32 0.0, %v812
        %v869 = vsub.f32 0.0, %v813
        %v870 = vsub.f32 0.0, %v814
        %v871 = vsub.f32 0.0, %v815
        %v872 = vsub.f32 0.0, %v816
        %v873 = vsub.f32 0.0, %v817
        %v874 = vsub.f32 0.0, %v818
        %v875 = vsub.f32 0.0, %v819
        %v876 = vsub.f32 0.0, %v820
        %v877 = vsub.f32 0.0, %v821
        %v878 = vsub.f32 0.0, %v822
        %v879 = vsub.f32 0.0, %v823
        %v880 = vsub.f32 0.0, %v824
        %v881 = vsub.f32 0.0, %v825
        %v882 = vsub.f32 0.0, %v826
        %v883 = vsub.f32 0.0, %v827
        %v884 = vsub.f32 0.0, %v828
        %v885 = vsub.f32 0.0, %v829
        %v886 = vsub.f32 0.0, %v830
        %v887 = vsub.f32 0.0, %v831
        %v888 = vsub.f32 0.0, %v832
        %v889 = vsub.f32 0.0, %v833
        %v890 = vsub.f32 0.0, %v834
        %v891 = vsub.f32 0.0, %v835
        %v892 = vsub.f32 0.0, %v836
        %v893 = vsub.f32 0.0, %v837
        %v894 = vsub.f32 0.0, %v838
        %v895 = vsub.f32 0.0, %v839
        %v896 = vsub.f32 0.0, %v840
        %v897 = vsub.f32 0.0, %v841
        %v898 = vsub.f32 0.0, %v842
        %v899 = vsub.f32 0.0, %v843
        %v900 = vsub.f32 0.0, %v844
        %v901 = vsub.f32 0.0, %v845
        %v902 = vsub.f32 0.0, %v846
        %v903 = vsub.f32 0.0, %v847
        %v904 = vsub.f32 0.0, %v848
        %v905 = vsub.f32 0.0, %v849
        %v906 = vsub.f32 0.0, %v850
        %v907 = vsub.f32 0.0, %v851
        %v908 = vsub.f32 0.0, %v852
        %v909 = vsub.f32 0.0, %v853
        %v910 = vsub.f32 0.0, %v854
        %v911 = vsub.f32 0.0, %v855
        %v912 = vsub.f32 0.0, %v856
        %v913 = vsub.f32 0.0, %v857
        %v914 = vsub.f32 0.0, %v858
        %v915 = vsub.f32 0.0, %v859
        %v916 = vsub.f32 0.0, %v860
        %v917 = vsub.f32 0.0, %v861
        %v918 = vsub.f32 0.0, %v862
        %v919 = vsub.f32 0.0, %v863
        %v920 = vsub.f32 0.0, %v864
        %v921 = vsub.f32 0.0, %v865
        %v922 = vmul.f32 %v866, 1.442695
        %v923 = vpow.pop %v922
        %v924 = vmul.f32 %v867, 1.442695
        %v925 = vpow.pop %v924
        %v926 = vmul.f32 %v868, 1.442695
        %v927 = vpow.pop %v926
        %v928 = vmul.f32 %v869, 1.442695
        %v929 = vpow.pop %v928
        %v930 = vmul.f32 %v870, 1.442695
        %v931 = vpow.pop %v930
        %v932 = vmul.f32 %v871, 1.442695
        %v933 = vpow.pop %v932
        %v934 = vmul.f32 %v872, 1.442695
        %v935 = vpow.pop %v934
        %v936 = vmul.f32 %v873, 1.442695
        %v937 = vpow.pop %v936
        %v938 = vmul.f32 %v874, 1.442695
        %v939 = vpow.pop %v938
        %v940 = vmul.f32 %v875, 1.442695
        %v941 = vpow.pop %v940
        %v942 = vmul.f32 %v876, 1.442695
        %v943 = vpow.pop %v942
        %v944 = vmul.f32 %v877, 1.442695
        %v945 = vpow.pop %v944
        %v946 = vmul.f32 %v878, 1.442695
        %v947 = vpow.pop %v946
        %v948 = vmul.f32 %v879, 1.442695
        %v949 = vpow.pop %v948
        %v950 = vmul.f32 %v880, 1.442695
        %v951 = vpow.pop %v950
        %v952 = vmul.f32 %v881, 1.442695
        %v953 = vpow.pop %v952
        %v954 = vmul.f32 %v882, 1.442695
        %v955 = vpow.pop %v954
        %v956 = vmul.f32 %v883, 1.442695
        %v957 = vpow.pop %v956
        %v958 = vmul.f32 %v884, 1.442695
        %v959 = vpow.pop %v958
        %v960 = vmul.f32 %v885, 1.442695
        %v961 = vpow.pop %v960
        %v962 = vmul.f32 %v886, 1.442695
        %v963 = vpow.pop %v962
        %v964 = vmul.f32 %v887, 1.442695
        %v965 = vpow.pop %v964
        %v966 = vmul.f32 %v888, 1.442695
        %v967 = vpow.pop %v966
        %v968 = vmul.f32 %v889, 1.442695
        %v969 = vpow.pop %v968
        %v970 = vmul.f32 %v890, 1.442695
        %v971 = vpow.pop %v970
        %v972 = vmul.f32 %v891, 1.442695
        %v973 = vpow.pop %v972
        %v974 = vmul.f32 %v892, 1.442695
        %v975 = vpow.pop %v974
        %v976 = vmul.f32 %v893, 1.442695
        %v977 = vpow.pop %v976
        %v978 = vmul.f32 %v894, 1.442695
        %v979 = vpow.pop %v978
        %v980 = vmul.f32 %v895, 1.442695
        %v981 = vpow.pop %v980
        %v982 = vmul.f32 %v896, 1.442695
        %v983 = vpow.pop %v982
        %v984 = vmul.f32 %v897, 1.442695
        %v985 = vpow.pop %v984
        %v986 = vmul.f32 %v898, 1.442695
        %v987 = vpow.pop %v986
        %v988 = vmul.f32 %v899, 1.442695
        %v989 = vpow.pop %v988
        %v990 = vmul.f32 %v900, 1.442695
        %v991 = vpow.pop %v990
        %v992 = vmul.f32 %v901, 1.442695
        %v993 = vpow.pop %v992
        %v994 = vmul.f32 %v902, 1.442695
        %v995 = vpow.pop %v994
        %v996 = vmul.f32 %v903, 1.442695
        %v997 = vpow.pop %v996
        %v998 = vmul.f32 %v904, 1.442695
        %v999 = vpow.pop %v998
        %v1000 = vmul.f32 %v905, 1.442695
        %v1001 = vpow.pop %v1000
        %v1002 = vmul.f32 %v906, 1.442695
        %v1003 = vpow.pop %v1002
        %v1004 = vmul.f32 %v907, 1.442695
        %v1005 = vpow.pop %v1004
        %v1006 = vmul.f32 %v908, 1.442695
        %v1007 = vpow.pop %v1006
        %v1008 = vmul.f32 %v909, 1.442695
        %v1009 = vpow.pop %v1008
        %v1010 = vmul.f32 %v910, 1.442695
        %v1011 = vpow.pop %v1010
        %v1012 = vmul.f32 %v911, 1.442695
        %v1013 = vpow.pop %v1012
        %v1014 = vmul.f32 %v912, 1.442695
        %v1015 = vpow.pop %v1014
        %v1016 = vmul.f32 %v913, 1.442695
        %v1017 = vpow.pop %v1016
        %v1018 = vmul.f32 %v914, 1.442695
        %v1019 = vpow.pop %v1018
        %v1020 = vmul.f32 %v915, 1.442695
        %v1021 = vpow.pop %v1020
        %v1022 = vmul.f32 %v916, 1.442695
        %v1023 = vpow.pop %v1022
        %v1024 = vmul.f32 %v917, 1.442695
        %v1025 = vpow.pop %v1024
        %v1026 = vmul.f32 %v918, 1.442695
        %v1027 = vpow.pop %v1026
        %v1028 = vmul.f32 %v919, 1.442695
        %v1029 = vpow.pop %v1028
        %v1030 = vmul.f32 %v920, 1.442695
        %v1031 = vpow.pop %v1030
        %v1032 = vmul.f32 %v921, 1.442695
        %v1033 = vpow.pop %v1032
        %v1034 = vadd.f32 %v923, 1.0
        %v1035 = vlog2.pop %v1034
        %v1036 = vmul.f32 %v1035, 0.6931472
        %v1037 = vmul.f32 -0.5, %v923
        %v1038 = vadd.f32 %v1037, 1.0
        %v1039 = vmul.f32 %v1038, %v923
        %v1040 = vand.u32 2147483647, %v923
        %vm1041 = vcmp.lt.f32.partialorder %v1040, 0.0004427343
        %v1042 = vsel %vm1041, %v1039, %v1036
        %v1043 = vadd.f32 %v925, 1.0
        %v1044 = vlog2.pop %v1043
        %v1045 = vmul.f32 %v1044, 0.6931472
        %v1046 = vmul.f32 -0.5, %v925
        %v1047 = vadd.f32 %v1046, 1.0
        %v1048 = vmul.f32 %v1047, %v925
        %v1049 = vand.u32 2147483647, %v925
        %vm1050 = vcmp.lt.f32.partialorder %v1049, 0.0004427343
        %v1051 = vsel %vm1050, %v1048, %v1045
        %v1052 = vadd.f32 %v927, 1.0
        %v1053 = vlog2.pop %v1052
        %v1054 = vmul.f32 %v1053, 0.6931472
        %v1055 = vmul.f32 -0.5, %v927
        %v1056 = vadd.f32 %v1055, 1.0
        %v1057 = vmul.f32 %v1056, %v927
        %v1058 = vand.u32 2147483647, %v927
        %vm1059 = vcmp.lt.f32.partialorder %v1058, 0.0004427343
        %v1060 = vsel %vm1059, %v1057, %v1054
        %v1061 = vadd.f32 %v929, 1.0
        %v1062 = vlog2.pop %v1061
        %v1063 = vmul.f32 %v1062, 0.6931472
        %v1064 = vmul.f32 -0.5, %v929
        %v1065 = vadd.f32 %v1064, 1.0
        %v1066 = vmul.f32 %v1065, %v929
        %v1067 = vand.u32 2147483647, %v929
        %vm1068 = vcmp.lt.f32.partialorder %v1067, 0.0004427343
        %v1069 = vsel %vm1068, %v1066, %v1063
        %v1070 = vadd.f32 %v931, 1.0
        %v1071 = vlog2.pop %v1070
        %v1072 = vmul.f32 %v1071, 0.6931472
        %v1073 = vmul.f32 -0.5, %v931
        %v1074 = vadd.f32 %v1073, 1.0
        %v1075 = vmul.f32 %v1074, %v931
        %v1076 = vand.u32 2147483647, %v931
        %vm1077 = vcmp.lt.f32.partialorder %v1076, 0.0004427343
        %v1078 = vsel %vm1077, %v1075, %v1072
        %v1079 = vadd.f32 %v933, 1.0
        %v1080 = vlog2.pop %v1079
        %v1081 = vmul.f32 %v1080, 0.6931472
        %v1082 = vmul.f32 -0.5, %v933
        %v1083 = vadd.f32 %v1082, 1.0
        %v1084 = vmul.f32 %v1083, %v933
        %v1085 = vand.u32 2147483647, %v933
        %vm1086 = vcmp.lt.f32.partialorder %v1085, 0.0004427343
        %v1087 = vsel %vm1086, %v1084, %v1081
        %v1088 = vadd.f32 %v935, 1.0
        %v1089 = vlog2.pop %v1088
        %v1090 = vmul.f32 %v1089, 0.6931472
        %v1091 = vmul.f32 -0.5, %v935
        %v1092 = vadd.f32 %v1091, 1.0
        %v1093 = vmul.f32 %v1092, %v935
        %v1094 = vand.u32 2147483647, %v935
        %vm1095 = vcmp.lt.f32.partialorder %v1094, 0.0004427343
        %v1096 = vsel %vm1095, %v1093, %v1090
        %v1097 = vadd.f32 %v937, 1.0
        %v1098 = vlog2.pop %v1097
        %v1099 = vmul.f32 %v1098, 0.6931472
        %v1100 = vmul.f32 -0.5, %v937
        %v1101 = vadd.f32 %v1100, 1.0
        %v1102 = vmul.f32 %v1101, %v937
        %v1103 = vand.u32 2147483647, %v937
        %vm1104 = vcmp.lt.f32.partialorder %v1103, 0.0004427343
        %v1105 = vsel %vm1104, %v1102, %v1099
        %v1106 = vadd.f32 %v939, 1.0
        %v1107 = vlog2.pop %v1106
        %v1108 = vmul.f32 %v1107, 0.6931472
        %v1109 = vmul.f32 -0.5, %v939
        %v1110 = vadd.f32 %v1109, 1.0
        %v1111 = vmul.f32 %v1110, %v939
        %v1112 = vand.u32 2147483647, %v939
        %vm1113 = vcmp.lt.f32.partialorder %v1112, 0.0004427343
        %v1114 = vsel %vm1113, %v1111, %v1108
        %v1115 = vadd.f32 %v941, 1.0
        %v1116 = vlog2.pop %v1115
        %v1117 = vmul.f32 %v1116, 0.6931472
        %v1118 = vmul.f32 -0.5, %v941
        %v1119 = vadd.f32 %v1118, 1.0
        %v1120 = vmul.f32 %v1119, %v941
        %v1121 = vand.u32 2147483647, %v941
        %vm1122 = vcmp.lt.f32.partialorder %v1121, 0.0004427343
        %v1123 = vsel %vm1122, %v1120, %v1117
        %v1124 = vadd.f32 %v943, 1.0
        %v1125 = vlog2.pop %v1124
        %v1126 = vmul.f32 %v1125, 0.6931472
        %v1127 = vmul.f32 -0.5, %v943
        %v1128 = vadd.f32 %v1127, 1.0
        %v1129 = vmul.f32 %v1128, %v943
        %v1130 = vand.u32 2147483647, %v943
        %vm1131 = vcmp.lt.f32.partialorder %v1130, 0.0004427343
        %v1132 = vsel %vm1131, %v1129, %v1126
        %v1133 = vadd.f32 %v945, 1.0
        %v1134 = vlog2.pop %v1133
        %v1135 = vmul.f32 %v1134, 0.6931472
        %v1136 = vmul.f32 -0.5, %v945
        %v1137 = vadd.f32 %v1136, 1.0
        %v1138 = vmul.f32 %v1137, %v945
        %v1139 = vand.u32 2147483647, %v945
        %vm1140 = vcmp.lt.f32.partialorder %v1139, 0.0004427343
        %v1141 = vsel %vm1140, %v1138, %v1135
        %v1142 = vadd.f32 %v947, 1.0
        %v1143 = vlog2.pop %v1142
        %v1144 = vmul.f32 %v1143, 0.6931472
        %v1145 = vmul.f32 -0.5, %v947
        %v1146 = vadd.f32 %v1145, 1.0
        %v1147 = vmul.f32 %v1146, %v947
        %v1148 = vand.u32 2147483647, %v947
        %vm1149 = vcmp.lt.f32.partialorder %v1148, 0.0004427343
        %v1150 = vsel %vm1149, %v1147, %v1144
        %v1151 = vadd.f32 %v949, 1.0
        %v1152 = vlog2.pop %v1151
        %v1153 = vmul.f32 %v1152, 0.6931472
        %v1154 = vmul.f32 -0.5, %v949
        %v1155 = vadd.f32 %v1154, 1.0
        %v1156 = vmul.f32 %v1155, %v949
        %v1157 = vand.u32 2147483647, %v949
        %vm1158 = vcmp.lt.f32.partialorder %v1157, 0.0004427343
        %v1159 = vsel %vm1158, %v1156, %v1153
        %v1160 = vadd.f32 %v951, 1.0
        %v1161 = vlog2.pop %v1160
        %v1162 = vmul.f32 %v1161, 0.6931472
        %v1163 = vmul.f32 -0.5, %v951
        %v1164 = vadd.f32 %v1163, 1.0
        %v1165 = vmul.f32 %v1164, %v951
        %v1166 = vand.u32 2147483647, %v951
        %vm1167 = vcmp.lt.f32.partialorder %v1166, 0.0004427343
        %v1168 = vsel %vm1167, %v1165, %v1162
        %v1169 = vadd.f32 %v953, 1.0
        %v1170 = vlog2.pop %v1169
        %v1171 = vmul.f32 %v1170, 0.6931472
        %v1172 = vmul.f32 -0.5, %v953
        %v1173 = vadd.f32 %v1172, 1.0
        %v1174 = vmul.f32 %v1173, %v953
        %v1175 = vand.u32 2147483647, %v953
        %vm1176 = vcmp.lt.f32.partialorder %v1175, 0.0004427343
        %v1177 = vsel %vm1176, %v1174, %v1171
        %v1178 = vadd.f32 %v955, 1.0
        %v1179 = vlog2.pop %v1178
        %v1180 = vmul.f32 %v1179, 0.6931472
        %v1181 = vmul.f32 -0.5, %v955
        %v1182 = vadd.f32 %v1181, 1.0
        %v1183 = vmul.f32 %v1182, %v955
        %v1184 = vand.u32 2147483647, %v955
        %vm1185 = vcmp.lt.f32.partialorder %v1184, 0.0004427343
        %v1186 = vsel %vm1185, %v1183, %v1180
        %v1187 = vadd.f32 %v957, 1.0
        %v1188 = vlog2.pop %v1187
        %v1189 = vmul.f32 %v1188, 0.6931472
        %v1190 = vmul.f32 -0.5, %v957
        %v1191 = vadd.f32 %v1190, 1.0
        %v1192 = vmul.f32 %v1191, %v957
        %v1193 = vand.u32 2147483647, %v957
        %vm1194 = vcmp.lt.f32.partialorder %v1193, 0.0004427343
        %v1195 = vsel %vm1194, %v1192, %v1189
        %v1196 = vadd.f32 %v959, 1.0
        %v1197 = vlog2.pop %v1196
        %v1198 = vmul.f32 %v1197, 0.6931472
        %v1199 = vmul.f32 -0.5, %v959
        %v1200 = vadd.f32 %v1199, 1.0
        %v1201 = vmul.f32 %v1200, %v959
        %v1202 = vand.u32 2147483647, %v959
        %vm1203 = vcmp.lt.f32.partialorder %v1202, 0.0004427343
        %v1204 = vsel %vm1203, %v1201, %v1198
        %v1205 = vadd.f32 %v961, 1.0
        %v1206 = vlog2.pop %v1205
        %v1207 = vmul.f32 %v1206, 0.6931472
        %v1208 = vmul.f32 -0.5, %v961
        %v1209 = vadd.f32 %v1208, 1.0
        %v1210 = vmul.f32 %v1209, %v961
        %v1211 = vand.u32 2147483647, %v961
        %vm1212 = vcmp.lt.f32.partialorder %v1211, 0.0004427343
        %v1213 = vsel %vm1212, %v1210, %v1207
        %v1214 = vadd.f32 %v963, 1.0
        %v1215 = vlog2.pop %v1214
        %v1216 = vmul.f32 %v1215, 0.6931472
        %v1217 = vmul.f32 -0.5, %v963
        %v1218 = vadd.f32 %v1217, 1.0
        %v1219 = vmul.f32 %v1218, %v963
        %v1220 = vand.u32 2147483647, %v963
        %vm1221 = vcmp.lt.f32.partialorder %v1220, 0.0004427343
        %v1222 = vsel %vm1221, %v1219, %v1216
        %v1223 = vadd.f32 %v965, 1.0
        %v1224 = vlog2.pop %v1223
        %v1225 = vmul.f32 %v1224, 0.6931472
        %v1226 = vmul.f32 -0.5, %v965
        %v1227 = vadd.f32 %v1226, 1.0
        %v1228 = vmul.f32 %v1227, %v965
        %v1229 = vand.u32 2147483647, %v965
        %vm1230 = vcmp.lt.f32.partialorder %v1229, 0.0004427343
        %v1231 = vsel %vm1230, %v1228, %v1225
        %v1232 = vadd.f32 %v967, 1.0
        %v1233 = vlog2.pop %v1232
        %v1234 = vmul.f32 %v1233, 0.6931472
        %v1235 = vmul.f32 -0.5, %v967
        %v1236 = vadd.f32 %v1235, 1.0
        %v1237 = vmul.f32 %v1236, %v967
        %v1238 = vand.u32 2147483647, %v967
        %vm1239 = vcmp.lt.f32.partialorder %v1238, 0.0004427343
        %v1240 = vsel %vm1239, %v1237, %v1234
        %v1241 = vadd.f32 %v969, 1.0
        %v1242 = vlog2.pop %v1241
        %v1243 = vmul.f32 %v1242, 0.6931472
        %v1244 = vmul.f32 -0.5, %v969
        %v1245 = vadd.f32 %v1244, 1.0
        %v1246 = vmul.f32 %v1245, %v969
        %v1247 = vand.u32 2147483647, %v969
        %vm1248 = vcmp.lt.f32.partialorder %v1247, 0.0004427343
        %v1249 = vsel %vm1248, %v1246, %v1243
        %v1250 = vadd.f32 %v971, 1.0
        %v1251 = vlog2.pop %v1250
        %v1252 = vmul.f32 %v1251, 0.6931472
        %v1253 = vmul.f32 -0.5, %v971
        %v1254 = vadd.f32 %v1253, 1.0
        %v1255 = vmul.f32 %v1254, %v971
        %v1256 = vand.u32 2147483647, %v971
        %vm1257 = vcmp.lt.f32.partialorder %v1256, 0.0004427343
        %v1258 = vsel %vm1257, %v1255, %v1252
        %v1259 = vadd.f32 %v973, 1.0
        %v1260 = vlog2.pop %v1259
        %v1261 = vmul.f32 %v1260, 0.6931472
        %v1262 = vmul.f32 -0.5, %v973
        %v1263 = vadd.f32 %v1262, 1.0
        %v1264 = vmul.f32 %v1263, %v973
        %v1265 = vand.u32 2147483647, %v973
        %vm1266 = vcmp.lt.f32.partialorder %v1265, 0.0004427343
        %v1267 = vsel %vm1266, %v1264, %v1261
        %v1268 = vadd.f32 %v975, 1.0
        %v1269 = vlog2.pop %v1268
        %v1270 = vmul.f32 %v1269, 0.6931472
        %v1271 = vmul.f32 -0.5, %v975
        %v1272 = vadd.f32 %v1271, 1.0
        %v1273 = vmul.f32 %v1272, %v975
        %v1274 = vand.u32 2147483647, %v975
        %vm1275 = vcmp.lt.f32.partialorder %v1274, 0.0004427343
        %v1276 = vsel %vm1275, %v1273, %v1270
        %v1277 = vadd.f32 %v977, 1.0
        %v1278 = vlog2.pop %v1277
        %v1279 = vmul.f32 %v1278, 0.6931472
        %v1280 = vmul.f32 -0.5, %v977
        %v1281 = vadd.f32 %v1280, 1.0
        %v1282 = vmul.f32 %v1281, %v977
        %v1283 = vand.u32 2147483647, %v977
        %vm1284 = vcmp.lt.f32.partialorder %v1283, 0.0004427343
        %v1285 = vsel %vm1284, %v1282, %v1279
        %v1286 = vadd.f32 %v979, 1.0
        %v1287 = vlog2.pop %v1286
        %v1288 = vmul.f32 %v1287, 0.6931472
        %v1289 = vmul.f32 -0.5, %v979
        %v1290 = vadd.f32 %v1289, 1.0
        %v1291 = vmul.f32 %v1290, %v979
        %v1292 = vand.u32 2147483647, %v979
        %vm1293 = vcmp.lt.f32.partialorder %v1292, 0.0004427343
        %v1294 = vsel %vm1293, %v1291, %v1288
        %v1295 = vadd.f32 %v981, 1.0
        %v1296 = vlog2.pop %v1295
        %v1297 = vmul.f32 %v1296, 0.6931472
        %v1298 = vmul.f32 -0.5, %v981
        %v1299 = vadd.f32 %v1298, 1.0
        %v1300 = vmul.f32 %v1299, %v981
        %v1301 = vand.u32 2147483647, %v981
        %vm1302 = vcmp.lt.f32.partialorder %v1301, 0.0004427343
        %v1303 = vsel %vm1302, %v1300, %v1297
        %v1304 = vadd.f32 %v983, 1.0
        %v1305 = vlog2.pop %v1304
        %v1306 = vmul.f32 %v1305, 0.6931472
        %v1307 = vmul.f32 -0.5, %v983
        %v1308 = vadd.f32 %v1307, 1.0
        %v1309 = vmul.f32 %v1308, %v983
        %v1310 = vand.u32 2147483647, %v983
        %vm1311 = vcmp.lt.f32.partialorder %v1310, 0.0004427343
        %v1312 = vsel %vm1311, %v1309, %v1306
        %v1313 = vadd.f32 %v985, 1.0
        %v1314 = vlog2.pop %v1313
        %v1315 = vmul.f32 %v1314, 0.6931472
        %v1316 = vmul.f32 -0.5, %v985
        %v1317 = vadd.f32 %v1316, 1.0
        %v1318 = vmul.f32 %v1317, %v985
        %v1319 = vand.u32 2147483647, %v985
        %vm1320 = vcmp.lt.f32.partialorder %v1319, 0.0004427343
        %v1321 = vsel %vm1320, %v1318, %v1315
        %v1322 = vadd.f32 %v987, 1.0
        %v1323 = vlog2.pop %v1322
        %v1324 = vmul.f32 %v1323, 0.6931472
        %v1325 = vmul.f32 -0.5, %v987
        %v1326 = vadd.f32 %v1325, 1.0
        %v1327 = vmul.f32 %v1326, %v987
        %v1328 = vand.u32 2147483647, %v987
        %vm1329 = vcmp.lt.f32.partialorder %v1328, 0.0004427343
        %v1330 = vsel %vm1329, %v1327, %v1324
        %v1331 = vadd.f32 %v989, 1.0
        %v1332 = vlog2.pop %v1331
        %v1333 = vmul.f32 %v1332, 0.6931472
        %v1334 = vmul.f32 -0.5, %v989
        %v1335 = vadd.f32 %v1334, 1.0
        %v1336 = vmul.f32 %v1335, %v989
        %v1337 = vand.u32 2147483647, %v989
        %vm1338 = vcmp.lt.f32.partialorder %v1337, 0.0004427343
        %v1339 = vsel %vm1338, %v1336, %v1333
        %v1340 = vadd.f32 %v991, 1.0
        %v1341 = vlog2.pop %v1340
        %v1342 = vmul.f32 %v1341, 0.6931472
        %v1343 = vmul.f32 -0.5, %v991
        %v1344 = vadd.f32 %v1343, 1.0
        %v1345 = vmul.f32 %v1344, %v991
        %v1346 = vand.u32 2147483647, %v991
        %vm1347 = vcmp.lt.f32.partialorder %v1346, 0.0004427343
        %v1348 = vsel %vm1347, %v1345, %v1342
        %v1349 = vadd.f32 %v993, 1.0
        %v1350 = vlog2.pop %v1349
        %v1351 = vmul.f32 %v1350, 0.6931472
        %v1352 = vmul.f32 -0.5, %v993
        %v1353 = vadd.f32 %v1352, 1.0
        %v1354 = vmul.f32 %v1353, %v993
        %v1355 = vand.u32 2147483647, %v993
        %vm1356 = vcmp.lt.f32.partialorder %v1355, 0.0004427343
        %v1357 = vsel %vm1356, %v1354, %v1351
        %v1358 = vadd.f32 %v995, 1.0
        %v1359 = vlog2.pop %v1358
        %v1360 = vmul.f32 %v1359, 0.6931472
        %v1361 = vmul.f32 -0.5, %v995
        %v1362 = vadd.f32 %v1361, 1.0
        %v1363 = vmul.f32 %v1362, %v995
        %v1364 = vand.u32 2147483647, %v995
        %vm1365 = vcmp.lt.f32.partialorder %v1364, 0.0004427343
        %v1366 = vsel %vm1365, %v1363, %v1360
        %v1367 = vadd.f32 %v997, 1.0
        %v1368 = vlog2.pop %v1367
        %v1369 = vmul.f32 %v1368, 0.6931472
        %v1370 = vmul.f32 -0.5, %v997
        %v1371 = vadd.f32 %v1370, 1.0
        %v1372 = vmul.f32 %v1371, %v997
        %v1373 = vand.u32 2147483647, %v997
        %vm1374 = vcmp.lt.f32.partialorder %v1373, 0.0004427343
        %v1375 = vsel %vm1374, %v1372, %v1369
        %v1376 = vadd.f32 %v999, 1.0
        %v1377 = vlog2.pop %v1376
        %v1378 = vmul.f32 %v1377, 0.6931472
        %v1379 = vmul.f32 -0.5, %v999
        %v1380 = vadd.f32 %v1379, 1.0
        %v1381 = vmul.f32 %v1380, %v999
        %v1382 = vand.u32 2147483647, %v999
        %vm1383 = vcmp.lt.f32.partialorder %v1382, 0.0004427343
        %v1384 = vsel %vm1383, %v1381, %v1378
        %v1385 = vadd.f32 %v1001, 1.0
        %v1386 = vlog2.pop %v1385
        %v1387 = vmul.f32 %v1386, 0.6931472
        %v1388 = vmul.f32 -0.5, %v1001
        %v1389 = vadd.f32 %v1388, 1.0
        %v1390 = vmul.f32 %v1389, %v1001
        %v1391 = vand.u32 2147483647, %v1001
        %vm1392 = vcmp.lt.f32.partialorder %v1391, 0.0004427343
        %v1393 = vsel %vm1392, %v1390, %v1387
        %v1394 = vadd.f32 %v1003, 1.0
        %v1395 = vlog2.pop %v1394
        %v1396 = vmul.f32 %v1395, 0.6931472
        %v1397 = vmul.f32 -0.5, %v1003
        %v1398 = vadd.f32 %v1397, 1.0
        %v1399 = vmul.f32 %v1398, %v1003
        %v1400 = vand.u32 2147483647, %v1003
        %vm1401 = vcmp.lt.f32.partialorder %v1400, 0.0004427343
        %v1402 = vsel %vm1401, %v1399, %v1396
        %v1403 = vadd.f32 %v1005, 1.0
        %v1404 = vlog2.pop %v1403
        %v1405 = vmul.f32 %v1404, 0.6931472
        %v1406 = vmul.f32 -0.5, %v1005
        %v1407 = vadd.f32 %v1406, 1.0
        %v1408 = vmul.f32 %v1407, %v1005
        %v1409 = vand.u32 2147483647, %v1005
        %vm1410 = vcmp.lt.f32.partialorder %v1409, 0.0004427343
        %v1411 = vsel %vm1410, %v1408, %v1405
        %v1412 = vadd.f32 %v1007, 1.0
        %v1413 = vlog2.pop %v1412
        %v1414 = vmul.f32 %v1413, 0.6931472
        %v1415 = vmul.f32 -0.5, %v1007
        %v1416 = vadd.f32 %v1415, 1.0
        %v1417 = vmul.f32 %v1416, %v1007
        %v1418 = vand.u32 2147483647, %v1007
        %vm1419 = vcmp.lt.f32.partialorder %v1418, 0.0004427343
        %v1420 = vsel %vm1419, %v1417, %v1414
        %v1421 = vadd.f32 %v1009, 1.0
        %v1422 = vlog2.pop %v1421
        %v1423 = vmul.f32 %v1422, 0.6931472
        %v1424 = vmul.f32 -0.5, %v1009
        %v1425 = vadd.f32 %v1424, 1.0
        %v1426 = vmul.f32 %v1425, %v1009
        %v1427 = vand.u32 2147483647, %v1009
        %vm1428 = vcmp.lt.f32.partialorder %v1427, 0.0004427343
        %v1429 = vsel %vm1428, %v1426, %v1423
        %v1430 = vadd.f32 %v1011, 1.0
        %v1431 = vlog2.pop %v1430
        %v1432 = vmul.f32 %v1431, 0.6931472
        %v1433 = vmul.f32 -0.5, %v1011
        %v1434 = vadd.f32 %v1433, 1.0
        %v1435 = vmul.f32 %v1434, %v1011
        %v1436 = vand.u32 2147483647, %v1011
        %vm1437 = vcmp.lt.f32.partialorder %v1436, 0.0004427343
        %v1438 = vsel %vm1437, %v1435, %v1432
        %v1439 = vadd.f32 %v1013, 1.0
        %v1440 = vlog2.pop %v1439
        %v1441 = vmul.f32 %v1440, 0.6931472
        %v1442 = vmul.f32 -0.5, %v1013
        %v1443 = vadd.f32 %v1442, 1.0
        %v1444 = vmul.f32 %v1443, %v1013
        %v1445 = vand.u32 2147483647, %v1013
        %vm1446 = vcmp.lt.f32.partialorder %v1445, 0.0004427343
        %v1447 = vsel %vm1446, %v1444, %v1441
        %v1448 = vadd.f32 %v1015, 1.0
        %v1449 = vlog2.pop %v1448
        %v1450 = vmul.f32 %v1449, 0.6931472
        %v1451 = vmul.f32 -0.5, %v1015
        %v1452 = vadd.f32 %v1451, 1.0
        %v1453 = vmul.f32 %v1452, %v1015
        %v1454 = vand.u32 2147483647, %v1015
        %vm1455 = vcmp.lt.f32.partialorder %v1454, 0.0004427343
        %v1456 = vsel %vm1455, %v1453, %v1450
        %v1457 = vadd.f32 %v1017, 1.0
        %v1458 = vlog2.pop %v1457
        %v1459 = vmul.f32 %v1458, 0.6931472
        %v1460 = vmul.f32 -0.5, %v1017
        %v1461 = vadd.f32 %v1460, 1.0
        %v1462 = vmul.f32 %v1461, %v1017
        %v1463 = vand.u32 2147483647, %v1017
        %vm1464 = vcmp.lt.f32.partialorder %v1463, 0.0004427343
        %v1465 = vsel %vm1464, %v1462, %v1459
        %v1466 = vadd.f32 %v1019, 1.0
        %v1467 = vlog2.pop %v1466
        %v1468 = vmul.f32 %v1467, 0.6931472
        %v1469 = vmul.f32 -0.5, %v1019
        %v1470 = vadd.f32 %v1469, 1.0
        %v1471 = vmul.f32 %v1470, %v1019
        %v1472 = vand.u32 2147483647, %v1019
        %vm1473 = vcmp.lt.f32.partialorder %v1472, 0.0004427343
        %v1474 = vsel %vm1473, %v1471, %v1468
        %v1475 = vadd.f32 %v1021, 1.0
        %v1476 = vlog2.pop %v1475
        %v1477 = vmul.f32 %v1476, 0.6931472
        %v1478 = vmul.f32 -0.5, %v1021
        %v1479 = vadd.f32 %v1478, 1.0
        %v1480 = vmul.f32 %v1479, %v1021
        %v1481 = vand.u32 2147483647, %v1021
        %vm1482 = vcmp.lt.f32.partialorder %v1481, 0.0004427343
        %v1483 = vsel %vm1482, %v1480, %v1477
        %v1484 = vadd.f32 %v1023, 1.0
        %v1485 = vlog2.pop %v1484
        %v1486 = vmul.f32 %v1485, 0.6931472
        %v1487 = vmul.f32 -0.5, %v1023
        %v1488 = vadd.f32 %v1487, 1.0
        %v1489 = vmul.f32 %v1488, %v1023
        %v1490 = vand.u32 2147483647, %v1023
        %vm1491 = vcmp.lt.f32.partialorder %v1490, 0.0004427343
        %v1492 = vsel %vm1491, %v1489, %v1486
        %v1493 = vadd.f32 %v1025, 1.0
        %v1494 = vlog2.pop %v1493
        %v1495 = vmul.f32 %v1494, 0.6931472
        %v1496 = vmul.f32 -0.5, %v1025
        %v1497 = vadd.f32 %v1496, 1.0
        %v1498 = vmul.f32 %v1497, %v1025
        %v1499 = vand.u32 2147483647, %v1025
        %vm1500 = vcmp.lt.f32.partialorder %v1499, 0.0004427343
        %v1501 = vsel %vm1500, %v1498, %v1495
        %v1502 = vadd.f32 %v1027, 1.0
        %v1503 = vlog2.pop %v1502
        %v1504 = vmul.f32 %v1503, 0.6931472
        %v1505 = vmul.f32 -0.5, %v1027
        %v1506 = vadd.f32 %v1505, 1.0
        %v1507 = vmul.f32 %v1506, %v1027
        %v1508 = vand.u32 2147483647, %v1027
        %vm1509 = vcmp.lt.f32.partialorder %v1508, 0.0004427343
        %v1510 = vsel %vm1509, %v1507, %v1504
        %v1511 = vadd.f32 %v1029, 1.0
        %v1512 = vlog2.pop %v1511
        %v1513 = vmul.f32 %v1512, 0.6931472
        %v1514 = vmul.f32 -0.5, %v1029
        %v1515 = vadd.f32 %v1514, 1.0
        %v1516 = vmul.f32 %v1515, %v1029
        %v1517 = vand.u32 2147483647, %v1029
        %vm1518 = vcmp.lt.f32.partialorder %v1517, 0.0004427343
        %v1519 = vsel %vm1518, %v1516, %v1513
        %v1520 = vadd.f32 %v1031, 1.0
        %v1521 = vlog2.pop %v1520
        %v1522 = vmul.f32 %v1521, 0.6931472
        %v1523 = vmul.f32 -0.5, %v1031
        %v1524 = vadd.f32 %v1523, 1.0
        %v1525 = vmul.f32 %v1524, %v1031
        %v1526 = vand.u32 2147483647, %v1031
        %vm1527 = vcmp.lt.f32.partialorder %v1526, 0.0004427343
        %v1528 = vsel %vm1527, %v1525, %v1522
        %v1529 = vadd.f32 %v1033, 1.0
        %v1530 = vlog2.pop %v1529
        %v1531 = vmul.f32 %v1530, 0.6931472
        %v1532 = vmul.f32 -0.5, %v1033
        %v1533 = vadd.f32 %v1532, 1.0
        %v1534 = vmul.f32 %v1533, %v1033
        %v1535 = vand.u32 2147483647, %v1033
        %vm1536 = vcmp.lt.f32.partialorder %v1535, 0.0004427343
        %v1537 = vsel %vm1536, %v1534, %v1531
        %v1538 = vadd.f32 %v754, %v1042
        %v1539 = vadd.f32 %v755, %v1051
        %v1540 = vadd.f32 %v756, %v1060
        %v1541 = vadd.f32 %v757, %v1069
        %v1542 = vadd.f32 %v758, %v1078
        %v1543 = vadd.f32 %v759, %v1087
        %v1544 = vadd.f32 %v760, %v1096
        %v1545 = vadd.f32 %v761, %v1105
        %v1546 = vadd.f32 %v762, %v1114
        %v1547 = vadd.f32 %v763, %v1123
        %v1548 = vadd.f32 %v764, %v1132
        %v1549 = vadd.f32 %v765, %v1141
        %v1550 = vadd.f32 %v766, %v1150
        %v1551 = vadd.f32 %v767, %v1159
        %v1552 = vadd.f32 %v768, %v1168
        %v1553 = vadd.f32 %v769, %v1177
        %v1554 = vadd.f32 %v770, %v1186
        %v1555 = vadd.f32 %v771, %v1195
        %v1556 = vadd.f32 %v772, %v1204
        %v1557 = vadd.f32 %v773, %v1213
        %v1558 = vadd.f32 %v774, %v1222
        %v1559 = vadd.f32 %v775, %v1231
        %v1560 = vadd.f32 %v776, %v1240
        %v1561 = vadd.f32 %v777, %v1249
        %v1562 = vadd.f32 %v778, %v1258
        %v1563 = vadd.f32 %v779, %v1267
        %v1564 = vadd.f32 %v780, %v1276
        %v1565 = vadd.f32 %v781, %v1285
        %v1566 = vadd.f32 %v782, %v1294
        %v1567 = vadd.f32 %v783, %v1303
        %v1568 = vadd.f32 %v784, %v1312
        %v1569 = vadd.f32 %v785, %v1321
        %v1570 = vadd.f32 %v786, %v1330
        %v1571 = vadd.f32 %v787, %v1339
        %v1572 = vadd.f32 %v788, %v1348
        %v1573 = vadd.f32 %v789, %v1357
        %v1574 = vadd.f32 %v790, %v1366
        %v1575 = vadd.f32 %v791, %v1375
        %v1576 = vadd.f32 %v792, %v1384
        %v1577 = vadd.f32 %v793, %v1393
        %v1578 = vadd.f32 %v794, %v1402
        %v1579 = vadd.f32 %v795, %v1411
        %v1580 = vadd.f32 %v796, %v1420
        %v1581 = vadd.f32 %v797, %v1429
        %v1582 = vadd.f32 %v798, %v1438
        %v1583 = vadd.f32 %v799, %v1447
        %v1584 = vadd.f32 %v800, %v1456
        %v1585 = vadd.f32 %v801, %v1465
        %v1586 = vadd.f32 %v802, %v1474
        %v1587 = vadd.f32 %v803, %v1483
        %v1588 = vadd.f32 %v804, %v1492
        %v1589 = vadd.f32 %v805, %v1501
        %v1590 = vadd.f32 %v806, %v1510
        %v1591 = vadd.f32 %v807, %v1519
        %v1592 = vadd.f32 %v808, %v1528
        %v1593 = vadd.f32 %v809, %v1537
        %v1594 = vld [vmem:[%s468] sm:$0xff]
        %v1595 = vld [vmem:[%s468 + $0x8] sm:$0xff]
        %v1596 = vld [vmem:[%s468 + $0x10] sm:$0xff]
        %v1597 = vld [vmem:[%s468 + $0x18] sm:$0xff]
        %v1598 = vld [vmem:[%s468 + $0x20] sm:$0xff]
        %v1599 = vld [vmem:[%s468 + $0x28] sm:$0xff]
        %v1600 = vld [vmem:[%s468 + $0x30] sm:$0xff]
        %v1601 = vld [vmem:[%s468 + $0x38] sm:$0xff]
        %v1602 = vld [vmem:[%s468 + $0x40] sm:$0xff]
        %v1603 = vld [vmem:[%s468 + $0x48] sm:$0xff]
        %v1604 = vld [vmem:[%s468 + $0x50] sm:$0xff]
        %v1605 = vld [vmem:[%s468 + $0x58] sm:$0xff]
        %v1606 = vld [vmem:[%s468 + $0x60] sm:$0xff]
        %v1607 = vld [vmem:[%s468 + $0x68] sm:$0xff]
        %v1608 = vld [vmem:[%s468 + $0x70] sm:$0xff]
        %v1609 = vld [vmem:[%s468 + $0x78] sm:$0xff]
        %v1610 = vld [vmem:[%s468 + $0x80] sm:$0xff]
        %v1611 = vld [vmem:[%s468 + $0x88] sm:$0xff]
        %v1612 = vld [vmem:[%s468 + $0x90] sm:$0xff]
        %v1613 = vld [vmem:[%s468 + $0x98] sm:$0xff]
        %v1614 = vld [vmem:[%s468 + $0xa0] sm:$0xff]
        %v1615 = vld [vmem:[%s468 + $0xa8] sm:$0xff]
        %v1616 = vld [vmem:[%s468 + $0xb0] sm:$0xff]
        %v1617 = vld [vmem:[%s468 + $0xb8] sm:$0xff]
        %v1618 = vld [vmem:[%s468 + $0xc0] sm:$0xff]
        %v1619 = vld [vmem:[%s468 + $0xc8] sm:$0xff]
        %v1620 = vld [vmem:[%s468 + $0xd0] sm:$0xff]
        %v1621 = vld [vmem:[%s468 + $0xd8] sm:$0xff]
        %v1622 = vld [vmem:[%s468 + $0xe0] sm:$0xff]
        %v1623 = vld [vmem:[%s468 + $0xe8] sm:$0xff]
        %v1624 = vld [vmem:[%s468 + $0xf0] sm:$0xff]
        %v1625 = vld [vmem:[%s468 + $0xf8] sm:$0xff]
        %v1626 = vld [vmem:[%s468 + $0x100] sm:$0xff]
        %v1627 = vld [vmem:[%s468 + $0x108] sm:$0xff]
        %v1628 = vld [vmem:[%s468 + $0x110] sm:$0xff]
        %v1629 = vld [vmem:[%s468 + $0x118] sm:$0xff]
        %v1630 = vld [vmem:[%s468 + $0x120] sm:$0xff]
        %v1631 = vld [vmem:[%s468 + $0x128] sm:$0xff]
        %v1632 = vld [vmem:[%s468 + $0x130] sm:$0xff]
        %v1633 = vld [vmem:[%s468 + $0x138] sm:$0xff]
        %v1634 = vld [vmem:[%s468 + $0x140] sm:$0xff]
        %v1635 = vld [vmem:[%s468 + $0x148] sm:$0xff]
        %v1636 = vld [vmem:[%s468 + $0x150] sm:$0xff]
        %v1637 = vld [vmem:[%s468 + $0x158] sm:$0xff]
        %v1638 = vld [vmem:[%s468 + $0x160] sm:$0xff]
        %v1639 = vld [vmem:[%s468 + $0x168] sm:$0xff]
        %v1640 = vld [vmem:[%s468 + $0x170] sm:$0xff]
        %v1641 = vld [vmem:[%s468 + $0x178] sm:$0xff]
        %v1642 = vld [vmem:[%s468 + $0x180] sm:$0xff]
        %v1643 = vld [vmem:[%s468 + $0x188] sm:$0xff]
        %v1644 = vld [vmem:[%s468 + $0x190] sm:$0xff]
        %v1645 = vld [vmem:[%s468 + $0x198] sm:$0xff]
        %v1646 = vld [vmem:[%s468 + $0x1a0] sm:$0xff]
        %v1647 = vld [vmem:[%s468 + $0x1a8] sm:$0xff]
        %v1648 = vld [vmem:[%s468 + $0x1b0] sm:$0xff]
        %v1649 = vld [vmem:[%s468 + $0x1b8] sm:$0xff]
        %v1650 = vmul.f32 %v1538, %v642
        %v1651 = vmul.f32 %v1539, %v643
        %v1652 = vmul.f32 %v1540, %v644
        %v1653 = vmul.f32 %v1541, %v645
        %v1654 = vmul.f32 %v1542, %v646
        %v1655 = vmul.f32 %v1543, %v647
        %v1656 = vmul.f32 %v1544, %v648
        %v1657 = vmul.f32 %v1545, %v649
        %v1658 = vmul.f32 %v1546, %v650
        %v1659 = vmul.f32 %v1547, %v651
        %v1660 = vmul.f32 %v1548, %v652
        %v1661 = vmul.f32 %v1549, %v653
        %v1662 = vmul.f32 %v1550, %v654
        %v1663 = vmul.f32 %v1551, %v655
        %v1664 = vmul.f32 %v1552, %v656
        %v1665 = vmul.f32 %v1553, %v657
        %v1666 = vmul.f32 %v1554, %v658
        %v1667 = vmul.f32 %v1555, %v659
        %v1668 = vmul.f32 %v1556, %v660
        %v1669 = vmul.f32 %v1557, %v661
        %v1670 = vmul.f32 %v1558, %v662
        %v1671 = vmul.f32 %v1559, %v663
        %v1672 = vmul.f32 %v1560, %v664
        %v1673 = vmul.f32 %v1561, %v665
        %v1674 = vmul.f32 %v1562, %v666
        %v1675 = vmul.f32 %v1563, %v667
        %v1676 = vmul.f32 %v1564, %v668
        %v1677 = vmul.f32 %v1565, %v669
        %v1678 = vmul.f32 %v1566, %v670
        %v1679 = vmul.f32 %v1567, %v671
        %v1680 = vmul.f32 %v1568, %v672
        %v1681 = vmul.f32 %v1569, %v673
        %v1682 = vmul.f32 %v1570, %v674
        %v1683 = vmul.f32 %v1571, %v675
        %v1684 = vmul.f32 %v1572, %v676
        %v1685 = vmul.f32 %v1573, %v677
        %v1686 = vmul.f32 %v1574, %v678
        %v1687 = vmul.f32 %v1575, %v679
        %v1688 = vmul.f32 %v1576, %v680
        %v1689 = vmul.f32 %v1577, %v681
        %v1690 = vmul.f32 %v1578, %v682
        %v1691 = vmul.f32 %v1579, %v683
        %v1692 = vmul.f32 %v1580, %v684
        %v1693 = vmul.f32 %v1581, %v685
        %v1694 = vmul.f32 %v1582, %v686
        %v1695 = vmul.f32 %v1583, %v687
        %v1696 = vmul.f32 %v1584, %v688
        %v1697 = vmul.f32 %v1585, %v689
        %v1698 = vmul.f32 %v1586, %v690
        %v1699 = vmul.f32 %v1587, %v691
        %v1700 = vmul.f32 %v1588, %v692
        %v1701 = vmul.f32 %v1589, %v693
        %v1702 = vmul.f32 %v1590, %v694
        %v1703 = vmul.f32 %v1591, %v695
        %v1704 = vmul.f32 %v1592, %v696
        %v1705 = vmul.f32 %v1593, %v697
        %v1706 = vadd.f32 %v1594, %v1650
        %v1707 = vadd.f32 %v1595, %v1651
        %v1708 = vadd.f32 %v1596, %v1652
        %v1709 = vadd.f32 %v1597, %v1653
        %v1710 = vadd.f32 %v1598, %v1654
        %v1711 = vadd.f32 %v1599, %v1655
        %v1712 = vadd.f32 %v1600, %v1656
        %v1713 = vadd.f32 %v1601, %v1657
        %v1714 = vadd.f32 %v1602, %v1658
        %v1715 = vadd.f32 %v1603, %v1659
        %v1716 = vadd.f32 %v1604, %v1660
        %v1717 = vadd.f32 %v1605, %v1661
        %v1718 = vadd.f32 %v1606, %v1662
        %v1719 = vadd.f32 %v1607, %v1663
        %v1720 = vadd.f32 %v1608, %v1664
        %v1721 = vadd.f32 %v1609, %v1665
        %v1722 = vadd.f32 %v1610, %v1666
        %v1723 = vadd.f32 %v1611, %v1667
        %v1724 = vadd.f32 %v1612, %v1668
        %v1725 = vadd.f32 %v1613, %v1669
        %v1726 = vadd.f32 %v1614, %v1670
        %v1727 = vadd.f32 %v1615, %v1671
        %v1728 = vadd.f32 %v1616, %v1672
        %v1729 = vadd.f32 %v1617, %v1673
        %v1730 = vadd.f32 %v1618, %v1674
        %v1731 = vadd.f32 %v1619, %v1675
        %v1732 = vadd.f32 %v1620, %v1676
        %v1733 = vadd.f32 %v1621, %v1677
        %v1734 = vadd.f32 %v1622, %v1678
        %v1735 = vadd.f32 %v1623, %v1679
        %v1736 = vadd.f32 %v1624, %v1680
        %v1737 = vadd.f32 %v1625, %v1681
        %v1738 = vadd.f32 %v1626, %v1682
        %v1739 = vadd.f32 %v1627, %v1683
        %v1740 = vadd.f32 %v1628, %v1684
        %v1741 = vadd.f32 %v1629, %v1685
        %v1742 = vadd.f32 %v1630, %v1686
        %v1743 = vadd.f32 %v1631, %v1687
        %v1744 = vadd.f32 %v1632, %v1688
        %v1745 = vadd.f32 %v1633, %v1689
        %v1746 = vadd.f32 %v1634, %v1690
        %v1747 = vadd.f32 %v1635, %v1691
        %v1748 = vadd.f32 %v1636, %v1692
        %v1749 = vadd.f32 %v1637, %v1693
        %v1750 = vadd.f32 %v1638, %v1694
        %v1751 = vadd.f32 %v1639, %v1695
        %v1752 = vadd.f32 %v1640, %v1696
        %v1753 = vadd.f32 %v1641, %v1697
        %v1754 = vadd.f32 %v1642, %v1698
        %v1755 = vadd.f32 %v1643, %v1699
        %v1756 = vadd.f32 %v1644, %v1700
        %v1757 = vadd.f32 %v1645, %v1701
        %v1758 = vadd.f32 %v1646, %v1702
        %v1759 = vadd.f32 %v1647, %v1703
        %v1760 = vadd.f32 %v1648, %v1704
        %v1761 = vadd.f32 %v1649, %v1705
        %s1762 = smul.u32 %s24, 2
        %s1763 = scalar_lea.vmem %s0, %s1762
        %v1764 = vld [vmem:[%s1763] sm:$0x3]
        %v1765 = vld [vmem:[#allocation2] sm:$0xff]
        %vm1766 = vcmask 916480
        %v1768 = vsel %vm1766, %v1764, 0
        %1770 = vmatprep.subr.mxu0 0.0
        %1771 = vmatpush1.msra.mxu0 0.0
        %1772 = vmatprep.subr.mxu0 0.0
        %1773 = vmatpush1.msra.mxu0 0.0
        %1774 = vmatprep.subr.mxu0 %v1759
        %1775 = vmatpush1.msra.mxu0 %v1758
        %1776 = vmatprep.subr.mxu0 %v1755
        %1777 = vmatpush1.msra.mxu0 %v1754
        %1778 = vmatprep.subr.mxu0 %v1751
        %1779 = vmatpush1.msra.mxu0 %v1750
        %1780 = vmatprep.subr.mxu0 %v1747
        %1781 = vmatpush1.msra.mxu0 %v1746
        %1782 = vmatprep.subr.mxu0 %v1743
        %1783 = vmatpush1.msra.mxu0 %v1742
        %1784 = vmatprep.subr.mxu0 %v1739
        %1785 = vmatpush1.msra.mxu0 %v1738
        %1786 = vmatprep.subr.mxu0 %v1735
        %1787 = vmatpush1.msra.mxu0 %v1734
        %1788 = vmatprep.subr.mxu0 %v1731
        %1789 = vmatpush1.msra.mxu0 %v1730
        %1790 = vmatprep.subr.mxu0 %v1727
        %1791 = vmatpush1.msra.mxu0 %v1726
        %1792 = vmatprep.subr.mxu0 %v1723
        %1793 = vmatpush1.msra.mxu0 %v1722
        %1794 = vmatprep.subr.mxu0 %v1719
        %1795 = vmatpush1.msra.mxu0 %v1718
        %1796 = vmatprep.subr.mxu0 %v1715
        %1797 = vmatpush1.msra.mxu0 %v1714
        %1798 = vmatprep.subr.mxu0 %v1711
        %1799 = vmatpush1.msra.mxu0 %v1710
        %1800 = vmatprep.subr.mxu0 %v1707
        %1801 = vmatpush1.msra.mxu0 %v1706
        %1802 = vmatprep.subr.mxu0 0.0
        %1803 = vmatpush2.msra.mxu0 0.0
        %1804 = vmatprep.subr.mxu0 0.0
        %1805 = vmatpush2.msra.mxu0 0.0
        %1806 = vmatprep.subr.mxu0 0.0
        %1807 = vmatpush2.msra.mxu0 0.0
        %1808 = vmatprep.subr.mxu0 0.0
        %1809 = vmatpush2.msra.mxu0 0.0
        %1810 = vmatprep.subr.mxu0 0.0
        %1811 = vmatpush2.msra.mxu0 0.0
        %1812 = vmatprep.subr.mxu0 0.0
        %1813 = vmatpush2.msra.mxu0 0.0
        %1814 = vmatprep.subr.mxu0 0.0
        %1815 = vmatpush2.msra.mxu0 0.0
        %1816 = vmatprep.subr.mxu0 0.0
        %1817 = vmatpush2.msra.mxu0 0.0
        %1818 = vmatprep.subr.mxu0 0.0
        %1819 = vmatpush2.msra.mxu0 0.0
        %1820 = vmatprep.subr.mxu0 0.0
        %1821 = vmatpush2.msra.mxu0 0.0
        %1822 = vmatprep.subr.mxu0 0.0
        %1823 = vmatpush2.msra.mxu0 0.0
        %1824 = vmatprep.subr.mxu0 0.0
        %1825 = vmatpush2.msra.mxu0 0.0
        %1826 = vmatprep.subr.mxu0 0.0
        %1827 = vmatpush2.msra.mxu0 0.0
        %1828 = vmatprep.subr.mxu0 0.0
        %1829 = vmatpush2.msra.mxu0 0.0
        %1830 = vmatprep.subr.mxu0 0.0
        %1831 = vmatpush2.msra.mxu0 0.0
        %1832 = vmatprep.subr.mxu0 0.0
        %1833 = vmatpush2.msra.mxu0 0.0
        %1834 = vmatprep.mubr.f32.mxu0 0.0
        %1835 = vmatmul.mubr.f32.gmra.mxu0 %v1768
        %v1836 = vpop.f32.mrf.mxu0
        %v1837 = vadd.f32 0.0, %v1836
        %v1838 = vpop.f32.mrf.mxu0
        %v1839 = vadd.f32 0.0, %v1838
        %1840 = vdwg.mxu0
        %1841 = vmatprep.subr.mxu0 0.0
        %1842 = vmatpush1.msra.mxu0 0.0
        %1843 = vmatprep.subr.mxu0 0.0
        %1844 = vmatpush1.msra.mxu0 0.0
        %1845 = vmatprep.subr.mxu0 %v1761
        %1846 = vmatpush1.msra.mxu0 %v1760
        %1847 = vmatprep.subr.mxu0 %v1757
        %1848 = vmatpush1.msra.mxu0 %v1756
        %1849 = vmatprep.subr.mxu0 %v1753
        %1850 = vmatpush1.msra.mxu0 %v1752
        %1851 = vmatprep.subr.mxu0 %v1749
        %1852 = vmatpush1.msra.mxu0 %v1748
        %1853 = vmatprep.subr.mxu0 %v1745
        %1854 = vmatpush1.msra.mxu0 %v1744
        %1855 = vmatprep.subr.mxu0 %v1741
        %1856 = vmatpush1.msra.mxu0 %v1740
        %1857 = vmatprep.subr.mxu0 %v1737
        %1858 = vmatpush1.msra.mxu0 %v1736
        %1859 = vmatprep.subr.mxu0 %v1733
        %1860 = vmatpush1.msra.mxu0 %v1732
        %1861 = vmatprep.subr.mxu0 %v1729
        %1862 = vmatpush1.msra.mxu0 %v1728
        %1863 = vmatprep.subr.mxu0 %v1725
        %1864 = vmatpush1.msra.mxu0 %v1724
        %1865 = vmatprep.subr.mxu0 %v1721
        %1866 = vmatpush1.msra.mxu0 %v1720
        %1867 = vmatprep.subr.mxu0 %v1717
        %1868 = vmatpush1.msra.mxu0 %v1716
        %1869 = vmatprep.subr.mxu0 %v1713
        %1870 = vmatpush1.msra.mxu0 %v1712
        %1871 = vmatprep.subr.mxu0 %v1709
        %1872 = vmatpush1.msra.mxu0 %v1708
        %1873 = vmatprep.subr.mxu0 0.0
        %1874 = vmatpush2.msra.mxu0 0.0
        %1875 = vmatprep.subr.mxu0 0.0
        %1876 = vmatpush2.msra.mxu0 0.0
        %1877 = vmatprep.subr.mxu0 0.0
        %1878 = vmatpush2.msra.mxu0 0.0
        %1879 = vmatprep.subr.mxu0 0.0
        %1880 = vmatpush2.msra.mxu0 0.0
        %1881 = vmatprep.subr.mxu0 0.0
        %1882 = vmatpush2.msra.mxu0 0.0
        %1883 = vmatprep.subr.mxu0 0.0
        %1884 = vmatpush2.msra.mxu0 0.0
        %1885 = vmatprep.subr.mxu0 0.0
        %1886 = vmatpush2.msra.mxu0 0.0
        %1887 = vmatprep.subr.mxu0 0.0
        %1888 = vmatpush2.msra.mxu0 0.0
        %1889 = vmatprep.subr.mxu0 0.0
        %1890 = vmatpush2.msra.mxu0 0.0
        %1891 = vmatprep.subr.mxu0 0.0
        %1892 = vmatpush2.msra.mxu0 0.0
        %1893 = vmatprep.subr.mxu0 0.0
        %1894 = vmatpush2.msra.mxu0 0.0
        %1895 = vmatprep.subr.mxu0 0.0
        %1896 = vmatpush2.msra.mxu0 0.0
        %1897 = vmatprep.subr.mxu0 0.0
        %1898 = vmatpush2.msra.mxu0 0.0
        %1899 = vmatprep.subr.mxu0 0.0
        %1900 = vmatpush2.msra.mxu0 0.0
        %1901 = vmatprep.subr.mxu0 0.0
        %1902 = vmatpush2.msra.mxu0 0.0
        %1903 = vmatprep.subr.mxu0 0.0
        %1904 = vmatpush2.msra.mxu0 0.0
        %1905 = vmatprep.mubr.f32.mxu0 0.0
        %1906 = vmatmul.mubr.f32.gmra.mxu0 %v1768
        %v1907 = vpop.f32.mrf.mxu0
        %v1908 = vadd.f32 0.0, %v1907
        %v1909 = vpop.f32.mrf.mxu0
        %v1910 = vadd.f32 0.0, %v1909
        %1911 = vdwg.mxu0
        %v1916 = vcombine.low %v1837, %v1839
        %v1917 = vcombine.low %v1908, %v1910
        %v1919 = vunpack.c.l.s4 1983009808
        %v1920 = vunpack.c.0.s8 %v1919
        %v1921 = vlaneseq
        %v1922 = vshrl.u32 %v1921, 7
        %v1923 = vsub.s32 %v1920, %v1922
        %v1924 = vrot.slane %v1916, %v1923
        %v1926 = vunpack.c.l.s4 1983009808
        %v1927 = vunpack.c.0.s8 %v1926
        %v1928 = vlaneseq
        %v1929 = vshrl.u32 %v1928, 7
        %v1930 = vsub.s32 %v1927, %v1929
        %v1931 = vrot.slane %v1917, %v1930
        %v1932 = vcombine.low %v1924, %v1931
        %v1934 = vadd.f32 %v1765, %v1932
        %vm1935 = vcmask 1041408
        %vm1936 = vcmask 1043458
        %vm1937 = vmor %vm1936, %vm1935
        %vm1938 = vcmask 1045508
        %vm1939 = vmor %vm1938, %vm1937
        %vm1940 = vcmask 130054
        %vm1941 = vmor %vm1940, %vm1939
        %1942 = vst.msk [vmem:[#allocation2] sm:$0xff] %vm1941, %v1934
        %v1943 = vld [vmem:[#allocation4] sm:$0xff]
        %v1944 = vld [vmem:[#allocation4 + $0x8] sm:$0xff]
        %v1945 = vld [vmem:[#allocation4 + $0x10] sm:$0xff]
        %v1946 = vld [vmem:[#allocation4 + $0x18] sm:$0xff]
        %v1947 = vld [vmem:[#allocation4 + $0x20] sm:$0xff]
        %v1948 = vld [vmem:[#allocation4 + $0x28] sm:$0xff]
        %v1949 = vld [vmem:[#allocation4 + $0x30] sm:$0xff]
        %v1950 = vld [vmem:[#allocation4 + $0x38] sm:$0xff]
        %v1951 = vld [vmem:[#allocation4 + $0x40] sm:$0xff]
        %v1952 = vld [vmem:[#allocation4 + $0x48] sm:$0xff]
        %v1953 = vld [vmem:[#allocation4 + $0x50] sm:$0xff]
        %v1954 = vld [vmem:[#allocation4 + $0x58] sm:$0xff]
        %v1955 = vld [vmem:[#allocation4 + $0x60] sm:$0xff]
        %v1956 = vld [vmem:[#allocation4 + $0x68] sm:$0xff]
        %v1957 = vld [vmem:[#allocation4 + $0x70] sm:$0xff]
        %v1958 = vld [vmem:[#allocation4 + $0x78] sm:$0xff]
        %v1959 = vld [vmem:[#allocation4 + $0x80] sm:$0xff]
        %v1960 = vld [vmem:[#allocation4 + $0x88] sm:$0xff]
        %v1961 = vld [vmem:[#allocation4 + $0x90] sm:$0xff]
        %v1962 = vld [vmem:[#allocation4 + $0x98] sm:$0xff]
        %v1963 = vld [vmem:[#allocation4 + $0xa0] sm:$0xff]
        %v1964 = vld [vmem:[#allocation4 + $0xa8] sm:$0xff]
        %v1965 = vld [vmem:[#allocation4 + $0xb0] sm:$0xff]
        %v1966 = vld [vmem:[#allocation4 + $0xb8] sm:$0xff]
        %v1967 = vld [vmem:[#allocation4 + $0xc0] sm:$0xff]
        %v1968 = vld [vmem:[#allocation4 + $0xc8] sm:$0xff]
        %v1969 = vld [vmem:[#allocation4 + $0xd0] sm:$0xff]
        %v1970 = vld [vmem:[#allocation4 + $0xd8] sm:$0xff]
        %v1971 = vld [vmem:[#allocation4 + $0xe0] sm:$0xff]
        %v1972 = vld [vmem:[#allocation4 + $0xe8] sm:$0xff]
        %v1973 = vld [vmem:[#allocation4 + $0xf0] sm:$0xff]
        %v1974 = vld [vmem:[#allocation4 + $0xf8] sm:$0xff]
        %v1975 = vld [vmem:[#allocation4 + $0x100] sm:$0xff]
        %v1976 = vld [vmem:[#allocation4 + $0x108] sm:$0xff]
        %v1977 = vld [vmem:[#allocation4 + $0x110] sm:$0xff]
        %v1978 = vld [vmem:[#allocation4 + $0x118] sm:$0xff]
        %v1979 = vld [vmem:[#allocation4 + $0x120] sm:$0xff]
        %v1980 = vld [vmem:[#allocation4 + $0x128] sm:$0xff]
        %v1981 = vld [vmem:[#allocation4 + $0x130] sm:$0xff]
        %v1982 = vld [vmem:[#allocation4 + $0x138] sm:$0xff]
        %v1983 = vld [vmem:[#allocation4 + $0x140] sm:$0xff]
        %v1984 = vld [vmem:[#allocation4 + $0x148] sm:$0xff]
        %v1985 = vld [vmem:[#allocation4 + $0x150] sm:$0xff]
        %v1986 = vld [vmem:[#allocation4 + $0x158] sm:$0xff]
        %v1987 = vld [vmem:[#allocation4 + $0x160] sm:$0xff]
        %v1988 = vld [vmem:[#allocation4 + $0x168] sm:$0xff]
        %v1989 = vld [vmem:[#allocation4 + $0x170] sm:$0xff]
        %v1990 = vld [vmem:[#allocation4 + $0x178] sm:$0xff]
        %v1991 = vld [vmem:[#allocation4 + $0x180] sm:$0xff]
        %v1992 = vld [vmem:[#allocation4 + $0x188] sm:$0xff]
        %v1993 = vld [vmem:[#allocation4 + $0x190] sm:$0xff]
        %v1994 = vld [vmem:[#allocation4 + $0x198] sm:$0xff]
        %v1995 = vld [vmem:[#allocation4 + $0x1a0] sm:$0xff]
        %v1996 = vld [vmem:[#allocation4 + $0x1a8] sm:$0xff]
        %v1997 = vld [vmem:[#allocation4 + $0x1b0] sm:$0xff]
        %v1998 = vld [vmem:[#allocation4 + $0x1b8] sm:$0xff]
        %v1999 = vmul.f32 %v1706, %v1706
        %v2000 = vmul.f32 %v1707, %v1707
        %v2001 = vmul.f32 %v1708, %v1708
        %v2002 = vmul.f32 %v1709, %v1709
        %v2003 = vmul.f32 %v1710, %v1710
        %v2004 = vmul.f32 %v1711, %v1711
        %v2005 = vmul.f32 %v1712, %v1712
        %v2006 = vmul.f32 %v1713, %v1713
        %v2007 = vmul.f32 %v1714, %v1714
        %v2008 = vmul.f32 %v1715, %v1715
        %v2009 = vmul.f32 %v1716, %v1716
        %v2010 = vmul.f32 %v1717, %v1717
        %v2011 = vmul.f32 %v1718, %v1718
        %v2012 = vmul.f32 %v1719, %v1719
        %v2013 = vmul.f32 %v1720, %v1720
        %v2014 = vmul.f32 %v1721, %v1721
        %v2015 = vmul.f32 %v1722, %v1722
        %v2016 = vmul.f32 %v1723, %v1723
        %v2017 = vmul.f32 %v1724, %v1724
        %v2018 = vmul.f32 %v1725, %v1725
        %v2019 = vmul.f32 %v1726, %v1726
        %v2020 = vmul.f32 %v1727, %v1727
        %v2021 = vmul.f32 %v1728, %v1728
        %v2022 = vmul.f32 %v1729, %v1729
        %v2023 = vmul.f32 %v1730, %v1730
        %v2024 = vmul.f32 %v1731, %v1731
        %v2025 = vmul.f32 %v1732, %v1732
        %v2026 = vmul.f32 %v1733, %v1733
        %v2027 = vmul.f32 %v1734, %v1734
        %v2028 = vmul.f32 %v1735, %v1735
        %v2029 = vmul.f32 %v1736, %v1736
        %v2030 = vmul.f32 %v1737, %v1737
        %v2031 = vmul.f32 %v1738, %v1738
        %v2032 = vmul.f32 %v1739, %v1739
        %v2033 = vmul.f32 %v1740, %v1740
        %v2034 = vmul.f32 %v1741, %v1741
        %v2035 = vmul.f32 %v1742, %v1742
        %v2036 = vmul.f32 %v1743, %v1743
        %v2037 = vmul.f32 %v1744, %v1744
        %v2038 = vmul.f32 %v1745, %v1745
        %v2039 = vmul.f32 %v1746, %v1746
        %v2040 = vmul.f32 %v1747, %v1747
        %v2041 = vmul.f32 %v1748, %v1748
        %v2042 = vmul.f32 %v1749, %v1749
        %v2043 = vmul.f32 %v1750, %v1750
        %v2044 = vmul.f32 %v1751, %v1751
        %v2045 = vmul.f32 %v1752, %v1752
        %v2046 = vmul.f32 %v1753, %v1753
        %v2047 = vmul.f32 %v1754, %v1754
        %v2048 = vmul.f32 %v1755, %v1755
        %v2049 = vmul.f32 %v1756, %v1756
        %v2050 = vmul.f32 %v1757, %v1757
        %v2051 = vmul.f32 %v1758, %v1758
        %v2052 = vmul.f32 %v1759, %v1759
        %v2053 = vmul.f32 %v1760, %v1760
        %v2054 = vmul.f32 %v1761, %v1761
        %v2055 = vadd.f32 %v1943, %v1999
        %v2056 = vadd.f32 %v1944, %v2000
        %v2057 = vadd.f32 %v1945, %v2001
        %v2058 = vadd.f32 %v1946, %v2002
        %v2059 = vadd.f32 %v1947, %v2003
        %v2060 = vadd.f32 %v1948, %v2004
        %v2061 = vadd.f32 %v1949, %v2005
        %v2062 = vadd.f32 %v1950, %v2006
        %v2063 = vadd.f32 %v1951, %v2007
        %v2064 = vadd.f32 %v1952, %v2008
        %v2065 = vadd.f32 %v1953, %v2009
        %v2066 = vadd.f32 %v1954, %v2010
        %v2067 = vadd.f32 %v1955, %v2011
        %v2068 = vadd.f32 %v1956, %v2012
        %v2069 = vadd.f32 %v1957, %v2013
        %v2070 = vadd.f32 %v1958, %v2014
        %v2071 = vadd.f32 %v1959, %v2015
        %v2072 = vadd.f32 %v1960, %v2016
        %v2073 = vadd.f32 %v1961, %v2017
        %v2074 = vadd.f32 %v1962, %v2018
        %v2075 = vadd.f32 %v1963, %v2019
        %v2076 = vadd.f32 %v1964, %v2020
        %v2077 = vadd.f32 %v1965, %v2021
        %v2078 = vadd.f32 %v1966, %v2022
        %v2079 = vadd.f32 %v1967, %v2023
        %v2080 = vadd.f32 %v1968, %v2024
        %v2081 = vadd.f32 %v1969, %v2025
        %v2082 = vadd.f32 %v1970, %v2026
        %v2083 = vadd.f32 %v1971, %v2027
        %v2084 = vadd.f32 %v1972, %v2028
        %v2085 = vadd.f32 %v1973, %v2029
        %v2086 = vadd.f32 %v1974, %v2030
        %v2087 = vadd.f32 %v1975, %v2031
        %v2088 = vadd.f32 %v1976, %v2032
        %v2089 = vadd.f32 %v1977, %v2033
        %v2090 = vadd.f32 %v1978, %v2034
        %v2091 = vadd.f32 %v1979, %v2035
        %v2092 = vadd.f32 %v1980, %v2036
        %v2093 = vadd.f32 %v1981, %v2037
        %v2094 = vadd.f32 %v1982, %v2038
        %v2095 = vadd.f32 %v1983, %v2039
        %v2096 = vadd.f32 %v1984, %v2040
        %v2097 = vadd.f32 %v1985, %v2041
        %v2098 = vadd.f32 %v1986, %v2042
        %v2099 = vadd.f32 %v1987, %v2043
        %v2100 = vadd.f32 %v1988, %v2044
        %v2101 = vadd.f32 %v1989, %v2045
        %v2102 = vadd.f32 %v1990, %v2046
        %v2103 = vadd.f32 %v1991, %v2047
        %v2104 = vadd.f32 %v1992, %v2048
        %v2105 = vadd.f32 %v1993, %v2049
        %v2106 = vadd.f32 %v1994, %v2050
        %v2107 = vadd.f32 %v1995, %v2051
        %v2108 = vadd.f32 %v1996, %v2052
        %v2109 = vadd.f32 %v1997, %v2053
        %v2110 = vadd.f32 %v1998, %v2054
        %2111 = vst [vmem:[#allocation4] sm:$0xff] %v2055
        %2112 = vst [vmem:[#allocation4 + $0x8] sm:$0xff] %v2056
        %2113 = vst [vmem:[#allocation4 + $0x10] sm:$0xff] %v2057
        %vm2114 = vcmask 130048
        %2115 = vst.msk [vmem:[#allocation4 + $0x18] sm:$0xff] %vm2114, %v2058
        %2116 = vst [vmem:[#allocation4 + $0x20] sm:$0xff] %v2059
        %2117 = vst [vmem:[#allocation4 + $0x28] sm:$0xff] %v2060
        %2118 = vst [vmem:[#allocation4 + $0x30] sm:$0xff] %v2061
        %2119 = vst.msk [vmem:[#allocation4 + $0x38] sm:$0xff] %vm2114, %v2062
        %2120 = vst [vmem:[#allocation4 + $0x40] sm:$0xff] %v2063
        %2121 = vst [vmem:[#allocation4 + $0x48] sm:$0xff] %v2064
        %2122 = vst [vmem:[#allocation4 + $0x50] sm:$0xff] %v2065
        %2123 = vst.msk [vmem:[#allocation4 + $0x58] sm:$0xff] %vm2114, %v2066
        %2124 = vst [vmem:[#allocation4 + $0x60] sm:$0xff] %v2067
        %2125 = vst [vmem:[#allocation4 + $0x68] sm:$0xff] %v2068
        %2126 = vst [vmem:[#allocation4 + $0x70] sm:$0xff] %v2069
        %2127 = vst.msk [vmem:[#allocation4 + $0x78] sm:$0xff] %vm2114, %v2070
        %2128 = vst [vmem:[#allocation4 + $0x80] sm:$0xff] %v2071
        %2129 = vst [vmem:[#allocation4 + $0x88] sm:$0xff] %v2072
        %2130 = vst [vmem:[#allocation4 + $0x90] sm:$0xff] %v2073
        %2131 = vst.msk [vmem:[#allocation4 + $0x98] sm:$0xff] %vm2114, %v2074
        %2132 = vst [vmem:[#allocation4 + $0xa0] sm:$0xff] %v2075
        %2133 = vst [vmem:[#allocation4 + $0xa8] sm:$0xff] %v2076
        %2134 = vst [vmem:[#allocation4 + $0xb0] sm:$0xff] %v2077
        %2135 = vst.msk [vmem:[#allocation4 + $0xb8] sm:$0xff] %vm2114, %v2078
        %2136 = vst [vmem:[#allocation4 + $0xc0] sm:$0xff] %v2079
        %2137 = vst [vmem:[#allocation4 + $0xc8] sm:$0xff] %v2080
        %2138 = vst [vmem:[#allocation4 + $0xd0] sm:$0xff] %v2081
        %2139 = vst.msk [vmem:[#allocation4 + $0xd8] sm:$0xff] %vm2114, %v2082
        %2140 = vst [vmem:[#allocation4 + $0xe0] sm:$0xff] %v2083
        %2141 = vst [vmem:[#allocation4 + $0xe8] sm:$0xff] %v2084
        %2142 = vst [vmem:[#allocation4 + $0xf0] sm:$0xff] %v2085
        %2143 = vst.msk [vmem:[#allocation4 + $0xf8] sm:$0xff] %vm2114, %v2086
        %2144 = vst [vmem:[#allocation4 + $0x100] sm:$0xff] %v2087
        %2145 = vst [vmem:[#allocation4 + $0x108] sm:$0xff] %v2088
        %2146 = vst [vmem:[#allocation4 + $0x110] sm:$0xff] %v2089
        %2147 = vst.msk [vmem:[#allocation4 + $0x118] sm:$0xff] %vm2114, %v2090
        %2148 = vst [vmem:[#allocation4 + $0x120] sm:$0xff] %v2091
        %2149 = vst [vmem:[#allocation4 + $0x128] sm:$0xff] %v2092
        %2150 = vst [vmem:[#allocation4 + $0x130] sm:$0xff] %v2093
        %2151 = vst.msk [vmem:[#allocation4 + $0x138] sm:$0xff] %vm2114, %v2094
        %2152 = vst [vmem:[#allocation4 + $0x140] sm:$0xff] %v2095
        %2153 = vst [vmem:[#allocation4 + $0x148] sm:$0xff] %v2096
        %2154 = vst [vmem:[#allocation4 + $0x150] sm:$0xff] %v2097
        %2155 = vst.msk [vmem:[#allocation4 + $0x158] sm:$0xff] %vm2114, %v2098
        %2156 = vst [vmem:[#allocation4 + $0x160] sm:$0xff] %v2099
        %2157 = vst [vmem:[#allocation4 + $0x168] sm:$0xff] %v2100
        %2158 = vst [vmem:[#allocation4 + $0x170] sm:$0xff] %v2101
        %2159 = vst.msk [vmem:[#allocation4 + $0x178] sm:$0xff] %vm2114, %v2102
        %2160 = vst [vmem:[#allocation4 + $0x180] sm:$0xff] %v2103
        %2161 = vst [vmem:[#allocation4 + $0x188] sm:$0xff] %v2104
        %2162 = vst [vmem:[#allocation4 + $0x190] sm:$0xff] %v2105
        %2163 = vst.msk [vmem:[#allocation4 + $0x198] sm:$0xff] %vm2114, %v2106
        %2164 = vst [vmem:[#allocation4 + $0x1a0] sm:$0xff] %v2107
        %2165 = vst [vmem:[#allocation4 + $0x1a8] sm:$0xff] %v2108
        %2166 = vst [vmem:[#allocation4 + $0x1b0] sm:$0xff] %v2109
        %2167 = vst.msk [vmem:[#allocation4 + $0x1b8] sm:$0xff] %vm2114, %v2110
        %v2168 = vld [vmem:[#allocation5] sm:$0xff]
        %v2169 = vld [vmem:[#allocation5 + $0x8] sm:$0xff]
        %v2170 = vld [vmem:[#allocation5 + $0x10] sm:$0xff]
        %v2171 = vld [vmem:[#allocation5 + $0x18] sm:$0xff]
        %v2172 = vld [vmem:[#allocation5 + $0x20] sm:$0xff]
        %v2173 = vld [vmem:[#allocation5 + $0x28] sm:$0xff]
        %v2174 = vld [vmem:[#allocation5 + $0x30] sm:$0xff]
        %v2175 = vld [vmem:[#allocation5 + $0x38] sm:$0xff]
        %v2176 = vld [vmem:[#allocation5 + $0x40] sm:$0xff]
        %v2177 = vld [vmem:[#allocation5 + $0x48] sm:$0xff]
        %v2178 = vld [vmem:[#allocation5 + $0x50] sm:$0xff]
        %v2179 = vld [vmem:[#allocation5 + $0x58] sm:$0xff]
        %v2180 = vld [vmem:[#allocation5 + $0x60] sm:$0xff]
        %v2181 = vld [vmem:[#allocation5 + $0x68] sm:$0xff]
        %v2182 = vld [vmem:[#allocation5 + $0x70] sm:$0xff]
        %v2183 = vld [vmem:[#allocation5 + $0x78] sm:$0xff]
        %v2184 = vld [vmem:[#allocation5 + $0x80] sm:$0xff]
        %v2185 = vld [vmem:[#allocation5 + $0x88] sm:$0xff]
        %v2186 = vld [vmem:[#allocation5 + $0x90] sm:$0xff]
        %v2187 = vld [vmem:[#allocation5 + $0x98] sm:$0xff]
        %v2188 = vld [vmem:[#allocation5 + $0xa0] sm:$0xff]
        %v2189 = vld [vmem:[#allocation5 + $0xa8] sm:$0xff]
        %v2190 = vld [vmem:[#allocation5 + $0xb0] sm:$0xff]
        %v2191 = vld [vmem:[#allocation5 + $0xb8] sm:$0xff]
        %v2192 = vld [vmem:[#allocation5 + $0xc0] sm:$0xff]
        %v2193 = vld [vmem:[#allocation5 + $0xc8] sm:$0xff]
        %v2194 = vld [vmem:[#allocation5 + $0xd0] sm:$0xff]
        %v2195 = vld [vmem:[#allocation5 + $0xd8] sm:$0xff]
        %v2196 = vld [vmem:[#allocation5 + $0xe0] sm:$0xff]
        %v2197 = vld [vmem:[#allocation5 + $0xe8] sm:$0xff]
        %v2198 = vld [vmem:[#allocation5 + $0xf0] sm:$0xff]
        %v2199 = vld [vmem:[#allocation5 + $0xf8] sm:$0xff]
        %v2200 = vld [vmem:[#allocation5 + $0x100] sm:$0xff]
        %v2201 = vld [vmem:[#allocation5 + $0x108] sm:$0xff]
        %v2202 = vld [vmem:[#allocation5 + $0x110] sm:$0xff]
        %v2203 = vld [vmem:[#allocation5 + $0x118] sm:$0xff]
        %v2204 = vld [vmem:[#allocation5 + $0x120] sm:$0xff]
        %v2205 = vld [vmem:[#allocation5 + $0x128] sm:$0xff]
        %v2206 = vld [vmem:[#allocation5 + $0x130] sm:$0xff]
        %v2207 = vld [vmem:[#allocation5 + $0x138] sm:$0xff]
        %v2208 = vld [vmem:[#allocation5 + $0x140] sm:$0xff]
        %v2209 = vld [vmem:[#allocation5 + $0x148] sm:$0xff]
        %v2210 = vld [vmem:[#allocation5 + $0x150] sm:$0xff]
        %v2211 = vld [vmem:[#allocation5 + $0x158] sm:$0xff]
        %v2212 = vld [vmem:[#allocation5 + $0x160] sm:$0xff]
        %v2213 = vld [vmem:[#allocation5 + $0x168] sm:$0xff]
        %v2214 = vld [vmem:[#allocation5 + $0x170] sm:$0xff]
        %v2215 = vld [vmem:[#allocation5 + $0x178] sm:$0xff]
        %v2216 = vld [vmem:[#allocation5 + $0x180] sm:$0xff]
        %v2217 = vld [vmem:[#allocation5 + $0x188] sm:$0xff]
        %v2218 = vld [vmem:[#allocation5 + $0x190] sm:$0xff]
        %v2219 = vld [vmem:[#allocation5 + $0x198] sm:$0xff]
        %v2220 = vld [vmem:[#allocation5 + $0x1a0] sm:$0xff]
        %v2221 = vld [vmem:[#allocation5 + $0x1a8] sm:$0xff]
        %v2222 = vld [vmem:[#allocation5 + $0x1b0] sm:$0xff]
        %v2223 = vld [vmem:[#allocation5 + $0x1b8] sm:$0xff]
        %v2224 = vmax.f32 %v1538, 1e-30
        %v2225 = vmax.f32 %v1539, 1e-30
        %v2226 = vmax.f32 %v1540, 1e-30
        %v2227 = vmax.f32 %v1541, 1e-30
        %v2228 = vmax.f32 %v1542, 1e-30
        %v2229 = vmax.f32 %v1543, 1e-30
        %v2230 = vmax.f32 %v1544, 1e-30
        %v2231 = vmax.f32 %v1545, 1e-30
        %v2232 = vmax.f32 %v1546, 1e-30
        %v2233 = vmax.f32 %v1547, 1e-30
        %v2234 = vmax.f32 %v1548, 1e-30
        %v2235 = vmax.f32 %v1549, 1e-30
        %v2236 = vmax.f32 %v1550, 1e-30
        %v2237 = vmax.f32 %v1551, 1e-30
        %v2238 = vmax.f32 %v1552, 1e-30
        %v2239 = vmax.f32 %v1553, 1e-30
        %v2240 = vmax.f32 %v1554, 1e-30
        %v2241 = vmax.f32 %v1555, 1e-30
        %v2242 = vmax.f32 %v1556, 1e-30
        %v2243 = vmax.f32 %v1557, 1e-30
        %v2244 = vmax.f32 %v1558, 1e-30
        %v2245 = vmax.f32 %v1559, 1e-30
        %v2246 = vmax.f32 %v1560, 1e-30
        %v2247 = vmax.f32 %v1561, 1e-30
        %v2248 = vmax.f32 %v1562, 1e-30
        %v2249 = vmax.f32 %v1563, 1e-30
        %v2250 = vmax.f32 %v1564, 1e-30
        %v2251 = vmax.f32 %v1565, 1e-30
        %v2252 = vmax.f32 %v1566, 1e-30
        %v2253 = vmax.f32 %v1567, 1e-30
        %v2254 = vmax.f32 %v1568, 1e-30
        %v2255 = vmax.f32 %v1569, 1e-30
        %v2256 = vmax.f32 %v1570, 1e-30
        %v2257 = vmax.f32 %v1571, 1e-30
        %v2258 = vmax.f32 %v1572, 1e-30
        %v2259 = vmax.f32 %v1573, 1e-30
        %v2260 = vmax.f32 %v1574, 1e-30
        %v2261 = vmax.f32 %v1575, 1e-30
        %v2262 = vmax.f32 %v1576, 1e-30
        %v2263 = vmax.f32 %v1577, 1e-30
        %v2264 = vmax.f32 %v1578, 1e-30
        %v2265 = vmax.f32 %v1579, 1e-30
        %v2266 = vmax.f32 %v1580, 1e-30
        %v2267 = vmax.f32 %v1581, 1e-30
        %v2268 = vmax.f32 %v1582, 1e-30
        %v2269 = vmax.f32 %v1583, 1e-30
        %v2270 = vmax.f32 %v1584, 1e-30
        %v2271 = vmax.f32 %v1585, 1e-30
        %v2272 = vmax.f32 %v1586, 1e-30
        %v2273 = vmax.f32 %v1587, 1e-30
        %v2274 = vmax.f32 %v1588, 1e-30
        %v2275 = vmax.f32 %v1589, 1e-30
        %v2276 = vmax.f32 %v1590, 1e-30
        %v2277 = vmax.f32 %v1591, 1e-30
        %v2278 = vmax.f32 %v1592, 1e-30
        %v2279 = vmax.f32 %v1593, 1e-30
        %v2280 = vlog2.pop %v2224
        %v2281 = vmul.f32 %v2280, 0.6931472
        %v2282 = vlog2.pop %v2225
        %v2283 = vmul.f32 %v2282, 0.6931472
        %v2284 = vlog2.pop %v2226
        %v2285 = vmul.f32 %v2284, 0.6931472
        %v2286 = vlog2.pop %v2227
        %v2287 = vmul.f32 %v2286, 0.6931472
        %v2288 = vlog2.pop %v2228
        %v2289 = vmul.f32 %v2288, 0.6931472
        %v2290 = vlog2.pop %v2229
        %v2291 = vmul.f32 %v2290, 0.6931472
        %v2292 = vlog2.pop %v2230
        %v2293 = vmul.f32 %v2292, 0.6931472
        %v2294 = vlog2.pop %v2231
        %v2295 = vmul.f32 %v2294, 0.6931472
        %v2296 = vlog2.pop %v2232
        %v2297 = vmul.f32 %v2296, 0.6931472
        %v2298 = vlog2.pop %v2233
        %v2299 = vmul.f32 %v2298, 0.6931472
        %v2300 = vlog2.pop %v2234
        %v2301 = vmul.f32 %v2300, 0.6931472
        %v2302 = vlog2.pop %v2235
        %v2303 = vmul.f32 %v2302, 0.6931472
        %v2304 = vlog2.pop %v2236
        %v2305 = vmul.f32 %v2304, 0.6931472
        %v2306 = vlog2.pop %v2237
        %v2307 = vmul.f32 %v2306, 0.6931472
        %v2308 = vlog2.pop %v2238
        %v2309 = vmul.f32 %v2308, 0.6931472
        %v2310 = vlog2.pop %v2239
        %v2311 = vmul.f32 %v2310, 0.6931472
        %v2312 = vlog2.pop %v2240
        %v2313 = vmul.f32 %v2312, 0.6931472
        %v2314 = vlog2.pop %v2241
        %v2315 = vmul.f32 %v2314, 0.6931472
        %v2316 = vlog2.pop %v2242
        %v2317 = vmul.f32 %v2316, 0.6931472
        %v2318 = vlog2.pop %v2243
        %v2319 = vmul.f32 %v2318, 0.6931472
        %v2320 = vlog2.pop %v2244
        %v2321 = vmul.f32 %v2320, 0.6931472
        %v2322 = vlog2.pop %v2245
        %v2323 = vmul.f32 %v2322, 0.6931472
        %v2324 = vlog2.pop %v2246
        %v2325 = vmul.f32 %v2324, 0.6931472
        %v2326 = vlog2.pop %v2247
        %v2327 = vmul.f32 %v2326, 0.6931472
        %v2328 = vlog2.pop %v2248
        %v2329 = vmul.f32 %v2328, 0.6931472
        %v2330 = vlog2.pop %v2249
        %v2331 = vmul.f32 %v2330, 0.6931472
        %v2332 = vlog2.pop %v2250
        %v2333 = vmul.f32 %v2332, 0.6931472
        %v2334 = vlog2.pop %v2251
        %v2335 = vmul.f32 %v2334, 0.6931472
        %v2336 = vlog2.pop %v2252
        %v2337 = vmul.f32 %v2336, 0.6931472
        %v2338 = vlog2.pop %v2253
        %v2339 = vmul.f32 %v2338, 0.6931472
        %v2340 = vlog2.pop %v2254
        %v2341 = vmul.f32 %v2340, 0.6931472
        %v2342 = vlog2.pop %v2255
        %v2343 = vmul.f32 %v2342, 0.6931472
        %v2344 = vlog2.pop %v2256
        %v2345 = vmul.f32 %v2344, 0.6931472
        %v2346 = vlog2.pop %v2257
        %v2347 = vmul.f32 %v2346, 0.6931472
        %v2348 = vlog2.pop %v2258
        %v2349 = vmul.f32 %v2348, 0.6931472
        %v2350 = vlog2.pop %v2259
        %v2351 = vmul.f32 %v2350, 0.6931472
        %v2352 = vlog2.pop %v2260
        %v2353 = vmul.f32 %v2352, 0.6931472
        %v2354 = vlog2.pop %v2261
        %v2355 = vmul.f32 %v2354, 0.6931472
        %v2356 = vlog2.pop %v2262
        %v2357 = vmul.f32 %v2356, 0.6931472
        %v2358 = vlog2.pop %v2263
        %v2359 = vmul.f32 %v2358, 0.6931472
        %v2360 = vlog2.pop %v2264
        %v2361 = vmul.f32 %v2360, 0.6931472
        %v2362 = vlog2.pop %v2265
        %v2363 = vmul.f32 %v2362, 0.6931472
        %v2364 = vlog2.pop %v2266
        %v2365 = vmul.f32 %v2364, 0.6931472
        %v2366 = vlog2.pop %v2267
        %v2367 = vmul.f32 %v2366, 0.6931472
        %v2368 = vlog2.pop %v2268
        %v2369 = vmul.f32 %v2368, 0.6931472
        %v2370 = vlog2.pop %v2269
        %v2371 = vmul.f32 %v2370, 0.6931472
        %v2372 = vlog2.pop %v2270
        %v2373 = vmul.f32 %v2372, 0.6931472
        %v2374 = vlog2.pop %v2271
        %v2375 = vmul.f32 %v2374, 0.6931472
        %v2376 = vlog2.pop %v2272
        %v2377 = vmul.f32 %v2376, 0.6931472
        %v2378 = vlog2.pop %v2273
        %v2379 = vmul.f32 %v2378, 0.6931472
        %v2380 = vlog2.pop %v2274
        %v2381 = vmul.f32 %v2380, 0.6931472
        %v2382 = vlog2.pop %v2275
        %v2383 = vmul.f32 %v2382, 0.6931472
        %v2384 = vlog2.pop %v2276
        %v2385 = vmul.f32 %v2384, 0.6931472
        %v2386 = vlog2.pop %v2277
        %v2387 = vmul.f32 %v2386, 0.6931472
        %v2388 = vlog2.pop %v2278
        %v2389 = vmul.f32 %v2388, 0.6931472
        %v2390 = vlog2.pop %v2279
        %v2391 = vmul.f32 %v2390, 0.6931472
        %v2392 = vmul.f32 %v642, %v642
        %v2393 = vmul.f32 %v643, %v643
        %v2394 = vmul.f32 %v644, %v644
        %v2395 = vmul.f32 %v645, %v645
        %v2396 = vmul.f32 %v646, %v646
        %v2397 = vmul.f32 %v647, %v647
        %v2398 = vmul.f32 %v648, %v648
        %v2399 = vmul.f32 %v649, %v649
        %v2400 = vmul.f32 %v650, %v650
        %v2401 = vmul.f32 %v651, %v651
        %v2402 = vmul.f32 %v652, %v652
        %v2403 = vmul.f32 %v653, %v653
        %v2404 = vmul.f32 %v654, %v654
        %v2405 = vmul.f32 %v655, %v655
        %v2406 = vmul.f32 %v656, %v656
        %v2407 = vmul.f32 %v657, %v657
        %v2408 = vmul.f32 %v658, %v658
        %v2409 = vmul.f32 %v659, %v659
        %v2410 = vmul.f32 %v660, %v660
        %v2411 = vmul.f32 %v661, %v661
        %v2412 = vmul.f32 %v662, %v662
        %v2413 = vmul.f32 %v663, %v663
        %v2414 = vmul.f32 %v664, %v664
        %v2415 = vmul.f32 %v665, %v665
        %v2416 = vmul.f32 %v666, %v666
        %v2417 = vmul.f32 %v667, %v667
        %v2418 = vmul.f32 %v668, %v668
        %v2419 = vmul.f32 %v669, %v669
        %v2420 = vmul.f32 %v670, %v670
        %v2421 = vmul.f32 %v671, %v671
        %v2422 = vmul.f32 %v672, %v672
        %v2423 = vmul.f32 %v673, %v673
        %v2424 = vmul.f32 %v674, %v674
        %v2425 = vmul.f32 %v675, %v675
        %v2426 = vmul.f32 %v676, %v676
        %v2427 = vmul.f32 %v677, %v677
        %v2428 = vmul.f32 %v678, %v678
        %v2429 = vmul.f32 %v679, %v679
        %v2430 = vmul.f32 %v680, %v680
        %v2431 = vmul.f32 %v681, %v681
        %v2432 = vmul.f32 %v682, %v682
        %v2433 = vmul.f32 %v683, %v683
        %v2434 = vmul.f32 %v684, %v684
        %v2435 = vmul.f32 %v685, %v685
        %v2436 = vmul.f32 %v686, %v686
        %v2437 = vmul.f32 %v687, %v687
        %v2438 = vmul.f32 %v688, %v688
        %v2439 = vmul.f32 %v689, %v689
        %v2440 = vmul.f32 %v690, %v690
        %v2441 = vmul.f32 %v691, %v691
        %v2442 = vmul.f32 %v692, %v692
        %v2443 = vmul.f32 %v693, %v693
        %v2444 = vmul.f32 %v694, %v694
        %v2445 = vmul.f32 %v695, %v695
        %v2446 = vmul.f32 %v696, %v696
        %v2447 = vmul.f32 %v697, %v697
        %v2448 = vmul.f32 %v2392, 0.5
        %v2449 = vmul.f32 %v2393, 0.5
        %v2450 = vmul.f32 %v2394, 0.5
        %v2451 = vmul.f32 %v2395, 0.5
        %v2452 = vmul.f32 %v2396, 0.5
        %v2453 = vmul.f32 %v2397, 0.5
        %v2454 = vmul.f32 %v2398, 0.5
        %v2455 = vmul.f32 %v2399, 0.5
        %v2456 = vmul.f32 %v2400, 0.5
        %v2457 = vmul.f32 %v2401, 0.5
        %v2458 = vmul.f32 %v2402, 0.5
        %v2459 = vmul.f32 %v2403, 0.5
        %v2460 = vmul.f32 %v2404, 0.5
        %v2461 = vmul.f32 %v2405, 0.5
        %v2462 = vmul.f32 %v2406, 0.5
        %v2463 = vmul.f32 %v2407, 0.5
        %v2464 = vmul.f32 %v2408, 0.5
        %v2465 = vmul.f32 %v2409, 0.5
        %v2466 = vmul.f32 %v2410, 0.5
        %v2467 = vmul.f32 %v2411, 0.5
        %v2468 = vmul.f32 %v2412, 0.5
        %v2469 = vmul.f32 %v2413, 0.5
        %v2470 = vmul.f32 %v2414, 0.5
        %v2471 = vmul.f32 %v2415, 0.5
        %v2472 = vmul.f32 %v2416, 0.5
        %v2473 = vmul.f32 %v2417, 0.5
        %v2474 = vmul.f32 %v2418, 0.5
        %v2475 = vmul.f32 %v2419, 0.5
        %v2476 = vmul.f32 %v2420, 0.5
        %v2477 = vmul.f32 %v2421, 0.5
        %v2478 = vmul.f32 %v2422, 0.5
        %v2479 = vmul.f32 %v2423, 0.5
        %v2480 = vmul.f32 %v2424, 0.5
        %v2481 = vmul.f32 %v2425, 0.5
        %v2482 = vmul.f32 %v2426, 0.5
        %v2483 = vmul.f32 %v2427, 0.5
        %v2484 = vmul.f32 %v2428, 0.5
        %v2485 = vmul.f32 %v2429, 0.5
        %v2486 = vmul.f32 %v2430, 0.5
        %v2487 = vmul.f32 %v2431, 0.5
        %v2488 = vmul.f32 %v2432, 0.5
        %v2489 = vmul.f32 %v2433, 0.5
        %v2490 = vmul.f32 %v2434, 0.5
        %v2491 = vmul.f32 %v2435, 0.5
        %v2492 = vmul.f32 %v2436, 0.5
        %v2493 = vmul.f32 %v2437, 0.5
        %v2494 = vmul.f32 %v2438, 0.5
        %v2495 = vmul.f32 %v2439, 0.5
        %v2496 = vmul.f32 %v2440, 0.5
        %v2497 = vmul.f32 %v2441, 0.5
        %v2498 = vmul.f32 %v2442, 0.5
        %v2499 = vmul.f32 %v2443, 0.5
        %v2500 = vmul.f32 %v2444, 0.5
        %v2501 = vmul.f32 %v2445, 0.5
        %v2502 = vmul.f32 %v2446, 0.5
        %v2503 = vmul.f32 %v2447, 0.5
        %v2504 = vadd.f32 %v2281, %v2448
        %v2505 = vadd.f32 %v2283, %v2449
        %v2506 = vadd.f32 %v2285, %v2450
        %v2507 = vadd.f32 %v2287, %v2451
        %v2508 = vadd.f32 %v2289, %v2452
        %v2509 = vadd.f32 %v2291, %v2453
        %v2510 = vadd.f32 %v2293, %v2454
        %v2511 = vadd.f32 %v2295, %v2455
        %v2512 = vadd.f32 %v2297, %v2456
        %v2513 = vadd.f32 %v2299, %v2457
        %v2514 = vadd.f32 %v2301, %v2458
        %v2515 = vadd.f32 %v2303, %v2459
        %v2516 = vadd.f32 %v2305, %v2460
        %v2517 = vadd.f32 %v2307, %v2461
        %v2518 = vadd.f32 %v2309, %v2462
        %v2519 = vadd.f32 %v2311, %v2463
        %v2520 = vadd.f32 %v2313, %v2464
        %v2521 = vadd.f32 %v2315, %v2465
        %v2522 = vadd.f32 %v2317, %v2466
        %v2523 = vadd.f32 %v2319, %v2467
        %v2524 = vadd.f32 %v2321, %v2468
        %v2525 = vadd.f32 %v2323, %v2469
        %v2526 = vadd.f32 %v2325, %v2470
        %v2527 = vadd.f32 %v2327, %v2471
        %v2528 = vadd.f32 %v2329, %v2472
        %v2529 = vadd.f32 %v2331, %v2473
        %v2530 = vadd.f32 %v2333, %v2474
        %v2531 = vadd.f32 %v2335, %v2475
        %v2532 = vadd.f32 %v2337, %v2476
        %v2533 = vadd.f32 %v2339, %v2477
        %v2534 = vadd.f32 %v2341, %v2478
        %v2535 = vadd.f32 %v2343, %v2479
        %v2536 = vadd.f32 %v2345, %v2480
        %v2537 = vadd.f32 %v2347, %v2481
        %v2538 = vadd.f32 %v2349, %v2482
        %v2539 = vadd.f32 %v2351, %v2483
        %v2540 = vadd.f32 %v2353, %v2484
        %v2541 = vadd.f32 %v2355, %v2485
        %v2542 = vadd.f32 %v2357, %v2486
        %v2543 = vadd.f32 %v2359, %v2487
        %v2544 = vadd.f32 %v2361, %v2488
        %v2545 = vadd.f32 %v2363, %v2489
        %v2546 = vadd.f32 %v2365, %v2490
        %v2547 = vadd.f32 %v2367, %v2491
        %v2548 = vadd.f32 %v2369, %v2492
        %v2549 = vadd.f32 %v2371, %v2493
        %v2550 = vadd.f32 %v2373, %v2494
        %v2551 = vadd.f32 %v2375, %v2495
        %v2552 = vadd.f32 %v2377, %v2496
        %v2553 = vadd.f32 %v2379, %v2497
        %v2554 = vadd.f32 %v2381, %v2498
        %v2555 = vadd.f32 %v2383, %v2499
        %v2556 = vadd.f32 %v2385, %v2500
        %v2557 = vadd.f32 %v2387, %v2501
        %v2558 = vadd.f32 %v2389, %v2502
        %v2559 = vadd.f32 %v2391, %v2503
        %v2560 = vadd.f32 %v2168, %v2504
        %v2561 = vadd.f32 %v2169, %v2505
        %v2562 = vadd.f32 %v2170, %v2506
        %v2563 = vadd.f32 %v2171, %v2507
        %v2564 = vadd.f32 %v2172, %v2508
        %v2565 = vadd.f32 %v2173, %v2509
        %v2566 = vadd.f32 %v2174, %v2510
        %v2567 = vadd.f32 %v2175, %v2511
        %v2568 = vadd.f32 %v2176, %v2512
        %v2569 = vadd.f32 %v2177, %v2513
        %v2570 = vadd.f32 %v2178, %v2514
        %v2571 = vadd.f32 %v2179, %v2515
        %v2572 = vadd.f32 %v2180, %v2516
        %v2573 = vadd.f32 %v2181, %v2517
        %v2574 = vadd.f32 %v2182, %v2518
        %v2575 = vadd.f32 %v2183, %v2519
        %v2576 = vadd.f32 %v2184, %v2520
        %v2577 = vadd.f32 %v2185, %v2521
        %v2578 = vadd.f32 %v2186, %v2522
        %v2579 = vadd.f32 %v2187, %v2523
        %v2580 = vadd.f32 %v2188, %v2524
        %v2581 = vadd.f32 %v2189, %v2525
        %v2582 = vadd.f32 %v2190, %v2526
        %v2583 = vadd.f32 %v2191, %v2527
        %v2584 = vadd.f32 %v2192, %v2528
        %v2585 = vadd.f32 %v2193, %v2529
        %v2586 = vadd.f32 %v2194, %v2530
        %v2587 = vadd.f32 %v2195, %v2531
        %v2588 = vadd.f32 %v2196, %v2532
        %v2589 = vadd.f32 %v2197, %v2533
        %v2590 = vadd.f32 %v2198, %v2534
        %v2591 = vadd.f32 %v2199, %v2535
        %v2592 = vadd.f32 %v2200, %v2536
        %v2593 = vadd.f32 %v2201, %v2537
        %v2594 = vadd.f32 %v2202, %v2538
        %v2595 = vadd.f32 %v2203, %v2539
        %v2596 = vadd.f32 %v2204, %v2540
        %v2597 = vadd.f32 %v2205, %v2541
        %v2598 = vadd.f32 %v2206, %v2542
        %v2599 = vadd.f32 %v2207, %v2543
        %v2600 = vadd.f32 %v2208, %v2544
        %v2601 = vadd.f32 %v2209, %v2545
        %v2602 = vadd.f32 %v2210, %v2546
        %v2603 = vadd.f32 %v2211, %v2547
        %v2604 = vadd.f32 %v2212, %v2548
        %v2605 = vadd.f32 %v2213, %v2549
        %v2606 = vadd.f32 %v2214, %v2550
        %v2607 = vadd.f32 %v2215, %v2551
        %v2608 = vadd.f32 %v2216, %v2552
        %v2609 = vadd.f32 %v2217, %v2553
        %v2610 = vadd.f32 %v2218, %v2554
        %v2611 = vadd.f32 %v2219, %v2555
        %v2612 = vadd.f32 %v2220, %v2556
        %v2613 = vadd.f32 %v2221, %v2557
        %v2614 = vadd.f32 %v2222, %v2558
        %v2615 = vadd.f32 %v2223, %v2559
        %2616 = vst [vmem:[#allocation5] sm:$0xff] %v2560
        %2617 = vst [vmem:[#allocation5 + $0x8] sm:$0xff] %v2561
        %2618 = vst [vmem:[#allocation5 + $0x10] sm:$0xff] %v2562
        %2619 = vst.msk [vmem:[#allocation5 + $0x18] sm:$0xff] %vm2114, %v2563
        %2620 = vst [vmem:[#allocation5 + $0x20] sm:$0xff] %v2564
        %2621 = vst [vmem:[#allocation5 + $0x28] sm:$0xff] %v2565
        %2622 = vst [vmem:[#allocation5 + $0x30] sm:$0xff] %v2566
        %2623 = vst.msk [vmem:[#allocation5 + $0x38] sm:$0xff] %vm2114, %v2567
        %2624 = vst [vmem:[#allocation5 + $0x40] sm:$0xff] %v2568
        %2625 = vst [vmem:[#allocation5 + $0x48] sm:$0xff] %v2569
        %2626 = vst [vmem:[#allocation5 + $0x50] sm:$0xff] %v2570
        %2627 = vst.msk [vmem:[#allocation5 + $0x58] sm:$0xff] %vm2114, %v2571
        %2628 = vst [vmem:[#allocation5 + $0x60] sm:$0xff] %v2572
        %2629 = vst [vmem:[#allocation5 + $0x68] sm:$0xff] %v2573
        %2630 = vst [vmem:[#allocation5 + $0x70] sm:$0xff] %v2574
        %2631 = vst.msk [vmem:[#allocation5 + $0x78] sm:$0xff] %vm2114, %v2575
        %2632 = vst [vmem:[#allocation5 + $0x80] sm:$0xff] %v2576
        %2633 = vst [vmem:[#allocation5 + $0x88] sm:$0xff] %v2577
        %2634 = vst [vmem:[#allocation5 + $0x90] sm:$0xff] %v2578
        %2635 = vst.msk [vmem:[#allocation5 + $0x98] sm:$0xff] %vm2114, %v2579
        %2636 = vst [vmem:[#allocation5 + $0xa0] sm:$0xff] %v2580
        %2637 = vst [vmem:[#allocation5 + $0xa8] sm:$0xff] %v2581
        %2638 = vst [vmem:[#allocation5 + $0xb0] sm:$0xff] %v2582
        %2639 = vst.msk [vmem:[#allocation5 + $0xb8] sm:$0xff] %vm2114, %v2583
        %2640 = vst [vmem:[#allocation5 + $0xc0] sm:$0xff] %v2584
        %2641 = vst [vmem:[#allocation5 + $0xc8] sm:$0xff] %v2585
        %2642 = vst [vmem:[#allocation5 + $0xd0] sm:$0xff] %v2586
        %2643 = vst.msk [vmem:[#allocation5 + $0xd8] sm:$0xff] %vm2114, %v2587
        %2644 = vst [vmem:[#allocation5 + $0xe0] sm:$0xff] %v2588
        %2645 = vst [vmem:[#allocation5 + $0xe8] sm:$0xff] %v2589
        %2646 = vst [vmem:[#allocation5 + $0xf0] sm:$0xff] %v2590
        %2647 = vst.msk [vmem:[#allocation5 + $0xf8] sm:$0xff] %vm2114, %v2591
        %2648 = vst [vmem:[#allocation5 + $0x100] sm:$0xff] %v2592
        %2649 = vst [vmem:[#allocation5 + $0x108] sm:$0xff] %v2593
        %2650 = vst [vmem:[#allocation5 + $0x110] sm:$0xff] %v2594
        %2651 = vst.msk [vmem:[#allocation5 + $0x118] sm:$0xff] %vm2114, %v2595
        %2652 = vst [vmem:[#allocation5 + $0x120] sm:$0xff] %v2596
        %2653 = vst [vmem:[#allocation5 + $0x128] sm:$0xff] %v2597
        %2654 = vst [vmem:[#allocation5 + $0x130] sm:$0xff] %v2598
        %2655 = vst.msk [vmem:[#allocation5 + $0x138] sm:$0xff] %vm2114, %v2599
        %2656 = vst [vmem:[#allocation5 + $0x140] sm:$0xff] %v2600
        %2657 = vst [vmem:[#allocation5 + $0x148] sm:$0xff] %v2601
        %2658 = vst [vmem:[#allocation5 + $0x150] sm:$0xff] %v2602
        %2659 = vst.msk [vmem:[#allocation5 + $0x158] sm:$0xff] %vm2114, %v2603
        %2660 = vst [vmem:[#allocation5 + $0x160] sm:$0xff] %v2604
        %2661 = vst [vmem:[#allocation5 + $0x168] sm:$0xff] %v2605
        %2662 = vst [vmem:[#allocation5 + $0x170] sm:$0xff] %v2606
        %2663 = vst.msk [vmem:[#allocation5 + $0x178] sm:$0xff] %vm2114, %v2607
        %2664 = vst [vmem:[#allocation5 + $0x180] sm:$0xff] %v2608
        %2665 = vst [vmem:[#allocation5 + $0x188] sm:$0xff] %v2609
        %2666 = vst [vmem:[#allocation5 + $0x190] sm:$0xff] %v2610
        %2667 = vst.msk [vmem:[#allocation5 + $0x198] sm:$0xff] %vm2114, %v2611
        %2668 = vst [vmem:[#allocation5 + $0x1a0] sm:$0xff] %v2612
        %2669 = vst [vmem:[#allocation5 + $0x1a8] sm:$0xff] %v2613
        %2670 = vst [vmem:[#allocation5 + $0x1b0] sm:$0xff] %v2614
        %2671 = vst.msk [vmem:[#allocation5 + $0x1b8] sm:$0xff] %vm2114, %v2615
        %p2672 = scmp.lt.s32.totalorder %s24, 5
        // Predicated region
        $region61: #{bayes_net_forward.1} parent=55 // pred_check
          %p2673 = pneg %p2672
        $region62: #{bayes_net_forward.1} parent=55 // pred_check_branch
          %2675 = sbr.rel (%p2673) target = $region64
        $region63: #{bayes_net_forward.1} parent=55 // pred_region
          %v2676 = vld [vmem:[%s513] sm:$0xff]
          %v2677 = vld [vmem:[%s513 + $0x8] sm:$0xff]
          %v2678 = vld [vmem:[%s513 + $0x10] sm:$0xff]
          %v2679 = vld [vmem:[%s513 + $0x18] sm:$0xff]
          %v2680 = vld [vmem:[%s513 + $0x20] sm:$0xff]
          %v2681 = vld [vmem:[%s513 + $0x28] sm:$0xff]
          %v2682 = vld [vmem:[%s513 + $0x30] sm:$0xff]
          %v2683 = vld [vmem:[%s513 + $0x38] sm:$0xff]
          %v2684 = vld [vmem:[%s513 + $0x40] sm:$0xff]
          %v2685 = vld [vmem:[%s513 + $0x48] sm:$0xff]
          %v2686 = vld [vmem:[%s513 + $0x50] sm:$0xff]
          %v2687 = vld [vmem:[%s513 + $0x58] sm:$0xff]
          %v2688 = vld [vmem:[%s513 + $0x60] sm:$0xff]
          %v2689 = vld [vmem:[%s513 + $0x68] sm:$0xff]
          %v2690 = vld [vmem:[%s513 + $0x70] sm:$0xff]
          %v2691 = vld [vmem:[%s513 + $0x78] sm:$0xff]
          %v2692 = vld [vmem:[%s513 + $0x80] sm:$0xff]
          %v2693 = vld [vmem:[%s513 + $0x88] sm:$0xff]
          %v2694 = vld [vmem:[%s513 + $0x90] sm:$0xff]
          %v2695 = vld [vmem:[%s513 + $0x98] sm:$0xff]
          %v2696 = vld [vmem:[%s513 + $0xa0] sm:$0xff]
          %v2697 = vld [vmem:[%s513 + $0xa8] sm:$0xff]
          %v2698 = vld [vmem:[%s513 + $0xb0] sm:$0xff]
          %v2699 = vld [vmem:[%s513 + $0xb8] sm:$0xff]
          %v2700 = vld [vmem:[%s513 + $0xc0] sm:$0xff]
          %v2701 = vld [vmem:[%s513 + $0xc8] sm:$0xff]
          %v2702 = vld [vmem:[%s513 + $0xd0] sm:$0xff]
          %v2703 = vld [vmem:[%s513 + $0xd8] sm:$0xff]
          %v2704 = vld [vmem:[%s513 + $0xe0] sm:$0xff]
          %v2705 = vld [vmem:[%s513 + $0xe8] sm:$0xff]
          %v2706 = vld [vmem:[%s513 + $0xf0] sm:$0xff]
          %v2707 = vld [vmem:[%s513 + $0xf8] sm:$0xff]
          %v2708 = vld [vmem:[%s513 + $0x100] sm:$0xff]
          %v2709 = vld [vmem:[%s513 + $0x108] sm:$0xff]
          %v2710 = vld [vmem:[%s513 + $0x110] sm:$0xff]
          %v2711 = vld [vmem:[%s513 + $0x118] sm:$0xff]
          %v2712 = vld [vmem:[%s513 + $0x120] sm:$0xff]
          %v2713 = vld [vmem:[%s513 + $0x128] sm:$0xff]
          %v2714 = vld [vmem:[%s513 + $0x130] sm:$0xff]
          %v2715 = vld [vmem:[%s513 + $0x138] sm:$0xff]
          %v2716 = vld [vmem:[%s502] sm:$0xff]
          %v2717 = vld [vmem:[%s502 + $0x8] sm:$0xff]
          %v2718 = vld [vmem:[%s502 + $0x10] sm:$0xff]
          %v2719 = vld [vmem:[%s502 + $0x18] sm:$0xff]
          %v2720 = vld [vmem:[%s502 + $0x20] sm:$0xff]
          %v2721 = vld [vmem:[%s502 + $0x28] sm:$0xff]
          %v2722 = vld [vmem:[%s502 + $0x30] sm:$0xff]
          %v2723 = vld [vmem:[%s502 + $0x38] sm:$0xff]
          %v2724 = vld [vmem:[%s502 + $0x40] sm:$0xff]
          %v2725 = vld [vmem:[%s502 + $0x48] sm:$0xff]
          %v2726 = vld [vmem:[%s502 + $0x50] sm:$0xff]
          %v2727 = vld [vmem:[%s502 + $0x58] sm:$0xff]
          %v2728 = vld [vmem:[%s502 + $0x60] sm:$0xff]
          %v2729 = vld [vmem:[%s502 + $0x68] sm:$0xff]
          %v2730 = vld [vmem:[%s502 + $0x70] sm:$0xff]
          %v2731 = vld [vmem:[%s502 + $0x78] sm:$0xff]
          %v2732 = vld [vmem:[%s502 + $0x80] sm:$0xff]
          %v2733 = vld [vmem:[%s502 + $0x88] sm:$0xff]
          %v2734 = vld [vmem:[%s502 + $0x90] sm:$0xff]
          %v2735 = vld [vmem:[%s502 + $0x98] sm:$0xff]
          %v2736 = vld [vmem:[%s502 + $0xa0] sm:$0xff]
          %v2737 = vld [vmem:[%s502 + $0xa8] sm:$0xff]
          %v2738 = vld [vmem:[%s502 + $0xb0] sm:$0xff]
          %v2739 = vld [vmem:[%s502 + $0xb8] sm:$0xff]
          %v2740 = vld [vmem:[%s502 + $0xc0] sm:$0xff]
          %v2741 = vld [vmem:[%s502 + $0xc8] sm:$0xff]
          %v2742 = vld [vmem:[%s502 + $0xd0] sm:$0xff]
          %v2743 = vld [vmem:[%s502 + $0xd8] sm:$0xff]
          %v2744 = vld [vmem:[%s502 + $0xe0] sm:$0xff]
          %v2745 = vld [vmem:[%s502 + $0xe8] sm:$0xff]
          %v2746 = vld [vmem:[%s502 + $0xf0] sm:$0xff]
          %v2747 = vld [vmem:[%s502 + $0xf8] sm:$0xff]
          %v2748 = vld [vmem:[%s502 + $0x100] sm:$0xff]
          %v2749 = vld [vmem:[%s502 + $0x108] sm:$0xff]
          %v2750 = vld [vmem:[%s502 + $0x110] sm:$0xff]
          %v2751 = vld [vmem:[%s502 + $0x118] sm:$0xff]
          %v2752 = vld [vmem:[%s502 + $0x120] sm:$0xff]
          %v2753 = vld [vmem:[%s502 + $0x128] sm:$0xff]
          %v2754 = vld [vmem:[%s502 + $0x130] sm:$0xff]
          %v2755 = vld [vmem:[%s502 + $0x138] sm:$0xff]
          %v2756 = vmax.f32 %v2716, 0.0
          %v2757 = vmax.f32 %v2717, 0.0
          %v2758 = vmax.f32 %v2718, 0.0
          %v2759 = vmax.f32 %v2719, 0.0
          %v2760 = vmax.f32 %v2720, 0.0
          %v2761 = vmax.f32 %v2721, 0.0
          %v2762 = vmax.f32 %v2722, 0.0
          %v2763 = vmax.f32 %v2723, 0.0
          %v2764 = vmax.f32 %v2724, 0.0
          %v2765 = vmax.f32 %v2725, 0.0
          %v2766 = vmax.f32 %v2726, 0.0
          %v2767 = vmax.f32 %v2727, 0.0
          %v2768 = vmax.f32 %v2728, 0.0
          %v2769 = vmax.f32 %v2729, 0.0
          %v2770 = vmax.f32 %v2730, 0.0
          %v2771 = vmax.f32 %v2731, 0.0
          %v2772 = vmax.f32 %v2732, 0.0
          %v2773 = vmax.f32 %v2733, 0.0
          %v2774 = vmax.f32 %v2734, 0.0
          %v2775 = vmax.f32 %v2735, 0.0
          %v2776 = vmax.f32 %v2736, 0.0
          %v2777 = vmax.f32 %v2737, 0.0
          %v2778 = vmax.f32 %v2738, 0.0
          %v2779 = vmax.f32 %v2739, 0.0
          %v2780 = vmax.f32 %v2740, 0.0
          %v2781 = vmax.f32 %v2741, 0.0
          %v2782 = vmax.f32 %v2742, 0.0
          %v2783 = vmax.f32 %v2743, 0.0
          %v2784 = vmax.f32 %v2744, 0.0
          %v2785 = vmax.f32 %v2745, 0.0
          %v2786 = vmax.f32 %v2746, 0.0
          %v2787 = vmax.f32 %v2747, 0.0
          %v2788 = vmax.f32 %v2748, 0.0
          %v2789 = vmax.f32 %v2749, 0.0
          %v2790 = vmax.f32 %v2750, 0.0
          %v2791 = vmax.f32 %v2751, 0.0
          %v2792 = vmax.f32 %v2752, 0.0
          %v2793 = vmax.f32 %v2753, 0.0
          %v2794 = vmax.f32 %v2754, 0.0
          %v2795 = vmax.f32 %v2755, 0.0
          %v2796 = vand.u32 2147483647, %v2716
          %v2797 = vand.u32 2147483647, %v2717
          %v2798 = vand.u32 2147483647, %v2718
          %v2799 = vand.u32 2147483647, %v2719
          %v2800 = vand.u32 2147483647, %v2720
          %v2801 = vand.u32 2147483647, %v2721
          %v2802 = vand.u32 2147483647, %v2722
          %v2803 = vand.u32 2147483647, %v2723
          %v2804 = vand.u32 2147483647, %v2724
          %v2805 = vand.u32 2147483647, %v2725
          %v2806 = vand.u32 2147483647, %v2726
          %v2807 = vand.u32 2147483647, %v2727
          %v2808 = vand.u32 2147483647, %v2728
          %v2809 = vand.u32 2147483647, %v2729
          %v2810 = vand.u32 2147483647, %v2730
          %v2811 = vand.u32 2147483647, %v2731
          %v2812 = vand.u32 2147483647, %v2732
          %v2813 = vand.u32 2147483647, %v2733
          %v2814 = vand.u32 2147483647, %v2734
          %v2815 = vand.u32 2147483647, %v2735
          %v2816 = vand.u32 2147483647, %v2736
          %v2817 = vand.u32 2147483647, %v2737
          %v2818 = vand.u32 2147483647, %v2738
          %v2819 = vand.u32 2147483647, %v2739
          %v2820 = vand.u32 2147483647, %v2740
          %v2821 = vand.u32 2147483647, %v2741
          %v2822 = vand.u32 2147483647, %v2742
          %v2823 = vand.u32 2147483647, %v2743
          %v2824 = vand.u32 2147483647, %v2744
          %v2825 = vand.u32 2147483647, %v2745
          %v2826 = vand.u32 2147483647, %v2746
          %v2827 = vand.u32 2147483647, %v2747
          %v2828 = vand.u32 2147483647, %v2748
          %v2829 = vand.u32 2147483647, %v2749
          %v2830 = vand.u32 2147483647, %v2750
          %v2831 = vand.u32 2147483647, %v2751
          %v2832 = vand.u32 2147483647, %v2752
          %v2833 = vand.u32 2147483647, %v2753
          %v2834 = vand.u32 2147483647, %v2754
          %v2835 = vand.u32 2147483647, %v2755
          %v2836 = vsub.f32 0.0, %v2796
          %v2837 = vsub.f32 0.0, %v2797
          %v2838 = vsub.f32 0.0, %v2798
          %v2839 = vsub.f32 0.0, %v2799
          %v2840 = vsub.f32 0.0, %v2800
          %v2841 = vsub.f32 0.0, %v2801
          %v2842 = vsub.f32 0.0, %v2802
          %v2843 = vsub.f32 0.0, %v2803
          %v2844 = vsub.f32 0.0, %v2804
          %v2845 = vsub.f32 0.0, %v2805
          %v2846 = vsub.f32 0.0, %v2806
          %v2847 = vsub.f32 0.0, %v2807
          %v2848 = vsub.f32 0.0, %v2808
          %v2849 = vsub.f32 0.0, %v2809
          %v2850 = vsub.f32 0.0, %v2810
          %v2851 = vsub.f32 0.0, %v2811
          %v2852 = vsub.f32 0.0, %v2812
          %v2853 = vsub.f32 0.0, %v2813
          %v2854 = vsub.f32 0.0, %v2814
          %v2855 = vsub.f32 0.0, %v2815
          %v2856 = vsub.f32 0.0, %v2816
          %v2857 = vsub.f32 0.0, %v2817
          %v2858 = vsub.f32 0.0, %v2818
          %v2859 = vsub.f32 0.0, %v2819
          %v2860 = vsub.f32 0.0, %v2820
          %v2861 = vsub.f32 0.0, %v2821
          %v2862 = vsub.f32 0.0, %v2822
          %v2863 = vsub.f32 0.0, %v2823
          %v2864 = vsub.f32 0.0, %v2824
          %v2865 = vsub.f32 0.0, %v2825
          %v2866 = vsub.f32 0.0, %v2826
          %v2867 = vsub.f32 0.0, %v2827
          %v2868 = vsub.f32 0.0, %v2828
          %v2869 = vsub.f32 0.0, %v2829
          %v2870 = vsub.f32 0.0, %v2830
          %v2871 = vsub.f32 0.0, %v2831
          %v2872 = vsub.f32 0.0, %v2832
          %v2873 = vsub.f32 0.0, %v2833
          %v2874 = vsub.f32 0.0, %v2834
          %v2875 = vsub.f32 0.0, %v2835
          %v2876 = vmul.f32 %v2836, 1.442695
          %v2877 = vpow.pop %v2876
          %v2878 = vmul.f32 %v2837, 1.442695
          %v2879 = vpow.pop %v2878
          %v2880 = vmul.f32 %v2838, 1.442695
          %v2881 = vpow.pop %v2880
          %v2882 = vmul.f32 %v2839, 1.442695
          %v2883 = vpow.pop %v2882
          %v2884 = vmul.f32 %v2840, 1.442695
          %v2885 = vpow.pop %v2884
          %v2886 = vmul.f32 %v2841, 1.442695
          %v2887 = vpow.pop %v2886
          %v2888 = vmul.f32 %v2842, 1.442695
          %v2889 = vpow.pop %v2888
          %v2890 = vmul.f32 %v2843, 1.442695
          %v2891 = vpow.pop %v2890
          %v2892 = vmul.f32 %v2844, 1.442695
          %v2893 = vpow.pop %v2892
          %v2894 = vmul.f32 %v2845, 1.442695
          %v2895 = vpow.pop %v2894
          %v2896 = vmul.f32 %v2846, 1.442695
          %v2897 = vpow.pop %v2896
          %v2898 = vmul.f32 %v2847, 1.442695
          %v2899 = vpow.pop %v2898
          %v2900 = vmul.f32 %v2848, 1.442695
          %v2901 = vpow.pop %v2900
          %v2902 = vmul.f32 %v2849, 1.442695
          %v2903 = vpow.pop %v2902
          %v2904 = vmul.f32 %v2850, 1.442695
          %v2905 = vpow.pop %v2904
          %v2906 = vmul.f32 %v2851, 1.442695
          %v2907 = vpow.pop %v2906
          %v2908 = vmul.f32 %v2852, 1.442695
          %v2909 = vpow.pop %v2908
          %v2910 = vmul.f32 %v2853, 1.442695
          %v2911 = vpow.pop %v2910
          %v2912 = vmul.f32 %v2854, 1.442695
          %v2913 = vpow.pop %v2912
          %v2914 = vmul.f32 %v2855, 1.442695
          %v2915 = vpow.pop %v2914
          %v2916 = vmul.f32 %v2856, 1.442695
          %v2917 = vpow.pop %v2916
          %v2918 = vmul.f32 %v2857, 1.442695
          %v2919 = vpow.pop %v2918
          %v2920 = vmul.f32 %v2858, 1.442695
          %v2921 = vpow.pop %v2920
          %v2922 = vmul.f32 %v2859, 1.442695
          %v2923 = vpow.pop %v2922
          %v2924 = vmul.f32 %v2860, 1.442695
          %v2925 = vpow.pop %v2924
          %v2926 = vmul.f32 %v2861, 1.442695
          %v2927 = vpow.pop %v2926
          %v2928 = vmul.f32 %v2862, 1.442695
          %v2929 = vpow.pop %v2928
          %v2930 = vmul.f32 %v2863, 1.442695
          %v2931 = vpow.pop %v2930
          %v2932 = vmul.f32 %v2864, 1.442695
          %v2933 = vpow.pop %v2932
          %v2934 = vmul.f32 %v2865, 1.442695
          %v2935 = vpow.pop %v2934
          %v2936 = vmul.f32 %v2866, 1.442695
          %v2937 = vpow.pop %v2936
          %v2938 = vmul.f32 %v2867, 1.442695
          %v2939 = vpow.pop %v2938
          %v2940 = vmul.f32 %v2868, 1.442695
          %v2941 = vpow.pop %v2940
          %v2942 = vmul.f32 %v2869, 1.442695
          %v2943 = vpow.pop %v2942
          %v2944 = vmul.f32 %v2870, 1.442695
          %v2945 = vpow.pop %v2944
          %v2946 = vmul.f32 %v2871, 1.442695
          %v2947 = vpow.pop %v2946
          %v2948 = vmul.f32 %v2872, 1.442695
          %v2949 = vpow.pop %v2948
          %v2950 = vmul.f32 %v2873, 1.442695
          %v2951 = vpow.pop %v2950
          %v2952 = vmul.f32 %v2874, 1.442695
          %v2953 = vpow.pop %v2952
          %v2954 = vmul.f32 %v2875, 1.442695
          %v2955 = vpow.pop %v2954
          %v2956 = vadd.f32 %v2877, 1.0
          %v2957 = vlog2.pop %v2956
          %v2958 = vmul.f32 %v2957, 0.6931472
          %v2959 = vmul.f32 -0.5, %v2877
          %v2960 = vadd.f32 %v2959, 1.0
          %v2961 = vmul.f32 %v2960, %v2877
          %v2962 = vand.u32 2147483647, %v2877
          %vm2963 = vcmp.lt.f32.partialorder %v2962, 0.0004427343
          %v2964 = vsel %vm2963, %v2961, %v2958
          %v2965 = vadd.f32 %v2879, 1.0
          %v2966 = vlog2.pop %v2965
          %v2967 = vmul.f32 %v2966, 0.6931472
          %v2968 = vmul.f32 -0.5, %v2879
          %v2969 = vadd.f32 %v2968, 1.0
          %v2970 = vmul.f32 %v2969, %v2879
          %v2971 = vand.u32 2147483647, %v2879
          %vm2972 = vcmp.lt.f32.partialorder %v2971, 0.0004427343
          %v2973 = vsel %vm2972, %v2970, %v2967
          %v2974 = vadd.f32 %v2881, 1.0
          %v2975 = vlog2.pop %v2974
          %v2976 = vmul.f32 %v2975, 0.6931472
          %v2977 = vmul.f32 -0.5, %v2881
          %v2978 = vadd.f32 %v2977, 1.0
          %v2979 = vmul.f32 %v2978, %v2881
          %v2980 = vand.u32 2147483647, %v2881
          %vm2981 = vcmp.lt.f32.partialorder %v2980, 0.0004427343
          %v2982 = vsel %vm2981, %v2979, %v2976
          %v2983 = vadd.f32 %v2883, 1.0
          %v2984 = vlog2.pop %v2983
          %v2985 = vmul.f32 %v2984, 0.6931472
          %v2986 = vmul.f32 -0.5, %v2883
          %v2987 = vadd.f32 %v2986, 1.0
          %v2988 = vmul.f32 %v2987, %v2883
          %v2989 = vand.u32 2147483647, %v2883
          %vm2990 = vcmp.lt.f32.partialorder %v2989, 0.0004427343
          %v2991 = vsel %vm2990, %v2988, %v2985
          %v2992 = vadd.f32 %v2885, 1.0
          %v2993 = vlog2.pop %v2992
          %v2994 = vmul.f32 %v2993, 0.6931472
          %v2995 = vmul.f32 -0.5, %v2885
          %v2996 = vadd.f32 %v2995, 1.0
          %v2997 = vmul.f32 %v2996, %v2885
          %v2998 = vand.u32 2147483647, %v2885
          %vm2999 = vcmp.lt.f32.partialorder %v2998, 0.0004427343
          %v3000 = vsel %vm2999, %v2997, %v2994
          %v3001 = vadd.f32 %v2887, 1.0
          %v3002 = vlog2.pop %v3001
          %v3003 = vmul.f32 %v3002, 0.6931472
          %v3004 = vmul.f32 -0.5, %v2887
          %v3005 = vadd.f32 %v3004, 1.0
          %v3006 = vmul.f32 %v3005, %v2887
          %v3007 = vand.u32 2147483647, %v2887
          %vm3008 = vcmp.lt.f32.partialorder %v3007, 0.0004427343
          %v3009 = vsel %vm3008, %v3006, %v3003
          %v3010 = vadd.f32 %v2889, 1.0
          %v3011 = vlog2.pop %v3010
          %v3012 = vmul.f32 %v3011, 0.6931472
          %v3013 = vmul.f32 -0.5, %v2889
          %v3014 = vadd.f32 %v3013, 1.0
          %v3015 = vmul.f32 %v3014, %v2889
          %v3016 = vand.u32 2147483647, %v2889
          %vm3017 = vcmp.lt.f32.partialorder %v3016, 0.0004427343
          %v3018 = vsel %vm3017, %v3015, %v3012
          %v3019 = vadd.f32 %v2891, 1.0
          %v3020 = vlog2.pop %v3019
          %v3021 = vmul.f32 %v3020, 0.6931472
          %v3022 = vmul.f32 -0.5, %v2891
          %v3023 = vadd.f32 %v3022, 1.0
          %v3024 = vmul.f32 %v3023, %v2891
          %v3025 = vand.u32 2147483647, %v2891
          %vm3026 = vcmp.lt.f32.partialorder %v3025, 0.0004427343
          %v3027 = vsel %vm3026, %v3024, %v3021
          %v3028 = vadd.f32 %v2893, 1.0
          %v3029 = vlog2.pop %v3028
          %v3030 = vmul.f32 %v3029, 0.6931472
          %v3031 = vmul.f32 -0.5, %v2893
          %v3032 = vadd.f32 %v3031, 1.0
          %v3033 = vmul.f32 %v3032, %v2893
          %v3034 = vand.u32 2147483647, %v2893
          %vm3035 = vcmp.lt.f32.partialorder %v3034, 0.0004427343
          %v3036 = vsel %vm3035, %v3033, %v3030
          %v3037 = vadd.f32 %v2895, 1.0
          %v3038 = vlog2.pop %v3037
          %v3039 = vmul.f32 %v3038, 0.6931472
          %v3040 = vmul.f32 -0.5, %v2895
          %v3041 = vadd.f32 %v3040, 1.0
          %v3042 = vmul.f32 %v3041, %v2895
          %v3043 = vand.u32 2147483647, %v2895
          %vm3044 = vcmp.lt.f32.partialorder %v3043, 0.0004427343
          %v3045 = vsel %vm3044, %v3042, %v3039
          %v3046 = vadd.f32 %v2897, 1.0
          %v3047 = vlog2.pop %v3046
          %v3048 = vmul.f32 %v3047, 0.6931472
          %v3049 = vmul.f32 -0.5, %v2897
          %v3050 = vadd.f32 %v3049, 1.0
          %v3051 = vmul.f32 %v3050, %v2897
          %v3052 = vand.u32 2147483647, %v2897
          %vm3053 = vcmp.lt.f32.partialorder %v3052, 0.0004427343
          %v3054 = vsel %vm3053, %v3051, %v3048
          %v3055 = vadd.f32 %v2899, 1.0
          %v3056 = vlog2.pop %v3055
          %v3057 = vmul.f32 %v3056, 0.6931472
          %v3058 = vmul.f32 -0.5, %v2899
          %v3059 = vadd.f32 %v3058, 1.0
          %v3060 = vmul.f32 %v3059, %v2899
          %v3061 = vand.u32 2147483647, %v2899
          %vm3062 = vcmp.lt.f32.partialorder %v3061, 0.0004427343
          %v3063 = vsel %vm3062, %v3060, %v3057
          %v3064 = vadd.f32 %v2901, 1.0
          %v3065 = vlog2.pop %v3064
          %v3066 = vmul.f32 %v3065, 0.6931472
          %v3067 = vmul.f32 -0.5, %v2901
          %v3068 = vadd.f32 %v3067, 1.0
          %v3069 = vmul.f32 %v3068, %v2901
          %v3070 = vand.u32 2147483647, %v2901
          %vm3071 = vcmp.lt.f32.partialorder %v3070, 0.0004427343
          %v3072 = vsel %vm3071, %v3069, %v3066
          %v3073 = vadd.f32 %v2903, 1.0
          %v3074 = vlog2.pop %v3073
          %v3075 = vmul.f32 %v3074, 0.6931472
          %v3076 = vmul.f32 -0.5, %v2903
          %v3077 = vadd.f32 %v3076, 1.0
          %v3078 = vmul.f32 %v3077, %v2903
          %v3079 = vand.u32 2147483647, %v2903
          %vm3080 = vcmp.lt.f32.partialorder %v3079, 0.0004427343
          %v3081 = vsel %vm3080, %v3078, %v3075
          %v3082 = vadd.f32 %v2905, 1.0
          %v3083 = vlog2.pop %v3082
          %v3084 = vmul.f32 %v3083, 0.6931472
          %v3085 = vmul.f32 -0.5, %v2905
          %v3086 = vadd.f32 %v3085, 1.0
          %v3087 = vmul.f32 %v3086, %v2905
          %v3088 = vand.u32 2147483647, %v2905
          %vm3089 = vcmp.lt.f32.partialorder %v3088, 0.0004427343
          %v3090 = vsel %vm3089, %v3087, %v3084
          %v3091 = vadd.f32 %v2907, 1.0
          %v3092 = vlog2.pop %v3091
          %v3093 = vmul.f32 %v3092, 0.6931472
          %v3094 = vmul.f32 -0.5, %v2907
          %v3095 = vadd.f32 %v3094, 1.0
          %v3096 = vmul.f32 %v3095, %v2907
          %v3097 = vand.u32 2147483647, %v2907
          %vm3098 = vcmp.lt.f32.partialorder %v3097, 0.0004427343
          %v3099 = vsel %vm3098, %v3096, %v3093
          %v3100 = vadd.f32 %v2909, 1.0
          %v3101 = vlog2.pop %v3100
          %v3102 = vmul.f32 %v3101, 0.6931472
          %v3103 = vmul.f32 -0.5, %v2909
          %v3104 = vadd.f32 %v3103, 1.0
          %v3105 = vmul.f32 %v3104, %v2909
          %v3106 = vand.u32 2147483647, %v2909
          %vm3107 = vcmp.lt.f32.partialorder %v3106, 0.0004427343
          %v3108 = vsel %vm3107, %v3105, %v3102
          %v3109 = vadd.f32 %v2911, 1.0
          %v3110 = vlog2.pop %v3109
          %v3111 = vmul.f32 %v3110, 0.6931472
          %v3112 = vmul.f32 -0.5, %v2911
          %v3113 = vadd.f32 %v3112, 1.0
          %v3114 = vmul.f32 %v3113, %v2911
          %v3115 = vand.u32 2147483647, %v2911
          %vm3116 = vcmp.lt.f32.partialorder %v3115, 0.0004427343
          %v3117 = vsel %vm3116, %v3114, %v3111
          %v3118 = vadd.f32 %v2913, 1.0
          %v3119 = vlog2.pop %v3118
          %v3120 = vmul.f32 %v3119, 0.6931472
          %v3121 = vmul.f32 -0.5, %v2913
          %v3122 = vadd.f32 %v3121, 1.0
          %v3123 = vmul.f32 %v3122, %v2913
          %v3124 = vand.u32 2147483647, %v2913
          %vm3125 = vcmp.lt.f32.partialorder %v3124, 0.0004427343
          %v3126 = vsel %vm3125, %v3123, %v3120
          %v3127 = vadd.f32 %v2915, 1.0
          %v3128 = vlog2.pop %v3127
          %v3129 = vmul.f32 %v3128, 0.6931472
          %v3130 = vmul.f32 -0.5, %v2915
          %v3131 = vadd.f32 %v3130, 1.0
          %v3132 = vmul.f32 %v3131, %v2915
          %v3133 = vand.u32 2147483647, %v2915
          %vm3134 = vcmp.lt.f32.partialorder %v3133, 0.0004427343
          %v3135 = vsel %vm3134, %v3132, %v3129
          %v3136 = vadd.f32 %v2917, 1.0
          %v3137 = vlog2.pop %v3136
          %v3138 = vmul.f32 %v3137, 0.6931472
          %v3139 = vmul.f32 -0.5, %v2917
          %v3140 = vadd.f32 %v3139, 1.0
          %v3141 = vmul.f32 %v3140, %v2917
          %v3142 = vand.u32 2147483647, %v2917
          %vm3143 = vcmp.lt.f32.partialorder %v3142, 0.0004427343
          %v3144 = vsel %vm3143, %v3141, %v3138
          %v3145 = vadd.f32 %v2919, 1.0
          %v3146 = vlog2.pop %v3145
          %v3147 = vmul.f32 %v3146, 0.6931472
          %v3148 = vmul.f32 -0.5, %v2919
          %v3149 = vadd.f32 %v3148, 1.0
          %v3150 = vmul.f32 %v3149, %v2919
          %v3151 = vand.u32 2147483647, %v2919
          %vm3152 = vcmp.lt.f32.partialorder %v3151, 0.0004427343
          %v3153 = vsel %vm3152, %v3150, %v3147
          %v3154 = vadd.f32 %v2921, 1.0
          %v3155 = vlog2.pop %v3154
          %v3156 = vmul.f32 %v3155, 0.6931472
          %v3157 = vmul.f32 -0.5, %v2921
          %v3158 = vadd.f32 %v3157, 1.0
          %v3159 = vmul.f32 %v3158, %v2921
          %v3160 = vand.u32 2147483647, %v2921
          %vm3161 = vcmp.lt.f32.partialorder %v3160, 0.0004427343
          %v3162 = vsel %vm3161, %v3159, %v3156
          %v3163 = vadd.f32 %v2923, 1.0
          %v3164 = vlog2.pop %v3163
          %v3165 = vmul.f32 %v3164, 0.6931472
          %v3166 = vmul.f32 -0.5, %v2923
          %v3167 = vadd.f32 %v3166, 1.0
          %v3168 = vmul.f32 %v3167, %v2923
          %v3169 = vand.u32 2147483647, %v2923
          %vm3170 = vcmp.lt.f32.partialorder %v3169, 0.0004427343
          %v3171 = vsel %vm3170, %v3168, %v3165
          %v3172 = vadd.f32 %v2925, 1.0
          %v3173 = vlog2.pop %v3172
          %v3174 = vmul.f32 %v3173, 0.6931472
          %v3175 = vmul.f32 -0.5, %v2925
          %v3176 = vadd.f32 %v3175, 1.0
          %v3177 = vmul.f32 %v3176, %v2925
          %v3178 = vand.u32 2147483647, %v2925
          %vm3179 = vcmp.lt.f32.partialorder %v3178, 0.0004427343
          %v3180 = vsel %vm3179, %v3177, %v3174
          %v3181 = vadd.f32 %v2927, 1.0
          %v3182 = vlog2.pop %v3181
          %v3183 = vmul.f32 %v3182, 0.6931472
          %v3184 = vmul.f32 -0.5, %v2927
          %v3185 = vadd.f32 %v3184, 1.0
          %v3186 = vmul.f32 %v3185, %v2927
          %v3187 = vand.u32 2147483647, %v2927
          %vm3188 = vcmp.lt.f32.partialorder %v3187, 0.0004427343
          %v3189 = vsel %vm3188, %v3186, %v3183
          %v3190 = vadd.f32 %v2929, 1.0
          %v3191 = vlog2.pop %v3190
          %v3192 = vmul.f32 %v3191, 0.6931472
          %v3193 = vmul.f32 -0.5, %v2929
          %v3194 = vadd.f32 %v3193, 1.0
          %v3195 = vmul.f32 %v3194, %v2929
          %v3196 = vand.u32 2147483647, %v2929
          %vm3197 = vcmp.lt.f32.partialorder %v3196, 0.0004427343
          %v3198 = vsel %vm3197, %v3195, %v3192
          %v3199 = vadd.f32 %v2931, 1.0
          %v3200 = vlog2.pop %v3199
          %v3201 = vmul.f32 %v3200, 0.6931472
          %v3202 = vmul.f32 -0.5, %v2931
          %v3203 = vadd.f32 %v3202, 1.0
          %v3204 = vmul.f32 %v3203, %v2931
          %v3205 = vand.u32 2147483647, %v2931
          %vm3206 = vcmp.lt.f32.partialorder %v3205, 0.0004427343
          %v3207 = vsel %vm3206, %v3204, %v3201
          %v3208 = vadd.f32 %v2933, 1.0
          %v3209 = vlog2.pop %v3208
          %v3210 = vmul.f32 %v3209, 0.6931472
          %v3211 = vmul.f32 -0.5, %v2933
          %v3212 = vadd.f32 %v3211, 1.0
          %v3213 = vmul.f32 %v3212, %v2933
          %v3214 = vand.u32 2147483647, %v2933
          %vm3215 = vcmp.lt.f32.partialorder %v3214, 0.0004427343
          %v3216 = vsel %vm3215, %v3213, %v3210
          %v3217 = vadd.f32 %v2935, 1.0
          %v3218 = vlog2.pop %v3217
          %v3219 = vmul.f32 %v3218, 0.6931472
          %v3220 = vmul.f32 -0.5, %v2935
          %v3221 = vadd.f32 %v3220, 1.0
          %v3222 = vmul.f32 %v3221, %v2935
          %v3223 = vand.u32 2147483647, %v2935
          %vm3224 = vcmp.lt.f32.partialorder %v3223, 0.0004427343
          %v3225 = vsel %vm3224, %v3222, %v3219
          %v3226 = vadd.f32 %v2937, 1.0
          %v3227 = vlog2.pop %v3226
          %v3228 = vmul.f32 %v3227, 0.6931472
          %v3229 = vmul.f32 -0.5, %v2937
          %v3230 = vadd.f32 %v3229, 1.0
          %v3231 = vmul.f32 %v3230, %v2937
          %v3232 = vand.u32 2147483647, %v2937
          %vm3233 = vcmp.lt.f32.partialorder %v3232, 0.0004427343
          %v3234 = vsel %vm3233, %v3231, %v3228
          %v3235 = vadd.f32 %v2939, 1.0
          %v3236 = vlog2.pop %v3235
          %v3237 = vmul.f32 %v3236, 0.6931472
          %v3238 = vmul.f32 -0.5, %v2939
          %v3239 = vadd.f32 %v3238, 1.0
          %v3240 = vmul.f32 %v3239, %v2939
          %v3241 = vand.u32 2147483647, %v2939
          %vm3242 = vcmp.lt.f32.partialorder %v3241, 0.0004427343
          %v3243 = vsel %vm3242, %v3240, %v3237
          %v3244 = vadd.f32 %v2941, 1.0
          %v3245 = vlog2.pop %v3244
          %v3246 = vmul.f32 %v3245, 0.6931472
          %v3247 = vmul.f32 -0.5, %v2941
          %v3248 = vadd.f32 %v3247, 1.0
          %v3249 = vmul.f32 %v3248, %v2941
          %v3250 = vand.u32 2147483647, %v2941
          %vm3251 = vcmp.lt.f32.partialorder %v3250, 0.0004427343
          %v3252 = vsel %vm3251, %v3249, %v3246
          %v3253 = vadd.f32 %v2943, 1.0
          %v3254 = vlog2.pop %v3253
          %v3255 = vmul.f32 %v3254, 0.6931472
          %v3256 = vmul.f32 -0.5, %v2943
          %v3257 = vadd.f32 %v3256, 1.0
          %v3258 = vmul.f32 %v3257, %v2943
          %v3259 = vand.u32 2147483647, %v2943
          %vm3260 = vcmp.lt.f32.partialorder %v3259, 0.0004427343
          %v3261 = vsel %vm3260, %v3258, %v3255
          %v3262 = vadd.f32 %v2945, 1.0
          %v3263 = vlog2.pop %v3262
          %v3264 = vmul.f32 %v3263, 0.6931472
          %v3265 = vmul.f32 -0.5, %v2945
          %v3266 = vadd.f32 %v3265, 1.0
          %v3267 = vmul.f32 %v3266, %v2945
          %v3268 = vand.u32 2147483647, %v2945
          %vm3269 = vcmp.lt.f32.partialorder %v3268, 0.0004427343
          %v3270 = vsel %vm3269, %v3267, %v3264
          %v3271 = vadd.f32 %v2947, 1.0
          %v3272 = vlog2.pop %v3271
          %v3273 = vmul.f32 %v3272, 0.6931472
          %v3274 = vmul.f32 -0.5, %v2947
          %v3275 = vadd.f32 %v3274, 1.0
          %v3276 = vmul.f32 %v3275, %v2947
          %v3277 = vand.u32 2147483647, %v2947
          %vm3278 = vcmp.lt.f32.partialorder %v3277, 0.0004427343
          %v3279 = vsel %vm3278, %v3276, %v3273
          %v3280 = vadd.f32 %v2949, 1.0
          %v3281 = vlog2.pop %v3280
          %v3282 = vmul.f32 %v3281, 0.6931472
          %v3283 = vmul.f32 -0.5, %v2949
          %v3284 = vadd.f32 %v3283, 1.0
          %v3285 = vmul.f32 %v3284, %v2949
          %v3286 = vand.u32 2147483647, %v2949
          %vm3287 = vcmp.lt.f32.partialorder %v3286, 0.0004427343
          %v3288 = vsel %vm3287, %v3285, %v3282
          %v3289 = vadd.f32 %v2951, 1.0
          %v3290 = vlog2.pop %v3289
          %v3291 = vmul.f32 %v3290, 0.6931472
          %v3292 = vmul.f32 -0.5, %v2951
          %v3293 = vadd.f32 %v3292, 1.0
          %v3294 = vmul.f32 %v3293, %v2951
          %v3295 = vand.u32 2147483647, %v2951
          %vm3296 = vcmp.lt.f32.partialorder %v3295, 0.0004427343
          %v3297 = vsel %vm3296, %v3294, %v3291
          %v3298 = vadd.f32 %v2953, 1.0
          %v3299 = vlog2.pop %v3298
          %v3300 = vmul.f32 %v3299, 0.6931472
          %v3301 = vmul.f32 -0.5, %v2953
          %v3302 = vadd.f32 %v3301, 1.0
          %v3303 = vmul.f32 %v3302, %v2953
          %v3304 = vand.u32 2147483647, %v2953
          %vm3305 = vcmp.lt.f32.partialorder %v3304, 0.0004427343
          %v3306 = vsel %vm3305, %v3303, %v3300
          %v3307 = vadd.f32 %v2955, 1.0
          %v3308 = vlog2.pop %v3307
          %v3309 = vmul.f32 %v3308, 0.6931472
          %v3310 = vmul.f32 -0.5, %v2955
          %v3311 = vadd.f32 %v3310, 1.0
          %v3312 = vmul.f32 %v3311, %v2955
          %v3313 = vand.u32 2147483647, %v2955
          %vm3314 = vcmp.lt.f32.partialorder %v3313, 0.0004427343
          %v3315 = vsel %vm3314, %v3312, %v3309
          %v3316 = vadd.f32 %v2756, %v2964
          %v3317 = vadd.f32 %v2757, %v2973
          %v3318 = vadd.f32 %v2758, %v2982
          %v3319 = vadd.f32 %v2759, %v2991
          %v3320 = vadd.f32 %v2760, %v3000
          %v3321 = vadd.f32 %v2761, %v3009
          %v3322 = vadd.f32 %v2762, %v3018
          %v3323 = vadd.f32 %v2763, %v3027
          %v3324 = vadd.f32 %v2764, %v3036
          %v3325 = vadd.f32 %v2765, %v3045
          %v3326 = vadd.f32 %v2766, %v3054
          %v3327 = vadd.f32 %v2767, %v3063
          %v3328 = vadd.f32 %v2768, %v3072
          %v3329 = vadd.f32 %v2769, %v3081
          %v3330 = vadd.f32 %v2770, %v3090
          %v3331 = vadd.f32 %v2771, %v3099
          %v3332 = vadd.f32 %v2772, %v3108
          %v3333 = vadd.f32 %v2773, %v3117
          %v3334 = vadd.f32 %v2774, %v3126
          %v3335 = vadd.f32 %v2775, %v3135
          %v3336 = vadd.f32 %v2776, %v3144
          %v3337 = vadd.f32 %v2777, %v3153
          %v3338 = vadd.f32 %v2778, %v3162
          %v3339 = vadd.f32 %v2779, %v3171
          %v3340 = vadd.f32 %v2780, %v3180
          %v3341 = vadd.f32 %v2781, %v3189
          %v3342 = vadd.f32 %v2782, %v3198
          %v3343 = vadd.f32 %v2783, %v3207
          %v3344 = vadd.f32 %v2784, %v3216
          %v3345 = vadd.f32 %v2785, %v3225
          %v3346 = vadd.f32 %v2786, %v3234
          %v3347 = vadd.f32 %v2787, %v3243
          %v3348 = vadd.f32 %v2788, %v3252
          %v3349 = vadd.f32 %v2789, %v3261
          %v3350 = vadd.f32 %v2790, %v3270
          %v3351 = vadd.f32 %v2791, %v3279
          %v3352 = vadd.f32 %v2792, %v3288
          %v3353 = vadd.f32 %v2793, %v3297
          %v3354 = vadd.f32 %v2794, %v3306
          %v3355 = vadd.f32 %v2795, %v3315
          %v3356 = vld [vmem:[%s491] sm:$0xff]
          %v3357 = vld [vmem:[%s491 + $0x8] sm:$0xff]
          %v3358 = vld [vmem:[%s491 + $0x10] sm:$0xff]
          %v3359 = vld [vmem:[%s491 + $0x18] sm:$0xff]
          %v3360 = vld [vmem:[%s491 + $0x20] sm:$0xff]
          %v3361 = vld [vmem:[%s491 + $0x28] sm:$0xff]
          %v3362 = vld [vmem:[%s491 + $0x30] sm:$0xff]
          %v3363 = vld [vmem:[%s491 + $0x38] sm:$0xff]
          %v3364 = vld [vmem:[%s491 + $0x40] sm:$0xff]
          %v3365 = vld [vmem:[%s491 + $0x48] sm:$0xff]
          %v3366 = vld [vmem:[%s491 + $0x50] sm:$0xff]
          %v3367 = vld [vmem:[%s491 + $0x58] sm:$0xff]
          %v3368 = vld [vmem:[%s491 + $0x60] sm:$0xff]
          %v3369 = vld [vmem:[%s491 + $0x68] sm:$0xff]
          %v3370 = vld [vmem:[%s491 + $0x70] sm:$0xff]
          %v3371 = vld [vmem:[%s491 + $0x78] sm:$0xff]
          %v3372 = vld [vmem:[%s491 + $0x80] sm:$0xff]
          %v3373 = vld [vmem:[%s491 + $0x88] sm:$0xff]
          %v3374 = vld [vmem:[%s491 + $0x90] sm:$0xff]
          %v3375 = vld [vmem:[%s491 + $0x98] sm:$0xff]
          %v3376 = vld [vmem:[%s491 + $0xa0] sm:$0xff]
          %v3377 = vld [vmem:[%s491 + $0xa8] sm:$0xff]
          %v3378 = vld [vmem:[%s491 + $0xb0] sm:$0xff]
          %v3379 = vld [vmem:[%s491 + $0xb8] sm:$0xff]
          %v3380 = vld [vmem:[%s491 + $0xc0] sm:$0xff]
          %v3381 = vld [vmem:[%s491 + $0xc8] sm:$0xff]
          %v3382 = vld [vmem:[%s491 + $0xd0] sm:$0xff]
          %v3383 = vld [vmem:[%s491 + $0xd8] sm:$0xff]
          %v3384 = vld [vmem:[%s491 + $0xe0] sm:$0xff]
          %v3385 = vld [vmem:[%s491 + $0xe8] sm:$0xff]
          %v3386 = vld [vmem:[%s491 + $0xf0] sm:$0xff]
          %v3387 = vld [vmem:[%s491 + $0xf8] sm:$0xff]
          %v3388 = vld [vmem:[%s491 + $0x100] sm:$0xff]
          %v3389 = vld [vmem:[%s491 + $0x108] sm:$0xff]
          %v3390 = vld [vmem:[%s491 + $0x110] sm:$0xff]
          %v3391 = vld [vmem:[%s491 + $0x118] sm:$0xff]
          %v3392 = vld [vmem:[%s491 + $0x120] sm:$0xff]
          %v3393 = vld [vmem:[%s491 + $0x128] sm:$0xff]
          %v3394 = vld [vmem:[%s491 + $0x130] sm:$0xff]
          %v3395 = vld [vmem:[%s491 + $0x138] sm:$0xff]
          %v3396 = vmul.f32 %v3316, %v2676
          %v3397 = vmul.f32 %v3317, %v2677
          %v3398 = vmul.f32 %v3318, %v2678
          %v3399 = vmul.f32 %v3319, %v2679
          %v3400 = vmul.f32 %v3320, %v2680
          %v3401 = vmul.f32 %v3321, %v2681
          %v3402 = vmul.f32 %v3322, %v2682
          %v3403 = vmul.f32 %v3323, %v2683
          %v3404 = vmul.f32 %v3324, %v2684
          %v3405 = vmul.f32 %v3325, %v2685
          %v3406 = vmul.f32 %v3326, %v2686
          %v3407 = vmul.f32 %v3327, %v2687
          %v3408 = vmul.f32 %v3328, %v2688
          %v3409 = vmul.f32 %v3329, %v2689
          %v3410 = vmul.f32 %v3330, %v2690
          %v3411 = vmul.f32 %v3331, %v2691
          %v3412 = vmul.f32 %v3332, %v2692
          %v3413 = vmul.f32 %v3333, %v2693
          %v3414 = vmul.f32 %v3334, %v2694
          %v3415 = vmul.f32 %v3335, %v2695
          %v3416 = vmul.f32 %v3336, %v2696
          %v3417 = vmul.f32 %v3337, %v2697
          %v3418 = vmul.f32 %v3338, %v2698
          %v3419 = vmul.f32 %v3339, %v2699
          %v3420 = vmul.f32 %v3340, %v2700
          %v3421 = vmul.f32 %v3341, %v2701
          %v3422 = vmul.f32 %v3342, %v2702
          %v3423 = vmul.f32 %v3343, %v2703
          %v3424 = vmul.f32 %v3344, %v2704
          %v3425 = vmul.f32 %v3345, %v2705
          %v3426 = vmul.f32 %v3346, %v2706
          %v3427 = vmul.f32 %v3347, %v2707
          %v3428 = vmul.f32 %v3348, %v2708
          %v3429 = vmul.f32 %v3349, %v2709
          %v3430 = vmul.f32 %v3350, %v2710
          %v3431 = vmul.f32 %v3351, %v2711
          %v3432 = vmul.f32 %v3352, %v2712
          %v3433 = vmul.f32 %v3353, %v2713
          %v3434 = vmul.f32 %v3354, %v2714
          %v3435 = vmul.f32 %v3355, %v2715
          %v3436 = vadd.f32 %v3356, %v3396
          %v3437 = vadd.f32 %v3357, %v3397
          %v3438 = vadd.f32 %v3358, %v3398
          %v3439 = vadd.f32 %v3359, %v3399
          %v3440 = vadd.f32 %v3360, %v3400
          %v3441 = vadd.f32 %v3361, %v3401
          %v3442 = vadd.f32 %v3362, %v3402
          %v3443 = vadd.f32 %v3363, %v3403
          %v3444 = vadd.f32 %v3364, %v3404
          %v3445 = vadd.f32 %v3365, %v3405
          %v3446 = vadd.f32 %v3366, %v3406
          %v3447 = vadd.f32 %v3367, %v3407
          %v3448 = vadd.f32 %v3368, %v3408
          %v3449 = vadd.f32 %v3369, %v3409
          %v3450 = vadd.f32 %v3370, %v3410
          %v3451 = vadd.f32 %v3371, %v3411
          %v3452 = vadd.f32 %v3372, %v3412
          %v3453 = vadd.f32 %v3373, %v3413
          %v3454 = vadd.f32 %v3374, %v3414
          %v3455 = vadd.f32 %v3375, %v3415
          %v3456 = vadd.f32 %v3376, %v3416
          %v3457 = vadd.f32 %v3377, %v3417
          %v3458 = vadd.f32 %v3378, %v3418
          %v3459 = vadd.f32 %v3379, %v3419
          %v3460 = vadd.f32 %v3380, %v3420
          %v3461 = vadd.f32 %v3381, %v3421
          %v3462 = vadd.f32 %v3382, %v3422
          %v3463 = vadd.f32 %v3383, %v3423
          %v3464 = vadd.f32 %v3384, %v3424
          %v3465 = vadd.f32 %v3385, %v3425
          %v3466 = vadd.f32 %v3386, %v3426
          %v3467 = vadd.f32 %v3387, %v3427
          %v3468 = vadd.f32 %v3388, %v3428
          %v3469 = vadd.f32 %v3389, %v3429
          %v3470 = vadd.f32 %v3390, %v3430
          %v3471 = vadd.f32 %v3391, %v3431
          %v3472 = vadd.f32 %v3392, %v3432
          %v3473 = vadd.f32 %v3393, %v3433
          %v3474 = vadd.f32 %v3394, %v3434
          %v3475 = vadd.f32 %v3395, %v3435
          %s3476 = smul.u32 %s24, 80
          %s3477 = sshra.s32 %s3476, 3
          %s3478 = sand.u32 %s3476, 7
          %s3479 = smul.u32 %s3477, 4
          %s3480 = smul.addr %s3479, 8
          %s3481 = scalar_lea.vmem [#allocation3], %s3480
          %3482 = vst [vmem:[%s3481] sm:$0xff] %v3436
          %3483 = vst [vmem:[%s3481 + $0x8] sm:$0xff] %v3437
          %3484 = vst [vmem:[%s3481 + $0x10] sm:$0xff] %v3438
          %3485 = vst.msk [vmem:[%s3481 + $0x18] sm:$0xff] %vm2114, %v3439
          %3486 = vst [vmem:[%s3481 + $0x20] sm:$0xff] %v3440
          %3487 = vst [vmem:[%s3481 + $0x28] sm:$0xff] %v3441
          %3488 = vst [vmem:[%s3481 + $0x30] sm:$0xff] %v3442
          %3489 = vst.msk [vmem:[%s3481 + $0x38] sm:$0xff] %vm2114, %v3443
          %3490 = vst [vmem:[%s3481 + $0x40] sm:$0xff] %v3444
          %3491 = vst [vmem:[%s3481 + $0x48] sm:$0xff] %v3445
          %3492 = vst [vmem:[%s3481 + $0x50] sm:$0xff] %v3446
          %3493 = vst.msk [vmem:[%s3481 + $0x58] sm:$0xff] %vm2114, %v3447
          %3494 = vst [vmem:[%s3481 + $0x60] sm:$0xff] %v3448
          %3495 = vst [vmem:[%s3481 + $0x68] sm:$0xff] %v3449
          %3496 = vst [vmem:[%s3481 + $0x70] sm:$0xff] %v3450
          %3497 = vst.msk [vmem:[%s3481 + $0x78] sm:$0xff] %vm2114, %v3451
          %3498 = vst [vmem:[%s3481 + $0x80] sm:$0xff] %v3452
          %3499 = vst [vmem:[%s3481 + $0x88] sm:$0xff] %v3453
          %3500 = vst [vmem:[%s3481 + $0x90] sm:$0xff] %v3454
          %3501 = vst.msk [vmem:[%s3481 + $0x98] sm:$0xff] %vm2114, %v3455
          %3502 = vst [vmem:[%s3481 + $0xa0] sm:$0xff] %v3456
          %3503 = vst [vmem:[%s3481 + $0xa8] sm:$0xff] %v3457
          %3504 = vst [vmem:[%s3481 + $0xb0] sm:$0xff] %v3458
          %3505 = vst.msk [vmem:[%s3481 + $0xb8] sm:$0xff] %vm2114, %v3459
          %3506 = vst [vmem:[%s3481 + $0xc0] sm:$0xff] %v3460
          %3507 = vst [vmem:[%s3481 + $0xc8] sm:$0xff] %v3461
          %3508 = vst [vmem:[%s3481 + $0xd0] sm:$0xff] %v3462
          %3509 = vst.msk [vmem:[%s3481 + $0xd8] sm:$0xff] %vm2114, %v3463
          %3510 = vst [vmem:[%s3481 + $0xe0] sm:$0xff] %v3464
          %3511 = vst [vmem:[%s3481 + $0xe8] sm:$0xff] %v3465
          %3512 = vst [vmem:[%s3481 + $0xf0] sm:$0xff] %v3466
          %3513 = vst.msk [vmem:[%s3481 + $0xf8] sm:$0xff] %vm2114, %v3467
          %3514 = vst [vmem:[%s3481 + $0x100] sm:$0xff] %v3468
          %3515 = vst [vmem:[%s3481 + $0x108] sm:$0xff] %v3469
          %3516 = vst [vmem:[%s3481 + $0x110] sm:$0xff] %v3470
          %3517 = vst.msk [vmem:[%s3481 + $0x118] sm:$0xff] %vm2114, %v3471
          %3518 = vst [vmem:[%s3481 + $0x120] sm:$0xff] %v3472
          %3519 = vst [vmem:[%s3481 + $0x128] sm:$0xff] %v3473
          %3520 = vst [vmem:[%s3481 + $0x130] sm:$0xff] %v3474
          %3521 = vst.msk [vmem:[%s3481 + $0x138] sm:$0xff] %vm2114, %v3475
          %v3522 = vld [vmem:[#allocation4] sm:$0xff]
          %v3523 = vld [vmem:[#allocation4 + $0x8] sm:$0xff]
          %v3524 = vld [vmem:[#allocation4 + $0x10] sm:$0xff]
          %v3525 = vld [vmem:[#allocation4 + $0x18] sm:$0xff]
          %v3526 = vld [vmem:[#allocation4 + $0x20] sm:$0xff]
          %v3527 = vld [vmem:[#allocation4 + $0x28] sm:$0xff]
          %v3528 = vld [vmem:[#allocation4 + $0x30] sm:$0xff]
          %v3529 = vld [vmem:[#allocation4 + $0x38] sm:$0xff]
          %v3530 = vld [vmem:[#allocation4 + $0x40] sm:$0xff]
          %v3531 = vld [vmem:[#allocation4 + $0x48] sm:$0xff]
          %v3532 = vld [vmem:[#allocation4 + $0x50] sm:$0xff]
          %v3533 = vld [vmem:[#allocation4 + $0x58] sm:$0xff]
          %v3534 = vld [vmem:[#allocation4 + $0x60] sm:$0xff]
          %v3535 = vld [vmem:[#allocation4 + $0x68] sm:$0xff]
          %v3536 = vld [vmem:[#allocation4 + $0x70] sm:$0xff]
          %v3537 = vld [vmem:[#allocation4 + $0x78] sm:$0xff]
          %v3538 = vld [vmem:[#allocation4 + $0x80] sm:$0xff]
          %v3539 = vld [vmem:[#allocation4 + $0x88] sm:$0xff]
          %v3540 = vld [vmem:[#allocation4 + $0x90] sm:$0xff]
          %v3541 = vld [vmem:[#allocation4 + $0x98] sm:$0xff]
          %v3542 = vld [vmem:[#allocation4 + $0xa0] sm:$0xff]
          %v3543 = vld [vmem:[#allocation4 + $0xa8] sm:$0xff]
          %v3544 = vld [vmem:[#allocation4 + $0xb0] sm:$0xff]
          %v3545 = vld [vmem:[#allocation4 + $0xb8] sm:$0xff]
          %v3546 = vld [vmem:[#allocation4 + $0xc0] sm:$0xff]
          %v3547 = vld [vmem:[#allocation4 + $0xc8] sm:$0xff]
          %v3548 = vld [vmem:[#allocation4 + $0xd0] sm:$0xff]
          %v3549 = vld [vmem:[#allocation4 + $0xd8] sm:$0xff]
          %v3550 = vld [vmem:[#allocation4 + $0xe0] sm:$0xff]
          %v3551 = vld [vmem:[#allocation4 + $0xe8] sm:$0xff]
          %v3552 = vld [vmem:[#allocation4 + $0xf0] sm:$0xff]
          %v3553 = vld [vmem:[#allocation4 + $0xf8] sm:$0xff]
          %v3554 = vld [vmem:[#allocation4 + $0x100] sm:$0xff]
          %v3555 = vld [vmem:[#allocation4 + $0x108] sm:$0xff]
          %v3556 = vld [vmem:[#allocation4 + $0x110] sm:$0xff]
          %v3557 = vld [vmem:[#allocation4 + $0x118] sm:$0xff]
          %v3558 = vld [vmem:[#allocation4 + $0x120] sm:$0xff]
          %v3559 = vld [vmem:[#allocation4 + $0x128] sm:$0xff]
          %v3560 = vld [vmem:[#allocation4 + $0x130] sm:$0xff]
          %v3561 = vld [vmem:[#allocation4 + $0x138] sm:$0xff]
          %v3562 = vmul.f32 %v3436, %v3436
          %v3563 = vmul.f32 %v3437, %v3437
          %v3564 = vmul.f32 %v3438, %v3438
          %v3565 = vmul.f32 %v3439, %v3439
          %v3566 = vmul.f32 %v3440, %v3440
          %v3567 = vmul.f32 %v3441, %v3441
          %v3568 = vmul.f32 %v3442, %v3442
          %v3569 = vmul.f32 %v3443, %v3443
          %v3570 = vmul.f32 %v3444, %v3444
          %v3571 = vmul.f32 %v3445, %v3445
          %v3572 = vmul.f32 %v3446, %v3446
          %v3573 = vmul.f32 %v3447, %v3447
          %v3574 = vmul.f32 %v3448, %v3448
          %v3575 = vmul.f32 %v3449, %v3449
          %v3576 = vmul.f32 %v3450, %v3450
          %v3577 = vmul.f32 %v3451, %v3451
          %v3578 = vmul.f32 %v3452, %v3452
          %v3579 = vmul.f32 %v3453, %v3453
          %v3580 = vmul.f32 %v3454, %v3454
          %v3581 = vmul.f32 %v3455, %v3455
          %v3582 = vmul.f32 %v3456, %v3456
          %v3583 = vmul.f32 %v3457, %v3457
          %v3584 = vmul.f32 %v3458, %v3458
          %v3585 = vmul.f32 %v3459, %v3459
          %v3586 = vmul.f32 %v3460, %v3460
          %v3587 = vmul.f32 %v3461, %v3461
          %v3588 = vmul.f32 %v3462, %v3462
          %v3589 = vmul.f32 %v3463, %v3463
          %v3590 = vmul.f32 %v3464, %v3464
          %v3591 = vmul.f32 %v3465, %v3465
          %v3592 = vmul.f32 %v3466, %v3466
          %v3593 = vmul.f32 %v3467, %v3467
          %v3594 = vmul.f32 %v3468, %v3468
          %v3595 = vmul.f32 %v3469, %v3469
          %v3596 = vmul.f32 %v3470, %v3470
          %v3597 = vmul.f32 %v3471, %v3471
          %v3598 = vmul.f32 %v3472, %v3472
          %v3599 = vmul.f32 %v3473, %v3473
          %v3600 = vmul.f32 %v3474, %v3474
          %v3601 = vmul.f32 %v3475, %v3475
          %v3602 = vadd.f32 %v3522, %v3562
          %v3603 = vadd.f32 %v3523, %v3563
          %v3604 = vadd.f32 %v3524, %v3564
          %v3605 = vadd.f32 %v3525, %v3565
          %v3606 = vadd.f32 %v3526, %v3566
          %v3607 = vadd.f32 %v3527, %v3567
          %v3608 = vadd.f32 %v3528, %v3568
          %v3609 = vadd.f32 %v3529, %v3569
          %v3610 = vadd.f32 %v3530, %v3570
          %v3611 = vadd.f32 %v3531, %v3571
          %v3612 = vadd.f32 %v3532, %v3572
          %v3613 = vadd.f32 %v3533, %v3573
          %v3614 = vadd.f32 %v3534, %v3574
          %v3615 = vadd.f32 %v3535, %v3575
          %v3616 = vadd.f32 %v3536, %v3576
          %v3617 = vadd.f32 %v3537, %v3577
          %v3618 = vadd.f32 %v3538, %v3578
          %v3619 = vadd.f32 %v3539, %v3579
          %v3620 = vadd.f32 %v3540, %v3580
          %v3621 = vadd.f32 %v3541, %v3581
          %v3622 = vadd.f32 %v3542, %v3582
          %v3623 = vadd.f32 %v3543, %v3583
          %v3624 = vadd.f32 %v3544, %v3584
          %v3625 = vadd.f32 %v3545, %v3585
          %v3626 = vadd.f32 %v3546, %v3586
          %v3627 = vadd.f32 %v3547, %v3587
          %v3628 = vadd.f32 %v3548, %v3588
          %v3629 = vadd.f32 %v3549, %v3589
          %v3630 = vadd.f32 %v3550, %v3590
          %v3631 = vadd.f32 %v3551, %v3591
          %v3632 = vadd.f32 %v3552, %v3592
          %v3633 = vadd.f32 %v3553, %v3593
          %v3634 = vadd.f32 %v3554, %v3594
          %v3635 = vadd.f32 %v3555, %v3595
          %v3636 = vadd.f32 %v3556, %v3596
          %v3637 = vadd.f32 %v3557, %v3597
          %v3638 = vadd.f32 %v3558, %v3598
          %v3639 = vadd.f32 %v3559, %v3599
          %v3640 = vadd.f32 %v3560, %v3600
          %v3641 = vadd.f32 %v3561, %v3601
          %3642 = vst [vmem:[#allocation4] sm:$0xff] %v3602
          %3643 = vst [vmem:[#allocation4 + $0x8] sm:$0xff] %v3603
          %3644 = vst [vmem:[#allocation4 + $0x10] sm:$0xff] %v3604
          %3645 = vst.msk [vmem:[#allocation4 + $0x18] sm:$0xff] %vm2114, %v3605
          %3646 = vst [vmem:[#allocation4 + $0x20] sm:$0xff] %v3606
          %3647 = vst [vmem:[#allocation4 + $0x28] sm:$0xff] %v3607
          %3648 = vst [vmem:[#allocation4 + $0x30] sm:$0xff] %v3608
          %3649 = vst.msk [vmem:[#allocation4 + $0x38] sm:$0xff] %vm2114, %v3609
          %3650 = vst [vmem:[#allocation4 + $0x40] sm:$0xff] %v3610
          %3651 = vst [vmem:[#allocation4 + $0x48] sm:$0xff] %v3611
          %3652 = vst [vmem:[#allocation4 + $0x50] sm:$0xff] %v3612
          %3653 = vst.msk [vmem:[#allocation4 + $0x58] sm:$0xff] %vm2114, %v3613
          %3654 = vst [vmem:[#allocation4 + $0x60] sm:$0xff] %v3614
          %3655 = vst [vmem:[#allocation4 + $0x68] sm:$0xff] %v3615
          %3656 = vst [vmem:[#allocation4 + $0x70] sm:$0xff] %v3616
          %3657 = vst.msk [vmem:[#allocation4 + $0x78] sm:$0xff] %vm2114, %v3617
          %3658 = vst [vmem:[#allocation4 + $0x80] sm:$0xff] %v3618
          %3659 = vst [vmem:[#allocation4 + $0x88] sm:$0xff] %v3619
          %3660 = vst [vmem:[#allocation4 + $0x90] sm:$0xff] %v3620
          %3661 = vst.msk [vmem:[#allocation4 + $0x98] sm:$0xff] %vm2114, %v3621
          %3662 = vst [vmem:[#allocation4 + $0xa0] sm:$0xff] %v3622
          %3663 = vst [vmem:[#allocation4 + $0xa8] sm:$0xff] %v3623
          %3664 = vst [vmem:[#allocation4 + $0xb0] sm:$0xff] %v3624
          %3665 = vst.msk [vmem:[#allocation4 + $0xb8] sm:$0xff] %vm2114, %v3625
          %3666 = vst [vmem:[#allocation4 + $0xc0] sm:$0xff] %v3626
          %3667 = vst [vmem:[#allocation4 + $0xc8] sm:$0xff] %v3627
          %3668 = vst [vmem:[#allocation4 + $0xd0] sm:$0xff] %v3628
          %3669 = vst.msk [vmem:[#allocation4 + $0xd8] sm:$0xff] %vm2114, %v3629
          %3670 = vst [vmem:[#allocation4 + $0xe0] sm:$0xff] %v3630
          %3671 = vst [vmem:[#allocation4 + $0xe8] sm:$0xff] %v3631
          %3672 = vst [vmem:[#allocation4 + $0xf0] sm:$0xff] %v3632
          %3673 = vst.msk [vmem:[#allocation4 + $0xf8] sm:$0xff] %vm2114, %v3633
          %3674 = vst [vmem:[#allocation4 + $0x100] sm:$0xff] %v3634
          %3675 = vst [vmem:[#allocation4 + $0x108] sm:$0xff] %v3635
          %3676 = vst [vmem:[#allocation4 + $0x110] sm:$0xff] %v3636
          %3677 = vst.msk [vmem:[#allocation4 + $0x118] sm:$0xff] %vm2114, %v3637
          %3678 = vst [vmem:[#allocation4 + $0x120] sm:$0xff] %v3638
          %3679 = vst [vmem:[#allocation4 + $0x128] sm:$0xff] %v3639
          %3680 = vst [vmem:[#allocation4 + $0x130] sm:$0xff] %v3640
          %3681 = vst.msk [vmem:[#allocation4 + $0x138] sm:$0xff] %vm2114, %v3641
          %v3682 = vld [vmem:[#allocation5] sm:$0xff]
          %v3683 = vld [vmem:[#allocation5 + $0x8] sm:$0xff]
          %v3684 = vld [vmem:[#allocation5 + $0x10] sm:$0xff]
          %v3685 = vld [vmem:[#allocation5 + $0x18] sm:$0xff]
          %v3686 = vld [vmem:[#allocation5 + $0x20] sm:$0xff]
          %v3687 = vld [vmem:[#allocation5 + $0x28] sm:$0xff]
          %v3688 = vld [vmem:[#allocation5 + $0x30] sm:$0xff]
          %v3689 = vld [vmem:[#allocation5 + $0x38] sm:$0xff]
          %v3690 = vld [vmem:[#allocation5 + $0x40] sm:$0xff]
          %v3691 = vld [vmem:[#allocation5 + $0x48] sm:$0xff]
          %v3692 = vld [vmem:[#allocation5 + $0x50] sm:$0xff]
          %v3693 = vld [vmem:[#allocation5 + $0x58] sm:$0xff]
          %v3694 = vld [vmem:[#allocation5 + $0x60] sm:$0xff]
          %v3695 = vld [vmem:[#allocation5 + $0x68] sm:$0xff]
          %v3696 = vld [vmem:[#allocation5 + $0x70] sm:$0xff]
          %v3697 = vld [vmem:[#allocation5 + $0x78] sm:$0xff]
          %v3698 = vld [vmem:[#allocation5 + $0x80] sm:$0xff]
          %v3699 = vld [vmem:[#allocation5 + $0x88] sm:$0xff]
          %v3700 = vld [vmem:[#allocation5 + $0x90] sm:$0xff]
          %v3701 = vld [vmem:[#allocation5 + $0x98] sm:$0xff]
          %v3702 = vld [vmem:[#allocation5 + $0xa0] sm:$0xff]
          %v3703 = vld [vmem:[#allocation5 + $0xa8] sm:$0xff]
          %v3704 = vld [vmem:[#allocation5 + $0xb0] sm:$0xff]
          %v3705 = vld [vmem:[#allocation5 + $0xb8] sm:$0xff]
          %v3706 = vld [vmem:[#allocation5 + $0xc0] sm:$0xff]
          %v3707 = vld [vmem:[#allocation5 + $0xc8] sm:$0xff]
          %v3708 = vld [vmem:[#allocation5 + $0xd0] sm:$0xff]
          %v3709 = vld [vmem:[#allocation5 + $0xd8] sm:$0xff]
          %v3710 = vld [vmem:[#allocation5 + $0xe0] sm:$0xff]
          %v3711 = vld [vmem:[#allocation5 + $0xe8] sm:$0xff]
          %v3712 = vld [vmem:[#allocation5 + $0xf0] sm:$0xff]
          %v3713 = vld [vmem:[#allocation5 + $0xf8] sm:$0xff]
          %v3714 = vld [vmem:[#allocation5 + $0x100] sm:$0xff]
          %v3715 = vld [vmem:[#allocation5 + $0x108] sm:$0xff]
          %v3716 = vld [vmem:[#allocation5 + $0x110] sm:$0xff]
          %v3717 = vld [vmem:[#allocation5 + $0x118] sm:$0xff]
          %v3718 = vld [vmem:[#allocation5 + $0x120] sm:$0xff]
          %v3719 = vld [vmem:[#allocation5 + $0x128] sm:$0xff]
          %v3720 = vld [vmem:[#allocation5 + $0x130] sm:$0xff]
          %v3721 = vld [vmem:[#allocation5 + $0x138] sm:$0xff]
          %v3722 = vmax.f32 %v3316, 1e-30
          %v3723 = vmax.f32 %v3317, 1e-30
          %v3724 = vmax.f32 %v3318, 1e-30
          %v3725 = vmax.f32 %v3319, 1e-30
          %v3726 = vmax.f32 %v3320, 1e-30
          %v3727 = vmax.f32 %v3321, 1e-30
          %v3728 = vmax.f32 %v3322, 1e-30
          %v3729 = vmax.f32 %v3323, 1e-30
          %v3730 = vmax.f32 %v3324, 1e-30
          %v3731 = vmax.f32 %v3325, 1e-30
          %v3732 = vmax.f32 %v3326, 1e-30
          %v3733 = vmax.f32 %v3327, 1e-30
          %v3734 = vmax.f32 %v3328, 1e-30
          %v3735 = vmax.f32 %v3329, 1e-30
          %v3736 = vmax.f32 %v3330, 1e-30
          %v3737 = vmax.f32 %v3331, 1e-30
          %v3738 = vmax.f32 %v3332, 1e-30
          %v3739 = vmax.f32 %v3333, 1e-30
          %v3740 = vmax.f32 %v3334, 1e-30
          %v3741 = vmax.f32 %v3335, 1e-30
          %v3742 = vmax.f32 %v3336, 1e-30
          %v3743 = vmax.f32 %v3337, 1e-30
          %v3744 = vmax.f32 %v3338, 1e-30
          %v3745 = vmax.f32 %v3339, 1e-30
          %v3746 = vmax.f32 %v3340, 1e-30
          %v3747 = vmax.f32 %v3341, 1e-30
          %v3748 = vmax.f32 %v3342, 1e-30
          %v3749 = vmax.f32 %v3343, 1e-30
          %v3750 = vmax.f32 %v3344, 1e-30
          %v3751 = vmax.f32 %v3345, 1e-30
          %v3752 = vmax.f32 %v3346, 1e-30
          %v3753 = vmax.f32 %v3347, 1e-30
          %v3754 = vmax.f32 %v3348, 1e-30
          %v3755 = vmax.f32 %v3349, 1e-30
          %v3756 = vmax.f32 %v3350, 1e-30
          %v3757 = vmax.f32 %v3351, 1e-30
          %v3758 = vmax.f32 %v3352, 1e-30
          %v3759 = vmax.f32 %v3353, 1e-30
          %v3760 = vmax.f32 %v3354, 1e-30
          %v3761 = vmax.f32 %v3355, 1e-30
          %v3762 = vlog2.pop %v3722
          %v3763 = vmul.f32 %v3762, 0.6931472
          %v3764 = vlog2.pop %v3723
          %v3765 = vmul.f32 %v3764, 0.6931472
          %v3766 = vlog2.pop %v3724
          %v3767 = vmul.f32 %v3766, 0.6931472
          %v3768 = vlog2.pop %v3725
          %v3769 = vmul.f32 %v3768, 0.6931472
          %v3770 = vlog2.pop %v3726
          %v3771 = vmul.f32 %v3770, 0.6931472
          %v3772 = vlog2.pop %v3727
          %v3773 = vmul.f32 %v3772, 0.6931472
          %v3774 = vlog2.pop %v3728
          %v3775 = vmul.f32 %v3774, 0.6931472
          %v3776 = vlog2.pop %v3729
          %v3777 = vmul.f32 %v3776, 0.6931472
          %v3778 = vlog2.pop %v3730
          %v3779 = vmul.f32 %v3778, 0.6931472
          %v3780 = vlog2.pop %v3731
          %v3781 = vmul.f32 %v3780, 0.6931472
          %v3782 = vlog2.pop %v3732
          %v3783 = vmul.f32 %v3782, 0.6931472
          %v3784 = vlog2.pop %v3733
          %v3785 = vmul.f32 %v3784, 0.6931472
          %v3786 = vlog2.pop %v3734
          %v3787 = vmul.f32 %v3786, 0.6931472
          %v3788 = vlog2.pop %v3735
          %v3789 = vmul.f32 %v3788, 0.6931472
          %v3790 = vlog2.pop %v3736
          %v3791 = vmul.f32 %v3790, 0.6931472
          %v3792 = vlog2.pop %v3737
          %v3793 = vmul.f32 %v3792, 0.6931472
          %v3794 = vlog2.pop %v3738
          %v3795 = vmul.f32 %v3794, 0.6931472
          %v3796 = vlog2.pop %v3739
          %v3797 = vmul.f32 %v3796, 0.6931472
          %v3798 = vlog2.pop %v3740
          %v3799 = vmul.f32 %v3798, 0.6931472
          %v3800 = vlog2.pop %v3741
          %v3801 = vmul.f32 %v3800, 0.6931472
          %v3802 = vlog2.pop %v3742
          %v3803 = vmul.f32 %v3802, 0.6931472
          %v3804 = vlog2.pop %v3743
          %v3805 = vmul.f32 %v3804, 0.6931472
          %v3806 = vlog2.pop %v3744
          %v3807 = vmul.f32 %v3806, 0.6931472
          %v3808 = vlog2.pop %v3745
          %v3809 = vmul.f32 %v3808, 0.6931472
          %v3810 = vlog2.pop %v3746
          %v3811 = vmul.f32 %v3810, 0.6931472
          %v3812 = vlog2.pop %v3747
          %v3813 = vmul.f32 %v3812, 0.6931472
          %v3814 = vlog2.pop %v3748
          %v3815 = vmul.f32 %v3814, 0.6931472
          %v3816 = vlog2.pop %v3749
          %v3817 = vmul.f32 %v3816, 0.6931472
          %v3818 = vlog2.pop %v3750
          %v3819 = vmul.f32 %v3818, 0.6931472
          %v3820 = vlog2.pop %v3751
          %v3821 = vmul.f32 %v3820, 0.6931472
          %v3822 = vlog2.pop %v3752
          %v3823 = vmul.f32 %v3822, 0.6931472
          %v3824 = vlog2.pop %v3753
          %v3825 = vmul.f32 %v3824, 0.6931472
          %v3826 = vlog2.pop %v3754
          %v3827 = vmul.f32 %v3826, 0.6931472
          %v3828 = vlog2.pop %v3755
          %v3829 = vmul.f32 %v3828, 0.6931472
          %v3830 = vlog2.pop %v3756
          %v3831 = vmul.f32 %v3830, 0.6931472
          %v3832 = vlog2.pop %v3757
          %v3833 = vmul.f32 %v3832, 0.6931472
          %v3834 = vlog2.pop %v3758
          %v3835 = vmul.f32 %v3834, 0.6931472
          %v3836 = vlog2.pop %v3759
          %v3837 = vmul.f32 %v3836, 0.6931472
          %v3838 = vlog2.pop %v3760
          %v3839 = vmul.f32 %v3838, 0.6931472
          %v3840 = vlog2.pop %v3761
          %v3841 = vmul.f32 %v3840, 0.6931472
          %v3842 = vadd.f32 %v3682, %v3763
          %v3843 = vadd.f32 %v3683, %v3765
          %v3844 = vadd.f32 %v3684, %v3767
          %v3845 = vadd.f32 %v3685, %v3769
          %v3846 = vadd.f32 %v3686, %v3771
          %v3847 = vadd.f32 %v3687, %v3773
          %v3848 = vadd.f32 %v3688, %v3775
          %v3849 = vadd.f32 %v3689, %v3777
          %v3850 = vadd.f32 %v3690, %v3779
          %v3851 = vadd.f32 %v3691, %v3781
          %v3852 = vadd.f32 %v3692, %v3783
          %v3853 = vadd.f32 %v3693, %v3785
          %v3854 = vadd.f32 %v3694, %v3787
          %v3855 = vadd.f32 %v3695, %v3789
          %v3856 = vadd.f32 %v3696, %v3791
          %v3857 = vadd.f32 %v3697, %v3793
          %v3858 = vadd.f32 %v3698, %v3795
          %v3859 = vadd.f32 %v3699, %v3797
          %v3860 = vadd.f32 %v3700, %v3799
          %v3861 = vadd.f32 %v3701, %v3801
          %v3862 = vadd.f32 %v3702, %v3803
          %v3863 = vadd.f32 %v3703, %v3805
          %v3864 = vadd.f32 %v3704, %v3807
          %v3865 = vadd.f32 %v3705, %v3809
          %v3866 = vadd.f32 %v3706, %v3811
          %v3867 = vadd.f32 %v3707, %v3813
          %v3868 = vadd.f32 %v3708, %v3815
          %v3869 = vadd.f32 %v3709, %v3817
          %v3870 = vadd.f32 %v3710, %v3819
          %v3871 = vadd.f32 %v3711, %v3821
          %v3872 = vadd.f32 %v3712, %v3823
          %v3873 = vadd.f32 %v3713, %v3825
          %v3874 = vadd.f32 %v3714, %v3827
          %v3875 = vadd.f32 %v3715, %v3829
          %v3876 = vadd.f32 %v3716, %v3831
          %v3877 = vadd.f32 %v3717, %v3833
          %v3878 = vadd.f32 %v3718, %v3835
          %v3879 = vadd.f32 %v3719, %v3837
          %v3880 = vadd.f32 %v3720, %v3839
          %v3881 = vadd.f32 %v3721, %v3841
          %v3882 = vmul.f32 %v2676, %v2676
          %v3883 = vmul.f32 %v2677, %v2677
          %v3884 = vmul.f32 %v2678, %v2678
          %v3885 = vmul.f32 %v2679, %v2679
          %v3886 = vmul.f32 %v2680, %v2680
          %v3887 = vmul.f32 %v2681, %v2681
          %v3888 = vmul.f32 %v2682, %v2682
          %v3889 = vmul.f32 %v2683, %v2683
          %v3890 = vmul.f32 %v2684, %v2684
          %v3891 = vmul.f32 %v2685, %v2685
          %v3892 = vmul.f32 %v2686, %v2686
          %v3893 = vmul.f32 %v2687, %v2687
          %v3894 = vmul.f32 %v2688, %v2688
          %v3895 = vmul.f32 %v2689, %v2689
          %v3896 = vmul.f32 %v2690, %v2690
          %v3897 = vmul.f32 %v2691, %v2691
          %v3898 = vmul.f32 %v2692, %v2692
          %v3899 = vmul.f32 %v2693, %v2693
          %v3900 = vmul.f32 %v2694, %v2694
          %v3901 = vmul.f32 %v2695, %v2695
          %v3902 = vmul.f32 %v2696, %v2696
          %v3903 = vmul.f32 %v2697, %v2697
          %v3904 = vmul.f32 %v2698, %v2698
          %v3905 = vmul.f32 %v2699, %v2699
          %v3906 = vmul.f32 %v2700, %v2700
          %v3907 = vmul.f32 %v2701, %v2701
          %v3908 = vmul.f32 %v2702, %v2702
          %v3909 = vmul.f32 %v2703, %v2703
          %v3910 = vmul.f32 %v2704, %v2704
          %v3911 = vmul.f32 %v2705, %v2705
          %v3912 = vmul.f32 %v2706, %v2706
          %v3913 = vmul.f32 %v2707, %v2707
          %v3914 = vmul.f32 %v2708, %v2708
          %v3915 = vmul.f32 %v2709, %v2709
          %v3916 = vmul.f32 %v2710, %v2710
          %v3917 = vmul.f32 %v2711, %v2711
          %v3918 = vmul.f32 %v2712, %v2712
          %v3919 = vmul.f32 %v2713, %v2713
          %v3920 = vmul.f32 %v2714, %v2714
          %v3921 = vmul.f32 %v2715, %v2715
          %v3922 = vmul.f32 %v3882, 0.5
          %v3923 = vmul.f32 %v3883, 0.5
          %v3924 = vmul.f32 %v3884, 0.5
          %v3925 = vmul.f32 %v3885, 0.5
          %v3926 = vmul.f32 %v3886, 0.5
          %v3927 = vmul.f32 %v3887, 0.5
          %v3928 = vmul.f32 %v3888, 0.5
          %v3929 = vmul.f32 %v3889, 0.5
          %v3930 = vmul.f32 %v3890, 0.5
          %v3931 = vmul.f32 %v3891, 0.5
          %v3932 = vmul.f32 %v3892, 0.5
          %v3933 = vmul.f32 %v3893, 0.5
          %v3934 = vmul.f32 %v3894, 0.5
          %v3935 = vmul.f32 %v3895, 0.5
          %v3936 = vmul.f32 %v3896, 0.5
          %v3937 = vmul.f32 %v3897, 0.5
          %v3938 = vmul.f32 %v3898, 0.5
          %v3939 = vmul.f32 %v3899, 0.5
          %v3940 = vmul.f32 %v3900, 0.5
          %v3941 = vmul.f32 %v3901, 0.5
          %v3942 = vmul.f32 %v3902, 0.5
          %v3943 = vmul.f32 %v3903, 0.5
          %v3944 = vmul.f32 %v3904, 0.5
          %v3945 = vmul.f32 %v3905, 0.5
          %v3946 = vmul.f32 %v3906, 0.5
          %v3947 = vmul.f32 %v3907, 0.5
          %v3948 = vmul.f32 %v3908, 0.5
          %v3949 = vmul.f32 %v3909, 0.5
          %v3950 = vmul.f32 %v3910, 0.5
          %v3951 = vmul.f32 %v3911, 0.5
          %v3952 = vmul.f32 %v3912, 0.5
          %v3953 = vmul.f32 %v3913, 0.5
          %v3954 = vmul.f32 %v3914, 0.5
          %v3955 = vmul.f32 %v3915, 0.5
          %v3956 = vmul.f32 %v3916, 0.5
          %v3957 = vmul.f32 %v3917, 0.5
          %v3958 = vmul.f32 %v3918, 0.5
          %v3959 = vmul.f32 %v3919, 0.5
          %v3960 = vmul.f32 %v3920, 0.5
          %v3961 = vmul.f32 %v3921, 0.5
          %v3962 = vadd.f32 %v3842, %v3922
          %v3963 = vadd.f32 %v3843, %v3923
          %v3964 = vadd.f32 %v3844, %v3924
          %v3965 = vadd.f32 %v3845, %v3925
          %v3966 = vadd.f32 %v3846, %v3926
          %v3967 = vadd.f32 %v3847, %v3927
          %v3968 = vadd.f32 %v3848, %v3928
          %v3969 = vadd.f32 %v3849, %v3929
          %v3970 = vadd.f32 %v3850, %v3930
          %v3971 = vadd.f32 %v3851, %v3931
          %v3972 = vadd.f32 %v3852, %v3932
          %v3973 = vadd.f32 %v3853, %v3933
          %v3974 = vadd.f32 %v3854, %v3934
          %v3975 = vadd.f32 %v3855, %v3935
          %v3976 = vadd.f32 %v3856, %v3936
          %v3977 = vadd.f32 %v3857, %v3937
          %v3978 = vadd.f32 %v3858, %v3938
          %v3979 = vadd.f32 %v3859, %v3939
          %v3980 = vadd.f32 %v3860, %v3940
          %v3981 = vadd.f32 %v3861, %v3941
          %v3982 = vadd.f32 %v3862, %v3942
          %v3983 = vadd.f32 %v3863, %v3943
          %v3984 = vadd.f32 %v3864, %v3944
          %v3985 = vadd.f32 %v3865, %v3945
          %v3986 = vadd.f32 %v3866, %v3946
          %v3987 = vadd.f32 %v3867, %v3947
          %v3988 = vadd.f32 %v3868, %v3948
          %v3989 = vadd.f32 %v3869, %v3949
          %v3990 = vadd.f32 %v3870, %v3950
          %v3991 = vadd.f32 %v3871, %v3951
          %v3992 = vadd.f32 %v3872, %v3952
          %v3993 = vadd.f32 %v3873, %v3953
          %v3994 = vadd.f32 %v3874, %v3954
          %v3995 = vadd.f32 %v3875, %v3955
          %v3996 = vadd.f32 %v3876, %v3956
          %v3997 = vadd.f32 %v3877, %v3957
          %v3998 = vadd.f32 %v3878, %v3958
          %v3999 = vadd.f32 %v3879, %v3959
          %v4000 = vadd.f32 %v3880, %v3960
          %v4001 = vadd.f32 %v3881, %v3961
          %4002 = vst [vmem:[#allocation5] sm:$0xff] %v3962
          %4003 = vst [vmem:[#allocation5 + $0x8] sm:$0xff] %v3963
          %4004 = vst [vmem:[#allocation5 + $0x10] sm:$0xff] %v3964
          %4005 = vst.msk [vmem:[#allocation5 + $0x18] sm:$0xff] %vm2114, %v3965
          %4006 = vst [vmem:[#allocation5 + $0x20] sm:$0xff] %v3966
          %4007 = vst [vmem:[#allocation5 + $0x28] sm:$0xff] %v3967
          %4008 = vst [vmem:[#allocation5 + $0x30] sm:$0xff] %v3968
          %4009 = vst.msk [vmem:[#allocation5 + $0x38] sm:$0xff] %vm2114, %v3969
          %4010 = vst [vmem:[#allocation5 + $0x40] sm:$0xff] %v3970
          %4011 = vst [vmem:[#allocation5 + $0x48] sm:$0xff] %v3971
          %4012 = vst [vmem:[#allocation5 + $0x50] sm:$0xff] %v3972
          %4013 = vst.msk [vmem:[#allocation5 + $0x58] sm:$0xff] %vm2114, %v3973
          %4014 = vst [vmem:[#allocation5 + $0x60] sm:$0xff] %v3974
          %4015 = vst [vmem:[#allocation5 + $0x68] sm:$0xff] %v3975
          %4016 = vst [vmem:[#allocation5 + $0x70] sm:$0xff] %v3976
          %4017 = vst.msk [vmem:[#allocation5 + $0x78] sm:$0xff] %vm2114, %v3977
          %4018 = vst [vmem:[#allocation5 + $0x80] sm:$0xff] %v3978
          %4019 = vst [vmem:[#allocation5 + $0x88] sm:$0xff] %v3979
          %4020 = vst [vmem:[#allocation5 + $0x90] sm:$0xff] %v3980
          %4021 = vst.msk [vmem:[#allocation5 + $0x98] sm:$0xff] %vm2114, %v3981
          %4022 = vst [vmem:[#allocation5 + $0xa0] sm:$0xff] %v3982
          %4023 = vst [vmem:[#allocation5 + $0xa8] sm:$0xff] %v3983
          %4024 = vst [vmem:[#allocation5 + $0xb0] sm:$0xff] %v3984
          %4025 = vst.msk [vmem:[#allocation5 + $0xb8] sm:$0xff] %vm2114, %v3985
          %4026 = vst [vmem:[#allocation5 + $0xc0] sm:$0xff] %v3986
          %4027 = vst [vmem:[#allocation5 + $0xc8] sm:$0xff] %v3987
          %4028 = vst [vmem:[#allocation5 + $0xd0] sm:$0xff] %v3988
          %4029 = vst.msk [vmem:[#allocation5 + $0xd8] sm:$0xff] %vm2114, %v3989
          %4030 = vst [vmem:[#allocation5 + $0xe0] sm:$0xff] %v3990
          %4031 = vst [vmem:[#allocation5 + $0xe8] sm:$0xff] %v3991
          %4032 = vst [vmem:[#allocation5 + $0xf0] sm:$0xff] %v3992
          %4033 = vst.msk [vmem:[#allocation5 + $0xf8] sm:$0xff] %vm2114, %v3993
          %4034 = vst [vmem:[#allocation5 + $0x100] sm:$0xff] %v3994
          %4035 = vst [vmem:[#allocation5 + $0x108] sm:$0xff] %v3995
          %4036 = vst [vmem:[#allocation5 + $0x110] sm:$0xff] %v3996
          %4037 = vst.msk [vmem:[#allocation5 + $0x118] sm:$0xff] %vm2114, %v3997
          %4038 = vst [vmem:[#allocation5 + $0x120] sm:$0xff] %v3998
          %4039 = vst [vmem:[#allocation5 + $0x128] sm:$0xff] %v3999
          %4040 = vst [vmem:[#allocation5 + $0x130] sm:$0xff] %v4000
          %4041 = vst.msk [vmem:[#allocation5 + $0x138] sm:$0xff] %vm2114, %v4001
        $region64: #{bayes_net_forward.1} parent=55 // pred_fallthru
          _
        %p4042 = scmp.eq.s32.totalorder %s24, 6
        // Predicated region
        $region65: #{bayes_net_forward.1} parent=55 // pred_check
          %p4043 = pneg %p4042
        $region66: #{bayes_net_forward.1} parent=55 // pred_check_branch
          %4045 = sbr.rel (%p4043) target = $region68
        $region67: #{bayes_net_forward.1} parent=55 // pred_region
          %v4046 = vld [vmem:[%s8] ss:$8 sm:$0xf]
          %s4047 = scalar_lea.vmem %s8, 1
          %v4048 = vld [vmem:[%s4047] ss:$8 sm:$0xf]
          %s4049 = scalar_lea.vmem %s8, 2
          %v4050 = vld [vmem:[%s4049] ss:$8 sm:$0xf]
          %v4051 = vmax.f32 %v4048, 0.0
          %v4052 = vand.u32 2147483647, %v4048
          %v4053 = vsub.f32 0.0, %v4052
          %v4054 = vmul.f32 %v4053, 1.442695
          %v4055 = vpow.pop %v4054
          %v4056 = vadd.f32 %v4055, 1.0
          %v4057 = vlog2.pop %v4056
          %v4058 = vmul.f32 %v4057, 0.6931472
          %v4059 = vmul.f32 -0.5, %v4055
          %v4060 = vadd.f32 %v4059, 1.0
          %v4061 = vmul.f32 %v4060, %v4055
          %v4062 = vand.u32 2147483647, %v4055
          %vm4063 = vcmp.lt.f32.partialorder %v4062, 0.0004427343
          %v4064 = vsel %vm4063, %v4061, %v4058
          %v4065 = vadd.f32 %v4051, %v4064
          %v4066 = vmul.f32 %v4065, %v4050
          %v4067 = vadd.f32 %v4046, %v4066
          %v4068 = vmul.f32 %v4067, %v4067
          %v4070 = vlaneseq
          %v4071 = vshrl.u32 %v4070, 7
          %v4072 = vsub.s32 0, %v4071
          %v4073 = vrot.slane %v4068, %v4072
          %v4074 = vlaneseq
          %v4075 = vshrl.u32 %v4074, 7
          %v4076 = vsub.s32 1, %v4075
          %v4077 = vrot.slane %v4068, %v4076
          %v4078 = vlaneseq
          %v4079 = vshrl.u32 %v4078, 7
          %v4080 = vsub.s32 2, %v4079
          %v4081 = vrot.slane %v4068, %v4080
          %v4082 = vlaneseq
          %v4083 = vshrl.u32 %v4082, 7
          %v4084 = vsub.s32 3, %v4083
          %v4085 = vrot.slane %v4068, %v4084
          %vm4090 = vcmask 1040384
          %v4091 = vsel %vm4090, %v4073, 0.0
          %v4092 = vsel %vm4090, %v4077, 0.0
          %v4093 = vadd.f32 %v4091, %v4092
          %v4094 = vsel %vm4090, %v4081, 0.0
          %v4095 = vadd.f32 %v4093, %v4094
          %vm4096 = vcmask 122880
          %v4097 = vsel %vm4096, %v4085, 0.0
          %v4098 = vadd.f32 %v4095, %v4097
          %4099 = vadd.xlane.f32.xlu0 %v4098
          %v4100 = vpop.xlane.xlu0 %4099
          %v4101 = vrot.slane %v4100, 4
          %v4102 = vadd.f32 %v4100, %v4101
          %v4103 = vrot.slane %v4102, 2
          %v4104 = vadd.f32 %v4102, %v4103
          %v4105 = vrot.slane %v4104, 1
          %v4106 = vadd.f32 %v4104, %v4105
          %s4107 = vtos %v4106
          %s4108 = sadd.f32 %s4107, 0.0
          %v4109 = vmax.f32 %v4065, 1e-30
          %v4110 = vlog2.pop %v4109
          %v4111 = vmul.f32 %v4110, 0.6931472
          %v4112 = vmul.f32 %v4050, %v4050
          %v4113 = vmul.f32 %v4112, 0.5
          %v4114 = vadd.f32 %v4111, %v4113
          %v4116 = vlaneseq
          %v4117 = vshrl.u32 %v4116, 7
          %v4118 = vsub.s32 0, %v4117
          %v4119 = vrot.slane %v4114, %v4118
          %v4120 = vlaneseq
          %v4121 = vshrl.u32 %v4120, 7
          %v4122 = vsub.s32 1, %v4121
          %v4123 = vrot.slane %v4114, %v4122
          %v4124 = vlaneseq
          %v4125 = vshrl.u32 %v4124, 7
          %v4126 = vsub.s32 2, %v4125
          %v4127 = vrot.slane %v4114, %v4126
          %v4128 = vlaneseq
          %v4129 = vshrl.u32 %v4128, 7
          %v4130 = vsub.s32 3, %v4129
          %v4131 = vrot.slane %v4114, %v4130
          %v4136 = vsel %vm4090, %v4119, 0.0
          %v4137 = vsel %vm4090, %v4123, 0.0
          %v4138 = vadd.f32 %v4136, %v4137
          %v4139 = vsel %vm4090, %v4127, 0.0
          %v4140 = vadd.f32 %v4138, %v4139
          %v4141 = vsel %vm4096, %v4131, 0.0
          %v4142 = vadd.f32 %v4140, %v4141
          %4143 = vadd.xlane.f32.xlu0 %v4142
          %v4144 = vpop.xlane.xlu0 %4143
          %v4145 = vrot.slane %v4144, 4
          %v4146 = vadd.f32 %v4144, %v4145
          %v4147 = vrot.slane %v4146, 2
          %v4148 = vadd.f32 %v4146, %v4147
          %v4149 = vrot.slane %v4148, 1
          %v4150 = vadd.f32 %v4148, %v4149
          %s4151 = vtos %v4150
          %s4152 = sadd.f32 %s4151, 0.0
          %s4153 = scalar_lea.vmem %s8, 3
          %v4154 = vld [vmem:[%s4153] ss:$8 sm:$0xf]
          %s4155 = scalar_lea.vmem %s8, 4
          %v4156 = vld [vmem:[%s4155] ss:$8 sm:$0xf]
          %s4157 = scalar_lea.vmem %s8, 5
          %v4158 = vld [vmem:[%s4157] ss:$8 sm:$0xf]
          %v4159 = vmax.f32 %v4156, 0.0
          %v4160 = vand.u32 2147483647, %v4156
          %v4161 = vsub.f32 0.0, %v4160
          %v4162 = vmul.f32 %v4161, 1.442695
          %v4163 = vpow.pop %v4162
          %v4164 = vadd.f32 %v4163, 1.0
          %v4165 = vlog2.pop %v4164
          %v4166 = vmul.f32 %v4165, 0.6931472
          %v4167 = vmul.f32 -0.5, %v4163
          %v4168 = vadd.f32 %v4167, 1.0
          %v4169 = vmul.f32 %v4168, %v4163
          %v4170 = vand.u32 2147483647, %v4163
          %vm4171 = vcmp.lt.f32.partialorder %v4170, 0.0004427343
          %v4172 = vsel %vm4171, %v4169, %v4166
          %v4173 = vadd.f32 %v4159, %v4172
          %v4174 = vmul.f32 %v4173, %v4158
          %v4175 = vadd.f32 %v4154, %v4174
          %v4176 = vmul.f32 %v4175, %v4175
          %v4178 = vlaneseq
          %v4179 = vshrl.u32 %v4178, 7
          %v4180 = vsub.s32 0, %v4179
          %v4181 = vrot.slane %v4176, %v4180
          %v4182 = vlaneseq
          %v4183 = vshrl.u32 %v4182, 7
          %v4184 = vsub.s32 1, %v4183
          %v4185 = vrot.slane %v4176, %v4184
          %v4186 = vlaneseq
          %v4187 = vshrl.u32 %v4186, 7
          %v4188 = vsub.s32 2, %v4187
          %v4189 = vrot.slane %v4176, %v4188
          %v4190 = vlaneseq
          %v4191 = vshrl.u32 %v4190, 7
          %v4192 = vsub.s32 3, %v4191
          %v4193 = vrot.slane %v4176, %v4192
          %v4198 = vsel %vm4090, %v4181, 0.0
          %v4199 = vsel %vm4090, %v4185, 0.0
          %v4200 = vadd.f32 %v4198, %v4199
          %v4201 = vsel %vm4090, %v4189, 0.0
          %v4202 = vadd.f32 %v4200, %v4201
          %v4203 = vsel %vm4096, %v4193, 0.0
          %v4204 = vadd.f32 %v4202, %v4203
          %4205 = vadd.xlane.f32.xlu0 %v4204
          %v4206 = vpop.xlane.xlu0 %4205
          %v4207 = vrot.slane %v4206, 4
          %v4208 = vadd.f32 %v4206, %v4207
          %v4209 = vrot.slane %v4208, 2
          %v4210 = vadd.f32 %v4208, %v4209
          %v4211 = vrot.slane %v4210, 1
          %v4212 = vadd.f32 %v4210, %v4211
          %s4213 = vtos %v4212
          %s4214 = sadd.f32 %s4108, %s4213
          %v4215 = vmax.f32 %v4173, 1e-30
          %v4216 = vlog2.pop %v4215
          %v4217 = vmul.f32 %v4216, 0.6931472
          %v4218 = vmul.f32 %v4158, %v4158
          %v4219 = vmul.f32 %v4218, 0.5
          %v4220 = vadd.f32 %v4217, %v4219
          %v4222 = vlaneseq
          %v4223 = vshrl.u32 %v4222, 7
          %v4224 = vsub.s32 0, %v4223
          %v4225 = vrot.slane %v4220, %v4224
          %v4226 = vlaneseq
          %v4227 = vshrl.u32 %v4226, 7
          %v4228 = vsub.s32 1, %v4227
          %v4229 = vrot.slane %v4220, %v4228
          %v4230 = vlaneseq
          %v4231 = vshrl.u32 %v4230, 7
          %v4232 = vsub.s32 2, %v4231
          %v4233 = vrot.slane %v4220, %v4232
          %v4234 = vlaneseq
          %v4235 = vshrl.u32 %v4234, 7
          %v4236 = vsub.s32 3, %v4235
          %v4237 = vrot.slane %v4220, %v4236
          %v4242 = vsel %vm4090, %v4225, 0.0
          %v4243 = vsel %vm4090, %v4229, 0.0
          %v4244 = vadd.f32 %v4242, %v4243
          %v4245 = vsel %vm4090, %v4233, 0.0
          %v4246 = vadd.f32 %v4244, %v4245
          %v4247 = vsel %vm4096, %v4237, 0.0
          %v4248 = vadd.f32 %v4246, %v4247
          %4249 = vadd.xlane.f32.xlu0 %v4248
          %v4250 = vpop.xlane.xlu0 %4249
          %v4251 = vrot.slane %v4250, 4
          %v4252 = vadd.f32 %v4250, %v4251
          %v4253 = vrot.slane %v4252, 2
          %v4254 = vadd.f32 %v4252, %v4253
          %v4255 = vrot.slane %v4254, 1
          %v4256 = vadd.f32 %v4254, %v4255
          %s4257 = vtos %v4256
          %s4258 = sadd.f32 %s4152, %s4257
          %s4259 = scalar_lea.vmem %s8, 6
          %v4260 = vld [vmem:[%s4259] ss:$8 sm:$0xf]
          %s4261 = scalar_lea.vmem %s8, 7
          %v4262 = vld [vmem:[%s4261] ss:$8 sm:$0xf]
          %s4263 = scalar_lea.vmem %s8, 32
          %v4264 = vld [vmem:[%s4263] ss:$8 sm:$0xf]
          %v4265 = vmax.f32 %v4262, 0.0
          %v4266 = vand.u32 2147483647, %v4262
          %v4267 = vsub.f32 0.0, %v4266
          %v4268 = vmul.f32 %v4267, 1.442695
          %v4269 = vpow.pop %v4268
          %v4270 = vadd.f32 %v4269, 1.0
          %v4271 = vlog2.pop %v4270
          %v4272 = vmul.f32 %v4271, 0.6931472
          %v4273 = vmul.f32 -0.5, %v4269
          %v4274 = vadd.f32 %v4273, 1.0
          %v4275 = vmul.f32 %v4274, %v4269
          %v4276 = vand.u32 2147483647, %v4269
          %vm4277 = vcmp.lt.f32.partialorder %v4276, 0.0004427343
          %v4278 = vsel %vm4277, %v4275, %v4272
          %v4279 = vadd.f32 %v4265, %v4278
          %v4280 = vmul.f32 %v4279, %v4264
          %v4281 = vadd.f32 %v4260, %v4280
          %v4282 = vmul.f32 %v4281, %v4281
          %v4284 = vlaneseq
          %v4285 = vshrl.u32 %v4284, 7
          %v4286 = vsub.s32 0, %v4285
          %v4287 = vrot.slane %v4282, %v4286
          %v4288 = vlaneseq
          %v4289 = vshrl.u32 %v4288, 7
          %v4290 = vsub.s32 1, %v4289
          %v4291 = vrot.slane %v4282, %v4290
          %v4292 = vlaneseq
          %v4293 = vshrl.u32 %v4292, 7
          %v4294 = vsub.s32 2, %v4293
          %v4295 = vrot.slane %v4282, %v4294
          %v4296 = vlaneseq
          %v4297 = vshrl.u32 %v4296, 7
          %v4298 = vsub.s32 3, %v4297
          %v4299 = vrot.slane %v4282, %v4298
          %v4304 = vsel %vm4090, %v4287, 0.0
          %v4305 = vsel %vm4090, %v4291, 0.0
          %v4306 = vadd.f32 %v4304, %v4305
          %v4307 = vsel %vm4090, %v4295, 0.0
          %v4308 = vadd.f32 %v4306, %v4307
          %v4309 = vsel %vm4096, %v4299, 0.0
          %v4310 = vadd.f32 %v4308, %v4309
          %4311 = vadd.xlane.f32.xlu0 %v4310
          %v4312 = vpop.xlane.xlu0 %4311
          %v4313 = vrot.slane %v4312, 4
          %v4314 = vadd.f32 %v4312, %v4313
          %v4315 = vrot.slane %v4314, 2
          %v4316 = vadd.f32 %v4314, %v4315
          %v4317 = vrot.slane %v4316, 1
          %v4318 = vadd.f32 %v4316, %v4317
          %s4319 = vtos %v4318
          %s4320 = sadd.f32 %s4214, %s4319
          %v4321 = vmax.f32 %v4279, 1e-30
          %v4322 = vlog2.pop %v4321
          %v4323 = vmul.f32 %v4322, 0.6931472
          %v4324 = vmul.f32 %v4264, %v4264
          %v4325 = vmul.f32 %v4324, 0.5
          %v4326 = vadd.f32 %v4323, %v4325
          %v4328 = vlaneseq
          %v4329 = vshrl.u32 %v4328, 7
          %v4330 = vsub.s32 0, %v4329
          %v4331 = vrot.slane %v4326, %v4330
          %v4332 = vlaneseq
          %v4333 = vshrl.u32 %v4332, 7
          %v4334 = vsub.s32 1, %v4333
          %v4335 = vrot.slane %v4326, %v4334
          %v4336 = vlaneseq
          %v4337 = vshrl.u32 %v4336, 7
          %v4338 = vsub.s32 2, %v4337
          %v4339 = vrot.slane %v4326, %v4338
          %v4340 = vlaneseq
          %v4341 = vshrl.u32 %v4340, 7
          %v4342 = vsub.s32 3, %v4341
          %v4343 = vrot.slane %v4326, %v4342
          %v4348 = vsel %vm4090, %v4331, 0.0
          %v4349 = vsel %vm4090, %v4335, 0.0
          %v4350 = vadd.f32 %v4348, %v4349
          %v4351 = vsel %vm4090, %v4339, 0.0
          %v4352 = vadd.f32 %v4350, %v4351
          %v4353 = vsel %vm4096, %v4343, 0.0
          %v4354 = vadd.f32 %v4352, %v4353
          %4355 = vadd.xlane.f32.xlu0 %v4354
          %v4356 = vpop.xlane.xlu0 %4355
          %v4357 = vrot.slane %v4356, 4
          %v4358 = vadd.f32 %v4356, %v4357
          %v4359 = vrot.slane %v4358, 2
          %v4360 = vadd.f32 %v4358, %v4359
          %v4361 = vrot.slane %v4360, 1
          %v4362 = vadd.f32 %v4360, %v4361
          %s4363 = vtos %v4362
          %s4364 = sadd.f32 %s4258, %s4363
          %v4365 = vld [vmem:[%s7] sm:$0xff]
          %v4366 = vld [vmem:[%s7 + $0x8] sm:$0xff]
          %v4367 = vld [vmem:[%s7 + $0x10] sm:$0xff]
          %v4368 = vld [vmem:[%s7 + $0x18] sm:$0xff]
          %v4369 = vld [vmem:[%s7 + $0x20] sm:$0xff]
          %v4370 = vld [vmem:[%s7 + $0x28] sm:$0xff]
          %v4371 = vld [vmem:[%s7 + $0x30] sm:$0xff]
          %v4372 = vld [vmem:[%s7 + $0x38] sm:$0xff]
          %v4373 = vld [vmem:[%s7 + $0x40] sm:$0xff]
          %v4374 = vld [vmem:[%s7 + $0x48] sm:$0xff]
          %v4375 = vld [vmem:[%s7 + $0x50] sm:$0xff]
          %v4376 = vld [vmem:[%s7 + $0x58] sm:$0xff]
          %v4377 = vld [vmem:[%s7 + $0x60] sm:$0xff]
          %v4378 = vld [vmem:[%s7 + $0x68] sm:$0xff]
          %v4379 = vld [vmem:[%s7 + $0x70] sm:$0xff]
          %v4380 = vld [vmem:[%s7 + $0x78] sm:$0xff]
          %v4381 = vld [vmem:[%s7 + $0x80] sm:$0xff]
          %v4382 = vld [vmem:[%s7 + $0x88] sm:$0xff]
          %v4383 = vld [vmem:[%s7 + $0x90] sm:$0xff]
          %v4384 = vld [vmem:[%s7 + $0x98] sm:$0xff]
          %v4385 = vld [vmem:[%s7 + $0xa0] sm:$0xff]
          %v4386 = vld [vmem:[%s7 + $0xa8] sm:$0xff]
          %v4387 = vld [vmem:[%s7 + $0xb0] sm:$0xff]
          %v4388 = vld [vmem:[%s7 + $0xb8] sm:$0xff]
          %v4389 = vld [vmem:[%s7 + $0xc0] sm:$0xff]
          %v4390 = vld [vmem:[%s7 + $0xc8] sm:$0xff]
          %v4391 = vld [vmem:[%s7 + $0xd0] sm:$0xff]
          %v4392 = vld [vmem:[%s7 + $0xd8] sm:$0xff]
          %v4393 = vld [vmem:[%s7 + $0xe0] sm:$0xff]
          %v4394 = vld [vmem:[%s7 + $0xe8] sm:$0xff]
          %v4395 = vld [vmem:[%s7 + $0xf0] sm:$0xff]
          %v4396 = vld [vmem:[%s7 + $0xf8] sm:$0xff]
          %v4397 = vld [vmem:[%s7 + $0x100] sm:$0xff]
          %v4398 = vld [vmem:[%s7 + $0x108] sm:$0xff]
          %v4399 = vld [vmem:[%s7 + $0x110] sm:$0xff]
          %v4400 = vld [vmem:[%s7 + $0x118] sm:$0xff]
          %v4401 = vld [vmem:[%s7 + $0x120] sm:$0xff]
          %v4402 = vld [vmem:[%s7 + $0x128] sm:$0xff]
          %v4403 = vld [vmem:[%s7 + $0x130] sm:$0xff]
          %v4404 = vld [vmem:[%s7 + $0x138] sm:$0xff]
          %v4405 = vld [vmem:[%s7 + $0x140] sm:$0xff]
          %v4406 = vld [vmem:[%s7 + $0x148] sm:$0xff]
          %v4407 = vld [vmem:[%s7 + $0x150] sm:$0xff]
          %v4408 = vld [vmem:[%s7 + $0x158] sm:$0xff]
          %v4409 = vld [vmem:[%s7 + $0x160] sm:$0xff]
          %v4410 = vld [vmem:[%s7 + $0x168] sm:$0xff]
          %v4411 = vld [vmem:[%s7 + $0x170] sm:$0xff]
          %v4412 = vld [vmem:[%s7 + $0x178] sm:$0xff]
          %v4413 = vld [vmem:[%s7 + $0x180] sm:$0xff]
          %v4414 = vld [vmem:[%s7 + $0x188] sm:$0xff]
          %s4415 = scalar_lea.vmem %s7, 400
          %v4416 = vld [vmem:[%s4415] sm:$0xff]
          %v4417 = vld [vmem:[%s4415 + $0x8] sm:$0xff]
          %v4418 = vld [vmem:[%s4415 + $0x10] sm:$0xff]
          %v4419 = vld [vmem:[%s4415 + $0x18] sm:$0xff]
          %v4420 = vld [vmem:[%s4415 + $0x20] sm:$0xff]
          %v4421 = vld [vmem:[%s4415 + $0x28] sm:$0xff]
          %v4422 = vld [vmem:[%s4415 + $0x30] sm:$0xff]
          %v4423 = vld [vmem:[%s4415 + $0x38] sm:$0xff]
          %v4424 = vld [vmem:[%s4415 + $0x40] sm:$0xff]
          %v4425 = vld [vmem:[%s4415 + $0x48] sm:$0xff]
          %v4426 = vld [vmem:[%s4415 + $0x50] sm:$0xff]
          %v4427 = vld [vmem:[%s4415 + $0x58] sm:$0xff]
          %v4428 = vld [vmem:[%s4415 + $0x60] sm:$0xff]
          %v4429 = vld [vmem:[%s4415 + $0x68] sm:$0xff]
          %v4430 = vld [vmem:[%s4415 + $0x70] sm:$0xff]
          %v4431 = vld [vmem:[%s4415 + $0x78] sm:$0xff]
          %v4432 = vld [vmem:[%s4415 + $0x80] sm:$0xff]
          %v4433 = vld [vmem:[%s4415 + $0x88] sm:$0xff]
          %v4434 = vld [vmem:[%s4415 + $0x90] sm:$0xff]
          %v4435 = vld [vmem:[%s4415 + $0x98] sm:$0xff]
          %v4436 = vld [vmem:[%s4415 + $0xa0] sm:$0xff]
          %v4437 = vld [vmem:[%s4415 + $0xa8] sm:$0xff]
          %v4438 = vld [vmem:[%s4415 + $0xb0] sm:$0xff]
          %v4439 = vld [vmem:[%s4415 + $0xb8] sm:$0xff]
          %v4440 = vld [vmem:[%s4415 + $0xc0] sm:$0xff]
          %v4441 = vld [vmem:[%s4415 + $0xc8] sm:$0xff]
          %v4442 = vld [vmem:[%s4415 + $0xd0] sm:$0xff]
          %v4443 = vld [vmem:[%s4415 + $0xd8] sm:$0xff]
          %v4444 = vld [vmem:[%s4415 + $0xe0] sm:$0xff]
          %v4445 = vld [vmem:[%s4415 + $0xe8] sm:$0xff]
          %v4446 = vld [vmem:[%s4415 + $0xf0] sm:$0xff]
          %v4447 = vld [vmem:[%s4415 + $0xf8] sm:$0xff]
          %v4448 = vld [vmem:[%s4415 + $0x100] sm:$0xff]
          %v4449 = vld [vmem:[%s4415 + $0x108] sm:$0xff]
          %v4450 = vld [vmem:[%s4415 + $0x110] sm:$0xff]
          %v4451 = vld [vmem:[%s4415 + $0x118] sm:$0xff]
          %v4452 = vld [vmem:[%s4415 + $0x120] sm:$0xff]
          %v4453 = vld [vmem:[%s4415 + $0x128] sm:$0xff]
          %v4454 = vld [vmem:[%s4415 + $0x130] sm:$0xff]
          %v4455 = vld [vmem:[%s4415 + $0x138] sm:$0xff]
          %v4456 = vld [vmem:[%s4415 + $0x140] sm:$0xff]
          %v4457 = vld [vmem:[%s4415 + $0x148] sm:$0xff]
          %v4458 = vld [vmem:[%s4415 + $0x150] sm:$0xff]
          %v4459 = vld [vmem:[%s4415 + $0x158] sm:$0xff]
          %v4460 = vld [vmem:[%s4415 + $0x160] sm:$0xff]
          %v4461 = vld [vmem:[%s4415 + $0x168] sm:$0xff]
          %v4462 = vld [vmem:[%s4415 + $0x170] sm:$0xff]
          %v4463 = vld [vmem:[%s4415 + $0x178] sm:$0xff]
          %v4464 = vld [vmem:[%s4415 + $0x180] sm:$0xff]
          %v4465 = vld [vmem:[%s4415 + $0x188] sm:$0xff]
          %s4466 = scalar_lea.vmem %s7, 800
          %v4467 = vld [vmem:[%s4466] sm:$0xff]
          %v4468 = vld [vmem:[%s4466 + $0x8] sm:$0xff]
          %v4469 = vld [vmem:[%s4466 + $0x10] sm:$0xff]
          %v4470 = vld [vmem:[%s4466 + $0x18] sm:$0xff]
          %v4471 = vld [vmem:[%s4466 + $0x20] sm:$0xff]
          %v4472 = vld [vmem:[%s4466 + $0x28] sm:$0xff]
          %v4473 = vld [vmem:[%s4466 + $0x30] sm:$0xff]
          %v4474 = vld [vmem:[%s4466 + $0x38] sm:$0xff]
          %v4475 = vld [vmem:[%s4466 + $0x40] sm:$0xff]
          %v4476 = vld [vmem:[%s4466 + $0x48] sm:$0xff]
          %v4477 = vld [vmem:[%s4466 + $0x50] sm:$0xff]
          %v4478 = vld [vmem:[%s4466 + $0x58] sm:$0xff]
          %v4479 = vld [vmem:[%s4466 + $0x60] sm:$0xff]
          %v4480 = vld [vmem:[%s4466 + $0x68] sm:$0xff]
          %v4481 = vld [vmem:[%s4466 + $0x70] sm:$0xff]
          %v4482 = vld [vmem:[%s4466 + $0x78] sm:$0xff]
          %v4483 = vld [vmem:[%s4466 + $0x80] sm:$0xff]
          %v4484 = vld [vmem:[%s4466 + $0x88] sm:$0xff]
          %v4485 = vld [vmem:[%s4466 + $0x90] sm:$0xff]
          %v4486 = vld [vmem:[%s4466 + $0x98] sm:$0xff]
          %v4487 = vld [vmem:[%s4466 + $0xa0] sm:$0xff]
          %v4488 = vld [vmem:[%s4466 + $0xa8] sm:$0xff]
          %v4489 = vld [vmem:[%s4466 + $0xb0] sm:$0xff]
          %v4490 = vld [vmem:[%s4466 + $0xb8] sm:$0xff]
          %v4491 = vld [vmem:[%s4466 + $0xc0] sm:$0xff]
          %v4492 = vld [vmem:[%s4466 + $0xc8] sm:$0xff]
          %v4493 = vld [vmem:[%s4466 + $0xd0] sm:$0xff]
          %v4494 = vld [vmem:[%s4466 + $0xd8] sm:$0xff]
          %v4495 = vld [vmem:[%s4466 + $0xe0] sm:$0xff]
          %v4496 = vld [vmem:[%s4466 + $0xe8] sm:$0xff]
          %v4497 = vld [vmem:[%s4466 + $0xf0] sm:$0xff]
          %v4498 = vld [vmem:[%s4466 + $0xf8] sm:$0xff]
          %v4499 = vld [vmem:[%s4466 + $0x100] sm:$0xff]
          %v4500 = vld [vmem:[%s4466 + $0x108] sm:$0xff]
          %v4501 = vld [vmem:[%s4466 + $0x110] sm:$0xff]
          %v4502 = vld [vmem:[%s4466 + $0x118] sm:$0xff]
          %v4503 = vld [vmem:[%s4466 + $0x120] sm:$0xff]
          %v4504 = vld [vmem:[%s4466 + $0x128] sm:$0xff]
          %v4505 = vld [vmem:[%s4466 + $0x130] sm:$0xff]
          %v4506 = vld [vmem:[%s4466 + $0x138] sm:$0xff]
          %v4507 = vld [vmem:[%s4466 + $0x140] sm:$0xff]
          %v4508 = vld [vmem:[%s4466 + $0x148] sm:$0xff]
          %v4509 = vld [vmem:[%s4466 + $0x150] sm:$0xff]
          %v4510 = vld [vmem:[%s4466 + $0x158] sm:$0xff]
          %v4511 = vld [vmem:[%s4466 + $0x160] sm:$0xff]
          %v4512 = vld [vmem:[%s4466 + $0x168] sm:$0xff]
          %v4513 = vld [vmem:[%s4466 + $0x170] sm:$0xff]
          %v4514 = vld [vmem:[%s4466 + $0x178] sm:$0xff]
          %v4515 = vld [vmem:[%s4466 + $0x180] sm:$0xff]
          %v4516 = vld [vmem:[%s4466 + $0x188] sm:$0xff]
          %v4517 = vmax.f32 %v4416, 0.0
          %v4518 = vmax.f32 %v4417, 0.0
          %v4519 = vmax.f32 %v4418, 0.0
          %v4520 = vmax.f32 %v4419, 0.0
          %v4521 = vmax.f32 %v4420, 0.0
          %v4522 = vmax.f32 %v4421, 0.0
          %v4523 = vmax.f32 %v4422, 0.0
          %v4524 = vmax.f32 %v4423, 0.0
          %v4525 = vmax.f32 %v4424, 0.0
          %v4526 = vmax.f32 %v4425, 0.0
          %v4527 = vmax.f32 %v4426, 0.0
          %v4528 = vmax.f32 %v4427, 0.0
          %v4529 = vmax.f32 %v4428, 0.0
          %v4530 = vmax.f32 %v4429, 0.0
          %v4531 = vmax.f32 %v4430, 0.0
          %v4532 = vmax.f32 %v4431, 0.0
          %v4533 = vmax.f32 %v4432, 0.0
          %v4534 = vmax.f32 %v4433, 0.0
          %v4535 = vmax.f32 %v4434, 0.0
          %v4536 = vmax.f32 %v4435, 0.0
          %v4537 = vmax.f32 %v4436, 0.0
          %v4538 = vmax.f32 %v4437, 0.0
          %v4539 = vmax.f32 %v4438, 0.0
          %v4540 = vmax.f32 %v4439, 0.0
          %v4541 = vmax.f32 %v4440, 0.0
          %v4542 = vmax.f32 %v4441, 0.0
          %v4543 = vmax.f32 %v4442, 0.0
          %v4544 = vmax.f32 %v4443, 0.0
          %v4545 = vmax.f32 %v4444, 0.0
          %v4546 = vmax.f32 %v4445, 0.0
          %v4547 = vmax.f32 %v4446, 0.0
          %v4548 = vmax.f32 %v4447, 0.0
          %v4549 = vmax.f32 %v4448, 0.0
          %v4550 = vmax.f32 %v4449, 0.0
          %v4551 = vmax.f32 %v4450, 0.0
          %v4552 = vmax.f32 %v4451, 0.0
          %v4553 = vmax.f32 %v4452, 0.0
          %v4554 = vmax.f32 %v4453, 0.0
          %v4555 = vmax.f32 %v4454, 0.0
          %v4556 = vmax.f32 %v4455, 0.0
          %v4557 = vmax.f32 %v4456, 0.0
          %v4558 = vmax.f32 %v4457, 0.0
          %v4559 = vmax.f32 %v4458, 0.0
          %v4560 = vmax.f32 %v4459, 0.0
          %v4561 = vmax.f32 %v4460, 0.0
          %v4562 = vmax.f32 %v4461, 0.0
          %v4563 = vmax.f32 %v4462, 0.0
          %v4564 = vmax.f32 %v4463, 0.0
          %v4565 = vmax.f32 %v4464, 0.0
          %v4566 = vmax.f32 %v4465, 0.0
          %v4567 = vand.u32 2147483647, %v4416
          %v4568 = vand.u32 2147483647, %v4417
          %v4569 = vand.u32 2147483647, %v4418
          %v4570 = vand.u32 2147483647, %v4419
          %v4571 = vand.u32 2147483647, %v4420
          %v4572 = vand.u32 2147483647, %v4421
          %v4573 = vand.u32 2147483647, %v4422
          %v4574 = vand.u32 2147483647, %v4423
          %v4575 = vand.u32 2147483647, %v4424
          %v4576 = vand.u32 2147483647, %v4425
          %v4577 = vand.u32 2147483647, %v4426
          %v4578 = vand.u32 2147483647, %v4427
          %v4579 = vand.u32 2147483647, %v4428
          %v4580 = vand.u32 2147483647, %v4429
          %v4581 = vand.u32 2147483647, %v4430
          %v4582 = vand.u32 2147483647, %v4431
          %v4583 = vand.u32 2147483647, %v4432
          %v4584 = vand.u32 2147483647, %v4433
          %v4585 = vand.u32 2147483647, %v4434
          %v4586 = vand.u32 2147483647, %v4435
          %v4587 = vand.u32 2147483647, %v4436
          %v4588 = vand.u32 2147483647, %v4437
          %v4589 = vand.u32 2147483647, %v4438
          %v4590 = vand.u32 2147483647, %v4439
          %v4591 = vand.u32 2147483647, %v4440
          %v4592 = vand.u32 2147483647, %v4441
          %v4593 = vand.u32 2147483647, %v4442
          %v4594 = vand.u32 2147483647, %v4443
          %v4595 = vand.u32 2147483647, %v4444
          %v4596 = vand.u32 2147483647, %v4445
          %v4597 = vand.u32 2147483647, %v4446
          %v4598 = vand.u32 2147483647, %v4447
          %v4599 = vand.u32 2147483647, %v4448
          %v4600 = vand.u32 2147483647, %v4449
          %v4601 = vand.u32 2147483647, %v4450
          %v4602 = vand.u32 2147483647, %v4451
          %v4603 = vand.u32 2147483647, %v4452
          %v4604 = vand.u32 2147483647, %v4453
          %v4605 = vand.u32 2147483647, %v4454
          %v4606 = vand.u32 2147483647, %v4455
          %v4607 = vand.u32 2147483647, %v4456
          %v4608 = vand.u32 2147483647, %v4457
          %v4609 = vand.u32 2147483647, %v4458
          %v4610 = vand.u32 2147483647, %v4459
          %v4611 = vand.u32 2147483647, %v4460
          %v4612 = vand.u32 2147483647, %v4461
          %v4613 = vand.u32 2147483647, %v4462
          %v4614 = vand.u32 2147483647, %v4463
          %v4615 = vand.u32 2147483647, %v4464
          %v4616 = vand.u32 2147483647, %v4465
          %v4617 = vsub.f32 0.0, %v4567
          %v4618 = vsub.f32 0.0, %v4568
          %v4619 = vsub.f32 0.0, %v4569
          %v4620 = vsub.f32 0.0, %v4570
          %v4621 = vsub.f32 0.0, %v4571
          %v4622 = vsub.f32 0.0, %v4572
          %v4623 = vsub.f32 0.0, %v4573
          %v4624 = vsub.f32 0.0, %v4574
          %v4625 = vsub.f32 0.0, %v4575
          %v4626 = vsub.f32 0.0, %v4576
          %v4627 = vsub.f32 0.0, %v4577
          %v4628 = vsub.f32 0.0, %v4578
          %v4629 = vsub.f32 0.0, %v4579
          %v4630 = vsub.f32 0.0, %v4580
          %v4631 = vsub.f32 0.0, %v4581
          %v4632 = vsub.f32 0.0, %v4582
          %v4633 = vsub.f32 0.0, %v4583
          %v4634 = vsub.f32 0.0, %v4584
          %v4635 = vsub.f32 0.0, %v4585
          %v4636 = vsub.f32 0.0, %v4586
          %v4637 = vsub.f32 0.0, %v4587
          %v4638 = vsub.f32 0.0, %v4588
          %v4639 = vsub.f32 0.0, %v4589
          %v4640 = vsub.f32 0.0, %v4590
          %v4641 = vsub.f32 0.0, %v4591
          %v4642 = vsub.f32 0.0, %v4592
          %v4643 = vsub.f32 0.0, %v4593
          %v4644 = vsub.f32 0.0, %v4594
          %v4645 = vsub.f32 0.0, %v4595
          %v4646 = vsub.f32 0.0, %v4596
          %v4647 = vsub.f32 0.0, %v4597
          %v4648 = vsub.f32 0.0, %v4598
          %v4649 = vsub.f32 0.0, %v4599
          %v4650 = vsub.f32 0.0, %v4600
          %v4651 = vsub.f32 0.0, %v4601
          %v4652 = vsub.f32 0.0, %v4602
          %v4653 = vsub.f32 0.0, %v4603
          %v4654 = vsub.f32 0.0, %v4604
          %v4655 = vsub.f32 0.0, %v4605
          %v4656 = vsub.f32 0.0, %v4606
          %v4657 = vsub.f32 0.0, %v4607
          %v4658 = vsub.f32 0.0, %v4608
          %v4659 = vsub.f32 0.0, %v4609
          %v4660 = vsub.f32 0.0, %v4610
          %v4661 = vsub.f32 0.0, %v4611
          %v4662 = vsub.f32 0.0, %v4612
          %v4663 = vsub.f32 0.0, %v4613
          %v4664 = vsub.f32 0.0, %v4614
          %v4665 = vsub.f32 0.0, %v4615
          %v4666 = vsub.f32 0.0, %v4616
          %v4667 = vmul.f32 %v4617, 1.442695
          %v4668 = vpow.pop %v4667
          %v4669 = vmul.f32 %v4618, 1.442695
          %v4670 = vpow.pop %v4669
          %v4671 = vmul.f32 %v4619, 1.442695
          %v4672 = vpow.pop %v4671
          %v4673 = vmul.f32 %v4620, 1.442695
          %v4674 = vpow.pop %v4673
          %v4675 = vmul.f32 %v4621, 1.442695
          %v4676 = vpow.pop %v4675
          %v4677 = vmul.f32 %v4622, 1.442695
          %v4678 = vpow.pop %v4677
          %v4679 = vmul.f32 %v4623, 1.442695
          %v4680 = vpow.pop %v4679
          %v4681 = vmul.f32 %v4624, 1.442695
          %v4682 = vpow.pop %v4681
          %v4683 = vmul.f32 %v4625, 1.442695
          %v4684 = vpow.pop %v4683
          %v4685 = vmul.f32 %v4626, 1.442695
          %v4686 = vpow.pop %v4685
          %v4687 = vmul.f32 %v4627, 1.442695
          %v4688 = vpow.pop %v4687
          %v4689 = vmul.f32 %v4628, 1.442695
          %v4690 = vpow.pop %v4689
          %v4691 = vmul.f32 %v4629, 1.442695
          %v4692 = vpow.pop %v4691
          %v4693 = vmul.f32 %v4630, 1.442695
          %v4694 = vpow.pop %v4693
          %v4695 = vmul.f32 %v4631, 1.442695
          %v4696 = vpow.pop %v4695
          %v4697 = vmul.f32 %v4632, 1.442695
          %v4698 = vpow.pop %v4697
          %v4699 = vmul.f32 %v4633, 1.442695
          %v4700 = vpow.pop %v4699
          %v4701 = vmul.f32 %v4634, 1.442695
          %v4702 = vpow.pop %v4701
          %v4703 = vmul.f32 %v4635, 1.442695
          %v4704 = vpow.pop %v4703
          %v4705 = vmul.f32 %v4636, 1.442695
          %v4706 = vpow.pop %v4705
          %v4707 = vmul.f32 %v4637, 1.442695
          %v4708 = vpow.pop %v4707
          %v4709 = vmul.f32 %v4638, 1.442695
          %v4710 = vpow.pop %v4709
          %v4711 = vmul.f32 %v4639, 1.442695
          %v4712 = vpow.pop %v4711
          %v4713 = vmul.f32 %v4640, 1.442695
          %v4714 = vpow.pop %v4713
          %v4715 = vmul.f32 %v4641, 1.442695
          %v4716 = vpow.pop %v4715
          %v4717 = vmul.f32 %v4642, 1.442695
          %v4718 = vpow.pop %v4717
          %v4719 = vmul.f32 %v4643, 1.442695
          %v4720 = vpow.pop %v4719
          %v4721 = vmul.f32 %v4644, 1.442695
          %v4722 = vpow.pop %v4721
          %v4723 = vmul.f32 %v4645, 1.442695
          %v4724 = vpow.pop %v4723
          %v4725 = vmul.f32 %v4646, 1.442695
          %v4726 = vpow.pop %v4725
          %v4727 = vmul.f32 %v4647, 1.442695
          %v4728 = vpow.pop %v4727
          %v4729 = vmul.f32 %v4648, 1.442695
          %v4730 = vpow.pop %v4729
          %v4731 = vmul.f32 %v4649, 1.442695
          %v4732 = vpow.pop %v4731
          %v4733 = vmul.f32 %v4650, 1.442695
          %v4734 = vpow.pop %v4733
          %v4735 = vmul.f32 %v4651, 1.442695
          %v4736 = vpow.pop %v4735
          %v4737 = vmul.f32 %v4652, 1.442695
          %v4738 = vpow.pop %v4737
          %v4739 = vmul.f32 %v4653, 1.442695
          %v4740 = vpow.pop %v4739
          %v4741 = vmul.f32 %v4654, 1.442695
          %v4742 = vpow.pop %v4741
          %v4743 = vmul.f32 %v4655, 1.442695
          %v4744 = vpow.pop %v4743
          %v4745 = vmul.f32 %v4656, 1.442695
          %v4746 = vpow.pop %v4745
          %v4747 = vmul.f32 %v4657, 1.442695
          %v4748 = vpow.pop %v4747
          %v4749 = vmul.f32 %v4658, 1.442695
          %v4750 = vpow.pop %v4749
          %v4751 = vmul.f32 %v4659, 1.442695
          %v4752 = vpow.pop %v4751
          %v4753 = vmul.f32 %v4660, 1.442695
          %v4754 = vpow.pop %v4753
          %v4755 = vmul.f32 %v4661, 1.442695
          %v4756 = vpow.pop %v4755
          %v4757 = vmul.f32 %v4662, 1.442695
          %v4758 = vpow.pop %v4757
          %v4759 = vmul.f32 %v4663, 1.442695
          %v4760 = vpow.pop %v4759
          %v4761 = vmul.f32 %v4664, 1.442695
          %v4762 = vpow.pop %v4761
          %v4763 = vmul.f32 %v4665, 1.442695
          %v4764 = vpow.pop %v4763
          %v4765 = vmul.f32 %v4666, 1.442695
          %v4766 = vpow.pop %v4765
          %v4767 = vadd.f32 %v4668, 1.0
          %v4768 = vlog2.pop %v4767
          %v4769 = vmul.f32 %v4768, 0.6931472
          %v4770 = vmul.f32 -0.5, %v4668
          %v4771 = vadd.f32 %v4770, 1.0
          %v4772 = vmul.f32 %v4771, %v4668
          %v4773 = vand.u32 2147483647, %v4668
          %vm4774 = vcmp.lt.f32.partialorder %v4773, 0.0004427343
          %v4775 = vsel %vm4774, %v4772, %v4769
          %v4776 = vadd.f32 %v4670, 1.0
          %v4777 = vlog2.pop %v4776
          %v4778 = vmul.f32 %v4777, 0.6931472
          %v4779 = vmul.f32 -0.5, %v4670
          %v4780 = vadd.f32 %v4779, 1.0
          %v4781 = vmul.f32 %v4780, %v4670
          %v4782 = vand.u32 2147483647, %v4670
          %vm4783 = vcmp.lt.f32.partialorder %v4782, 0.0004427343
          %v4784 = vsel %vm4783, %v4781, %v4778
          %v4785 = vadd.f32 %v4672, 1.0
          %v4786 = vlog2.pop %v4785
          %v4787 = vmul.f32 %v4786, 0.6931472
          %v4788 = vmul.f32 -0.5, %v4672
          %v4789 = vadd.f32 %v4788, 1.0
          %v4790 = vmul.f32 %v4789, %v4672
          %v4791 = vand.u32 2147483647, %v4672
          %vm4792 = vcmp.lt.f32.partialorder %v4791, 0.0004427343
          %v4793 = vsel %vm4792, %v4790, %v4787
          %v4794 = vadd.f32 %v4674, 1.0
          %v4795 = vlog2.pop %v4794
          %v4796 = vmul.f32 %v4795, 0.6931472
          %v4797 = vmul.f32 -0.5, %v4674
          %v4798 = vadd.f32 %v4797, 1.0
          %v4799 = vmul.f32 %v4798, %v4674
          %v4800 = vand.u32 2147483647, %v4674
          %vm4801 = vcmp.lt.f32.partialorder %v4800, 0.0004427343
          %v4802 = vsel %vm4801, %v4799, %v4796
          %v4803 = vadd.f32 %v4676, 1.0
          %v4804 = vlog2.pop %v4803
          %v4805 = vmul.f32 %v4804, 0.6931472
          %v4806 = vmul.f32 -0.5, %v4676
          %v4807 = vadd.f32 %v4806, 1.0
          %v4808 = vmul.f32 %v4807, %v4676
          %v4809 = vand.u32 2147483647, %v4676
          %vm4810 = vcmp.lt.f32.partialorder %v4809, 0.0004427343
          %v4811 = vsel %vm4810, %v4808, %v4805
          %v4812 = vadd.f32 %v4678, 1.0
          %v4813 = vlog2.pop %v4812
          %v4814 = vmul.f32 %v4813, 0.6931472
          %v4815 = vmul.f32 -0.5, %v4678
          %v4816 = vadd.f32 %v4815, 1.0
          %v4817 = vmul.f32 %v4816, %v4678
          %v4818 = vand.u32 2147483647, %v4678
          %vm4819 = vcmp.lt.f32.partialorder %v4818, 0.0004427343
          %v4820 = vsel %vm4819, %v4817, %v4814
          %v4821 = vadd.f32 %v4680, 1.0
          %v4822 = vlog2.pop %v4821
          %v4823 = vmul.f32 %v4822, 0.6931472
          %v4824 = vmul.f32 -0.5, %v4680
          %v4825 = vadd.f32 %v4824, 1.0
          %v4826 = vmul.f32 %v4825, %v4680
          %v4827 = vand.u32 2147483647, %v4680
          %vm4828 = vcmp.lt.f32.partialorder %v4827, 0.0004427343
          %v4829 = vsel %vm4828, %v4826, %v4823
          %v4830 = vadd.f32 %v4682, 1.0
          %v4831 = vlog2.pop %v4830
          %v4832 = vmul.f32 %v4831, 0.6931472
          %v4833 = vmul.f32 -0.5, %v4682
          %v4834 = vadd.f32 %v4833, 1.0
          %v4835 = vmul.f32 %v4834, %v4682
          %v4836 = vand.u32 2147483647, %v4682
          %vm4837 = vcmp.lt.f32.partialorder %v4836, 0.0004427343
          %v4838 = vsel %vm4837, %v4835, %v4832
          %v4839 = vadd.f32 %v4684, 1.0
          %v4840 = vlog2.pop %v4839
          %v4841 = vmul.f32 %v4840, 0.6931472
          %v4842 = vmul.f32 -0.5, %v4684
          %v4843 = vadd.f32 %v4842, 1.0
          %v4844 = vmul.f32 %v4843, %v4684
          %v4845 = vand.u32 2147483647, %v4684
          %vm4846 = vcmp.lt.f32.partialorder %v4845, 0.0004427343
          %v4847 = vsel %vm4846, %v4844, %v4841
          %v4848 = vadd.f32 %v4686, 1.0
          %v4849 = vlog2.pop %v4848
          %v4850 = vmul.f32 %v4849, 0.6931472
          %v4851 = vmul.f32 -0.5, %v4686
          %v4852 = vadd.f32 %v4851, 1.0
          %v4853 = vmul.f32 %v4852, %v4686
          %v4854 = vand.u32 2147483647, %v4686
          %vm4855 = vcmp.lt.f32.partialorder %v4854, 0.0004427343
          %v4856 = vsel %vm4855, %v4853, %v4850
          %v4857 = vadd.f32 %v4688, 1.0
          %v4858 = vlog2.pop %v4857
          %v4859 = vmul.f32 %v4858, 0.6931472
          %v4860 = vmul.f32 -0.5, %v4688
          %v4861 = vadd.f32 %v4860, 1.0
          %v4862 = vmul.f32 %v4861, %v4688
          %v4863 = vand.u32 2147483647, %v4688
          %vm4864 = vcmp.lt.f32.partialorder %v4863, 0.0004427343
          %v4865 = vsel %vm4864, %v4862, %v4859
          %v4866 = vadd.f32 %v4690, 1.0
          %v4867 = vlog2.pop %v4866
          %v4868 = vmul.f32 %v4867, 0.6931472
          %v4869 = vmul.f32 -0.5, %v4690
          %v4870 = vadd.f32 %v4869, 1.0
          %v4871 = vmul.f32 %v4870, %v4690
          %v4872 = vand.u32 2147483647, %v4690
          %vm4873 = vcmp.lt.f32.partialorder %v4872, 0.0004427343
          %v4874 = vsel %vm4873, %v4871, %v4868
          %v4875 = vadd.f32 %v4692, 1.0
          %v4876 = vlog2.pop %v4875
          %v4877 = vmul.f32 %v4876, 0.6931472
          %v4878 = vmul.f32 -0.5, %v4692
          %v4879 = vadd.f32 %v4878, 1.0
          %v4880 = vmul.f32 %v4879, %v4692
          %v4881 = vand.u32 2147483647, %v4692
          %vm4882 = vcmp.lt.f32.partialorder %v4881, 0.0004427343
          %v4883 = vsel %vm4882, %v4880, %v4877
          %v4884 = vadd.f32 %v4694, 1.0
          %v4885 = vlog2.pop %v4884
          %v4886 = vmul.f32 %v4885, 0.6931472
          %v4887 = vmul.f32 -0.5, %v4694
          %v4888 = vadd.f32 %v4887, 1.0
          %v4889 = vmul.f32 %v4888, %v4694
          %v4890 = vand.u32 2147483647, %v4694
          %vm4891 = vcmp.lt.f32.partialorder %v4890, 0.0004427343
          %v4892 = vsel %vm4891, %v4889, %v4886
          %v4893 = vadd.f32 %v4696, 1.0
          %v4894 = vlog2.pop %v4893
          %v4895 = vmul.f32 %v4894, 0.6931472
          %v4896 = vmul.f32 -0.5, %v4696
          %v4897 = vadd.f32 %v4896, 1.0
          %v4898 = vmul.f32 %v4897, %v4696
          %v4899 = vand.u32 2147483647, %v4696
          %vm4900 = vcmp.lt.f32.partialorder %v4899, 0.0004427343
          %v4901 = vsel %vm4900, %v4898, %v4895
          %v4902 = vadd.f32 %v4698, 1.0
          %v4903 = vlog2.pop %v4902
          %v4904 = vmul.f32 %v4903, 0.6931472
          %v4905 = vmul.f32 -0.5, %v4698
          %v4906 = vadd.f32 %v4905, 1.0
          %v4907 = vmul.f32 %v4906, %v4698
          %v4908 = vand.u32 2147483647, %v4698
          %vm4909 = vcmp.lt.f32.partialorder %v4908, 0.0004427343
          %v4910 = vsel %vm4909, %v4907, %v4904
          %v4911 = vadd.f32 %v4700, 1.0
          %v4912 = vlog2.pop %v4911
          %v4913 = vmul.f32 %v4912, 0.6931472
          %v4914 = vmul.f32 -0.5, %v4700
          %v4915 = vadd.f32 %v4914, 1.0
          %v4916 = vmul.f32 %v4915, %v4700
          %v4917 = vand.u32 2147483647, %v4700
          %vm4918 = vcmp.lt.f32.partialorder %v4917, 0.0004427343
          %v4919 = vsel %vm4918, %v4916, %v4913
          %v4920 = vadd.f32 %v4702, 1.0
          %v4921 = vlog2.pop %v4920
          %v4922 = vmul.f32 %v4921, 0.6931472
          %v4923 = vmul.f32 -0.5, %v4702
          %v4924 = vadd.f32 %v4923, 1.0
          %v4925 = vmul.f32 %v4924, %v4702
          %v4926 = vand.u32 2147483647, %v4702
          %vm4927 = vcmp.lt.f32.partialorder %v4926, 0.0004427343
          %v4928 = vsel %vm4927, %v4925, %v4922
          %v4929 = vadd.f32 %v4704, 1.0
          %v4930 = vlog2.pop %v4929
          %v4931 = vmul.f32 %v4930, 0.6931472
          %v4932 = vmul.f32 -0.5, %v4704
          %v4933 = vadd.f32 %v4932, 1.0
          %v4934 = vmul.f32 %v4933, %v4704
          %v4935 = vand.u32 2147483647, %v4704
          %vm4936 = vcmp.lt.f32.partialorder %v4935, 0.0004427343
          %v4937 = vsel %vm4936, %v4934, %v4931
          %v4938 = vadd.f32 %v4706, 1.0
          %v4939 = vlog2.pop %v4938
          %v4940 = vmul.f32 %v4939, 0.6931472
          %v4941 = vmul.f32 -0.5, %v4706
          %v4942 = vadd.f32 %v4941, 1.0
          %v4943 = vmul.f32 %v4942, %v4706
          %v4944 = vand.u32 2147483647, %v4706
          %vm4945 = vcmp.lt.f32.partialorder %v4944, 0.0004427343
          %v4946 = vsel %vm4945, %v4943, %v4940
          %v4947 = vadd.f32 %v4708, 1.0
          %v4948 = vlog2.pop %v4947
          %v4949 = vmul.f32 %v4948, 0.6931472
          %v4950 = vmul.f32 -0.5, %v4708
          %v4951 = vadd.f32 %v4950, 1.0
          %v4952 = vmul.f32 %v4951, %v4708
          %v4953 = vand.u32 2147483647, %v4708
          %vm4954 = vcmp.lt.f32.partialorder %v4953, 0.0004427343
          %v4955 = vsel %vm4954, %v4952, %v4949
          %v4956 = vadd.f32 %v4710, 1.0
          %v4957 = vlog2.pop %v4956
          %v4958 = vmul.f32 %v4957, 0.6931472
          %v4959 = vmul.f32 -0.5, %v4710
          %v4960 = vadd.f32 %v4959, 1.0
          %v4961 = vmul.f32 %v4960, %v4710
          %v4962 = vand.u32 2147483647, %v4710
          %vm4963 = vcmp.lt.f32.partialorder %v4962, 0.0004427343
          %v4964 = vsel %vm4963, %v4961, %v4958
          %v4965 = vadd.f32 %v4712, 1.0
          %v4966 = vlog2.pop %v4965
          %v4967 = vmul.f32 %v4966, 0.6931472
          %v4968 = vmul.f32 -0.5, %v4712
          %v4969 = vadd.f32 %v4968, 1.0
          %v4970 = vmul.f32 %v4969, %v4712
          %v4971 = vand.u32 2147483647, %v4712
          %vm4972 = vcmp.lt.f32.partialorder %v4971, 0.0004427343
          %v4973 = vsel %vm4972, %v4970, %v4967
          %v4974 = vadd.f32 %v4714, 1.0
          %v4975 = vlog2.pop %v4974
          %v4976 = vmul.f32 %v4975, 0.6931472
          %v4977 = vmul.f32 -0.5, %v4714
          %v4978 = vadd.f32 %v4977, 1.0
          %v4979 = vmul.f32 %v4978, %v4714
          %v4980 = vand.u32 2147483647, %v4714
          %vm4981 = vcmp.lt.f32.partialorder %v4980, 0.0004427343
          %v4982 = vsel %vm4981, %v4979, %v4976
          %v4983 = vadd.f32 %v4716, 1.0
          %v4984 = vlog2.pop %v4983
          %v4985 = vmul.f32 %v4984, 0.6931472
          %v4986 = vmul.f32 -0.5, %v4716
          %v4987 = vadd.f32 %v4986, 1.0
          %v4988 = vmul.f32 %v4987, %v4716
          %v4989 = vand.u32 2147483647, %v4716
          %vm4990 = vcmp.lt.f32.partialorder %v4989, 0.0004427343
          %v4991 = vsel %vm4990, %v4988, %v4985
          %v4992 = vadd.f32 %v4718, 1.0
          %v4993 = vlog2.pop %v4992
          %v4994 = vmul.f32 %v4993, 0.6931472
          %v4995 = vmul.f32 -0.5, %v4718
          %v4996 = vadd.f32 %v4995, 1.0
          %v4997 = vmul.f32 %v4996, %v4718
          %v4998 = vand.u32 2147483647, %v4718
          %vm4999 = vcmp.lt.f32.partialorder %v4998, 0.0004427343
          %v5000 = vsel %vm4999, %v4997, %v4994
          %v5001 = vadd.f32 %v4720, 1.0
          %v5002 = vlog2.pop %v5001
          %v5003 = vmul.f32 %v5002, 0.6931472
          %v5004 = vmul.f32 -0.5, %v4720
          %v5005 = vadd.f32 %v5004, 1.0
          %v5006 = vmul.f32 %v5005, %v4720
          %v5007 = vand.u32 2147483647, %v4720
          %vm5008 = vcmp.lt.f32.partialorder %v5007, 0.0004427343
          %v5009 = vsel %vm5008, %v5006, %v5003
          %v5010 = vadd.f32 %v4722, 1.0
          %v5011 = vlog2.pop %v5010
          %v5012 = vmul.f32 %v5011, 0.6931472
          %v5013 = vmul.f32 -0.5, %v4722
          %v5014 = vadd.f32 %v5013, 1.0
          %v5015 = vmul.f32 %v5014, %v4722
          %v5016 = vand.u32 2147483647, %v4722
          %vm5017 = vcmp.lt.f32.partialorder %v5016, 0.0004427343
          %v5018 = vsel %vm5017, %v5015, %v5012
          %v5019 = vadd.f32 %v4724, 1.0
          %v5020 = vlog2.pop %v5019
          %v5021 = vmul.f32 %v5020, 0.6931472
          %v5022 = vmul.f32 -0.5, %v4724
          %v5023 = vadd.f32 %v5022, 1.0
          %v5024 = vmul.f32 %v5023, %v4724
          %v5025 = vand.u32 2147483647, %v4724
          %vm5026 = vcmp.lt.f32.partialorder %v5025, 0.0004427343
          %v5027 = vsel %vm5026, %v5024, %v5021
          %v5028 = vadd.f32 %v4726, 1.0
          %v5029 = vlog2.pop %v5028
          %v5030 = vmul.f32 %v5029, 0.6931472
          %v5031 = vmul.f32 -0.5, %v4726
          %v5032 = vadd.f32 %v5031, 1.0
          %v5033 = vmul.f32 %v5032, %v4726
          %v5034 = vand.u32 2147483647, %v4726
          %vm5035 = vcmp.lt.f32.partialorder %v5034, 0.0004427343
          %v5036 = vsel %vm5035, %v5033, %v5030
          %v5037 = vadd.f32 %v4728, 1.0
          %v5038 = vlog2.pop %v5037
          %v5039 = vmul.f32 %v5038, 0.6931472
          %v5040 = vmul.f32 -0.5, %v4728
          %v5041 = vadd.f32 %v5040, 1.0
          %v5042 = vmul.f32 %v5041, %v4728
          %v5043 = vand.u32 2147483647, %v4728
          %vm5044 = vcmp.lt.f32.partialorder %v5043, 0.0004427343
          %v5045 = vsel %vm5044, %v5042, %v5039
          %v5046 = vadd.f32 %v4730, 1.0
          %v5047 = vlog2.pop %v5046
          %v5048 = vmul.f32 %v5047, 0.6931472
          %v5049 = vmul.f32 -0.5, %v4730
          %v5050 = vadd.f32 %v5049, 1.0
          %v5051 = vmul.f32 %v5050, %v4730
          %v5052 = vand.u32 2147483647, %v4730
          %vm5053 = vcmp.lt.f32.partialorder %v5052, 0.0004427343
          %v5054 = vsel %vm5053, %v5051, %v5048
          %v5055 = vadd.f32 %v4732, 1.0
          %v5056 = vlog2.pop %v5055
          %v5057 = vmul.f32 %v5056, 0.6931472
          %v5058 = vmul.f32 -0.5, %v4732
          %v5059 = vadd.f32 %v5058, 1.0
          %v5060 = vmul.f32 %v5059, %v4732
          %v5061 = vand.u32 2147483647, %v4732
          %vm5062 = vcmp.lt.f32.partialorder %v5061, 0.0004427343
          %v5063 = vsel %vm5062, %v5060, %v5057
          %v5064 = vadd.f32 %v4734, 1.0
          %v5065 = vlog2.pop %v5064
          %v5066 = vmul.f32 %v5065, 0.6931472
          %v5067 = vmul.f32 -0.5, %v4734
          %v5068 = vadd.f32 %v5067, 1.0
          %v5069 = vmul.f32 %v5068, %v4734
          %v5070 = vand.u32 2147483647, %v4734
          %vm5071 = vcmp.lt.f32.partialorder %v5070, 0.0004427343
          %v5072 = vsel %vm5071, %v5069, %v5066
          %v5073 = vadd.f32 %v4736, 1.0
          %v5074 = vlog2.pop %v5073
          %v5075 = vmul.f32 %v5074, 0.6931472
          %v5076 = vmul.f32 -0.5, %v4736
          %v5077 = vadd.f32 %v5076, 1.0
          %v5078 = vmul.f32 %v5077, %v4736
          %v5079 = vand.u32 2147483647, %v4736
          %vm5080 = vcmp.lt.f32.partialorder %v5079, 0.0004427343
          %v5081 = vsel %vm5080, %v5078, %v5075
          %v5082 = vadd.f32 %v4738, 1.0
          %v5083 = vlog2.pop %v5082
          %v5084 = vmul.f32 %v5083, 0.6931472
          %v5085 = vmul.f32 -0.5, %v4738
          %v5086 = vadd.f32 %v5085, 1.0
          %v5087 = vmul.f32 %v5086, %v4738
          %v5088 = vand.u32 2147483647, %v4738
          %vm5089 = vcmp.lt.f32.partialorder %v5088, 0.0004427343
          %v5090 = vsel %vm5089, %v5087, %v5084
          %v5091 = vadd.f32 %v4740, 1.0
          %v5092 = vlog2.pop %v5091
          %v5093 = vmul.f32 %v5092, 0.6931472
          %v5094 = vmul.f32 -0.5, %v4740
          %v5095 = vadd.f32 %v5094, 1.0
          %v5096 = vmul.f32 %v5095, %v4740
          %v5097 = vand.u32 2147483647, %v4740
          %vm5098 = vcmp.lt.f32.partialorder %v5097, 0.0004427343
          %v5099 = vsel %vm5098, %v5096, %v5093
          %v5100 = vadd.f32 %v4742, 1.0
          %v5101 = vlog2.pop %v5100
          %v5102 = vmul.f32 %v5101, 0.6931472
          %v5103 = vmul.f32 -0.5, %v4742
          %v5104 = vadd.f32 %v5103, 1.0
          %v5105 = vmul.f32 %v5104, %v4742
          %v5106 = vand.u32 2147483647, %v4742
          %vm5107 = vcmp.lt.f32.partialorder %v5106, 0.0004427343
          %v5108 = vsel %vm5107, %v5105, %v5102
          %v5109 = vadd.f32 %v4744, 1.0
          %v5110 = vlog2.pop %v5109
          %v5111 = vmul.f32 %v5110, 0.6931472
          %v5112 = vmul.f32 -0.5, %v4744
          %v5113 = vadd.f32 %v5112, 1.0
          %v5114 = vmul.f32 %v5113, %v4744
          %v5115 = vand.u32 2147483647, %v4744
          %vm5116 = vcmp.lt.f32.partialorder %v5115, 0.0004427343
          %v5117 = vsel %vm5116, %v5114, %v5111
          %v5118 = vadd.f32 %v4746, 1.0
          %v5119 = vlog2.pop %v5118
          %v5120 = vmul.f32 %v5119, 0.6931472
          %v5121 = vmul.f32 -0.5, %v4746
          %v5122 = vadd.f32 %v5121, 1.0
          %v5123 = vmul.f32 %v5122, %v4746
          %v5124 = vand.u32 2147483647, %v4746
          %vm5125 = vcmp.lt.f32.partialorder %v5124, 0.0004427343
          %v5126 = vsel %vm5125, %v5123, %v5120
          %v5127 = vadd.f32 %v4748, 1.0
          %v5128 = vlog2.pop %v5127
          %v5129 = vmul.f32 %v5128, 0.6931472
          %v5130 = vmul.f32 -0.5, %v4748
          %v5131 = vadd.f32 %v5130, 1.0
          %v5132 = vmul.f32 %v5131, %v4748
          %v5133 = vand.u32 2147483647, %v4748
          %vm5134 = vcmp.lt.f32.partialorder %v5133, 0.0004427343
          %v5135 = vsel %vm5134, %v5132, %v5129
          %v5136 = vadd.f32 %v4750, 1.0
          %v5137 = vlog2.pop %v5136
          %v5138 = vmul.f32 %v5137, 0.6931472
          %v5139 = vmul.f32 -0.5, %v4750
          %v5140 = vadd.f32 %v5139, 1.0
          %v5141 = vmul.f32 %v5140, %v4750
          %v5142 = vand.u32 2147483647, %v4750
          %vm5143 = vcmp.lt.f32.partialorder %v5142, 0.0004427343
          %v5144 = vsel %vm5143, %v5141, %v5138
          %v5145 = vadd.f32 %v4752, 1.0
          %v5146 = vlog2.pop %v5145
          %v5147 = vmul.f32 %v5146, 0.6931472
          %v5148 = vmul.f32 -0.5, %v4752
          %v5149 = vadd.f32 %v5148, 1.0
          %v5150 = vmul.f32 %v5149, %v4752
          %v5151 = vand.u32 2147483647, %v4752
          %vm5152 = vcmp.lt.f32.partialorder %v5151, 0.0004427343
          %v5153 = vsel %vm5152, %v5150, %v5147
          %v5154 = vadd.f32 %v4754, 1.0
          %v5155 = vlog2.pop %v5154
          %v5156 = vmul.f32 %v5155, 0.6931472
          %v5157 = vmul.f32 -0.5, %v4754
          %v5158 = vadd.f32 %v5157, 1.0
          %v5159 = vmul.f32 %v5158, %v4754
          %v5160 = vand.u32 2147483647, %v4754
          %vm5161 = vcmp.lt.f32.partialorder %v5160, 0.0004427343
          %v5162 = vsel %vm5161, %v5159, %v5156
          %v5163 = vadd.f32 %v4756, 1.0
          %v5164 = vlog2.pop %v5163
          %v5165 = vmul.f32 %v5164, 0.6931472
          %v5166 = vmul.f32 -0.5, %v4756
          %v5167 = vadd.f32 %v5166, 1.0
          %v5168 = vmul.f32 %v5167, %v4756
          %v5169 = vand.u32 2147483647, %v4756
          %vm5170 = vcmp.lt.f32.partialorder %v5169, 0.0004427343
          %v5171 = vsel %vm5170, %v5168, %v5165
          %v5172 = vadd.f32 %v4758, 1.0
          %v5173 = vlog2.pop %v5172
          %v5174 = vmul.f32 %v5173, 0.6931472
          %v5175 = vmul.f32 -0.5, %v4758
          %v5176 = vadd.f32 %v5175, 1.0
          %v5177 = vmul.f32 %v5176, %v4758
          %v5178 = vand.u32 2147483647, %v4758
          %vm5179 = vcmp.lt.f32.partialorder %v5178, 0.0004427343
          %v5180 = vsel %vm5179, %v5177, %v5174
          %v5181 = vadd.f32 %v4760, 1.0
          %v5182 = vlog2.pop %v5181
          %v5183 = vmul.f32 %v5182, 0.6931472
          %v5184 = vmul.f32 -0.5, %v4760
          %v5185 = vadd.f32 %v5184, 1.0
          %v5186 = vmul.f32 %v5185, %v4760
          %v5187 = vand.u32 2147483647, %v4760
          %vm5188 = vcmp.lt.f32.partialorder %v5187, 0.0004427343
          %v5189 = vsel %vm5188, %v5186, %v5183
          %v5190 = vadd.f32 %v4762, 1.0
          %v5191 = vlog2.pop %v5190
          %v5192 = vmul.f32 %v5191, 0.6931472
          %v5193 = vmul.f32 -0.5, %v4762
          %v5194 = vadd.f32 %v5193, 1.0
          %v5195 = vmul.f32 %v5194, %v4762
          %v5196 = vand.u32 2147483647, %v4762
          %vm5197 = vcmp.lt.f32.partialorder %v5196, 0.0004427343
          %v5198 = vsel %vm5197, %v5195, %v5192
          %v5199 = vadd.f32 %v4764, 1.0
          %v5200 = vlog2.pop %v5199
          %v5201 = vmul.f32 %v5200, 0.6931472
          %v5202 = vmul.f32 -0.5, %v4764
          %v5203 = vadd.f32 %v5202, 1.0
          %v5204 = vmul.f32 %v5203, %v4764
          %v5205 = vand.u32 2147483647, %v4764
          %vm5206 = vcmp.lt.f32.partialorder %v5205, 0.0004427343
          %v5207 = vsel %vm5206, %v5204, %v5201
          %v5208 = vadd.f32 %v4766, 1.0
          %v5209 = vlog2.pop %v5208
          %v5210 = vmul.f32 %v5209, 0.6931472
          %v5211 = vmul.f32 -0.5, %v4766
          %v5212 = vadd.f32 %v5211, 1.0
          %v5213 = vmul.f32 %v5212, %v4766
          %v5214 = vand.u32 2147483647, %v4766
          %vm5215 = vcmp.lt.f32.partialorder %v5214, 0.0004427343
          %v5216 = vsel %vm5215, %v5213, %v5210
          %v5217 = vadd.f32 %v4517, %v4775
          %v5218 = vadd.f32 %v4518, %v4784
          %v5219 = vadd.f32 %v4519, %v4793
          %v5220 = vadd.f32 %v4520, %v4802
          %v5221 = vadd.f32 %v4521, %v4811
          %v5222 = vadd.f32 %v4522, %v4820
          %v5223 = vadd.f32 %v4523, %v4829
          %v5224 = vadd.f32 %v4524, %v4838
          %v5225 = vadd.f32 %v4525, %v4847
          %v5226 = vadd.f32 %v4526, %v4856
          %v5227 = vadd.f32 %v4527, %v4865
          %v5228 = vadd.f32 %v4528, %v4874
          %v5229 = vadd.f32 %v4529, %v4883
          %v5230 = vadd.f32 %v4530, %v4892
          %v5231 = vadd.f32 %v4531, %v4901
          %v5232 = vadd.f32 %v4532, %v4910
          %v5233 = vadd.f32 %v4533, %v4919
          %v5234 = vadd.f32 %v4534, %v4928
          %v5235 = vadd.f32 %v4535, %v4937
          %v5236 = vadd.f32 %v4536, %v4946
          %v5237 = vadd.f32 %v4537, %v4955
          %v5238 = vadd.f32 %v4538, %v4964
          %v5239 = vadd.f32 %v4539, %v4973
          %v5240 = vadd.f32 %v4540, %v4982
          %v5241 = vadd.f32 %v4541, %v4991
          %v5242 = vadd.f32 %v4542, %v5000
          %v5243 = vadd.f32 %v4543, %v5009
          %v5244 = vadd.f32 %v4544, %v5018
          %v5245 = vadd.f32 %v4545, %v5027
          %v5246 = vadd.f32 %v4546, %v5036
          %v5247 = vadd.f32 %v4547, %v5045
          %v5248 = vadd.f32 %v4548, %v5054
          %v5249 = vadd.f32 %v4549, %v5063
          %v5250 = vadd.f32 %v4550, %v5072
          %v5251 = vadd.f32 %v4551, %v5081
          %v5252 = vadd.f32 %v4552, %v5090
          %v5253 = vadd.f32 %v4553, %v5099
          %v5254 = vadd.f32 %v4554, %v5108
          %v5255 = vadd.f32 %v4555, %v5117
          %v5256 = vadd.f32 %v4556, %v5126
          %v5257 = vadd.f32 %v4557, %v5135
          %v5258 = vadd.f32 %v4558, %v5144
          %v5259 = vadd.f32 %v4559, %v5153
          %v5260 = vadd.f32 %v4560, %v5162
          %v5261 = vadd.f32 %v4561, %v5171
          %v5262 = vadd.f32 %v4562, %v5180
          %v5263 = vadd.f32 %v4563, %v5189
          %v5264 = vadd.f32 %v4564, %v5198
          %v5265 = vadd.f32 %v4565, %v5207
          %v5266 = vadd.f32 %v4566, %v5216
          %v5267 = vmul.f32 %v5217, %v4467
          %v5268 = vmul.f32 %v5218, %v4468
          %v5269 = vmul.f32 %v5219, %v4469
          %v5270 = vmul.f32 %v5220, %v4470
          %v5271 = vmul.f32 %v5221, %v4471
          %v5272 = vmul.f32 %v5222, %v4472
          %v5273 = vmul.f32 %v5223, %v4473
          %v5274 = vmul.f32 %v5224, %v4474
          %v5275 = vmul.f32 %v5225, %v4475
          %v5276 = vmul.f32 %v5226, %v4476
          %v5277 = vmul.f32 %v5227, %v4477
          %v5278 = vmul.f32 %v5228, %v4478
          %v5279 = vmul.f32 %v5229, %v4479
          %v5280 = vmul.f32 %v5230, %v4480
          %v5281 = vmul.f32 %v5231, %v4481
          %v5282 = vmul.f32 %v5232, %v4482
          %v5283 = vmul.f32 %v5233, %v4483
          %v5284 = vmul.f32 %v5234, %v4484
          %v5285 = vmul.f32 %v5235, %v4485
          %v5286 = vmul.f32 %v5236, %v4486
          %v5287 = vmul.f32 %v5237, %v4487
          %v5288 = vmul.f32 %v5238, %v4488
          %v5289 = vmul.f32 %v5239, %v4489
          %v5290 = vmul.f32 %v5240, %v4490
          %v5291 = vmul.f32 %v5241, %v4491
          %v5292 = vmul.f32 %v5242, %v4492
          %v5293 = vmul.f32 %v5243, %v4493
          %v5294 = vmul.f32 %v5244, %v4494
          %v5295 = vmul.f32 %v5245, %v4495
          %v5296 = vmul.f32 %v5246, %v4496
          %v5297 = vmul.f32 %v5247, %v4497
          %v5298 = vmul.f32 %v5248, %v4498
          %v5299 = vmul.f32 %v5249, %v4499
          %v5300 = vmul.f32 %v5250, %v4500
          %v5301 = vmul.f32 %v5251, %v4501
          %v5302 = vmul.f32 %v5252, %v4502
          %v5303 = vmul.f32 %v5253, %v4503
          %v5304 = vmul.f32 %v5254, %v4504
          %v5305 = vmul.f32 %v5255, %v4505
          %v5306 = vmul.f32 %v5256, %v4506
          %v5307 = vmul.f32 %v5257, %v4507
          %v5308 = vmul.f32 %v5258, %v4508
          %v5309 = vmul.f32 %v5259, %v4509
          %v5310 = vmul.f32 %v5260, %v4510
          %v5311 = vmul.f32 %v5261, %v4511
          %v5312 = vmul.f32 %v5262, %v4512
          %v5313 = vmul.f32 %v5263, %v4513
          %v5314 = vmul.f32 %v5264, %v4514
          %v5315 = vmul.f32 %v5265, %v4515
          %v5316 = vmul.f32 %v5266, %v4516
          %v5317 = vadd.f32 %v4365, %v5267
          %v5318 = vadd.f32 %v4366, %v5268
          %v5319 = vadd.f32 %v4367, %v5269
          %v5320 = vadd.f32 %v4368, %v5270
          %v5321 = vadd.f32 %v4369, %v5271
          %v5322 = vadd.f32 %v4370, %v5272
          %v5323 = vadd.f32 %v4371, %v5273
          %v5324 = vadd.f32 %v4372, %v5274
          %v5325 = vadd.f32 %v4373, %v5275
          %v5326 = vadd.f32 %v4374, %v5276
          %v5327 = vadd.f32 %v4375, %v5277
          %v5328 = vadd.f32 %v4376, %v5278
          %v5329 = vadd.f32 %v4377, %v5279
          %v5330 = vadd.f32 %v4378, %v5280
          %v5331 = vadd.f32 %v4379, %v5281
          %v5332 = vadd.f32 %v4380, %v5282
          %v5333 = vadd.f32 %v4381, %v5283
          %v5334 = vadd.f32 %v4382, %v5284
          %v5335 = vadd.f32 %v4383, %v5285
          %v5336 = vadd.f32 %v4384, %v5286
          %v5337 = vadd.f32 %v4385, %v5287
          %v5338 = vadd.f32 %v4386, %v5288
          %v5339 = vadd.f32 %v4387, %v5289
          %v5340 = vadd.f32 %v4388, %v5290
          %v5341 = vadd.f32 %v4389, %v5291
          %v5342 = vadd.f32 %v4390, %v5292
          %v5343 = vadd.f32 %v4391, %v5293
          %v5344 = vadd.f32 %v4392, %v5294
          %v5345 = vadd.f32 %v4393, %v5295
          %v5346 = vadd.f32 %v4394, %v5296
          %v5347 = vadd.f32 %v4395, %v5297
          %v5348 = vadd.f32 %v4396, %v5298
          %v5349 = vadd.f32 %v4397, %v5299
          %v5350 = vadd.f32 %v4398, %v5300
          %v5351 = vadd.f32 %v4399, %v5301
          %v5352 = vadd.f32 %v4400, %v5302
          %v5353 = vadd.f32 %v4401, %v5303
          %v5354 = vadd.f32 %v4402, %v5304
          %v5355 = vadd.f32 %v4403, %v5305
          %v5356 = vadd.f32 %v4404, %v5306
          %v5357 = vadd.f32 %v4405, %v5307
          %v5358 = vadd.f32 %v4406, %v5308
          %v5359 = vadd.f32 %v4407, %v5309
          %v5360 = vadd.f32 %v4408, %v5310
          %v5361 = vadd.f32 %v4409, %v5311
          %v5362 = vadd.f32 %v4410, %v5312
          %v5363 = vadd.f32 %v4411, %v5313
          %v5364 = vadd.f32 %v4412, %v5314
          %v5365 = vadd.f32 %v4413, %v5315
          %v5366 = vadd.f32 %v4414, %v5316
          %v5367 = vmul.f32 %v5317, %v5317
          %v5368 = vmul.f32 %v5318, %v5318
          %v5369 = vmul.f32 %v5319, %v5319
          %v5370 = vmul.f32 %v5320, %v5320
          %v5371 = vmul.f32 %v5321, %v5321
          %v5372 = vmul.f32 %v5322, %v5322
          %v5373 = vmul.f32 %v5323, %v5323
          %v5374 = vmul.f32 %v5324, %v5324
          %v5375 = vmul.f32 %v5325, %v5325
          %v5376 = vmul.f32 %v5326, %v5326
          %v5377 = vmul.f32 %v5327, %v5327
          %v5378 = vmul.f32 %v5328, %v5328
          %v5379 = vmul.f32 %v5329, %v5329
          %v5380 = vmul.f32 %v5330, %v5330
          %v5381 = vmul.f32 %v5331, %v5331
          %v5382 = vmul.f32 %v5332, %v5332
          %v5383 = vmul.f32 %v5333, %v5333
          %v5384 = vmul.f32 %v5334, %v5334
          %v5385 = vmul.f32 %v5335, %v5335
          %v5386 = vmul.f32 %v5336, %v5336
          %v5387 = vmul.f32 %v5337, %v5337
          %v5388 = vmul.f32 %v5338, %v5338
          %v5389 = vmul.f32 %v5339, %v5339
          %v5390 = vmul.f32 %v5340, %v5340
          %v5391 = vmul.f32 %v5341, %v5341
          %v5392 = vmul.f32 %v5342, %v5342
          %v5393 = vmul.f32 %v5343, %v5343
          %v5394 = vmul.f32 %v5344, %v5344
          %v5395 = vmul.f32 %v5345, %v5345
          %v5396 = vmul.f32 %v5346, %v5346
          %v5397 = vmul.f32 %v5347, %v5347
          %v5398 = vmul.f32 %v5348, %v5348
          %v5399 = vmul.f32 %v5349, %v5349
          %v5400 = vmul.f32 %v5350, %v5350
          %v5401 = vmul.f32 %v5351, %v5351
          %v5402 = vmul.f32 %v5352, %v5352
          %v5403 = vmul.f32 %v5353, %v5353
          %v5404 = vmul.f32 %v5354, %v5354
          %v5405 = vmul.f32 %v5355, %v5355
          %v5406 = vmul.f32 %v5356, %v5356
          %v5407 = vmul.f32 %v5357, %v5357
          %v5408 = vmul.f32 %v5358, %v5358
          %v5409 = vmul.f32 %v5359, %v5359
          %v5410 = vmul.f32 %v5360, %v5360
          %v5411 = vmul.f32 %v5361, %v5361
          %v5412 = vmul.f32 %v5362, %v5362
          %v5413 = vmul.f32 %v5363, %v5363
          %v5414 = vmul.f32 %v5364, %v5364
          %v5415 = vmul.f32 %v5365, %v5365
          %v5416 = vmul.f32 %v5366, %v5366
          %vm5417 = vcmask 80896
          %v5418 = vsel %vm5417, %v5367, 0.0
          %v5419 = vsel %vm5417, %v5368, 0.0
          %v5420 = vadd.f32 %v5418, %v5419
          %v5421 = vsel %vm5417, %v5369, 0.0
          %v5422 = vadd.f32 %v5420, %v5421
          %v5423 = vsel %vm5417, %v5370, 0.0
          %v5424 = vadd.f32 %v5422, %v5423
          %v5425 = vsel %vm5417, %v5371, 0.0
          %v5426 = vadd.f32 %v5424, %v5425
          %v5427 = vsel %vm5417, %v5372, 0.0
          %v5428 = vadd.f32 %v5426, %v5427
          %v5429 = vsel %vm5417, %v5373, 0.0
          %v5430 = vadd.f32 %v5428, %v5429
          %v5431 = vsel %vm5417, %v5374, 0.0
          %v5432 = vadd.f32 %v5430, %v5431
          %v5433 = vsel %vm5417, %v5375, 0.0
          %v5434 = vadd.f32 %v5432, %v5433
          %v5435 = vsel %vm5417, %v5376, 0.0
          %v5436 = vadd.f32 %v5434, %v5435
          %v5437 = vsel %vm5417, %v5377, 0.0
          %v5438 = vadd.f32 %v5436, %v5437
          %v5439 = vsel %vm5417, %v5378, 0.0
          %v5440 = vadd.f32 %v5438, %v5439
          %v5441 = vsel %vm5417, %v5379, 0.0
          %v5442 = vadd.f32 %v5440, %v5441
          %v5443 = vsel %vm5417, %v5380, 0.0
          %v5444 = vadd.f32 %v5442, %v5443
          %v5445 = vsel %vm5417, %v5381, 0.0
          %v5446 = vadd.f32 %v5444, %v5445
          %v5447 = vsel %vm5417, %v5382, 0.0
          %v5448 = vadd.f32 %v5446, %v5447
          %v5449 = vsel %vm5417, %v5383, 0.0
          %v5450 = vadd.f32 %v5448, %v5449
          %v5451 = vsel %vm5417, %v5384, 0.0
          %v5452 = vadd.f32 %v5450, %v5451
          %v5453 = vsel %vm5417, %v5385, 0.0
          %v5454 = vadd.f32 %v5452, %v5453
          %v5455 = vsel %vm5417, %v5386, 0.0
          %v5456 = vadd.f32 %v5454, %v5455
          %v5457 = vsel %vm5417, %v5387, 0.0
          %v5458 = vadd.f32 %v5456, %v5457
          %v5459 = vsel %vm5417, %v5388, 0.0
          %v5460 = vadd.f32 %v5458, %v5459
          %v5461 = vsel %vm5417, %v5389, 0.0
          %v5462 = vadd.f32 %v5460, %v5461
          %v5463 = vsel %vm5417, %v5390, 0.0
          %v5464 = vadd.f32 %v5462, %v5463
          %v5465 = vsel %vm5417, %v5391, 0.0
          %v5466 = vadd.f32 %v5464, %v5465
          %v5467 = vsel %vm5417, %v5392, 0.0
          %v5468 = vadd.f32 %v5466, %v5467
          %v5469 = vsel %vm5417, %v5393, 0.0
          %v5470 = vadd.f32 %v5468, %v5469
          %v5471 = vsel %vm5417, %v5394, 0.0
          %v5472 = vadd.f32 %v5470, %v5471
          %v5473 = vsel %vm5417, %v5395, 0.0
          %v5474 = vadd.f32 %v5472, %v5473
          %v5475 = vsel %vm5417, %v5396, 0.0
          %v5476 = vadd.f32 %v5474, %v5475
          %v5477 = vsel %vm5417, %v5397, 0.0
          %v5478 = vadd.f32 %v5476, %v5477
          %v5479 = vsel %vm5417, %v5398, 0.0
          %v5480 = vadd.f32 %v5478, %v5479
          %v5481 = vsel %vm5417, %v5399, 0.0
          %v5482 = vadd.f32 %v5480, %v5481
          %v5483 = vsel %vm5417, %v5400, 0.0
          %v5484 = vadd.f32 %v5482, %v5483
          %v5485 = vsel %vm5417, %v5401, 0.0
          %v5486 = vadd.f32 %v5484, %v5485
          %v5487 = vsel %vm5417, %v5402, 0.0
          %v5488 = vadd.f32 %v5486, %v5487
          %v5489 = vsel %vm5417, %v5403, 0.0
          %v5490 = vadd.f32 %v5488, %v5489
          %v5491 = vsel %vm5417, %v5404, 0.0
          %v5492 = vadd.f32 %v5490, %v5491
          %v5493 = vsel %vm5417, %v5405, 0.0
          %v5494 = vadd.f32 %v5492, %v5493
          %v5495 = vsel %vm5417, %v5406, 0.0
          %v5496 = vadd.f32 %v5494, %v5495
          %v5497 = vsel %vm5417, %v5407, 0.0
          %v5498 = vadd.f32 %v5496, %v5497
          %v5499 = vsel %vm5417, %v5408, 0.0
          %v5500 = vadd.f32 %v5498, %v5499
          %v5501 = vsel %vm5417, %v5409, 0.0
          %v5502 = vadd.f32 %v5500, %v5501
          %v5503 = vsel %vm5417, %v5410, 0.0
          %v5504 = vadd.f32 %v5502, %v5503
          %v5505 = vsel %vm5417, %v5411, 0.0
          %v5506 = vadd.f32 %v5504, %v5505
          %v5507 = vsel %vm5417, %v5412, 0.0
          %v5508 = vadd.f32 %v5506, %v5507
          %v5509 = vsel %vm5417, %v5413, 0.0
          %v5510 = vadd.f32 %v5508, %v5509
          %v5511 = vsel %vm5417, %v5414, 0.0
          %v5512 = vadd.f32 %v5510, %v5511
          %v5513 = vsel %vm5417, %v5415, 0.0
          %v5514 = vadd.f32 %v5512, %v5513
          %v5515 = vsel %vm5417, %v5416, 0.0
          %v5516 = vadd.f32 %v5514, %v5515
          %5517 = vadd.xlane.f32.xlu0 %v5516
          %v5518 = vpop.xlane.xlu0 %5517
          %v5519 = vrot.slane %v5518, 4
          %v5520 = vadd.f32 %v5518, %v5519
          %v5521 = vrot.slane %v5520, 2
          %v5522 = vadd.f32 %v5520, %v5521
          %v5523 = vrot.slane %v5522, 1
          %v5524 = vadd.f32 %v5522, %v5523
          %s5525 = vtos %v5524
          %s5526 = sadd.f32 %s4320, %s5525
          %v5527 = vmax.f32 %v5217, 1e-30
          %v5528 = vmax.f32 %v5218, 1e-30
          %v5529 = vmax.f32 %v5219, 1e-30
          %v5530 = vmax.f32 %v5220, 1e-30
          %v5531 = vmax.f32 %v5221, 1e-30
          %v5532 = vmax.f32 %v5222, 1e-30
          %v5533 = vmax.f32 %v5223, 1e-30
          %v5534 = vmax.f32 %v5224, 1e-30
          %v5535 = vmax.f32 %v5225, 1e-30
          %v5536 = vmax.f32 %v5226, 1e-30
          %v5537 = vmax.f32 %v5227, 1e-30
          %v5538 = vmax.f32 %v5228, 1e-30
          %v5539 = vmax.f32 %v5229, 1e-30
          %v5540 = vmax.f32 %v5230, 1e-30
          %v5541 = vmax.f32 %v5231, 1e-30
          %v5542 = vmax.f32 %v5232, 1e-30
          %v5543 = vmax.f32 %v5233, 1e-30
          %v5544 = vmax.f32 %v5234, 1e-30
          %v5545 = vmax.f32 %v5235, 1e-30
          %v5546 = vmax.f32 %v5236, 1e-30
          %v5547 = vmax.f32 %v5237, 1e-30
          %v5548 = vmax.f32 %v5238, 1e-30
          %v5549 = vmax.f32 %v5239, 1e-30
          %v5550 = vmax.f32 %v5240, 1e-30
          %v5551 = vmax.f32 %v5241, 1e-30
          %v5552 = vmax.f32 %v5242, 1e-30
          %v5553 = vmax.f32 %v5243, 1e-30
          %v5554 = vmax.f32 %v5244, 1e-30
          %v5555 = vmax.f32 %v5245, 1e-30
          %v5556 = vmax.f32 %v5246, 1e-30
          %v5557 = vmax.f32 %v5247, 1e-30
          %v5558 = vmax.f32 %v5248, 1e-30
          %v5559 = vmax.f32 %v5249, 1e-30
          %v5560 = vmax.f32 %v5250, 1e-30
          %v5561 = vmax.f32 %v5251, 1e-30
          %v5562 = vmax.f32 %v5252, 1e-30
          %v5563 = vmax.f32 %v5253, 1e-30
          %v5564 = vmax.f32 %v5254, 1e-30
          %v5565 = vmax.f32 %v5255, 1e-30
          %v5566 = vmax.f32 %v5256, 1e-30
          %v5567 = vmax.f32 %v5257, 1e-30
          %v5568 = vmax.f32 %v5258, 1e-30
          %v5569 = vmax.f32 %v5259, 1e-30
          %v5570 = vmax.f32 %v5260, 1e-30
          %v5571 = vmax.f32 %v5261, 1e-30
          %v5572 = vmax.f32 %v5262, 1e-30
          %v5573 = vmax.f32 %v5263, 1e-30
          %v5574 = vmax.f32 %v5264, 1e-30
          %v5575 = vmax.f32 %v5265, 1e-30
          %v5576 = vmax.f32 %v5266, 1e-30
          %v5577 = vlog2.pop %v5527
          %v5578 = vmul.f32 %v5577, 0.6931472
          %v5579 = vlog2.pop %v5528
          %v5580 = vmul.f32 %v5579, 0.6931472
          %v5581 = vlog2.pop %v5529
          %v5582 = vmul.f32 %v5581, 0.6931472
          %v5583 = vlog2.pop %v5530
          %v5584 = vmul.f32 %v5583, 0.6931472
          %v5585 = vlog2.pop %v5531
          %v5586 = vmul.f32 %v5585, 0.6931472
          %v5587 = vlog2.pop %v5532
          %v5588 = vmul.f32 %v5587, 0.6931472
          %v5589 = vlog2.pop %v5533
          %v5590 = vmul.f32 %v5589, 0.6931472
          %v5591 = vlog2.pop %v5534
          %v5592 = vmul.f32 %v5591, 0.6931472
          %v5593 = vlog2.pop %v5535
          %v5594 = vmul.f32 %v5593, 0.6931472
          %v5595 = vlog2.pop %v5536
          %v5596 = vmul.f32 %v5595, 0.6931472
          %v5597 = vlog2.pop %v5537
          %v5598 = vmul.f32 %v5597, 0.6931472
          %v5599 = vlog2.pop %v5538
          %v5600 = vmul.f32 %v5599, 0.6931472
          %v5601 = vlog2.pop %v5539
          %v5602 = vmul.f32 %v5601, 0.6931472
          %v5603 = vlog2.pop %v5540
          %v5604 = vmul.f32 %v5603, 0.6931472
          %v5605 = vlog2.pop %v5541
          %v5606 = vmul.f32 %v5605, 0.6931472
          %v5607 = vlog2.pop %v5542
          %v5608 = vmul.f32 %v5607, 0.6931472
          %v5609 = vlog2.pop %v5543
          %v5610 = vmul.f32 %v5609, 0.6931472
          %v5611 = vlog2.pop %v5544
          %v5612 = vmul.f32 %v5611, 0.6931472
          %v5613 = vlog2.pop %v5545
          %v5614 = vmul.f32 %v5613, 0.6931472
          %v5615 = vlog2.pop %v5546
          %v5616 = vmul.f32 %v5615, 0.6931472
          %v5617 = vlog2.pop %v5547
          %v5618 = vmul.f32 %v5617, 0.6931472
          %v5619 = vlog2.pop %v5548
          %v5620 = vmul.f32 %v5619, 0.6931472
          %v5621 = vlog2.pop %v5549
          %v5622 = vmul.f32 %v5621, 0.6931472
          %v5623 = vlog2.pop %v5550
          %v5624 = vmul.f32 %v5623, 0.6931472
          %v5625 = vlog2.pop %v5551
          %v5626 = vmul.f32 %v5625, 0.6931472
          %v5627 = vlog2.pop %v5552
          %v5628 = vmul.f32 %v5627, 0.6931472
          %v5629 = vlog2.pop %v5553
          %v5630 = vmul.f32 %v5629, 0.6931472
          %v5631 = vlog2.pop %v5554
          %v5632 = vmul.f32 %v5631, 0.6931472
          %v5633 = vlog2.pop %v5555
          %v5634 = vmul.f32 %v5633, 0.6931472
          %v5635 = vlog2.pop %v5556
          %v5636 = vmul.f32 %v5635, 0.6931472
          %v5637 = vlog2.pop %v5557
          %v5638 = vmul.f32 %v5637, 0.6931472
          %v5639 = vlog2.pop %v5558
          %v5640 = vmul.f32 %v5639, 0.6931472
          %v5641 = vlog2.pop %v5559
          %v5642 = vmul.f32 %v5641, 0.6931472
          %v5643 = vlog2.pop %v5560
          %v5644 = vmul.f32 %v5643, 0.6931472
          %v5645 = vlog2.pop %v5561
          %v5646 = vmul.f32 %v5645, 0.6931472
          %v5647 = vlog2.pop %v5562
          %v5648 = vmul.f32 %v5647, 0.6931472
          %v5649 = vlog2.pop %v5563
          %v5650 = vmul.f32 %v5649, 0.6931472
          %v5651 = vlog2.pop %v5564
          %v5652 = vmul.f32 %v5651, 0.6931472
          %v5653 = vlog2.pop %v5565
          %v5654 = vmul.f32 %v5653, 0.6931472
          %v5655 = vlog2.pop %v5566
          %v5656 = vmul.f32 %v5655, 0.6931472
          %v5657 = vlog2.pop %v5567
          %v5658 = vmul.f32 %v5657, 0.6931472
          %v5659 = vlog2.pop %v5568
          %v5660 = vmul.f32 %v5659, 0.6931472
          %v5661 = vlog2.pop %v5569
          %v5662 = vmul.f32 %v5661, 0.6931472
          %v5663 = vlog2.pop %v5570
          %v5664 = vmul.f32 %v5663, 0.6931472
          %v5665 = vlog2.pop %v5571
          %v5666 = vmul.f32 %v5665, 0.6931472
          %v5667 = vlog2.pop %v5572
          %v5668 = vmul.f32 %v5667, 0.6931472
          %v5669 = vlog2.pop %v5573
          %v5670 = vmul.f32 %v5669, 0.6931472
          %v5671 = vlog2.pop %v5574
          %v5672 = vmul.f32 %v5671, 0.6931472
          %v5673 = vlog2.pop %v5575
          %v5674 = vmul.f32 %v5673, 0.6931472
          %v5675 = vlog2.pop %v5576
          %v5676 = vmul.f32 %v5675, 0.6931472
          %v5677 = vmul.f32 %v4467, %v4467
          %v5678 = vmul.f32 %v4468, %v4468
          %v5679 = vmul.f32 %v4469, %v4469
          %v5680 = vmul.f32 %v4470, %v4470
          %v5681 = vmul.f32 %v4471, %v4471
          %v5682 = vmul.f32 %v4472, %v4472
          %v5683 = vmul.f32 %v4473, %v4473
          %v5684 = vmul.f32 %v4474, %v4474
          %v5685 = vmul.f32 %v4475, %v4475
          %v5686 = vmul.f32 %v4476, %v4476
          %v5687 = vmul.f32 %v4477, %v4477
          %v5688 = vmul.f32 %v4478, %v4478
          %v5689 = vmul.f32 %v4479, %v4479
          %v5690 = vmul.f32 %v4480, %v4480
          %v5691 = vmul.f32 %v4481, %v4481
          %v5692 = vmul.f32 %v4482, %v4482
          %v5693 = vmul.f32 %v4483, %v4483
          %v5694 = vmul.f32 %v4484, %v4484
          %v5695 = vmul.f32 %v4485, %v4485
          %v5696 = vmul.f32 %v4486, %v4486
          %v5697 = vmul.f32 %v4487, %v4487
          %v5698 = vmul.f32 %v4488, %v4488
          %v5699 = vmul.f32 %v4489, %v4489
          %v5700 = vmul.f32 %v4490, %v4490
          %v5701 = vmul.f32 %v4491, %v4491
          %v5702 = vmul.f32 %v4492, %v4492
          %v5703 = vmul.f32 %v4493, %v4493
          %v5704 = vmul.f32 %v4494, %v4494
          %v5705 = vmul.f32 %v4495, %v4495
          %v5706 = vmul.f32 %v4496, %v4496
          %v5707 = vmul.f32 %v4497, %v4497
          %v5708 = vmul.f32 %v4498, %v4498
          %v5709 = vmul.f32 %v4499, %v4499
          %v5710 = vmul.f32 %v4500, %v4500
          %v5711 = vmul.f32 %v4501, %v4501
          %v5712 = vmul.f32 %v4502, %v4502
          %v5713 = vmul.f32 %v4503, %v4503
          %v5714 = vmul.f32 %v4504, %v4504
          %v5715 = vmul.f32 %v4505, %v4505
          %v5716 = vmul.f32 %v4506, %v4506
          %v5717 = vmul.f32 %v4507, %v4507
          %v5718 = vmul.f32 %v4508, %v4508
          %v5719 = vmul.f32 %v4509, %v4509
          %v5720 = vmul.f32 %v4510, %v4510
          %v5721 = vmul.f32 %v4511, %v4511
          %v5722 = vmul.f32 %v4512, %v4512
          %v5723 = vmul.f32 %v4513, %v4513
          %v5724 = vmul.f32 %v4514, %v4514
          %v5725 = vmul.f32 %v4515, %v4515
          %v5726 = vmul.f32 %v4516, %v4516
          %v5727 = vmul.f32 %v5677, 0.5
          %v5728 = vmul.f32 %v5678, 0.5
          %v5729 = vmul.f32 %v5679, 0.5
          %v5730 = vmul.f32 %v5680, 0.5
          %v5731 = vmul.f32 %v5681, 0.5
          %v5732 = vmul.f32 %v5682, 0.5
          %v5733 = vmul.f32 %v5683, 0.5
          %v5734 = vmul.f32 %v5684, 0.5
          %v5735 = vmul.f32 %v5685, 0.5
          %v5736 = vmul.f32 %v5686, 0.5
          %v5737 = vmul.f32 %v5687, 0.5
          %v5738 = vmul.f32 %v5688, 0.5
          %v5739 = vmul.f32 %v5689, 0.5
          %v5740 = vmul.f32 %v5690, 0.5
          %v5741 = vmul.f32 %v5691, 0.5
          %v5742 = vmul.f32 %v5692, 0.5
          %v5743 = vmul.f32 %v5693, 0.5
          %v5744 = vmul.f32 %v5694, 0.5
          %v5745 = vmul.f32 %v5695, 0.5
          %v5746 = vmul.f32 %v5696, 0.5
          %v5747 = vmul.f32 %v5697, 0.5
          %v5748 = vmul.f32 %v5698, 0.5
          %v5749 = vmul.f32 %v5699, 0.5
          %v5750 = vmul.f32 %v5700, 0.5
          %v5751 = vmul.f32 %v5701, 0.5
          %v5752 = vmul.f32 %v5702, 0.5
          %v5753 = vmul.f32 %v5703, 0.5
          %v5754 = vmul.f32 %v5704, 0.5
          %v5755 = vmul.f32 %v5705, 0.5
          %v5756 = vmul.f32 %v5706, 0.5
          %v5757 = vmul.f32 %v5707, 0.5
          %v5758 = vmul.f32 %v5708, 0.5
          %v5759 = vmul.f32 %v5709, 0.5
          %v5760 = vmul.f32 %v5710, 0.5
          %v5761 = vmul.f32 %v5711, 0.5
          %v5762 = vmul.f32 %v5712, 0.5
          %v5763 = vmul.f32 %v5713, 0.5
          %v5764 = vmul.f32 %v5714, 0.5
          %v5765 = vmul.f32 %v5715, 0.5
          %v5766 = vmul.f32 %v5716, 0.5
          %v5767 = vmul.f32 %v5717, 0.5
          %v5768 = vmul.f32 %v5718, 0.5
          %v5769 = vmul.f32 %v5719, 0.5
          %v5770 = vmul.f32 %v5720, 0.5
          %v5771 = vmul.f32 %v5721, 0.5
          %v5772 = vmul.f32 %v5722, 0.5
          %v5773 = vmul.f32 %v5723, 0.5
          %v5774 = vmul.f32 %v5724, 0.5
          %v5775 = vmul.f32 %v5725, 0.5
          %v5776 = vmul.f32 %v5726, 0.5
          %v5777 = vadd.f32 %v5578, %v5727
          %v5778 = vadd.f32 %v5580, %v5728
          %v5779 = vadd.f32 %v5582, %v5729
          %v5780 = vadd.f32 %v5584, %v5730
          %v5781 = vadd.f32 %v5586, %v5731
          %v5782 = vadd.f32 %v5588, %v5732
          %v5783 = vadd.f32 %v5590, %v5733
          %v5784 = vadd.f32 %v5592, %v5734
          %v5785 = vadd.f32 %v5594, %v5735
          %v5786 = vadd.f32 %v5596, %v5736
          %v5787 = vadd.f32 %v5598, %v5737
          %v5788 = vadd.f32 %v5600, %v5738
          %v5789 = vadd.f32 %v5602, %v5739
          %v5790 = vadd.f32 %v5604, %v5740
          %v5791 = vadd.f32 %v5606, %v5741
          %v5792 = vadd.f32 %v5608, %v5742
          %v5793 = vadd.f32 %v5610, %v5743
          %v5794 = vadd.f32 %v5612, %v5744
          %v5795 = vadd.f32 %v5614, %v5745
          %v5796 = vadd.f32 %v5616, %v5746
          %v5797 = vadd.f32 %v5618, %v5747
          %v5798 = vadd.f32 %v5620, %v5748
          %v5799 = vadd.f32 %v5622, %v5749
          %v5800 = vadd.f32 %v5624, %v5750
          %v5801 = vadd.f32 %v5626, %v5751
          %v5802 = vadd.f32 %v5628, %v5752
          %v5803 = vadd.f32 %v5630, %v5753
          %v5804 = vadd.f32 %v5632, %v5754
          %v5805 = vadd.f32 %v5634, %v5755
          %v5806 = vadd.f32 %v5636, %v5756
          %v5807 = vadd.f32 %v5638, %v5757
          %v5808 = vadd.f32 %v5640, %v5758
          %v5809 = vadd.f32 %v5642, %v5759
          %v5810 = vadd.f32 %v5644, %v5760
          %v5811 = vadd.f32 %v5646, %v5761
          %v5812 = vadd.f32 %v5648, %v5762
          %v5813 = vadd.f32 %v5650, %v5763
          %v5814 = vadd.f32 %v5652, %v5764
          %v5815 = vadd.f32 %v5654, %v5765
          %v5816 = vadd.f32 %v5656, %v5766
          %v5817 = vadd.f32 %v5658, %v5767
          %v5818 = vadd.f32 %v5660, %v5768
          %v5819 = vadd.f32 %v5662, %v5769
          %v5820 = vadd.f32 %v5664, %v5770
          %v5821 = vadd.f32 %v5666, %v5771
          %v5822 = vadd.f32 %v5668, %v5772
          %v5823 = vadd.f32 %v5670, %v5773
          %v5824 = vadd.f32 %v5672, %v5774
          %v5825 = vadd.f32 %v5674, %v5775
          %v5826 = vadd.f32 %v5676, %v5776
          %v5827 = vsel %vm5417, %v5777, 0.0
          %v5828 = vsel %vm5417, %v5778, 0.0
          %v5829 = vadd.f32 %v5827, %v5828
          %v5830 = vsel %vm5417, %v5779, 0.0
          %v5831 = vadd.f32 %v5829, %v5830
          %v5832 = vsel %vm5417, %v5780, 0.0
          %v5833 = vadd.f32 %v5831, %v5832
          %v5834 = vsel %vm5417, %v5781, 0.0
          %v5835 = vadd.f32 %v5833, %v5834
          %v5836 = vsel %vm5417, %v5782, 0.0
          %v5837 = vadd.f32 %v5835, %v5836
          %v5838 = vsel %vm5417, %v5783, 0.0
          %v5839 = vadd.f32 %v5837, %v5838
          %v5840 = vsel %vm5417, %v5784, 0.0
          %v5841 = vadd.f32 %v5839, %v5840
          %v5842 = vsel %vm5417, %v5785, 0.0
          %v5843 = vadd.f32 %v5841, %v5842
          %v5844 = vsel %vm5417, %v5786, 0.0
          %v5845 = vadd.f32 %v5843, %v5844
          %v5846 = vsel %vm5417, %v5787, 0.0
          %v5847 = vadd.f32 %v5845, %v5846
          %v5848 = vsel %vm5417, %v5788, 0.0
          %v5849 = vadd.f32 %v5847, %v5848
          %v5850 = vsel %vm5417, %v5789, 0.0
          %v5851 = vadd.f32 %v5849, %v5850
          %v5852 = vsel %vm5417, %v5790, 0.0
          %v5853 = vadd.f32 %v5851, %v5852
          %v5854 = vsel %vm5417, %v5791, 0.0
          %v5855 = vadd.f32 %v5853, %v5854
          %v5856 = vsel %vm5417, %v5792, 0.0
          %v5857 = vadd.f32 %v5855, %v5856
          %v5858 = vsel %vm5417, %v5793, 0.0
          %v5859 = vadd.f32 %v5857, %v5858
          %v5860 = vsel %vm5417, %v5794, 0.0
          %v5861 = vadd.f32 %v5859, %v5860
          %v5862 = vsel %vm5417, %v5795, 0.0
          %v5863 = vadd.f32 %v5861, %v5862
          %v5864 = vsel %vm5417, %v5796, 0.0
          %v5865 = vadd.f32 %v5863, %v5864
          %v5866 = vsel %vm5417, %v5797, 0.0
          %v5867 = vadd.f32 %v5865, %v5866
          %v5868 = vsel %vm5417, %v5798, 0.0
          %v5869 = vadd.f32 %v5867, %v5868
          %v5870 = vsel %vm5417, %v5799, 0.0
          %v5871 = vadd.f32 %v5869, %v5870
          %v5872 = vsel %vm5417, %v5800, 0.0
          %v5873 = vadd.f32 %v5871, %v5872
          %v5874 = vsel %vm5417, %v5801, 0.0
          %v5875 = vadd.f32 %v5873, %v5874
          %v5876 = vsel %vm5417, %v5802, 0.0
          %v5877 = vadd.f32 %v5875, %v5876
          %v5878 = vsel %vm5417, %v5803, 0.0
          %v5879 = vadd.f32 %v5877, %v5878
          %v5880 = vsel %vm5417, %v5804, 0.0
          %v5881 = vadd.f32 %v5879, %v5880
          %v5882 = vsel %vm5417, %v5805, 0.0
          %v5883 = vadd.f32 %v5881, %v5882
          %v5884 = vsel %vm5417, %v5806, 0.0
          %v5885 = vadd.f32 %v5883, %v5884
          %v5886 = vsel %vm5417, %v5807, 0.0
          %v5887 = vadd.f32 %v5885, %v5886
          %v5888 = vsel %vm5417, %v5808, 0.0
          %v5889 = vadd.f32 %v5887, %v5888
          %v5890 = vsel %vm5417, %v5809, 0.0
          %v5891 = vadd.f32 %v5889, %v5890
          %v5892 = vsel %vm5417, %v5810, 0.0
          %v5893 = vadd.f32 %v5891, %v5892
          %v5894 = vsel %vm5417, %v5811, 0.0
          %v5895 = vadd.f32 %v5893, %v5894
          %v5896 = vsel %vm5417, %v5812, 0.0
          %v5897 = vadd.f32 %v5895, %v5896
          %v5898 = vsel %vm5417, %v5813, 0.0
          %v5899 = vadd.f32 %v5897, %v5898
          %v5900 = vsel %vm5417, %v5814, 0.0
          %v5901 = vadd.f32 %v5899, %v5900
          %v5902 = vsel %vm5417, %v5815, 0.0
          %v5903 = vadd.f32 %v5901, %v5902
          %v5904 = vsel %vm5417, %v5816, 0.0
          %v5905 = vadd.f32 %v5903, %v5904
          %v5906 = vsel %vm5417, %v5817, 0.0
          %v5907 = vadd.f32 %v5905, %v5906
          %v5908 = vsel %vm5417, %v5818, 0.0
          %v5909 = vadd.f32 %v5907, %v5908
          %v5910 = vsel %vm5417, %v5819, 0.0
          %v5911 = vadd.f32 %v5909, %v5910
          %v5912 = vsel %vm5417, %v5820, 0.0
          %v5913 = vadd.f32 %v5911, %v5912
          %v5914 = vsel %vm5417, %v5821, 0.0
          %v5915 = vadd.f32 %v5913, %v5914
          %v5916 = vsel %vm5417, %v5822, 0.0
          %v5917 = vadd.f32 %v5915, %v5916
          %v5918 = vsel %vm5417, %v5823, 0.0
          %v5919 = vadd.f32 %v5917, %v5918
          %v5920 = vsel %vm5417, %v5824, 0.0
          %v5921 = vadd.f32 %v5919, %v5920
          %v5922 = vsel %vm5417, %v5825, 0.0
          %v5923 = vadd.f32 %v5921, %v5922
          %v5924 = vsel %vm5417, %v5826, 0.0
          %v5925 = vadd.f32 %v5923, %v5924
          %5926 = vadd.xlane.f32.xlu0 %v5925
          %v5927 = vpop.xlane.xlu0 %5926
          %v5928 = vrot.slane %v5927, 4
          %v5929 = vadd.f32 %v5927, %v5928
          %v5930 = vrot.slane %v5929, 2
          %v5931 = vadd.f32 %v5929, %v5930
          %v5932 = vrot.slane %v5931, 1
          %v5933 = vadd.f32 %v5931, %v5932
          %s5934 = vtos %v5933
          %s5935 = sadd.f32 %s4364, %s5934
          %v5936 = vld [vmem:[#allocation2] sm:$0xff]
          %v5938 = vlaneseq
          %v5939 = vshrl.u32 %v5938, 7
          %v5940 = vsub.s32 0, %v5939
          %v5941 = vrot.slane %v4067, %v5940
          %v5942 = vlaneseq
          %v5943 = vshrl.u32 %v5942, 7
          %v5944 = vsub.s32 1, %v5943
          %v5945 = vrot.slane %v4067, %v5944
          %v5946 = vlaneseq
          %v5947 = vshrl.u32 %v5946, 7
          %v5948 = vsub.s32 2, %v5947
          %v5949 = vrot.slane %v4067, %v5948
          %v5950 = vlaneseq
          %v5951 = vshrl.u32 %v5950, 7
          %v5952 = vsub.s32 3, %v5951
          %v5953 = vrot.slane %v4067, %v5952
          %v5954 = vcombine.low %v5941, %v5945
          %v5955 = vcombine.low %v5949, %v5953
          %v5957 = vunpack.c.l.s4 1983009808
          %v5958 = vunpack.c.0.s8 %v5957
          %v5959 = vlaneseq
          %v5960 = vshrl.u32 %v5959, 7
          %v5961 = vsub.s32 %v5958, %v5960
          %v5962 = vrot.slane %v5954, %v5961
          %v5964 = vunpack.c.l.s4 1983009808
          %v5965 = vunpack.c.0.s8 %v5964
          %v5966 = vlaneseq
          %v5967 = vshrl.u32 %v5966, 7
          %v5968 = vsub.s32 %v5965, %v5967
          %v5969 = vrot.slane %v5955, %v5968
          %v5970 = vcombine.low %v5962, %v5969
          %v5972 = vadd.f32 %v5936, %v5970
          %v5973 = vmax.f32 %v5972, 0.0
          %v5974 = vld [vmem:[#allocation3] sm:$0xff]
          %v5975 = vld [vmem:[#allocation3 + $0x8] sm:$0xff]
          %v5976 = vld [vmem:[#allocation3 + $0x10] sm:$0xff]
          %v5977 = vld [vmem:[#allocation3 + $0x18] sm:$0xff]
          %v5978 = vld [vmem:[#allocation3 + $0x20] sm:$0xff]
          %v5979 = vld [vmem:[#allocation3 + $0x28] sm:$0xff]
          %v5980 = vld [vmem:[#allocation3 + $0x30] sm:$0xff]
          %v5981 = vld [vmem:[#allocation3 + $0x38] sm:$0xff]
          %v5982 = vld [vmem:[#allocation3 + $0x40] sm:$0xff]
          %v5983 = vld [vmem:[#allocation3 + $0x48] sm:$0xff]
          %v5984 = vld [vmem:[#allocation3 + $0x50] sm:$0xff]
          %v5985 = vld [vmem:[#allocation3 + $0x58] sm:$0xff]
          %v5986 = vld [vmem:[#allocation3 + $0x60] sm:$0xff]
          %v5987 = vld [vmem:[#allocation3 + $0x68] sm:$0xff]
          %v5988 = vld [vmem:[#allocation3 + $0x70] sm:$0xff]
          %v5989 = vld [vmem:[#allocation3 + $0x78] sm:$0xff]
          %v5990 = vld [vmem:[#allocation3 + $0x80] sm:$0xff]
          %v5991 = vld [vmem:[#allocation3 + $0x88] sm:$0xff]
          %v5992 = vld [vmem:[#allocation3 + $0x90] sm:$0xff]
          %v5993 = vld [vmem:[#allocation3 + $0x98] sm:$0xff]
          %v5994 = vld [vmem:[#allocation3 + $0xa0] sm:$0xff]
          %v5995 = vld [vmem:[#allocation3 + $0xa8] sm:$0xff]
          %v5996 = vld [vmem:[#allocation3 + $0xb0] sm:$0xff]
          %v5997 = vld [vmem:[#allocation3 + $0xb8] sm:$0xff]
          %v5998 = vld [vmem:[#allocation3 + $0xc0] sm:$0xff]
          %v5999 = vld [vmem:[#allocation3 + $0xc8] sm:$0xff]
          %v6000 = vld [vmem:[#allocation3 + $0xd0] sm:$0xff]
          %v6001 = vld [vmem:[#allocation3 + $0xd8] sm:$0xff]
          %v6002 = vld [vmem:[#allocation3 + $0xe0] sm:$0xff]
          %v6003 = vld [vmem:[#allocation3 + $0xe8] sm:$0xff]
          %v6004 = vld [vmem:[#allocation3 + $0xf0] sm:$0xff]
          %v6005 = vld [vmem:[#allocation3 + $0xf8] sm:$0xff]
          %v6006 = vld [vmem:[#allocation3 + $0x100] sm:$0xff]
          %v6007 = vld [vmem:[#allocation3 + $0x108] sm:$0xff]
          %v6008 = vld [vmem:[#allocation3 + $0x110] sm:$0xff]
          %v6009 = vld [vmem:[#allocation3 + $0x118] sm:$0xff]
          %v6010 = vld [vmem:[#allocation3 + $0x120] sm:$0xff]
          %v6011 = vld [vmem:[#allocation3 + $0x128] sm:$0xff]
          %v6012 = vld [vmem:[#allocation3 + $0x130] sm:$0xff]
          %v6013 = vld [vmem:[#allocation3 + $0x138] sm:$0xff]
          %v6014 = vld [vmem:[#allocation3 + $0x140] sm:$0xff]
          %v6015 = vld [vmem:[#allocation3 + $0x148] sm:$0xff]
          %v6016 = vld [vmem:[#allocation3 + $0x150] sm:$0xff]
          %v6017 = vld [vmem:[#allocation3 + $0x158] sm:$0xff]
          %v6018 = vld [vmem:[#allocation3 + $0x160] sm:$0xff]
          %v6019 = vld [vmem:[#allocation3 + $0x168] sm:$0xff]
          %v6020 = vld [vmem:[#allocation3 + $0x170] sm:$0xff]
          %v6021 = vld [vmem:[#allocation3 + $0x178] sm:$0xff]
          %v6022 = vld [vmem:[#allocation3 + $0x180] sm:$0xff]
          %v6023 = vld [vmem:[#allocation3 + $0x188] sm:$0xff]
          %v6024 = vld [vmem:[#allocation3 + $0x190] sm:$0xff]
          %v6025 = vld [vmem:[#allocation3 + $0x198] sm:$0xff]
          %v6026 = vld [vmem:[#allocation3 + $0x1a0] sm:$0xff]
          %v6027 = vld [vmem:[#allocation3 + $0x1a8] sm:$0xff]
          %v6028 = vld [vmem:[#allocation3 + $0x1b0] sm:$0xff]
          %v6029 = vld [vmem:[#allocation3 + $0x1b8] sm:$0xff]
          %v6030 = vld [vmem:[#allocation3 + $0x1c0] sm:$0xff]
          %v6031 = vld [vmem:[#allocation3 + $0x1c8] sm:$0xff]
          %v6032 = vld [vmem:[#allocation3 + $0x1d0] sm:$0xff]
          %v6033 = vld [vmem:[#allocation3 + $0x1d8] sm:$0xff]
          %v6034 = vld [vmem:[#allocation3 + $0x1e0] sm:$0xff]
          %v6035 = vld [vmem:[#allocation3 + $0x1e8] sm:$0xff]
          %v6036 = vld [vmem:[#allocation3 + $0x1f0] sm:$0xff]
          %v6037 = vld [vmem:[#allocation3 + $0x1f8] sm:$0xff]
          %v6038 = vld [vmem:[#allocation3 + $0x200] sm:$0xff]
          %v6039 = vld [vmem:[#allocation3 + $0x208] sm:$0xff]
          %v6040 = vld [vmem:[#allocation3 + $0x210] sm:$0xff]
          %v6041 = vld [vmem:[#allocation3 + $0x218] sm:$0xff]
          %v6042 = vld [vmem:[#allocation3 + $0x220] sm:$0xff]
          %v6043 = vld [vmem:[#allocation3 + $0x228] sm:$0xff]
          %v6044 = vld [vmem:[#allocation3 + $0x230] sm:$0xff]
          %v6045 = vld [vmem:[#allocation3 + $0x238] sm:$0xff]
          %v6046 = vld [vmem:[#allocation3 + $0x240] sm:$0xff]
          %v6047 = vld [vmem:[#allocation3 + $0x248] sm:$0xff]
          %v6048 = vld [vmem:[#allocation3 + $0x250] sm:$0xff]
          %v6049 = vld [vmem:[#allocation3 + $0x258] sm:$0xff]
          %v6050 = vld [vmem:[#allocation3 + $0x260] sm:$0xff]
          %v6051 = vld [vmem:[#allocation3 + $0x268] sm:$0xff]
          %v6052 = vld [vmem:[#allocation3 + $0x270] sm:$0xff]
          %v6053 = vld [vmem:[#allocation3 + $0x278] sm:$0xff]
          %v6054 = vld [vmem:[#allocation3 + $0x280] sm:$0xff]
          %v6055 = vld [vmem:[#allocation3 + $0x288] sm:$0xff]
          %v6056 = vld [vmem:[#allocation3 + $0x290] sm:$0xff]
          %v6057 = vld [vmem:[#allocation3 + $0x298] sm:$0xff]
          %v6058 = vld [vmem:[#allocation3 + $0x2a0] sm:$0xff]
          %v6059 = vld [vmem:[#allocation3 + $0x2a8] sm:$0xff]
          %v6060 = vld [vmem:[#allocation3 + $0x2b0] sm:$0xff]
          %v6061 = vld [vmem:[#allocation3 + $0x2b8] sm:$0xff]
          %v6062 = vld [vmem:[#allocation3 + $0x2c0] sm:$0xff]
          %v6063 = vld [vmem:[#allocation3 + $0x2c8] sm:$0xff]
          %v6064 = vld [vmem:[#allocation3 + $0x2d0] sm:$0xff]
          %v6065 = vld [vmem:[#allocation3 + $0x2d8] sm:$0xff]
          %v6066 = vld [vmem:[#allocation3 + $0x2e0] sm:$0xff]
          %v6067 = vld [vmem:[#allocation3 + $0x2e8] sm:$0xff]
          %v6068 = vld [vmem:[#allocation3 + $0x2f0] sm:$0xff]
          %v6069 = vld [vmem:[#allocation3 + $0x2f8] sm:$0xff]
          %v6070 = vld [vmem:[#allocation3 + $0x300] sm:$0xff]
          %v6071 = vld [vmem:[#allocation3 + $0x308] sm:$0xff]
          %v6072 = vld [vmem:[#allocation3 + $0x310] sm:$0xff]
          %v6073 = vld [vmem:[#allocation3 + $0x318] sm:$0xff]
          %v6074 = vld [vmem:[#allocation3 + $0x320] sm:$0xff]
          %v6075 = vld [vmem:[#allocation3 + $0x328] sm:$0xff]
          %v6076 = vld [vmem:[#allocation3 + $0x330] sm:$0xff]
          %v6077 = vld [vmem:[#allocation3 + $0x338] sm:$0xff]
          %v6078 = vld [vmem:[#allocation3 + $0x340] sm:$0xff]
          %v6079 = vld [vmem:[#allocation3 + $0x348] sm:$0xff]
          %v6080 = vld [vmem:[#allocation3 + $0x350] sm:$0xff]
          %v6081 = vld [vmem:[#allocation3 + $0x358] sm:$0xff]
          %v6082 = vld [vmem:[#allocation3 + $0x360] sm:$0xff]
          %v6083 = vld [vmem:[#allocation3 + $0x368] sm:$0xff]
          %v6084 = vld [vmem:[#allocation3 + $0x370] sm:$0xff]
          %v6085 = vld [vmem:[#allocation3 + $0x378] sm:$0xff]
          %v6086 = vld [vmem:[#allocation3 + $0x380] sm:$0xff]
          %v6087 = vld [vmem:[#allocation3 + $0x388] sm:$0xff]
          %v6088 = vld [vmem:[#allocation3 + $0x390] sm:$0xff]
          %v6089 = vld [vmem:[#allocation3 + $0x398] sm:$0xff]
          %v6090 = vld [vmem:[#allocation3 + $0x3a0] sm:$0xff]
          %v6091 = vld [vmem:[#allocation3 + $0x3a8] sm:$0xff]
          %v6092 = vld [vmem:[#allocation3 + $0x3b0] sm:$0xff]
          %v6093 = vld [vmem:[#allocation3 + $0x3b8] sm:$0xff]
          %v6094 = vld [vmem:[#allocation3 + $0x3c0] sm:$0xff]
          %v6095 = vld [vmem:[#allocation3 + $0x3c8] sm:$0xff]
          %v6096 = vld [vmem:[#allocation3 + $0x3d0] sm:$0xff]
          %v6097 = vld [vmem:[#allocation3 + $0x3d8] sm:$0xff]
          %v6098 = vld [vmem:[#allocation3 + $0x3e0] sm:$0xff]
          %v6099 = vld [vmem:[#allocation3 + $0x3e8] sm:$0xff]
          %v6100 = vld [vmem:[#allocation3 + $0x3f0] sm:$0xff]
          %v6101 = vld [vmem:[#allocation3 + $0x3f8] sm:$0xff]
          %v6102 = vld [vmem:[#allocation3 + $0x400] sm:$0xff]
          %v6103 = vld [vmem:[#allocation3 + $0x408] sm:$0xff]
          %v6104 = vld [vmem:[#allocation3 + $0x410] sm:$0xff]
          %v6105 = vld [vmem:[#allocation3 + $0x418] sm:$0xff]
          %v6106 = vld [vmem:[#allocation3 + $0x420] sm:$0xff]
          %v6107 = vld [vmem:[#allocation3 + $0x428] sm:$0xff]
          %v6108 = vld [vmem:[#allocation3 + $0x430] sm:$0xff]
          %v6109 = vld [vmem:[#allocation3 + $0x438] sm:$0xff]
          %v6110 = vld [vmem:[#allocation3 + $0x440] sm:$0xff]
          %v6111 = vld [vmem:[#allocation3 + $0x448] sm:$0xff]
          %v6112 = vld [vmem:[#allocation3 + $0x450] sm:$0xff]
          %v6113 = vld [vmem:[#allocation3 + $0x458] sm:$0xff]
          %v6114 = vld [vmem:[#allocation3 + $0x460] sm:$0xff]
          %v6115 = vld [vmem:[#allocation3 + $0x468] sm:$0xff]
          %v6116 = vld [vmem:[#allocation3 + $0x470] sm:$0xff]
          %v6117 = vld [vmem:[#allocation3 + $0x478] sm:$0xff]
          %v6118 = vld [vmem:[#allocation3 + $0x480] sm:$0xff]
          %v6119 = vld [vmem:[#allocation3 + $0x488] sm:$0xff]
          %v6120 = vld [vmem:[#allocation3 + $0x490] sm:$0xff]
          %v6121 = vld [vmem:[#allocation3 + $0x498] sm:$0xff]
          %v6122 = vld [vmem:[#allocation3 + $0x4a0] sm:$0xff]
          %v6123 = vld [vmem:[#allocation3 + $0x4a8] sm:$0xff]
          %v6124 = vld [vmem:[#allocation3 + $0x4b0] sm:$0xff]
          %v6125 = vld [vmem:[#allocation3 + $0x4b8] sm:$0xff]
          %v6126 = vld [vmem:[#allocation3 + $0x4c0] sm:$0xff]
          %v6127 = vld [vmem:[#allocation3 + $0x4c8] sm:$0xff]
          %v6128 = vld [vmem:[#allocation3 + $0x4d0] sm:$0xff]
          %v6129 = vld [vmem:[#allocation3 + $0x4d8] sm:$0xff]
          %v6130 = vld [vmem:[#allocation3 + $0x4e0] sm:$0xff]
          %v6131 = vld [vmem:[#allocation3 + $0x4e8] sm:$0xff]
          %v6132 = vld [vmem:[#allocation3 + $0x4f0] sm:$0xff]
          %v6133 = vld [vmem:[#allocation3 + $0x4f8] sm:$0xff]
          %v6134 = vld [vmem:[#allocation3 + $0x500] sm:$0xff]
          %v6135 = vld [vmem:[#allocation3 + $0x508] sm:$0xff]
          %v6136 = vld [vmem:[#allocation3 + $0x510] sm:$0xff]
          %v6137 = vld [vmem:[#allocation3 + $0x518] sm:$0xff]
          %v6138 = vld [vmem:[#allocation3 + $0x520] sm:$0xff]
          %v6139 = vld [vmem:[#allocation3 + $0x528] sm:$0xff]
          %v6140 = vld [vmem:[#allocation3 + $0x530] sm:$0xff]
          %v6141 = vld [vmem:[#allocation3 + $0x538] sm:$0xff]
          %v6142 = vld [vmem:[#allocation3 + $0x540] sm:$0xff]
          %v6143 = vld [vmem:[#allocation3 + $0x548] sm:$0xff]
          %v6144 = vld [vmem:[#allocation3 + $0x550] sm:$0xff]
          %v6145 = vld [vmem:[#allocation3 + $0x558] sm:$0xff]
          %v6146 = vld [vmem:[#allocation3 + $0x560] sm:$0xff]
          %v6147 = vld [vmem:[#allocation3 + $0x568] sm:$0xff]
          %v6148 = vld [vmem:[#allocation3 + $0x570] sm:$0xff]
          %v6149 = vld [vmem:[#allocation3 + $0x578] sm:$0xff]
          %v6150 = vld [vmem:[#allocation3 + $0x580] sm:$0xff]
          %v6151 = vld [vmem:[#allocation3 + $0x588] sm:$0xff]
          %v6152 = vld [vmem:[#allocation3 + $0x590] sm:$0xff]
          %v6153 = vld [vmem:[#allocation3 + $0x598] sm:$0xff]
          %v6154 = vld [vmem:[#allocation3 + $0x5a0] sm:$0xff]
          %v6155 = vld [vmem:[#allocation3 + $0x5a8] sm:$0xff]
          %v6156 = vld [vmem:[#allocation3 + $0x5b0] sm:$0xff]
          %v6157 = vld [vmem:[#allocation3 + $0x5b8] sm:$0xff]
          %v6158 = vld [vmem:[#allocation3 + $0x5c0] sm:$0xff]
          %v6159 = vld [vmem:[#allocation3 + $0x5c8] sm:$0xff]
          %v6160 = vld [vmem:[#allocation3 + $0x5d0] sm:$0xff]
          %v6161 = vld [vmem:[#allocation3 + $0x5d8] sm:$0xff]
          %v6162 = vld [vmem:[#allocation3 + $0x5e0] sm:$0xff]
          %v6163 = vld [vmem:[#allocation3 + $0x5e8] sm:$0xff]
          %v6164 = vld [vmem:[#allocation3 + $0x5f0] sm:$0xff]
          %v6165 = vld [vmem:[#allocation3 + $0x5f8] sm:$0xff]
          %v6166 = vld [vmem:[#allocation3 + $0x600] sm:$0xff]
          %v6167 = vld [vmem:[#allocation3 + $0x608] sm:$0xff]
          %v6168 = vld [vmem:[#allocation3 + $0x610] sm:$0xff]
          %v6169 = vld [vmem:[#allocation3 + $0x618] sm:$0xff]
          %v6170 = vld [vmem:[#allocation3 + $0x620] sm:$0xff]
          %v6171 = vld [vmem:[#allocation3 + $0x628] sm:$0xff]
          %v6172 = vld [vmem:[#allocation3 + $0x630] sm:$0xff]
          %v6173 = vld [vmem:[#allocation3 + $0x638] sm:$0xff]
          %v6175 = vlaneseq
          %v6176 = vshrl.u32 %v6175, 7
          %v6177 = vsub.s32 0, %v6176
          %v6178 = vrot.slane %v4175, %v6177
          %v6179 = vlaneseq
          %v6180 = vshrl.u32 %v6179, 7
          %v6181 = vsub.s32 1, %v6180
          %v6182 = vrot.slane %v4175, %v6181
          %v6183 = vlaneseq
          %v6184 = vshrl.u32 %v6183, 7
          %v6185 = vsub.s32 2, %v6184
          %v6186 = vrot.slane %v4175, %v6185
          %v6187 = vlaneseq
          %v6188 = vshrl.u32 %v6187, 7
          %v6189 = vsub.s32 3, %v6188
          %v6190 = vrot.slane %v4175, %v6189
          %v6196 = vcombine.high %v5973, %v5973
          %v6198 = vunpack.c.l.s4 1983009808
          %v6199 = vunpack.c.0.s8 %v6198
          %v6200 = vlaneseq
          %v6201 = vshrl.u32 %v6200, 7
          %v6202 = vsub.s32 %v6199, %v6201
          %v6203 = vrot.slane %v5973, %v6202
          %v6205 = vunpack.c.l.s4 1983009808
          %v6206 = vunpack.c.0.s8 %v6205
          %v6207 = vlaneseq
          %v6208 = vshrl.u32 %v6207, 7
          %v6209 = vsub.s32 %v6206, %v6208
          %v6210 = vrot.slane %v6196, %v6209
          %v6211 = vcombine.high %v6203, %v6203
          %v6212 = vcombine.high %v6210, %v6210
          %v6216 = vsel %vm2114, %v6212, 0
          %6218 = vmatprep.subr.mxu0 %v6035
          %6219 = vmatpush1.msra.mxu0 %v6034
          %6220 = vmatprep.subr.mxu0 %v6031
          %6221 = vmatpush1.msra.mxu0 %v6030
          %6222 = vmatprep.subr.mxu0 %v6027
          %6223 = vmatpush1.msra.mxu0 %v6026
          %6224 = vmatprep.subr.mxu0 %v6023
          %6225 = vmatpush1.msra.mxu0 %v6022
          %6226 = vmatprep.subr.mxu0 %v6019
          %6227 = vmatpush1.msra.mxu0 %v6018
          %6228 = vmatprep.subr.mxu0 %v6015
          %6229 = vmatpush1.msra.mxu0 %v6014
          %6230 = vmatprep.subr.mxu0 %v6011
          %6231 = vmatpush1.msra.mxu0 %v6010
          %6232 = vmatprep.subr.mxu0 %v6007
          %6233 = vmatpush1.msra.mxu0 %v6006
          %6234 = vmatprep.subr.mxu0 %v6003
          %6235 = vmatpush1.msra.mxu0 %v6002
          %6236 = vmatprep.subr.mxu0 %v5999
          %6237 = vmatpush1.msra.mxu0 %v5998
          %6238 = vmatprep.subr.mxu0 %v5995
          %6239 = vmatpush1.msra.mxu0 %v5994
          %6240 = vmatprep.subr.mxu0 %v5991
          %6241 = vmatpush1.msra.mxu0 %v5990
          %6242 = vmatprep.subr.mxu0 %v5987
          %6243 = vmatpush1.msra.mxu0 %v5986
          %6244 = vmatprep.subr.mxu0 %v5983
          %6245 = vmatpush1.msra.mxu0 %v5982
          %6246 = vmatprep.subr.mxu0 %v5979
          %6247 = vmatpush1.msra.mxu0 %v5978
          %6248 = vmatprep.subr.mxu0 %v5975
          %6249 = vmatpush1.msra.mxu0 %v5974
          %6250 = vmatprep.subr.mxu0 %v6099
          %6251 = vmatpush2.msra.mxu0 %v6098
          %6252 = vmatprep.subr.mxu0 %v6095
          %6253 = vmatpush2.msra.mxu0 %v6094
          %6254 = vmatprep.subr.mxu0 %v6091
          %6255 = vmatpush2.msra.mxu0 %v6090
          %6256 = vmatprep.subr.mxu0 %v6087
          %6257 = vmatpush2.msra.mxu0 %v6086
          %6258 = vmatprep.subr.mxu0 %v6083
          %6259 = vmatpush2.msra.mxu0 %v6082
          %6260 = vmatprep.subr.mxu0 %v6079
          %6261 = vmatpush2.msra.mxu0 %v6078
          %6262 = vmatprep.subr.mxu0 %v6075
          %6263 = vmatpush2.msra.mxu0 %v6074
          %6264 = vmatprep.subr.mxu0 %v6071
          %6265 = vmatpush2.msra.mxu0 %v6070
          %6266 = vmatprep.subr.mxu0 %v6067
          %6267 = vmatpush2.msra.mxu0 %v6066
          %6268 = vmatprep.subr.mxu0 %v6063
          %6269 = vmatpush2.msra.mxu0 %v6062
          %6270 = vmatprep.subr.mxu0 %v6059
          %6271 = vmatpush2.msra.mxu0 %v6058
          %6272 = vmatprep.subr.mxu0 %v6055
          %6273 = vmatpush2.msra.mxu0 %v6054
          %6274 = vmatprep.subr.mxu0 %v6051
          %6275 = vmatpush2.msra.mxu0 %v6050
          %6276 = vmatprep.subr.mxu0 %v6047
          %6277 = vmatpush2.msra.mxu0 %v6046
          %6278 = vmatprep.subr.mxu0 %v6043
          %6279 = vmatpush2.msra.mxu0 %v6042
          %6280 = vmatprep.subr.mxu0 %v6039
          %6281 = vmatpush2.msra.mxu0 %v6038
          %6282 = vmatprep.mubr.f32.mxu0 %v6211
          %6283 = vmatmul.mubr.f32.gmra.mxu0 %v6203
          %v6284 = vpop.f32.mrf.mxu0
          %v6285 = vadd.f32 %v6178, %v6284
          %v6286 = vpop.f32.mrf.mxu0
          %v6287 = vadd.f32 %v6182, %v6286
          %6288 = vdwg.mxu0
          %6289 = vmatprep.subr.mxu0 %v6163
          %6290 = vmatpush1.msra.mxu0 %v6162
          %6291 = vmatprep.subr.mxu0 %v6159
          %6292 = vmatpush1.msra.mxu0 %v6158
          %6293 = vmatprep.subr.mxu0 %v6155
          %6294 = vmatpush1.msra.mxu0 %v6154
          %6295 = vmatprep.subr.mxu0 %v6151
          %6296 = vmatpush1.msra.mxu0 %v6150
          %6297 = vmatprep.subr.mxu0 %v6147
          %6298 = vmatpush1.msra.mxu0 %v6146
          %6299 = vmatprep.subr.mxu0 %v6143
          %6300 = vmatpush1.msra.mxu0 %v6142
          %6301 = vmatprep.subr.mxu0 %v6139
          %6302 = vmatpush1.msra.mxu0 %v6138
          %6303 = vmatprep.subr.mxu0 %v6135
          %6304 = vmatpush1.msra.mxu0 %v6134
          %6305 = vmatprep.subr.mxu0 %v6131
          %6306 = vmatpush1.msra.mxu0 %v6130
          %6307 = vmatprep.subr.mxu0 %v6127
          %6308 = vmatpush1.msra.mxu0 %v6126
          %6309 = vmatprep.subr.mxu0 %v6123
          %6310 = vmatpush1.msra.mxu0 %v6122
          %6311 = vmatprep.subr.mxu0 %v6119
          %6312 = vmatpush1.msra.mxu0 %v6118
          %6313 = vmatprep.subr.mxu0 %v6115
          %6314 = vmatpush1.msra.mxu0 %v6114
          %6315 = vmatprep.subr.mxu0 %v6111
          %6316 = vmatpush1.msra.mxu0 %v6110
          %6317 = vmatprep.subr.mxu0 %v6107
          %6318 = vmatpush1.msra.mxu0 %v6106
          %6319 = vmatprep.subr.mxu0 %v6103
          %6320 = vmatpush1.msra.mxu0 %v6102
          %6321 = vmatprep.subr.mxu0 0.0
          %6322 = vmatpush2.msra.mxu0 0.0
          %6323 = vmatprep.subr.mxu0 0.0
          %6324 = vmatpush2.msra.mxu0 0.0
          %6325 = vmatprep.subr.mxu0 0.0
          %6326 = vmatpush2.msra.mxu0 0.0
          %6327 = vmatprep.subr.mxu0 0.0
          %6328 = vmatpush2.msra.mxu0 0.0
          %6329 = vmatprep.subr.mxu0 0.0
          %6330 = vmatpush2.msra.mxu0 0.0
          %6331 = vmatprep.subr.mxu0 0.0
          %6332 = vmatpush2.msra.mxu0 0.0
          %6333 = vmatprep.subr.mxu0 0.0
          %6334 = vmatpush2.msra.mxu0 0.0
          %6335 = vmatprep.subr.mxu0 0.0
          %6336 = vmatpush2.msra.mxu0 0.0
          %6337 = vmatprep.subr.mxu0 0.0
          %6338 = vmatpush2.msra.mxu0 0.0
          %6339 = vmatprep.subr.mxu0 0.0
          %6340 = vmatpush2.msra.mxu0 0.0
          %6341 = vmatprep.subr.mxu0 0.0
          %6342 = vmatpush2.msra.mxu0 0.0
          %6343 = vmatprep.subr.mxu0 0.0
          %6344 = vmatpush2.msra.mxu0 0.0
          %6345 = vmatprep.subr.mxu0 0.0
          %6346 = vmatpush2.msra.mxu0 0.0
          %6347 = vmatprep.subr.mxu0 0.0
          %6348 = vmatpush2.msra.mxu0 0.0
          %6349 = vmatprep.subr.mxu0 %v6171
          %6350 = vmatpush2.msra.mxu0 %v6170
          %6351 = vmatprep.subr.mxu0 %v6167
          %6352 = vmatpush2.msra.mxu0 %v6166
          %6353 = vmatprep.mubr.f32.mxu0 %v6216
          %6354 = vmatmul.mubr.f32.gmra.mxu0 %v6210
          %v6355 = vpop.f32.mrf.mxu0
          %v6356 = vadd.f32 %v6285, %v6355
          %v6357 = vpop.f32.mrf.mxu0
          %v6358 = vadd.f32 %v6287, %v6357
          %6359 = vdwg.mxu0
          %6360 = vmatprep.subr.mxu0 %v6037
          %6361 = vmatpush1.msra.mxu0 %v6036
          %6362 = vmatprep.subr.mxu0 %v6033
          %6363 = vmatpush1.msra.mxu0 %v6032
          %6364 = vmatprep.subr.mxu0 %v6029
          %6365 = vmatpush1.msra.mxu0 %v6028
          %6366 = vmatprep.subr.mxu0 %v6025
          %6367 = vmatpush1.msra.mxu0 %v6024
          %6368 = vmatprep.subr.mxu0 %v6021
          %6369 = vmatpush1.msra.mxu0 %v6020
          %6370 = vmatprep.subr.mxu0 %v6017
          %6371 = vmatpush1.msra.mxu0 %v6016
          %6372 = vmatprep.subr.mxu0 %v6013
          %6373 = vmatpush1.msra.mxu0 %v6012
          %6374 = vmatprep.subr.mxu0 %v6009
          %6375 = vmatpush1.msra.mxu0 %v6008
          %6376 = vmatprep.subr.mxu0 %v6005
          %6377 = vmatpush1.msra.mxu0 %v6004
          %6378 = vmatprep.subr.mxu0 %v6001
          %6379 = vmatpush1.msra.mxu0 %v6000
          %6380 = vmatprep.subr.mxu0 %v5997
          %6381 = vmatpush1.msra.mxu0 %v5996
          %6382 = vmatprep.subr.mxu0 %v5993
          %6383 = vmatpush1.msra.mxu0 %v5992
          %6384 = vmatprep.subr.mxu0 %v5989
          %6385 = vmatpush1.msra.mxu0 %v5988
          %6386 = vmatprep.subr.mxu0 %v5985
          %6387 = vmatpush1.msra.mxu0 %v5984
          %6388 = vmatprep.subr.mxu0 %v5981
          %6389 = vmatpush1.msra.mxu0 %v5980
          %6390 = vmatprep.subr.mxu0 %v5977
          %6391 = vmatpush1.msra.mxu0 %v5976
          %6392 = vmatprep.subr.mxu0 %v6101
          %6393 = vmatpush2.msra.mxu0 %v6100
          %6394 = vmatprep.subr.mxu0 %v6097
          %6395 = vmatpush2.msra.mxu0 %v6096
          %6396 = vmatprep.subr.mxu0 %v6093
          %6397 = vmatpush2.msra.mxu0 %v6092
          %6398 = vmatprep.subr.mxu0 %v6089
          %6399 = vmatpush2.msra.mxu0 %v6088
          %6400 = vmatprep.subr.mxu0 %v6085
          %6401 = vmatpush2.msra.mxu0 %v6084
          %6402 = vmatprep.subr.mxu0 %v6081
          %6403 = vmatpush2.msra.mxu0 %v6080
          %6404 = vmatprep.subr.mxu0 %v6077
          %6405 = vmatpush2.msra.mxu0 %v6076
          %6406 = vmatprep.subr.mxu0 %v6073
          %6407 = vmatpush2.msra.mxu0 %v6072
          %6408 = vmatprep.subr.mxu0 %v6069
          %6409 = vmatpush2.msra.mxu0 %v6068
          %6410 = vmatprep.subr.mxu0 %v6065
          %6411 = vmatpush2.msra.mxu0 %v6064
          %6412 = vmatprep.subr.mxu0 %v6061
          %6413 = vmatpush2.msra.mxu0 %v6060
          %6414 = vmatprep.subr.mxu0 %v6057
          %6415 = vmatpush2.msra.mxu0 %v6056
          %6416 = vmatprep.subr.mxu0 %v6053
          %6417 = vmatpush2.msra.mxu0 %v6052
          %6418 = vmatprep.subr.mxu0 %v6049
          %6419 = vmatpush2.msra.mxu0 %v6048
          %6420 = vmatprep.subr.mxu0 %v6045
          %6421 = vmatpush2.msra.mxu0 %v6044
          %6422 = vmatprep.subr.mxu0 %v6041
          %6423 = vmatpush2.msra.mxu0 %v6040
          %6424 = vmatprep.mubr.f32.mxu0 %v6211
          %6425 = vmatmul.mubr.f32.gmra.mxu0 %v6203
          %v6426 = vpop.f32.mrf.mxu0
          %v6427 = vadd.f32 %v6186, %v6426
          %v6428 = vpop.f32.mrf.mxu0
          %v6429 = vadd.f32 %v6190, %v6428
          %6430 = vdwg.mxu0
          %6431 = vmatprep.subr.mxu0 %v6165
          %6432 = vmatpush1.msra.mxu0 %v6164
          %6433 = vmatprep.subr.mxu0 %v6161
          %6434 = vmatpush1.msra.mxu0 %v6160
          %6435 = vmatprep.subr.mxu0 %v6157
          %6436 = vmatpush1.msra.mxu0 %v6156
          %6437 = vmatprep.subr.mxu0 %v6153
          %6438 = vmatpush1.msra.mxu0 %v6152
          %6439 = vmatprep.subr.mxu0 %v6149
          %6440 = vmatpush1.msra.mxu0 %v6148
          %6441 = vmatprep.subr.mxu0 %v6145
          %6442 = vmatpush1.msra.mxu0 %v6144
          %6443 = vmatprep.subr.mxu0 %v6141
          %6444 = vmatpush1.msra.mxu0 %v6140
          %6445 = vmatprep.subr.mxu0 %v6137
          %6446 = vmatpush1.msra.mxu0 %v6136
          %6447 = vmatprep.subr.mxu0 %v6133
          %6448 = vmatpush1.msra.mxu0 %v6132
          %6449 = vmatprep.subr.mxu0 %v6129
          %6450 = vmatpush1.msra.mxu0 %v6128
          %6451 = vmatprep.subr.mxu0 %v6125
          %6452 = vmatpush1.msra.mxu0 %v6124
          %6453 = vmatprep.subr.mxu0 %v6121
          %6454 = vmatpush1.msra.mxu0 %v6120
          %6455 = vmatprep.subr.mxu0 %v6117
          %6456 = vmatpush1.msra.mxu0 %v6116
          %6457 = vmatprep.subr.mxu0 %v6113
          %6458 = vmatpush1.msra.mxu0 %v6112
          %6459 = vmatprep.subr.mxu0 %v6109
          %6460 = vmatpush1.msra.mxu0 %v6108
          %6461 = vmatprep.subr.mxu0 %v6105
          %6462 = vmatpush1.msra.mxu0 %v6104
          %6463 = vmatprep.subr.mxu0 0.0
          %6464 = vmatpush2.msra.mxu0 0.0
          %6465 = vmatprep.subr.mxu0 0.0
          %6466 = vmatpush2.msra.mxu0 0.0
          %6467 = vmatprep.subr.mxu0 0.0
          %6468 = vmatpush2.msra.mxu0 0.0
          %6469 = vmatprep.subr.mxu0 0.0
          %6470 = vmatpush2.msra.mxu0 0.0
          %6471 = vmatprep.subr.mxu0 0.0
          %6472 = vmatpush2.msra.mxu0 0.0
          %6473 = vmatprep.subr.mxu0 0.0
          %6474 = vmatpush2.msra.mxu0 0.0
          %6475 = vmatprep.subr.mxu0 0.0
          %6476 = vmatpush2.msra.mxu0 0.0
          %6477 = vmatprep.subr.mxu0 0.0
          %6478 = vmatpush2.msra.mxu0 0.0
          %6479 = vmatprep.subr.mxu0 0.0
          %6480 = vmatpush2.msra.mxu0 0.0
          %6481 = vmatprep.subr.mxu0 0.0
          %6482 = vmatpush2.msra.mxu0 0.0
          %6483 = vmatprep.subr.mxu0 0.0
          %6484 = vmatpush2.msra.mxu0 0.0
          %6485 = vmatprep.subr.mxu0 0.0
          %6486 = vmatpush2.msra.mxu0 0.0
          %6487 = vmatprep.subr.mxu0 0.0
          %6488 = vmatpush2.msra.mxu0 0.0
          %6489 = vmatprep.subr.mxu0 0.0
          %6490 = vmatpush2.msra.mxu0 0.0
          %6491 = vmatprep.subr.mxu0 %v6173
          %6492 = vmatpush2.msra.mxu0 %v6172
          %6493 = vmatprep.subr.mxu0 %v6169
          %6494 = vmatpush2.msra.mxu0 %v6168
          %6495 = vmatprep.mubr.f32.mxu0 %v6216
          %6496 = vmatmul.mubr.f32.gmra.mxu0 %v6210
          %v6497 = vpop.f32.mrf.mxu0
          %v6498 = vadd.f32 %v6427, %v6497
          %v6499 = vpop.f32.mrf.mxu0
          %v6500 = vadd.f32 %v6429, %v6499
          %6501 = vdwg.mxu0
          %v6502 = vmax.f32 %v6356, 0.0
          %v6503 = vmax.f32 %v6358, 0.0
          %v6504 = vmax.f32 %v6498, 0.0
          %v6505 = vmax.f32 %v6500, 0.0
          %v6507 = vlaneseq
          %v6508 = vshrl.u32 %v6507, 7
          %v6509 = vsub.s32 0, %v6508
          %v6510 = vrot.slane %v4281, %v6509
          %v6513 = vsel %vm2114, %v6505, 0
          %6515 = vmatprep.subr.mxu0 0.0
          %6516 = vmatpush1.msra.mxu0 %v5332
          %6517 = vmatprep.subr.mxu0 0.0
          %6518 = vmatpush1.msra.mxu0 %v5331
          %6519 = vmatprep.subr.mxu0 0.0
          %6520 = vmatpush1.msra.mxu0 %v5330
          %6521 = vmatprep.subr.mxu0 0.0
          %6522 = vmatpush1.msra.mxu0 %v5329
          %6523 = vmatprep.subr.mxu0 0.0
          %6524 = vmatpush1.msra.mxu0 %v5328
          %6525 = vmatprep.subr.mxu0 0.0
          %6526 = vmatpush1.msra.mxu0 %v5327
          %6527 = vmatprep.subr.mxu0 0.0
          %6528 = vmatpush1.msra.mxu0 %v5326
          %6529 = vmatprep.subr.mxu0 0.0
          %6530 = vmatpush1.msra.mxu0 %v5325
          %6531 = vmatprep.subr.mxu0 0.0
          %6532 = vmatpush1.msra.mxu0 %v5324
          %6533 = vmatprep.subr.mxu0 0.0
          %6534 = vmatpush1.msra.mxu0 %v5323
          %6535 = vmatprep.subr.mxu0 0.0
          %6536 = vmatpush1.msra.mxu0 %v5322
          %6537 = vmatprep.subr.mxu0 0.0
          %6538 = vmatpush1.msra.mxu0 %v5321
          %6539 = vmatprep.subr.mxu0 0.0
          %6540 = vmatpush1.msra.mxu0 %v5320
          %6541 = vmatprep.subr.mxu0 0.0
          %6542 = vmatpush1.msra.mxu0 %v5319
          %6543 = vmatprep.subr.mxu0 0.0
          %6544 = vmatpush1.msra.mxu0 %v5318
          %6545 = vmatprep.subr.mxu0 0.0
          %6546 = vmatpush1.msra.mxu0 %v5317
          %6547 = vmatprep.subr.mxu0 0.0
          %6548 = vmatpush2.msra.mxu0 %v5348
          %6549 = vmatprep.subr.mxu0 0.0
          %6550 = vmatpush2.msra.mxu0 %v5347
          %6551 = vmatprep.subr.mxu0 0.0
          %6552 = vmatpush2.msra.mxu0 %v5346
          %6553 = vmatprep.subr.mxu0 0.0
          %6554 = vmatpush2.msra.mxu0 %v5345
          %6555 = vmatprep.subr.mxu0 0.0
          %6556 = vmatpush2.msra.mxu0 %v5344
          %6557 = vmatprep.subr.mxu0 0.0
          %6558 = vmatpush2.msra.mxu0 %v5343
          %6559 = vmatprep.subr.mxu0 0.0
          %6560 = vmatpush2.msra.mxu0 %v5342
          %6561 = vmatprep.subr.mxu0 0.0
          %6562 = vmatpush2.msra.mxu0 %v5341
          %6563 = vmatprep.subr.mxu0 0.0
          %6564 = vmatpush2.msra.mxu0 %v5340
          %6565 = vmatprep.subr.mxu0 0.0
          %6566 = vmatpush2.msra.mxu0 %v5339
          %6567 = vmatprep.subr.mxu0 0.0
          %6568 = vmatpush2.msra.mxu0 %v5338
          %6569 = vmatprep.subr.mxu0 0.0
          %6570 = vmatpush2.msra.mxu0 %v5337
          %6571 = vmatprep.subr.mxu0 0.0
          %6572 = vmatpush2.msra.mxu0 %v5336
          %6573 = vmatprep.subr.mxu0 0.0
          %6574 = vmatpush2.msra.mxu0 %v5335
          %6575 = vmatprep.subr.mxu0 0.0
          %6576 = vmatpush2.msra.mxu0 %v5334
          %6577 = vmatprep.subr.mxu0 0.0
          %6578 = vmatpush2.msra.mxu0 %v5333
          %6579 = vmatprep.mubr.f32.mxu0 %v6503
          %6580 = vmatmul.mubr.f32.gmra.mxu0 %v6502
          %v6581 = vpop.f32.mrf.mxu0
          %v6582 = vadd.f32 %v6510, %v6581
          %v6583 = vpop.f32.mrf.mxu0
          %6584 = vdwg.mxu0
          %6585 = vmatprep.subr.mxu0 0.0
          %6586 = vmatpush1.msra.mxu0 %v5364
          %6587 = vmatprep.subr.mxu0 0.0
          %6588 = vmatpush1.msra.mxu0 %v5363
          %6589 = vmatprep.subr.mxu0 0.0
          %6590 = vmatpush1.msra.mxu0 %v5362
          %6591 = vmatprep.subr.mxu0 0.0
          %6592 = vmatpush1.msra.mxu0 %v5361
          %6593 = vmatprep.subr.mxu0 0.0
          %6594 = vmatpush1.msra.mxu0 %v5360
          %6595 = vmatprep.subr.mxu0 0.0
          %6596 = vmatpush1.msra.mxu0 %v5359
          %6597 = vmatprep.subr.mxu0 0.0
          %6598 = vmatpush1.msra.mxu0 %v5358
          %6599 = vmatprep.subr.mxu0 0.0
          %6600 = vmatpush1.msra.mxu0 %v5357
          %6601 = vmatprep.subr.mxu0 0.0
          %6602 = vmatpush1.msra.mxu0 %v5356
          %6603 = vmatprep.subr.mxu0 0.0
          %6604 = vmatpush1.msra.mxu0 %v5355
          %6605 = vmatprep.subr.mxu0 0.0
          %6606 = vmatpush1.msra.mxu0 %v5354
          %6607 = vmatprep.subr.mxu0 0.0
          %6608 = vmatpush1.msra.mxu0 %v5353
          %6609 = vmatprep.subr.mxu0 0.0
          %6610 = vmatpush1.msra.mxu0 %v5352
          %6611 = vmatprep.subr.mxu0 0.0
          %6612 = vmatpush1.msra.mxu0 %v5351
          %6613 = vmatprep.subr.mxu0 0.0
          %6614 = vmatpush1.msra.mxu0 %v5350
          %6615 = vmatprep.subr.mxu0 0.0
          %6616 = vmatpush1.msra.mxu0 %v5349
          %6617 = vmatprep.subr.mxu0 0.0
          %6618 = vmatpush2.msra.mxu0 0.0
          %6619 = vmatprep.subr.mxu0 0.0
          %6620 = vmatpush2.msra.mxu0 0.0
          %6621 = vmatprep.subr.mxu0 0.0
          %6622 = vmatpush2.msra.mxu0 0.0
          %6623 = vmatprep.subr.mxu0 0.0
          %6624 = vmatpush2.msra.mxu0 0.0
          %6625 = vmatprep.subr.mxu0 0.0
          %6626 = vmatpush2.msra.mxu0 0.0
          %6627 = vmatprep.subr.mxu0 0.0
          %6628 = vmatpush2.msra.mxu0 0.0
          %6629 = vmatprep.subr.mxu0 0.0
          %6630 = vmatpush2.msra.mxu0 0.0
          %6631 = vmatprep.subr.mxu0 0.0
          %6632 = vmatpush2.msra.mxu0 0.0
          %6633 = vmatprep.subr.mxu0 0.0
          %6634 = vmatpush2.msra.mxu0 0.0
          %6635 = vmatprep.subr.mxu0 0.0
          %6636 = vmatpush2.msra.mxu0 0.0
          %6637 = vmatprep.subr.mxu0 0.0
          %6638 = vmatpush2.msra.mxu0 0.0
          %6639 = vmatprep.subr.mxu0 0.0
          %6640 = vmatpush2.msra.mxu0 0.0
          %6641 = vmatprep.subr.mxu0 0.0
          %6642 = vmatpush2.msra.mxu0 0.0
          %6643 = vmatprep.subr.mxu0 0.0
          %6644 = vmatpush2.msra.mxu0 0.0
          %6645 = vmatprep.subr.mxu0 0.0
          %6646 = vmatpush2.msra.mxu0 %v5366
          %6647 = vmatprep.subr.mxu0 0.0
          %6648 = vmatpush2.msra.mxu0 %v5365
          %6649 = vmatprep.mubr.f32.mxu0 %v6513
          %6650 = vmatmul.mubr.f32.gmra.mxu0 %v6504
          %v6651 = vpop.f32.mrf.mxu0
          %v6652 = vadd.f32 %v6582, %v6651
          %v6653 = vpop.f32.mrf.mxu0
          %6654 = vdwg.mxu0
          %vm6655 = vcmask 74752
          %v6656 = vsel %vm6655, %v6652, -inf
          %6657 = vmax.xlane.f32.xlu0 %v6656
          %v6658 = vpop.xlane.xlu0 %6657
          %v6659 = vsub.f32 %v6652, %v6658
          %v6660 = vmul.f32 %v6659, 1.442695
          %v6661 = vpow.pop %v6660
          %v6662 = vsel %vm6655, %v6661, 0.0
          %6663 = vadd.xlane.f32.xlu0 %v6662
          %v6664 = vpop.xlane.xlu0 %6663
          %v6665 = vlog2.pop %v6664
          %v6666 = vmul.f32 %v6665, 0.6931472
          %v6667 = vadd.f32 %v6658, %v6666
          %v6668 = vsub.f32 %v6652, %v6667
          %6669 = vst.msk [vmem:[#allocation6] sm:$0x3] %vm6655, %v6668
          %v6670 = vld [vmem:[#allocation4] sm:$0xff]
          %v6671 = vld [vmem:[#allocation4 + $0x8] sm:$0xff]
          %v6672 = vld [vmem:[#allocation4 + $0x10] sm:$0xff]
          %v6673 = vld [vmem:[#allocation4 + $0x18] sm:$0xff]
          %v6674 = vld [vmem:[#allocation4 + $0x20] sm:$0xff]
          %v6675 = vld [vmem:[#allocation4 + $0x28] sm:$0xff]
          %v6676 = vld [vmem:[#allocation4 + $0x30] sm:$0xff]
          %v6677 = vld [vmem:[#allocation4 + $0x38] sm:$0xff]
          %v6678 = vld [vmem:[#allocation4 + $0x40] sm:$0xff]
          %v6679 = vld [vmem:[#allocation4 + $0x48] sm:$0xff]
          %v6680 = vld [vmem:[#allocation4 + $0x50] sm:$0xff]
          %v6681 = vld [vmem:[#allocation4 + $0x58] sm:$0xff]
          %v6682 = vld [vmem:[#allocation4 + $0x60] sm:$0xff]
          %v6683 = vld [vmem:[#allocation4 + $0x68] sm:$0xff]
          %v6684 = vld [vmem:[#allocation4 + $0x70] sm:$0xff]
          %v6685 = vld [vmem:[#allocation4 + $0x78] sm:$0xff]
          %v6686 = vld [vmem:[#allocation4 + $0x80] sm:$0xff]
          %v6687 = vld [vmem:[#allocation4 + $0x88] sm:$0xff]
          %v6688 = vld [vmem:[#allocation4 + $0x90] sm:$0xff]
          %v6689 = vld [vmem:[#allocation4 + $0x98] sm:$0xff]
          %v6690 = vld [vmem:[#allocation4 + $0xa0] sm:$0xff]
          %v6691 = vld [vmem:[#allocation4 + $0xa8] sm:$0xff]
          %v6692 = vld [vmem:[#allocation4 + $0xb0] sm:$0xff]
          %v6693 = vld [vmem:[#allocation4 + $0xb8] sm:$0xff]
          %v6694 = vld [vmem:[#allocation4 + $0xc0] sm:$0xff]
          %v6695 = vld [vmem:[#allocation4 + $0xc8] sm:$0xff]
          %v6696 = vld [vmem:[#allocation4 + $0xd0] sm:$0xff]
          %v6697 = vld [vmem:[#allocation4 + $0xd8] sm:$0xff]
          %v6698 = vld [vmem:[#allocation4 + $0xe0] sm:$0xff]
          %v6699 = vld [vmem:[#allocation4 + $0xe8] sm:$0xff]
          %v6700 = vld [vmem:[#allocation4 + $0xf0] sm:$0xff]
          %v6701 = vld [vmem:[#allocation4 + $0xf8] sm:$0xff]
          %v6702 = vld [vmem:[#allocation4 + $0x100] sm:$0xff]
          %v6703 = vld [vmem:[#allocation4 + $0x108] sm:$0xff]
          %v6704 = vld [vmem:[#allocation4 + $0x110] sm:$0xff]
          %v6705 = vld [vmem:[#allocation4 + $0x118] sm:$0xff]
          %v6706 = vld [vmem:[#allocation4 + $0x120] sm:$0xff]
          %v6707 = vld [vmem:[#allocation4 + $0x128] sm:$0xff]
          %v6708 = vld [vmem:[#allocation4 + $0x130] sm:$0xff]
          %v6709 = vld [vmem:[#allocation4 + $0x138] sm:$0xff]
          %v6710 = vld [vmem:[#allocation4 + $0x140] sm:$0xff]
          %v6711 = vld [vmem:[#allocation4 + $0x148] sm:$0xff]
          %v6712 = vld [vmem:[#allocation4 + $0x150] sm:$0xff]
          %v6713 = vld [vmem:[#allocation4 + $0x158] sm:$0xff]
          %v6714 = vld [vmem:[#allocation4 + $0x160] sm:$0xff]
          %v6715 = vld [vmem:[#allocation4 + $0x168] sm:$0xff]
          %v6716 = vld [vmem:[#allocation4 + $0x170] sm:$0xff]
          %v6717 = vld [vmem:[#allocation4 + $0x178] sm:$0xff]
          %v6718 = vld [vmem:[#allocation4 + $0x180] sm:$0xff]
          %v6719 = vld [vmem:[#allocation4 + $0x188] sm:$0xff]
          %v6720 = vld [vmem:[#allocation4 + $0x190] sm:$0xff]
          %v6721 = vld [vmem:[#allocation4 + $0x198] sm:$0xff]
          %v6722 = vld [vmem:[#allocation4 + $0x1a0] sm:$0xff]
          %v6723 = vld [vmem:[#allocation4 + $0x1a8] sm:$0xff]
          %v6724 = vld [vmem:[#allocation4 + $0x1b0] sm:$0xff]
          %v6725 = vld [vmem:[#allocation4 + $0x1b8] sm:$0xff]
          %v6726 = vadd.f32 %v6670, %v6671
          %v6727 = vadd.f32 %v6726, %v6672
          %v6728 = vsel %vm2114, %v6673, 0.0
          %v6729 = vadd.f32 %v6727, %v6728
          %v6730 = vadd.f32 %v6729, %v6674
          %v6731 = vadd.f32 %v6730, %v6675
          %v6732 = vadd.f32 %v6731, %v6676
          %v6733 = vsel %vm2114, %v6677, 0.0
          %v6734 = vadd.f32 %v6732, %v6733
          %v6735 = vadd.f32 %v6734, %v6678
          %v6736 = vadd.f32 %v6735, %v6679
          %v6737 = vadd.f32 %v6736, %v6680
          %v6738 = vsel %vm2114, %v6681, 0.0
          %v6739 = vadd.f32 %v6737, %v6738
          %v6740 = vadd.f32 %v6739, %v6682
          %v6741 = vadd.f32 %v6740, %v6683
          %v6742 = vadd.f32 %v6741, %v6684
          %v6743 = vsel %vm2114, %v6685, 0.0
          %v6744 = vadd.f32 %v6742, %v6743
          %v6745 = vadd.f32 %v6744, %v6686
          %v6746 = vadd.f32 %v6745, %v6687
          %v6747 = vadd.f32 %v6746, %v6688
          %v6748 = vsel %vm2114, %v6689, 0.0
          %v6749 = vadd.f32 %v6747, %v6748
          %v6750 = vadd.f32 %v6749, %v6690
          %v6751 = vadd.f32 %v6750, %v6691
          %v6752 = vadd.f32 %v6751, %v6692
          %v6753 = vsel %vm2114, %v6693, 0.0
          %v6754 = vadd.f32 %v6752, %v6753
          %v6755 = vadd.f32 %v6754, %v6694
          %v6756 = vadd.f32 %v6755, %v6695
          %v6757 = vadd.f32 %v6756, %v6696
          %v6758 = vsel %vm2114, %v6697, 0.0
          %v6759 = vadd.f32 %v6757, %v6758
          %v6760 = vadd.f32 %v6759, %v6698
          %v6761 = vadd.f32 %v6760, %v6699
          %v6762 = vadd.f32 %v6761, %v6700
          %v6763 = vsel %vm2114, %v6701, 0.0
          %v6764 = vadd.f32 %v6762, %v6763
          %v6765 = vadd.f32 %v6764, %v6702
          %v6766 = vadd.f32 %v6765, %v6703
          %v6767 = vadd.f32 %v6766, %v6704
          %v6768 = vsel %vm2114, %v6705, 0.0
          %v6769 = vadd.f32 %v6767, %v6768
          %v6770 = vadd.f32 %v6769, %v6706
          %v6771 = vadd.f32 %v6770, %v6707
          %v6772 = vadd.f32 %v6771, %v6708
          %v6773 = vsel %vm2114, %v6709, 0.0
          %v6774 = vadd.f32 %v6772, %v6773
          %v6775 = vadd.f32 %v6774, %v6710
          %v6776 = vadd.f32 %v6775, %v6711
          %v6777 = vadd.f32 %v6776, %v6712
          %v6778 = vsel %vm2114, %v6713, 0.0
          %v6779 = vadd.f32 %v6777, %v6778
          %v6780 = vadd.f32 %v6779, %v6714
          %v6781 = vadd.f32 %v6780, %v6715
          %v6782 = vadd.f32 %v6781, %v6716
          %v6783 = vsel %vm2114, %v6717, 0.0
          %v6784 = vadd.f32 %v6782, %v6783
          %v6785 = vadd.f32 %v6784, %v6718
          %v6786 = vadd.f32 %v6785, %v6719
          %v6787 = vadd.f32 %v6786, %v6720
          %v6788 = vsel %vm2114, %v6721, 0.0
          %v6789 = vadd.f32 %v6787, %v6788
          %v6790 = vadd.f32 %v6789, %v6722
          %v6791 = vadd.f32 %v6790, %v6723
          %v6792 = vadd.f32 %v6791, %v6724
          %v6793 = vsel %vm2114, %v6725, 0.0
          %v6794 = vadd.f32 %v6792, %v6793
          %6795 = vadd.xlane.f32.xlu0 %v6794
          %v6796 = vpop.xlane.xlu0 %6795
          %v6797 = vrot.slane %v6796, 4
          %v6798 = vadd.f32 %v6796, %v6797
          %v6799 = vrot.slane %v6798, 2
          %v6800 = vadd.f32 %v6798, %v6799
          %v6801 = vrot.slane %v6800, 1
          %v6802 = vadd.f32 %v6800, %v6801
          %s6803 = vtos %v6802
          %s6804 = sadd.f32 %s6803, %s5526
          %v6805 = vld [vmem:[#allocation5] sm:$0xff]
          %v6806 = vld [vmem:[#allocation5 + $0x8] sm:$0xff]
          %v6807 = vld [vmem:[#allocation5 + $0x10] sm:$0xff]
          %v6808 = vld [vmem:[#allocation5 + $0x18] sm:$0xff]
          %v6809 = vld [vmem:[#allocation5 + $0x20] sm:$0xff]
          %v6810 = vld [vmem:[#allocation5 + $0x28] sm:$0xff]
          %v6811 = vld [vmem:[#allocation5 + $0x30] sm:$0xff]
          %v6812 = vld [vmem:[#allocation5 + $0x38] sm:$0xff]
          %v6813 = vld [vmem:[#allocation5 + $0x40] sm:$0xff]
          %v6814 = vld [vmem:[#allocation5 + $0x48] sm:$0xff]
          %v6815 = vld [vmem:[#allocation5 + $0x50] sm:$0xff]
          %v6816 = vld [vmem:[#allocation5 + $0x58] sm:$0xff]
          %v6817 = vld [vmem:[#allocation5 + $0x60] sm:$0xff]
          %v6818 = vld [vmem:[#allocation5 + $0x68] sm:$0xff]
          %v6819 = vld [vmem:[#allocation5 + $0x70] sm:$0xff]
          %v6820 = vld [vmem:[#allocation5 + $0x78] sm:$0xff]
          %v6821 = vld [vmem:[#allocation5 + $0x80] sm:$0xff]
          %v6822 = vld [vmem:[#allocation5 + $0x88] sm:$0xff]
          %v6823 = vld [vmem:[#allocation5 + $0x90] sm:$0xff]
          %v6824 = vld [vmem:[#allocation5 + $0x98] sm:$0xff]
          %v6825 = vld [vmem:[#allocation5 + $0xa0] sm:$0xff]
          %v6826 = vld [vmem:[#allocation5 + $0xa8] sm:$0xff]
          %v6827 = vld [vmem:[#allocation5 + $0xb0] sm:$0xff]
          %v6828 = vld [vmem:[#allocation5 + $0xb8] sm:$0xff]
          %v6829 = vld [vmem:[#allocation5 + $0xc0] sm:$0xff]
          %v6830 = vld [vmem:[#allocation5 + $0xc8] sm:$0xff]
          %v6831 = vld [vmem:[#allocation5 + $0xd0] sm:$0xff]
          %v6832 = vld [vmem:[#allocation5 + $0xd8] sm:$0xff]
          %v6833 = vld [vmem:[#allocation5 + $0xe0] sm:$0xff]
          %v6834 = vld [vmem:[#allocation5 + $0xe8] sm:$0xff]
          %v6835 = vld [vmem:[#allocation5 + $0xf0] sm:$0xff]
          %v6836 = vld [vmem:[#allocation5 + $0xf8] sm:$0xff]
          %v6837 = vld [vmem:[#allocation5 + $0x100] sm:$0xff]
          %v6838 = vld [vmem:[#allocation5 + $0x108] sm:$0xff]
          %v6839 = vld [vmem:[#allocation5 + $0x110] sm:$0xff]
          %v6840 = vld [vmem:[#allocation5 + $0x118] sm:$0xff]
          %v6841 = vld [vmem:[#allocation5 + $0x120] sm:$0xff]
          %v6842 = vld [vmem:[#allocation5 + $0x128] sm:$0xff]
          %v6843 = vld [vmem:[#allocation5 + $0x130] sm:$0xff]
          %v6844 = vld [vmem:[#allocation5 + $0x138] sm:$0xff]
          %v6845 = vld [vmem:[#allocation5 + $0x140] sm:$0xff]
          %v6846 = vld [vmem:[#allocation5 + $0x148] sm:$0xff]
          %v6847 = vld [vmem:[#allocation5 + $0x150] sm:$0xff]
          %v6848 = vld [vmem:[#allocation5 + $0x158] sm:$0xff]
          %v6849 = vld [vmem:[#allocation5 + $0x160] sm:$0xff]
          %v6850 = vld [vmem:[#allocation5 + $0x168] sm:$0xff]
          %v6851 = vld [vmem:[#allocation5 + $0x170] sm:$0xff]
          %v6852 = vld [vmem:[#allocation5 + $0x178] sm:$0xff]
          %v6853 = vld [vmem:[#allocation5 + $0x180] sm:$0xff]
          %v6854 = vld [vmem:[#allocation5 + $0x188] sm:$0xff]
          %v6855 = vld [vmem:[#allocation5 + $0x190] sm:$0xff]
          %v6856 = vld [vmem:[#allocation5 + $0x198] sm:$0xff]
          %v6857 = vld [vmem:[#allocation5 + $0x1a0] sm:$0xff]
          %v6858 = vld [vmem:[#allocation5 + $0x1a8] sm:$0xff]
          %v6859 = vld [vmem:[#allocation5 + $0x1b0] sm:$0xff]
          %v6860 = vld [vmem:[#allocation5 + $0x1b8] sm:$0xff]
          %v6861 = vadd.f32 %v6805, %v6806
          %v6862 = vadd.f32 %v6861, %v6807
          %v6863 = vsel %vm2114, %v6808, 0.0
          %v6864 = vadd.f32 %v6862, %v6863
          %v6865 = vadd.f32 %v6864, %v6809
          %v6866 = vadd.f32 %v6865, %v6810
          %v6867 = vadd.f32 %v6866, %v6811
          %v6868 = vsel %vm2114, %v6812, 0.0
          %v6869 = vadd.f32 %v6867, %v6868
          %v6870 = vadd.f32 %v6869, %v6813
          %v6871 = vadd.f32 %v6870, %v6814
          %v6872 = vadd.f32 %v6871, %v6815
          %v6873 = vsel %vm2114, %v6816, 0.0
          %v6874 = vadd.f32 %v6872, %v6873
          %v6875 = vadd.f32 %v6874, %v6817
          %v6876 = vadd.f32 %v6875, %v6818
          %v6877 = vadd.f32 %v6876, %v6819
          %v6878 = vsel %vm2114, %v6820, 0.0
          %v6879 = vadd.f32 %v6877, %v6878
          %v6880 = vadd.f32 %v6879, %v6821
          %v6881 = vadd.f32 %v6880, %v6822
          %v6882 = vadd.f32 %v6881, %v6823
          %v6883 = vsel %vm2114, %v6824, 0.0
          %v6884 = vadd.f32 %v6882, %v6883
          %v6885 = vadd.f32 %v6884, %v6825
          %v6886 = vadd.f32 %v6885, %v6826
          %v6887 = vadd.f32 %v6886, %v6827
          %v6888 = vsel %vm2114, %v6828, 0.0
          %v6889 = vadd.f32 %v6887, %v6888
          %v6890 = vadd.f32 %v6889, %v6829
          %v6891 = vadd.f32 %v6890, %v6830
          %v6892 = vadd.f32 %v6891, %v6831
          %v6893 = vsel %vm2114, %v6832, 0.0
          %v6894 = vadd.f32 %v6892, %v6893
          %v6895 = vadd.f32 %v6894, %v6833
          %v6896 = vadd.f32 %v6895, %v6834
          %v6897 = vadd.f32 %v6896, %v6835
          %v6898 = vsel %vm2114, %v6836, 0.0
          %v6899 = vadd.f32 %v6897, %v6898
          %v6900 = vadd.f32 %v6899, %v6837
          %v6901 = vadd.f32 %v6900, %v6838
          %v6902 = vadd.f32 %v6901, %v6839
          %v6903 = vsel %vm2114, %v6840, 0.0
          %v6904 = vadd.f32 %v6902, %v6903
          %v6905 = vadd.f32 %v6904, %v6841
          %v6906 = vadd.f32 %v6905, %v6842
          %v6907 = vadd.f32 %v6906, %v6843
          %v6908 = vsel %vm2114, %v6844, 0.0
          %v6909 = vadd.f32 %v6907, %v6908
          %v6910 = vadd.f32 %v6909, %v6845
          %v6911 = vadd.f32 %v6910, %v6846
          %v6912 = vadd.f32 %v6911, %v6847
          %v6913 = vsel %vm2114, %v6848, 0.0
          %v6914 = vadd.f32 %v6912, %v6913
          %v6915 = vadd.f32 %v6914, %v6849
          %v6916 = vadd.f32 %v6915, %v6850
          %v6917 = vadd.f32 %v6916, %v6851
          %v6918 = vsel %vm2114, %v6852, 0.0
          %v6919 = vadd.f32 %v6917, %v6918
          %v6920 = vadd.f32 %v6919, %v6853
          %v6921 = vadd.f32 %v6920, %v6854
          %v6922 = vadd.f32 %v6921, %v6855
          %v6923 = vsel %vm2114, %v6856, 0.0
          %v6924 = vadd.f32 %v6922, %v6923
          %v6925 = vadd.f32 %v6924, %v6857
          %v6926 = vadd.f32 %v6925, %v6858
          %v6927 = vadd.f32 %v6926, %v6859
          %v6928 = vsel %vm2114, %v6860, 0.0
          %v6929 = vadd.f32 %v6927, %v6928
          %6930 = vadd.xlane.f32.xlu0 %v6929
          %v6931 = vpop.xlane.xlu0 %6930
          %v6932 = vrot.slane %v6931, 4
          %v6933 = vadd.f32 %v6931, %v6932
          %v6934 = vrot.slane %v6933, 2
          %v6935 = vadd.f32 %v6933, %v6934
          %v6936 = vrot.slane %v6935, 1
          %v6937 = vadd.f32 %v6935, %v6936
          %s6938 = vtos %v6937
          %s6939 = sadd.f32 %s6938, %s5935
          %s6940 = smul.f32 %s6804, 0.5
          %s6941 = ssub.f32 -439629.38, %s6940
          %s6942 = scalar_lea.smem [#allocation9], 0
          %6943 = sst [smem:[%s6942]] %s6941
          %s6944 = ssub.f32 -439629.38, %s6939
          %s6945 = scalar_lea.smem [#allocation9], 1
          %6946 = sst [smem:[%s6945]] %s6944
        $region68: #{bayes_net_forward.1} parent=55 // pred_fallthru
          _
        // Predicated region
        $region69: #{bayes_net_forward.1} parent=55 // pred_check
          %p6947 = pneg %p268
        $region70: #{bayes_net_forward.1} parent=55 // pred_check_branch
          %6949 = sbr.rel (%p6947) target = $region72
        $region71: #{bayes_net_forward.1} parent=55 // pred_region
          %s6951 = ssub.s32 32, 32
          %6952 = vsyncadd [#allocation7], %s6951
          %s6954 = sshll.u32 [#allocation6], 4
          %s6955 = int_to_ptr.vmem [resolvable:$true] %s6954
          %6957 = dma.vmem_to_hbm [thread:$0]  %s6955, 32, %s9, [#allocation7]
        $region72: #{bayes_net_forward.1} parent=55 // pred_fallthru
          _
        // Predicated region
        $region73: #{bayes_net_forward.1} parent=55 // pred_check
          %p6958 = pneg %p289
        $region74: #{bayes_net_forward.1} parent=55 // pred_check_branch
          %6960 = sbr.rel (%p6958) target = $region76
        $region75: #{bayes_net_forward.1} parent=55 // pred_region
          %s6962 = ssub.s32 16, 16
          %6963 = vsyncadd [#allocation8], %s6962
          %s6965 = sshll.u32 %s10, 4
          %s6966 = int_to_ptr.vmem [resolvable:$true] %s6965
          %6968 = dma.smem_to_vmem [#allocation9], 16, %s6966, [#allocation8]
        $region76: #{bayes_net_forward.1} parent=55 // pred_fallthru
          _
        // Predicated region
        $region77: #{bayes_net_forward.1} parent=55 // pred_check
          %p6969 = pneg %p268
        $region78: #{bayes_net_forward.1} parent=55 // pred_check_branch
          %6971 = sbr.rel (%p6969) target = $region80
        $region79: #{bayes_net_forward.1} parent=55 // pred_region
          %6972 = dma.done [#allocation7], 32
        $region80: #{bayes_net_forward.1} parent=55 // pred_fallthru
          _
        // Predicated region
        $region81: #{bayes_net_forward.1} parent=55 // pred_check
          %p6973 = pneg %p289
        $region82: #{bayes_net_forward.1} parent=55 // pred_check_branch
          %6975 = sbr.rel (%p6973) target = $region84
        $region83: #{bayes_net_forward.1} parent=55 // pred_region
          %6976 = dma.done [#allocation8], 16
        $region84: #{bayes_net_forward.1} parent=55 // pred_fallthru
          _
        %6977 = sfence
      $region56: #{bayes_net_forward.1} parent=5 // pred_fallthru
        _
      %p6978 = scmp.le.s32.totalorder 2, %s19
      // Predicated region
      $region85: #{bayes_net_forward.1} parent=5 // pred_check
        %p6979 = pneg %p6978
      $region86: #{bayes_net_forward.1} parent=5 // pred_check_branch
        %6981 = sbr.rel (%p6979) target = $region88
      $region87: #{bayes_net_forward.1} parent=5 // pred_region
        %s6982 = ssub.s32 %s19, 2
      $region88: #{bayes_net_forward.1} parent=5 // pred_fallthru
        _
    $region6: #{bayes_net_forward.1} parent=1 // loop_footer
      %s23 = sadd.s32 1, %s19
    $region7: #{bayes_net_forward.1} parent=1 // loop_footer_branch
      %18 = sbr.rel target = $region3
    $region8: #{bayes_net_forward.1} parent=1 // loop_exit
      _
    %6983 = vsyncpa [#allocation7], 1
    %s6984 = scalar_lea.sflag [#allocation7], 1
    %6985 = vsyncpa %s6984, 1
    %6986 = vsyncpa [#allocation8], 1
    %s6987 = scalar_lea.sflag [#allocation8], 1
    %6988 = vsyncpa %s6987, 1

</llo_original>
